<compile_context>
chip_gen: v6e
topology: v6e:2x2x1
jax: 0.10.0
libtpu: 0.0.40
codegen_flags: <defaults>
</compile_context>

<pallas_src>
import functools

import jax
import jax.numpy as jnp
from jax import lax
from jax.experimental import pallas as pl
from jax.experimental.pallas import tpu as pltpu

# ---- EEGNetWithDAT hyper-parameters (from the PyTorch __init__) ----
F1, D, F2 = 16, 2, 32
SR = 250
K1 = SR // 2            # temporal kernel width = 125
KP = 128                # taps zero-padded to 128 -> MXU-friendly contraction dim
P1, P2 = 4, 8           # avg-pool widths
T1 = 16                 # separable (depthwise) kernel width
NUM_CH = 4              # shape[2] = number of EEG electrodes (small)
T = 1125                # time samples; gives F2*33 flatten, matching the hardcoded Linear
C2 = F1 * D             # 32
KDIM = NUM_CH * KP      # 512 = combined contraction dimension
T_P1 = T // P1          # 281
T_SEP = T_P1 - T1 + 1   # 266
T_P2 = T_SEP // P2      # 33
NUM_CLASSES = 4
NUM_DOMAINS = 2
NUM_FEAT = F2 * T_P2    # 1056
HID = 128
BN_EPS = 1e-5


def _elu(z):
    # ELU(alpha=1), f32 path (v5e VPU/EUP have no bf16)
    return jnp.where(z > 0, z, jnp.exp(jnp.minimum(z, 0.0)) - 1.0)


# --------------------------- Pallas kernels ---------------------------------

def feature_kernel(x_ref, w_ref, b12_ref, p4_ref, wd_ref, wp_ref, b3_ref,
                   p8_ref, feat_ref, *, nb):
    """Processes `nb` batch elements per grid step.

    x_ref    : (nb, KDIM, T)      bf16  im2col windows (temporal taps zero-padded to 128)
    w_ref    : (C2, KDIM)         bf16  combined temporal+spatial conv weight (BN1+BN2 folded)
    b12_ref  : (C2, 1)            f32   fused bias for temporal+spatial+BN stages
    p4_ref   : (T_P1*P1, T_P1)    bf16  AvgPool2d(1,4) as matmul
    wd_ref   : (C2, T1)           f32   depthwise (1,16) kernel
    wp_ref   : (F2, C2)           f32   pointwise 1x1 kernel with BN3 scale folded
    b3_ref   : (F2, 1)            f32   BN3 bias
    p8_ref   : (T_P2*P2, T_P2)    bf16  AvgPool2d(1,8) as matmul
    feat_ref : (nb, F2, T_P2)     f32
    """
    w = w_ref[...]
    wd = wd_ref[...]
    wp = wp_ref[...]
    for s in range(nb):                                   # static unroll over samples in the block
        # temporal conv + BN1 + grouped spatial conv + BN2 as ONE MXU matmul
        z2 = jnp.dot(w, x_ref[s],
                     preferred_element_type=jnp.float32) + b12_ref[...]   # (C2, T)
        e2 = _elu(z2)
        # AvgPool2d(1, 4) as MXU matmul
        p2 = jnp.dot(e2[:, :T_P1 * P1].astype(jnp.bfloat16), p4_ref[...],
                     preferred_element_type=jnp.float32)                  # (C2, T_P1)
        # depthwise conv (1,16), valid -- tiny, stays on the VPU/XLU
        acc3 = wd[:, 0:1] * p2[:, 0:T_SEP]
        for k in range(1, T1):
            acc3 = acc3 + wd[:, k:k + 1] * p2[:, k:k + T_SEP]
        # pointwise 1x1 conv with BN3 folded (MXU)
        z3 = jnp.dot(wp, acc3, preferred_element_type=jnp.float32) + b3_ref[...]
        e3 = _elu(z3)
        # AvgPool2d(1, 8) as MXU matmul
        feat_ref[s] = jnp.dot(e3[:, :T_P2 * P2].astype(jnp.bfloat16), p8_ref[...],
                              preferred_element_type=jnp.float32)         # (F2, T_P2)


def head_kernel(feat_ref, wh_ref, bh_ref, w2T_ref, b2_ref, task_ref, dom_ref):
    """Task classifier + domain discriminator, whole batch.

    Task Linear(1056->4) and domain hidden Linear(1056->128) are fused into one
    (1056, 132) matmul, then sliced.
    """
    f = feat_ref[...]                                     # (B, NUM_FEAT)
    u = jnp.dot(f, wh_ref[...], preferred_element_type=jnp.float32) + bh_ref[...]   # (B, 132)
    task_ref[...] = u[:, :NUM_CLASSES]
    h = jnp.maximum(u[:, NUM_CLASSES:], 0.0)              # ReLU, (B, 128)
    logits = (jnp.dot(h, w2T_ref[...], preferred_element_type=jnp.float32)
              + b2_ref[...])                              # (B, NUM_DOMAINS)
    m = jnp.max(logits, axis=1, keepdims=True)
    e = jnp.exp(logits - m)
    dom_ref[...] = e / jnp.sum(e, axis=1, keepdims=True)  # Softmax(dim=1)


# --------------------------- wrappers ----------------------------------------

def feature_extractor(x_win, p, nb):
    b_pad = x_win.shape[0]
    consts = [p["w_conv"], p["b12"], p["p4"], p["wd"], p["wp_f"], p["b3"], p["p8"]]
    in_specs = [pl.BlockSpec((nb, KDIM, T), lambda b: (b, 0, 0))]
    in_specs += [pl.BlockSpec(a.shape, (lambda n: (lambda b: (0,) * n))(a.ndim))
                 for a in consts]
    return pl.pallas_call(
        functools.partial(feature_kernel, nb=nb),
        out_shape=jax.ShapeDtypeStruct((b_pad, C2, T_P2), jnp.float32),
        grid_spec=pltpu.PrefetchScalarGridSpec(
            num_scalar_prefetch=0,
            grid=(b_pad // nb,),
            in_specs=in_specs,
            out_specs=pl.BlockSpec((nb, C2, T_P2), lambda b: (b, 0, 0)),
        ),
        # batch axis is fully independent -> shard across TensorCores on v7x
        compiler_params=pltpu.CompilerParams(dimension_semantics=("parallel",)),
    )(x_win, *consts)


def heads(feat_flat, p):
    b = feat_flat.shape[0]
    vmem = pl.BlockSpec(memory_space=pltpu.MemorySpace.VMEM)
    return pl.pallas_call(
        head_kernel,
        out_shape=(jax.ShapeDtypeStruct((b, NUM_CLASSES), jnp.float32),
                   jax.ShapeDtypeStruct((b, NUM_DOMAINS), jnp.float32)),
        in_specs=[vmem] * 5,
        out_specs=(vmem, vmem),
    )(feat_flat, p["wh_T"], p["bh"], p["w2_T"], p["b2"])


def _build_windows(x):
    """x: (B, NUM_CH, T) f32 -> im2col windows (B, NUM_CH*KP, T) bf16 (built in XLA)."""
    b = x.shape[0]
    xp = jnp.pad(x, ((0, 0), (0, 0), (K1 // 2, K1 - 1 - K1 // 2)))        # 'same' padding
    cols = [lax.slice_in_dim(xp, k, k + T, axis=2) for k in range(K1)]    # each (B, NUM_CH, T)
    win = jnp.stack(cols, axis=2)                                         # (B, NUM_CH, K1, T)
    win = jnp.pad(win, ((0, 0), (0, 0), (0, KP - K1), (0, 0)))            # zero taps 125..127
    return win.reshape(b, KDIM, T).astype(jnp.bfloat16)


def eegnet_with_dat_forward(x_nchw, params, lambda_=0.1):
    b = x_nchw.shape[0]
    x = x_nchw[:, 0]                                      # (B, NUM_CH, T)
    nb = min(b, 4)                                        # samples per grid step
    b_pad = ((b + nb - 1) // nb) * nb
    x_win = _build_windows(x)                             # (B, 512, 1125) bf16
    if b_pad != b:
        x_win = jnp.pad(x_win, ((0, b_pad - b), (0, 0), (0, 0)))
    feat = feature_extractor(x_win, params, nb)[:b]       # (B, 32, 33)
    feat_flat = feat.reshape(b, NUM_FEAT)                 # nn.Flatten order: c*33 + t
    # GradientReversal is identity in the forward pass (lambda_ only scales gradients).
    task, dom = heads(feat_flat, params)
    return task, dom


# --------------------------- deterministic params -----------------------------

def _renorm_rows(w, max_norm):
    """torch.renorm(w, p=2, dim=0, maxnorm=max_norm) equivalent."""
    norm = jnp.sqrt(jnp.sum(w * w, axis=tuple(range(1, w.ndim)), keepdims=True))
    factor = jnp.where(norm > max_norm, max_norm / (norm + 1e-7), 1.0)
    return w * factor


def _bn_affine(gamma, beta, mean, var):
    scale = gamma / jnp.sqrt(var + BN_EPS)
    return scale, beta - mean * scale


def init_params(key):
    ks = jax.random.split(key, 20)
    f32 = jnp.float32

    wt = jax.random.normal(ks[0], (F1, K1), f32) * 0.1
    s1, o1 = _bn_affine(1.0 + 0.1 * jax.random.normal(ks[1], (F1,), f32),
                        0.1 * jax.random.normal(ks[2], (F1,), f32),
                        0.1 * jax.random.normal(ks[3], (F1,), f32),
                        1.0 + 0.1 * jax.random.uniform(ks[4], (F1,), f32))

    ws = _renorm_rows(jax.random.normal(ks[5], (C2, NUM_CH), f32) * 0.3, 1.0)  # Conv2dWithConstraint
    s2, o2 = _bn_affine(1.0 + 0.1 * jax.random.normal(ks[6], (C2,), f32),
                        0.1 * jax.random.normal(ks[7], (C2,), f32),
                        0.1 * jax.random.normal(ks[8], (C2,), f32),
                        1.0 + 0.1 * jax.random.uniform(ks[9], (C2,), f32))

    wd = jax.random.normal(ks[10], (C2, T1), f32) * 0.1
    wp = jax.random.normal(ks[11], (F2, C2), f32) * 0.1
    s3, o3 = _bn_affine(1.0 + 0.1 * jax.random.normal(ks[12], (F2,), f32),
                        0.1 * jax.random.normal(ks[13], (F2,), f32),
                        0.1 * jax.random.normal(ks[14], (F2,), f32),
                        1.0 + 0.1 * jax.random.uniform(ks[15], (F2,), f32))

    wtask = _renorm_rows(jax.random.normal(ks[16], (NUM_CLASSES, NUM_FEAT), f32) * 0.05,
                         0.25)                                               # LinearWithConstraint
    btask = 0.01 * jax.random.normal(ks[17], (NUM_CLASSES,), f32)
    w1 = jax.random.normal(ks[18], (HID, NUM_FEAT), f32) * 0.05
    b1 = jnp.zeros((HID,), f32)
    w2 = jax.random.normal(ks[19], (NUM_DOMAINS, HID), f32) * 0.1
    b2 = jnp.zeros((NUM_DOMAINS,), f32)

    # --- fold BN1 + BN2 into one combined temporal+spatial conv weight + bias ---
    wt_rep = jnp.repeat(wt, D, axis=0)          # (C2, K1); output channel c uses filter c // D
    s1_rep = jnp.repeat(s1, D)
    o1_rep = jnp.repeat(o1, D)
    w_comb = (s2[:, None, None] * ws[:, :, None]) \
             * (s1_rep[:, None] * wt_rep)[:, None, :]        # (C2, NUM_CH, K1)
    w_comb = jnp.pad(w_comb, ((0, 0), (0, 0), (0, KP - K1)))  # zero-pad taps to 128
    w_conv = w_comb.reshape(C2, KDIM).astype(jnp.bfloat16)    # (32, 512)
    b12 = (s2 * o1_rep * jnp.sum(ws, axis=1) + o2)[:, None]   # (32, 1)

    # fold BN3 scale into the pointwise 1x1 conv
    wp_f = s3[:, None] * wp                                   # (32, 32)
    b3 = o3[:, None]                                          # (32, 1)

    # average-pooling matrices (pooling implemented as MXU matmuls; 1/4, 1/8 exact in bf16)
    p4 = (((jnp.arange(T_P1 * P1)[:, None] // P1) == jnp.arange(T_P1)[None, :])
          .astype(f32) / P1).astype(jnp.bfloat16)
    p8 = (((jnp.arange(T_P2 * P2)[:, None] // P2) == jnp.arange(T_P2)[None, :])
          .astype(f32) / P2).astype(jnp.bfloat16)

    # heads: fuse task (1056->4) and domain hidden (1056->128) into one (1056,132) matmul
    wh_T = jnp.concatenate([wtask.T, w1.T], axis=1)           # (1056, 132)
    bh = jnp.concatenate([btask, b1])[None, :]                # (1, 132)

    return dict(
        w_conv=w_conv, b12=b12, p4=p4, wd=wd, wp_f=wp_f, b3=b3, p8=p8,
        wh_T=wh_T, bh=bh, w2_T=w2.T, b2=b2[None, :],
    )


# --------------------------- main ---------------------------------------------

if __name__ == "__main__":
    B = 2
    key = jax.random.PRNGKey(0)
    kx, kp = jax.random.split(key)
    # PyTorch NCHW input: (B, 1, num_ch, T)
    x_nchw = jax.random.normal(kx, (B, 1, NUM_CH, T), jnp.float32)
    params = init_params(kp)

    fwd = jax.jit(eegnet_with_dat_forward)
    task, dom = fwd(x_nchw, params)
    jax.block_until_ready((task, dom))

    assert task.shape == (B, NUM_CLASSES), task.shape
    assert dom.shape == (B, NUM_DOMAINS), dom.shape
    assert bool(jnp.all(jnp.isfinite(task))) and bool(jnp.all(jnp.isfinite(dom)))
    assert bool(jnp.allclose(jnp.sum(dom, axis=1), 1.0, atol=1e-5))
    print("KERNEL_OK")
</pallas_src>

<mosaic_0001>
module attributes {stable_mosaic.version = 11 : i64} {
  func.func @feature_kernel(%arg0: i32, %arg1: memref<2x512x1125xbf16, #tpu.memory_space<vmem>>, %arg2: memref<32x512xbf16, #tpu.memory_space<vmem>>, %arg3: memref<32x1xf32, #tpu.memory_space<vmem>>, %arg4: memref<1124x281xbf16, #tpu.memory_space<vmem>>, %arg5: memref<32x16xf32, #tpu.memory_space<vmem>>, %arg6: memref<32x32xf32, #tpu.memory_space<vmem>>, %arg7: memref<32x1xf32, #tpu.memory_space<vmem>>, %arg8: memref<264x33xbf16, #tpu.memory_space<vmem>>, %arg9: memref<2x32x33xf32, #tpu.memory_space<vmem>>) attributes {dimension_semantics = [#tpu.dimension_semantics<parallel>], iteration_bounds = array<i64: 1>, scalar_prefetch = 0 : i64, scratch_operands = 0 : i64, tpu.core_type = #tpu.core_type<tc>, window_params = [{transform_indices = @transform_0, window_bounds = array<i64: 2, 512, 1125>}, {pipeline_mode = #tpu.pipeline_mode<synchronous>, transform_indices = @transform_1, window_bounds = array<i64: 32, 512>}, {pipeline_mode = #tpu.pipeline_mode<synchronous>, transform_indices = @transform_2, window_bounds = array<i64: 32, 1>}, {pipeline_mode = #tpu.pipeline_mode<synchronous>, transform_indices = @transform_3, window_bounds = array<i64: 1124, 281>}, {pipeline_mode = #tpu.pipeline_mode<synchronous>, transform_indices = @transform_4, window_bounds = array<i64: 32, 16>}, {pipeline_mode = #tpu.pipeline_mode<synchronous>, transform_indices = @transform_5, window_bounds = array<i64: 32, 32>}, {pipeline_mode = #tpu.pipeline_mode<synchronous>, transform_indices = @transform_6, window_bounds = array<i64: 32, 1>}, {pipeline_mode = #tpu.pipeline_mode<synchronous>, transform_indices = @transform_7, window_bounds = array<i64: 264, 33>}, {transform_indices = @transform_8, window_bounds = array<i64: 2, 32, 33>}]} {
    %c0 = arith.constant 0 : index
    %c0_0 = arith.constant 0 : index
    %0 = vector.load %arg2[%c0, %c0_0] : memref<32x512xbf16, #tpu.memory_space<vmem>>, vector<32x512xbf16>
    %c0_1 = arith.constant 0 : index
    %c0_2 = arith.constant 0 : index
    %1 = vector.load %arg5[%c0_1, %c0_2] : memref<32x16xf32, #tpu.memory_space<vmem>>, vector<32x16xf32>
    %c0_3 = arith.constant 0 : index
    %c0_4 = arith.constant 0 : index
    %2 = vector.load %arg6[%c0_3, %c0_4] : memref<32x32xf32, #tpu.memory_space<vmem>>, vector<32x32xf32>
    %c0_5 = arith.constant 0 : index
    %c0_6 = arith.constant 0 : index
    %c0_7 = arith.constant 0 : index
    %3 = vector.load %arg1[%c0_5, %c0_6, %c0_7] : memref<2x512x1125xbf16, #tpu.memory_space<vmem>>, vector<1x512x1125xbf16>
    %4 = vector.shape_cast %3 : vector<1x512x1125xbf16> to vector<512x1125xbf16>
    %cst = arith.constant dense<0.000000e+00> : vector<32x1125xf32>
    %5 = tpu.matmul %0, %4, %cst {dimension_numbers = #tpu.dot_dimension_numbers<[1], [0], [0], [1], [0, 0, 1, 1], [], []>} : vector<32x512xbf16>, vector<512x1125xbf16>, vector<32x1125xf32> -> vector<32x1125xf32>
    %c0_8 = arith.constant 0 : index
    %c0_9 = arith.constant 0 : index
    %6 = vector.load %arg3[%c0_8, %c0_9] : memref<32x1xf32, #tpu.memory_space<vmem>>, vector<32x1xf32>
    %7 = vector.broadcast %6 : vector<32x1xf32> to vector<32x1125xf32>
    %8 = arith.addf %5, %7 : vector<32x1125xf32>
    %cst_10 = arith.constant 0.000000e+00 : f32
    %9 = vector.broadcast %cst_10 : f32 to vector<32x1125xf32>
    %10 = arith.cmpf ogt, %8, %9 : vector<32x1125xf32>
    %cst_11 = arith.constant 0.000000e+00 : f32
    %11 = vector.broadcast %cst_11 : f32 to vector<32x1125xf32>
    %12 = arith.minimumf %8, %11 : vector<32x1125xf32>
    %13 = math.exp %12 : vector<32x1125xf32>
    %cst_12 = arith.constant 1.000000e+00 : f32
    %14 = vector.broadcast %cst_12 : f32 to vector<32x1125xf32>
    %15 = arith.subf %13, %14 : vector<32x1125xf32>
    %16 = arith.select %10, %8, %15 : vector<32x1125xi1>, vector<32x1125xf32>
    %17 = vector.extract_strided_slice %16 {offsets = [0, 0], sizes = [32, 1124], strides = [1, 1]} : vector<32x1125xf32> to vector<32x1124xf32>
    %18 = arith.truncf %17 : vector<32x1124xf32> to vector<32x1124xbf16>
    %c0_13 = arith.constant 0 : index
    %c0_14 = arith.constant 0 : index
    %19 = vector.load %arg4[%c0_13, %c0_14] : memref<1124x281xbf16, #tpu.memory_space<vmem>>, vector<1124x281xbf16>
    %cst_15 = arith.constant dense<0.000000e+00> : vector<32x281xf32>
    %20 = tpu.matmul %18, %19, %cst_15 {dimension_numbers = #tpu.dot_dimension_numbers<[1], [0], [0], [1], [0, 0, 1, 1], [], []>} : vector<32x1124xbf16>, vector<1124x281xbf16>, vector<32x281xf32> -> vector<32x281xf32>
    %21 = vector.extract_strided_slice %1 {offsets = [0, 0], sizes = [32, 1], strides = [1, 1]} : vector<32x16xf32> to vector<32x1xf32>
    %22 = vector.extract_strided_slice %20 {offsets = [0, 0], sizes = [32, 266], strides = [1, 1]} : vector<32x281xf32> to vector<32x266xf32>
    %23 = vector.broadcast %21 : vector<32x1xf32> to vector<32x266xf32>
    %24 = arith.mulf %23, %22 : vector<32x266xf32>
    %25 = vector.extract_strided_slice %1 {offsets = [0, 1], sizes = [32, 1], strides = [1, 1]} : vector<32x16xf32> to vector<32x1xf32>
    %26 = vector.extract_strided_slice %20 {offsets = [0, 1], sizes = [32, 266], strides = [1, 1]} : vector<32x281xf32> to vector<32x266xf32>
    %27 = vector.broadcast %25 : vector<32x1xf32> to vector<32x266xf32>
    %28 = arith.mulf %27, %26 : vector<32x266xf32>
    %29 = arith.addf %24, %28 : vector<32x266xf32>
    %30 = vector.extract_strided_slice %1 {offsets = [0, 2], sizes = [32, 1], strides = [1, 1]} : vector<32x16xf32> to vector<32x1xf32>
    %31 = vector.extract_strided_slice %20 {offsets = [0, 2], sizes = [32, 266], strides = [1, 1]} : vector<32x281xf32> to vector<32x266xf32>
    %32 = vector.broadcast %30 : vector<32x1xf32> to vector<32x266xf32>
    %33 = arith.mulf %32, %31 : vector<32x266xf32>
    %34 = arith.addf %29, %33 : vector<32x266xf32>
    %35 = vector.extract_strided_slice %1 {offsets = [0, 3], sizes = [32, 1], strides = [1, 1]} : vector<32x16xf32> to vector<32x1xf32>
    %36 = vector.extract_strided_slice %20 {offsets = [0, 3], sizes = [32, 266], strides = [1, 1]} : vector<32x281xf32> to vector<32x266xf32>
    %37 = vector.broadcast %35 : vector<32x1xf32> to vector<32x266xf32>
    %38 = arith.mulf %37, %36 : vector<32x266xf32>
    %39 = arith.addf %34, %38 : vector<32x266xf32>
    %40 = vector.extract_strided_slice %1 {offsets = [0, 4], sizes = [32, 1], strides = [1, 1]} : vector<32x16xf32> to vector<32x1xf32>
    %41 = vector.extract_strided_slice %20 {offsets = [0, 4], sizes = [32, 266], strides = [1, 1]} : vector<32x281xf32> to vector<32x266xf32>
    %42 = vector.broadcast %40 : vector<32x1xf32> to vector<32x266xf32>
    %43 = arith.mulf %42, %41 : vector<32x266xf32>
    %44 = arith.addf %39, %43 : vector<32x266xf32>
    %45 = vector.extract_strided_slice %1 {offsets = [0, 5], sizes = [32, 1], strides = [1, 1]} : vector<32x16xf32> to vector<32x1xf32>
    %46 = vector.extract_strided_slice %20 {offsets = [0, 5], sizes = [32, 266], strides = [1, 1]} : vector<32x281xf32> to vector<32x266xf32>
    %47 = vector.broadcast %45 : vector<32x1xf32> to vector<32x266xf32>
    %48 = arith.mulf %47, %46 : vector<32x266xf32>
    %49 = arith.addf %44, %48 : vector<32x266xf32>
    %50 = vector.extract_strided_slice %1 {offsets = [0, 6], sizes = [32, 1], strides = [1, 1]} : vector<32x16xf32> to vector<32x1xf32>
    %51 = vector.extract_strided_slice %20 {offsets = [0, 6], sizes = [32, 266], strides = [1, 1]} : vector<32x281xf32> to vector<32x266xf32>
    %52 = vector.broadcast %50 : vector<32x1xf32> to vector<32x266xf32>
    %53 = arith.mulf %52, %51 : vector<32x266xf32>
    %54 = arith.addf %49, %53 : vector<32x266xf32>
    %55 = vector.extract_strided_slice %1 {offsets = [0, 7], sizes = [32, 1], strides = [1, 1]} : vector<32x16xf32> to vector<32x1xf32>
    %56 = vector.extract_strided_slice %20 {offsets = [0, 7], sizes = [32, 266], strides = [1, 1]} : vector<32x281xf32> to vector<32x266xf32>
    %57 = vector.broadcast %55 : vector<32x1xf32> to vector<32x266xf32>
    %58 = arith.mulf %57, %56 : vector<32x266xf32>
    %59 = arith.addf %54, %58 : vector<32x266xf32>
    %60 = vector.extract_strided_slice %1 {offsets = [0, 8], sizes = [32, 1], strides = [1, 1]} : vector<32x16xf32> to vector<32x1xf32>
    %61 = vector.extract_strided_slice %20 {offsets = [0, 8], sizes = [32, 266], strides = [1, 1]} : vector<32x281xf32> to vector<32x266xf32>
    %62 = vector.broadcast %60 : vector<32x1xf32> to vector<32x266xf32>
    %63 = arith.mulf %62, %61 : vector<32x266xf32>
    %64 = arith.addf %59, %63 : vector<32x266xf32>
    %65 = vector.extract_strided_slice %1 {offsets = [0, 9], sizes = [32, 1], strides = [1, 1]} : vector<32x16xf32> to vector<32x1xf32>
    %66 = vector.extract_strided_slice %20 {offsets = [0, 9], sizes = [32, 266], strides = [1, 1]} : vector<32x281xf32> to vector<32x266xf32>
    %67 = vector.broadcast %65 : vector<32x1xf32> to vector<32x266xf32>
    %68 = arith.mulf %67, %66 : vector<32x266xf32>
    %69 = arith.addf %64, %68 : vector<32x266xf32>
    %70 = vector.extract_strided_slice %1 {offsets = [0, 10], sizes = [32, 1], strides = [1, 1]} : vector<32x16xf32> to vector<32x1xf32>
    %71 = vector.extract_strided_slice %20 {offsets = [0, 10], sizes = [32, 266], strides = [1, 1]} : vector<32x281xf32> to vector<32x266xf32>
    %72 = vector.broadcast %70 : vector<32x1xf32> to vector<32x266xf32>
    %73 = arith.mulf %72, %71 : vector<32x266xf32>
    %74 = arith.addf %69, %73 : vector<32x266xf32>
    %75 = vector.extract_strided_slice %1 {offsets = [0, 11], sizes = [32, 1], strides = [1, 1]} : vector<32x16xf32> to vector<32x1xf32>
    %76 = vector.extract_strided_slice %20 {offsets = [0, 11], sizes = [32, 266], strides = [1, 1]} : vector<32x281xf32> to vector<32x266xf32>
    %77 = vector.broadcast %75 : vector<32x1xf32> to vector<32x266xf32>
    %78 = arith.mulf %77, %76 : vector<32x266xf32>
    %79 = arith.addf %74, %78 : vector<32x266xf32>
    %80 = vector.extract_strided_slice %1 {offsets = [0, 12], sizes = [32, 1], strides = [1, 1]} : vector<32x16xf32> to vector<32x1xf32>
    %81 = vector.extract_strided_slice %20 {offsets = [0, 12], sizes = [32, 266], strides = [1, 1]} : vector<32x281xf32> to vector<32x266xf32>
    %82 = vector.broadcast %80 : vector<32x1xf32> to vector<32x266xf32>
    %83 = arith.mulf %82, %81 : vector<32x266xf32>
    %84 = arith.addf %79, %83 : vector<32x266xf32>
    %85 = vector.extract_strided_slice %1 {offsets = [0, 13], sizes = [32, 1], strides = [1, 1]} : vector<32x16xf32> to vector<32x1xf32>
    %86 = vector.extract_strided_slice %20 {offsets = [0, 13], sizes = [32, 266], strides = [1, 1]} : vector<32x281xf32> to vector<32x266xf32>
    %87 = vector.broadcast %85 : vector<32x1xf32> to vector<32x266xf32>
    %88 = arith.mulf %87, %86 : vector<32x266xf32>
    %89 = arith.addf %84, %88 : vector<32x266xf32>
    %90 = vector.extract_strided_slice %1 {offsets = [0, 14], sizes = [32, 1], strides = [1, 1]} : vector<32x16xf32> to vector<32x1xf32>
    %91 = vector.extract_strided_slice %20 {offsets = [0, 14], sizes = [32, 266], strides = [1, 1]} : vector<32x281xf32> to vector<32x266xf32>
    %92 = vector.broadcast %90 : vector<32x1xf32> to vector<32x266xf32>
    %93 = arith.mulf %92, %91 : vector<32x266xf32>
    %94 = arith.addf %89, %93 : vector<32x266xf32>
    %95 = vector.extract_strided_slice %1 {offsets = [0, 15], sizes = [32, 1], strides = [1, 1]} : vector<32x16xf32> to vector<32x1xf32>
    %96 = vector.extract_strided_slice %20 {offsets = [0, 15], sizes = [32, 266], strides = [1, 1]} : vector<32x281xf32> to vector<32x266xf32>
    %97 = vector.broadcast %95 : vector<32x1xf32> to vector<32x266xf32>
    %98 = arith.mulf %97, %96 : vector<32x266xf32>
    %99 = arith.addf %94, %98 : vector<32x266xf32>
    %cst_16 = arith.constant dense<0.000000e+00> : vector<32x266xf32>
    %100 = tpu.matmul %2, %99, %cst_16 {dimension_numbers = #tpu.dot_dimension_numbers<[1], [0], [0], [1], [0, 0, 1, 1], [], []>} : vector<32x32xf32>, vector<32x266xf32>, vector<32x266xf32> -> vector<32x266xf32>
    %c0_17 = arith.constant 0 : index
    %c0_18 = arith.constant 0 : index
    %101 = vector.load %arg7[%c0_17, %c0_18] : memref<32x1xf32, #tpu.memory_space<vmem>>, vector<32x1xf32>
    %102 = vector.broadcast %101 : vector<32x1xf32> to vector<32x266xf32>
    %103 = arith.addf %100, %102 : vector<32x266xf32>
    %cst_19 = arith.constant 0.000000e+00 : f32
    %104 = vector.broadcast %cst_19 : f32 to vector<32x266xf32>
    %105 = arith.cmpf ogt, %103, %104 : vector<32x266xf32>
    %cst_20 = arith.constant 0.000000e+00 : f32
    %106 = vector.broadcast %cst_20 : f32 to vector<32x266xf32>
    %107 = arith.minimumf %103, %106 : vector<32x266xf32>
    %108 = math.exp %107 : vector<32x266xf32>
    %cst_21 = arith.constant 1.000000e+00 : f32
    %109 = vector.broadcast %cst_21 : f32 to vector<32x266xf32>
    %110 = arith.subf %108, %109 : vector<32x266xf32>
    %111 = arith.select %105, %103, %110 : vector<32x266xi1>, vector<32x266xf32>
    %112 = vector.extract_strided_slice %111 {offsets = [0, 0], sizes = [32, 264], strides = [1, 1]} : vector<32x266xf32> to vector<32x264xf32>
    %113 = arith.truncf %112 : vector<32x264xf32> to vector<32x264xbf16>
    %c0_22 = arith.constant 0 : index
    %c0_23 = arith.constant 0 : index
    %114 = vector.load %arg8[%c0_22, %c0_23] : memref<264x33xbf16, #tpu.memory_space<vmem>>, vector<264x33xbf16>
    %cst_24 = arith.constant dense<0.000000e+00> : vector<32x33xf32>
    %115 = tpu.matmul %113, %114, %cst_24 {dimension_numbers = #tpu.dot_dimension_numbers<[1], [0], [0], [1], [0, 0, 1, 1], [], []>} : vector<32x264xbf16>, vector<264x33xbf16>, vector<32x33xf32> -> vector<32x33xf32>
    %c0_25 = arith.constant 0 : index
    %c0_26 = arith.constant 0 : index
    %c0_27 = arith.constant 0 : index
    %116 = vector.load %arg9[%c0_25, %c0_26, %c0_27] : memref<2x32x33xf32, #tpu.memory_space<vmem>>, vector<1x32x33xf32>
    %117 = vector.shape_cast %116 : vector<1x32x33xf32> to vector<32x33xf32>
    %118 = vector.shape_cast %115 : vector<32x33xf32> to vector<1x32x33xf32>
    tpu.vector_store %arg9[%c0_25, %c0_26, %c0_27], %118 {strides = array<i32>} : memref<2x32x33xf32, #tpu.memory_space<vmem>>, vector<1x32x33xf32>,
    %c1 = arith.constant 1 : index
    %c0_28 = arith.constant 0 : index
    %c0_29 = arith.constant 0 : index
    %119 = vector.load %arg1[%c1, %c0_28, %c0_29] : memref<2x512x1125xbf16, #tpu.memory_space<vmem>>, vector<1x512x1125xbf16>
    %120 = vector.shape_cast %119 : vector<1x512x1125xbf16> to vector<512x1125xbf16>
    %cst_30 = arith.constant dense<0.000000e+00> : vector<32x1125xf32>
    %121 = tpu.matmul %0, %120, %cst_30 {dimension_numbers = #tpu.dot_dimension_numbers<[1], [0], [0], [1], [0, 0, 1, 1], [], []>} : vector<32x512xbf16>, vector<512x1125xbf16>, vector<32x1125xf32> -> vector<32x1125xf32>
    %c0_31 = arith.constant 0 : index
    %c0_32 = arith.constant 0 : index
    %122 = vector.load %arg3[%c0_31, %c0_32] : memref<32x1xf32, #tpu.memory_space<vmem>>, vector<32x1xf32>
    %123 = vector.broadcast %122 : vector<32x1xf32> to vector<32x1125xf32>
    %124 = arith.addf %121, %123 : vector<32x1125xf32>
    %cst_33 = arith.constant 0.000000e+00 : f32
    %125 = vector.broadcast %cst_33 : f32 to vector<32x1125xf32>
    %126 = arith.cmpf ogt, %124, %125 : vector<32x1125xf32>
    %cst_34 = arith.constant 0.000000e+00 : f32
    %127 = vector.broadcast %cst_34 : f32 to vector<32x1125xf32>
    %128 = arith.minimumf %124, %127 : vector<32x1125xf32>
    %129 = math.exp %128 : vector<32x1125xf32>
    %cst_35 = arith.constant 1.000000e+00 : f32
    %130 = vector.broadcast %cst_35 : f32 to vector<32x1125xf32>
    %131 = arith.subf %129, %130 : vector<32x1125xf32>
    %132 = arith.select %126, %124, %131 : vector<32x1125xi1>, vector<32x1125xf32>
    %133 = vector.extract_strided_slice %132 {offsets = [0, 0], sizes = [32, 1124], strides = [1, 1]} : vector<32x1125xf32> to vector<32x1124xf32>
    %134 = arith.truncf %133 : vector<32x1124xf32> to vector<32x1124xbf16>
    %c0_36 = arith.constant 0 : index
    %c0_37 = arith.constant 0 : index
    %135 = vector.load %arg4[%c0_36, %c0_37] : memref<1124x281xbf16, #tpu.memory_space<vmem>>, vector<1124x281xbf16>
    %cst_38 = arith.constant dense<0.000000e+00> : vector<32x281xf32>
    %136 = tpu.matmul %134, %135, %cst_38 {dimension_numbers = #tpu.dot_dimension_numbers<[1], [0], [0], [1], [0, 0, 1, 1], [], []>} : vector<32x1124xbf16>, vector<1124x281xbf16>, vector<32x281xf32> -> vector<32x281xf32>
    %137 = vector.extract_strided_slice %1 {offsets = [0, 0], sizes = [32, 1], strides = [1, 1]} : vector<32x16xf32> to vector<32x1xf32>
    %138 = vector.extract_strided_slice %136 {offsets = [0, 0], sizes = [32, 266], strides = [1, 1]} : vector<32x281xf32> to vector<32x266xf32>
    %139 = vector.broadcast %137 : vector<32x1xf32> to vector<32x266xf32>
    %140 = arith.mulf %139, %138 : vector<32x266xf32>
    %141 = vector.extract_strided_slice %1 {offsets = [0, 1], sizes = [32, 1], strides = [1, 1]} : vector<32x16xf32> to vector<32x1xf32>
    %142 = vector.extract_strided_slice %136 {offsets = [0, 1], sizes = [32, 266], strides = [1, 1]} : vector<32x281xf32> to vector<32x266xf32>
    %143 = vector.broadcast %141 : vector<32x1xf32> to vector<32x266xf32>
    %144 = arith.mulf %143, %142 : vector<32x266xf32>
    %145 = arith.addf %140, %144 : vector<32x266xf32>
    %146 = vector.extract_strided_slice %1 {offsets = [0, 2], sizes = [32, 1], strides = [1, 1]} : vector<32x16xf32> to vector<32x1xf32>
    %147 = vector.extract_strided_slice %136 {offsets = [0, 2], sizes = [32, 266], strides = [1, 1]} : vector<32x281xf32> to vector<32x266xf32>
    %148 = vector.broadcast %146 : vector<32x1xf32> to vector<32x266xf32>
    %149 = arith.mulf %148, %147 : vector<32x266xf32>
    %150 = arith.addf %145, %149 : vector<32x266xf32>
    %151 = vector.extract_strided_slice %1 {offsets = [0, 3], sizes = [32, 1], strides = [1, 1]} : vector<32x16xf32> to vector<32x1xf32>
    %152 = vector.extract_strided_slice %136 {offsets = [0, 3], sizes = [32, 266], strides = [1, 1]} : vector<32x281xf32> to vector<32x266xf32>
    %153 = vector.broadcast %151 : vector<32x1xf32> to vector<32x266xf32>
    %154 = arith.mulf %153, %152 : vector<32x266xf32>
    %155 = arith.addf %150, %154 : vector<32x266xf32>
    %156 = vector.extract_strided_slice %1 {offsets = [0, 4], sizes = [32, 1], strides = [1, 1]} : vector<32x16xf32> to vector<32x1xf32>
    %157 = vector.extract_strided_slice %136 {offsets = [0, 4], sizes = [32, 266], strides = [1, 1]} : vector<32x281xf32> to vector<32x266xf32>
    %158 = vector.broadcast %156 : vector<32x1xf32> to vector<32x266xf32>
    %159 = arith.mulf %158, %157 : vector<32x266xf32>
    %160 = arith.addf %155, %159 : vector<32x266xf32>
    %161 = vector.extract_strided_slice %1 {offsets = [0, 5], sizes = [32, 1], strides = [1, 1]} : vector<32x16xf32> to vector<32x1xf32>
    %162 = vector.extract_strided_slice %136 {offsets = [0, 5], sizes = [32, 266], strides = [1, 1]} : vector<32x281xf32> to vector<32x266xf32>
    %163 = vector.broadcast %161 : vector<32x1xf32> to vector<32x266xf32>
    %164 = arith.mulf %163, %162 : vector<32x266xf32>
    %165 = arith.addf %160, %164 : vector<32x266xf32>
    %166 = vector.extract_strided_slice %1 {offsets = [0, 6], sizes = [32, 1], strides = [1, 1]} : vector<32x16xf32> to vector<32x1xf32>
    %167 = vector.extract_strided_slice %136 {offsets = [0, 6], sizes = [32, 266], strides = [1, 1]} : vector<32x281xf32> to vector<32x266xf32>
    %168 = vector.broadcast %166 : vector<32x1xf32> to vector<32x266xf32>
    %169 = arith.mulf %168, %167 : vector<32x266xf32>
    %170 = arith.addf %165, %169 : vector<32x266xf32>
    %171 = vector.extract_strided_slice %1 {offsets = [0, 7], sizes = [32, 1], strides = [1, 1]} : vector<32x16xf32> to vector<32x1xf32>
    %172 = vector.extract_strided_slice %136 {offsets = [0, 7], sizes = [32, 266], strides = [1, 1]} : vector<32x281xf32> to vector<32x266xf32>
    %173 = vector.broadcast %171 : vector<32x1xf32> to vector<32x266xf32>
    %174 = arith.mulf %173, %172 : vector<32x266xf32>
    %175 = arith.addf %170, %174 : vector<32x266xf32>
    %176 = vector.extract_strided_slice %1 {offsets = [0, 8], sizes = [32, 1], strides = [1, 1]} : vector<32x16xf32> to vector<32x1xf32>
    %177 = vector.extract_strided_slice %136 {offsets = [0, 8], sizes = [32, 266], strides = [1, 1]} : vector<32x281xf32> to vector<32x266xf32>
    %178 = vector.broadcast %176 : vector<32x1xf32> to vector<32x266xf32>
    %179 = arith.mulf %178, %177 : vector<32x266xf32>
    %180 = arith.addf %175, %179 : vector<32x266xf32>
    %181 = vector.extract_strided_slice %1 {offsets = [0, 9], sizes = [32, 1], strides = [1, 1]} : vector<32x16xf32> to vector<32x1xf32>
    %182 = vector.extract_strided_slice %136 {offsets = [0, 9], sizes = [32, 266], strides = [1, 1]} : vector<32x281xf32> to vector<32x266xf32>
    %183 = vector.broadcast %181 : vector<32x1xf32> to vector<32x266xf32>
    %184 = arith.mulf %183, %182 : vector<32x266xf32>
    %185 = arith.addf %180, %184 : vector<32x266xf32>
    %186 = vector.extract_strided_slice %1 {offsets = [0, 10], sizes = [32, 1], strides = [1, 1]} : vector<32x16xf32> to vector<32x1xf32>
    %187 = vector.extract_strided_slice %136 {offsets = [0, 10], sizes = [32, 266], strides = [1, 1]} : vector<32x281xf32> to vector<32x266xf32>
    %188 = vector.broadcast %186 : vector<32x1xf32> to vector<32x266xf32>
    %189 = arith.mulf %188, %187 : vector<32x266xf32>
    %190 = arith.addf %185, %189 : vector<32x266xf32>
    %191 = vector.extract_strided_slice %1 {offsets = [0, 11], sizes = [32, 1], strides = [1, 1]} : vector<32x16xf32> to vector<32x1xf32>
    %192 = vector.extract_strided_slice %136 {offsets = [0, 11], sizes = [32, 266], strides = [1, 1]} : vector<32x281xf32> to vector<32x266xf32>
    %193 = vector.broadcast %191 : vector<32x1xf32> to vector<32x266xf32>
    %194 = arith.mulf %193, %192 : vector<32x266xf32>
    %195 = arith.addf %190, %194 : vector<32x266xf32>
    %196 = vector.extract_strided_slice %1 {offsets = [0, 12], sizes = [32, 1], strides = [1, 1]} : vector<32x16xf32> to vector<32x1xf32>
    %197 = vector.extract_strided_slice %136 {offsets = [0, 12], sizes = [32, 266], strides = [1, 1]} : vector<32x281xf32> to vector<32x266xf32>
    %198 = vector.broadcast %196 : vector<32x1xf32> to vector<32x266xf32>
    %199 = arith.mulf %198, %197 : vector<32x266xf32>
    %200 = arith.addf %195, %199 : vector<32x266xf32>
    %201 = vector.extract_strided_slice %1 {offsets = [0, 13], sizes = [32, 1], strides = [1, 1]} : vector<32x16xf32> to vector<32x1xf32>
    %202 = vector.extract_strided_slice %136 {offsets = [0, 13], sizes = [32, 266], strides = [1, 1]} : vector<32x281xf32> to vector<32x266xf32>
    %203 = vector.broadcast %201 : vector<32x1xf32> to vector<32x266xf32>
    %204 = arith.mulf %203, %202 : vector<32x266xf32>
    %205 = arith.addf %200, %204 : vector<32x266xf32>
    %206 = vector.extract_strided_slice %1 {offsets = [0, 14], sizes = [32, 1], strides = [1, 1]} : vector<32x16xf32> to vector<32x1xf32>
    %207 = vector.extract_strided_slice %136 {offsets = [0, 14], sizes = [32, 266], strides = [1, 1]} : vector<32x281xf32> to vector<32x266xf32>
    %208 = vector.broadcast %206 : vector<32x1xf32> to vector<32x266xf32>
    %209 = arith.mulf %208, %207 : vector<32x266xf32>
    %210 = arith.addf %205, %209 : vector<32x266xf32>
    %211 = vector.extract_strided_slice %1 {offsets = [0, 15], sizes = [32, 1], strides = [1, 1]} : vector<32x16xf32> to vector<32x1xf32>
    %212 = vector.extract_strided_slice %136 {offsets = [0, 15], sizes = [32, 266], strides = [1, 1]} : vector<32x281xf32> to vector<32x266xf32>
    %213 = vector.broadcast %211 : vector<32x1xf32> to vector<32x266xf32>
    %214 = arith.mulf %213, %212 : vector<32x266xf32>
    %215 = arith.addf %210, %214 : vector<32x266xf32>
    %cst_39 = arith.constant dense<0.000000e+00> : vector<32x266xf32>
    %216 = tpu.matmul %2, %215, %cst_39 {dimension_numbers = #tpu.dot_dimension_numbers<[1], [0], [0], [1], [0, 0, 1, 1], [], []>} : vector<32x32xf32>, vector<32x266xf32>, vector<32x266xf32> -> vector<32x266xf32>
    %c0_40 = arith.constant 0 : index
    %c0_41 = arith.constant 0 : index
    %217 = vector.load %arg7[%c0_40, %c0_41] : memref<32x1xf32, #tpu.memory_space<vmem>>, vector<32x1xf32>
    %218 = vector.broadcast %217 : vector<32x1xf32> to vector<32x266xf32>
    %219 = arith.addf %216, %218 : vector<32x266xf32>
    %cst_42 = arith.constant 0.000000e+00 : f32
    %220 = vector.broadcast %cst_42 : f32 to vector<32x266xf32>
    %221 = arith.cmpf ogt, %219, %220 : vector<32x266xf32>
    %cst_43 = arith.constant 0.000000e+00 : f32
    %222 = vector.broadcast %cst_43 : f32 to vector<32x266xf32>
    %223 = arith.minimumf %219, %222 : vector<32x266xf32>
    %224 = math.exp %223 : vector<32x266xf32>
    %cst_44 = arith.constant 1.000000e+00 : f32
    %225 = vector.broadcast %cst_44 : f32 to vector<32x266xf32>
    %226 = arith.subf %224, %225 : vector<32x266xf32>
    %227 = arith.select %221, %219, %226 : vector<32x266xi1>, vector<32x266xf32>
    %228 = vector.extract_strided_slice %227 {offsets = [0, 0], sizes = [32, 264], strides = [1, 1]} : vector<32x266xf32> to vector<32x264xf32>
    %229 = arith.truncf %228 : vector<32x264xf32> to vector<32x264xbf16>
    %c0_45 = arith.constant 0 : index
    %c0_46 = arith.constant 0 : index
    %230 = vector.load %arg8[%c0_45, %c0_46] : memref<264x33xbf16, #tpu.memory_space<vmem>>, vector<264x33xbf16>
    %cst_47 = arith.constant dense<0.000000e+00> : vector<32x33xf32>
    %231 = tpu.matmul %229, %230, %cst_47 {dimension_numbers = #tpu.dot_dimension_numbers<[1], [0], [0], [1], [0, 0, 1, 1], [], []>} : vector<32x264xbf16>, vector<264x33xbf16>, vector<32x33xf32> -> vector<32x33xf32>
    %c1_48 = arith.constant 1 : index
    %c0_49 = arith.constant 0 : index
    %c0_50 = arith.constant 0 : index
    %232 = vector.load %arg9[%c1_48, %c0_49, %c0_50] : memref<2x32x33xf32, #tpu.memory_space<vmem>>, vector<1x32x33xf32>
    %233 = vector.shape_cast %232 : vector<1x32x33xf32> to vector<32x33xf32>
    %234 = vector.shape_cast %231 : vector<32x33xf32> to vector<1x32x33xf32>
    tpu.vector_store %arg9[%c1_48, %c0_49, %c0_50], %234 {strides = array<i32>} : memref<2x32x33xf32, #tpu.memory_space<vmem>>, vector<1x32x33xf32>,
    return
  }
  func.func @transform_0(%arg0: i32) -> (i32, i32, i32) {
    %c0_i32 = arith.constant 0 : i32
    %c0_i32_0 = arith.constant 0 : i32
    %c0_i32_1 = arith.constant 0 : i32
    return %arg0, %c0_i32, %c0_i32_0 : i32, i32, i32
  }
  func.func @transform_1(%arg0: i32) -> (i32, i32) {
    %c0_i32 = arith.constant 0 : i32
    %c0_i32_0 = arith.constant 0 : i32
    %c0_i32_1 = arith.constant 0 : i32
    return %c0_i32, %c0_i32_0 : i32, i32
  }
  func.func @transform_2(%arg0: i32) -> (i32, i32) {
    %c0_i32 = arith.constant 0 : i32
    %c0_i32_0 = arith.constant 0 : i32
    %c0_i32_1 = arith.constant 0 : i32
    return %c0_i32, %c0_i32_0 : i32, i32
  }
  func.func @transform_3(%arg0: i32) -> (i32, i32) {
    %c0_i32 = arith.constant 0 : i32
    %c0_i32_0 = arith.constant 0 : i32
    %c0_i32_1 = arith.constant 0 : i32
    return %c0_i32, %c0_i32_0 : i32, i32
  }
  func.func @transform_4(%arg0: i32) -> (i32, i32) {
    %c0_i32 = arith.constant 0 : i32
    %c0_i32_0 = arith.constant 0 : i32
    %c0_i32_1 = arith.constant 0 : i32
    return %c0_i32, %c0_i32_0 : i32, i32
  }
  func.func @transform_5(%arg0: i32) -> (i32, i32) {
    %c0_i32 = arith.constant 0 : i32
    %c0_i32_0 = arith.constant 0 : i32
    %c0_i32_1 = arith.constant 0 : i32
    return %c0_i32, %c0_i32_0 : i32, i32
  }
  func.func @transform_6(%arg0: i32) -> (i32, i32) {
    %c0_i32 = arith.constant 0 : i32
    %c0_i32_0 = arith.constant 0 : i32
    %c0_i32_1 = arith.constant 0 : i32
    return %c0_i32, %c0_i32_0 : i32, i32
  }
  func.func @transform_7(%arg0: i32) -> (i32, i32) {
    %c0_i32 = arith.constant 0 : i32
    %c0_i32_0 = arith.constant 0 : i32
    %c0_i32_1 = arith.constant 0 : i32
    return %c0_i32, %c0_i32_0 : i32, i32
  }
  func.func @transform_8(%arg0: i32) -> (i32, i32, i32) {
    %c0_i32 = arith.constant 0 : i32
    %c0_i32_0 = arith.constant 0 : i32
    %c0_i32_1 = arith.constant 0 : i32
    return %arg0, %c0_i32, %c0_i32_0 : i32, i32, i32
  }
}

module attributes {stable_mosaic.version = 11 : i64} {
  func.func @head_kernel(%arg0: memref<2x1056xf32, #tpu.memory_space<vmem>>, %arg1: memref<1056x132xf32, #tpu.memory_space<vmem>>, %arg2: memref<1x132xf32, #tpu.memory_space<vmem>>, %arg3: memref<128x2xf32, #tpu.memory_space<vmem>>, %arg4: memref<1x2xf32, #tpu.memory_space<vmem>>, %arg5: memref<2x4xf32, #tpu.memory_space<vmem>>, %arg6: memref<2x2xf32, #tpu.memory_space<vmem>>) attributes {dimension_semantics = [], scalar_prefetch = 0 : i64, scratch_operands = 0 : i64, tpu.core_type = #tpu.core_type<tc>} {
    %c0 = arith.constant 0 : index
    %c0_0 = arith.constant 0 : index
    %0 = vector.load %arg0[%c0, %c0_0] : memref<2x1056xf32, #tpu.memory_space<vmem>>, vector<2x1056xf32>
    %c0_1 = arith.constant 0 : index
    %c0_2 = arith.constant 0 : index
    %1 = vector.load %arg1[%c0_1, %c0_2] : memref<1056x132xf32, #tpu.memory_space<vmem>>, vector<1056x132xf32>
    %cst = arith.constant dense<0.000000e+00> : vector<2x132xf32>
    %2 = tpu.matmul %0, %1, %cst {dimension_numbers = #tpu.dot_dimension_numbers<[1], [0], [0], [1], [0, 0, 1, 1], [], []>} : vector<2x1056xf32>, vector<1056x132xf32>, vector<2x132xf32> -> vector<2x132xf32>
    %c0_3 = arith.constant 0 : index
    %c0_4 = arith.constant 0 : index
    %3 = vector.load %arg2[%c0_3, %c0_4] : memref<1x132xf32, #tpu.memory_space<vmem>>, vector<1x132xf32>
    %4 = vector.broadcast %3 : vector<1x132xf32> to vector<2x132xf32>
    %5 = arith.addf %2, %4 : vector<2x132xf32>
    %6 = vector.extract_strided_slice %5 {offsets = [0, 0], sizes = [2, 4], strides = [1, 1]} : vector<2x132xf32> to vector<2x4xf32>
    %c0_5 = arith.constant 0 : index
    %c0_6 = arith.constant 0 : index
    %7 = vector.load %arg5[%c0_5, %c0_6] : memref<2x4xf32, #tpu.memory_space<vmem>>, vector<2x4xf32>
    tpu.vector_store %arg5[%c0_5, %c0_6], %6 {strides = array<i32>} : memref<2x4xf32, #tpu.memory_space<vmem>>, vector<2x4xf32>,
    %8 = vector.extract_strided_slice %5 {offsets = [0, 4], sizes = [2, 128], strides = [1, 1]} : vector<2x132xf32> to vector<2x128xf32>
    %cst_7 = arith.constant 0.000000e+00 : f32
    %9 = vector.broadcast %cst_7 : f32 to vector<2x128xf32>
    %10 = arith.maximumf %8, %9 : vector<2x128xf32>
    %c0_8 = arith.constant 0 : index
    %c0_9 = arith.constant 0 : index
    %11 = vector.load %arg3[%c0_8, %c0_9] : memref<128x2xf32, #tpu.memory_space<vmem>>, vector<128x2xf32>
    %cst_10 = arith.constant dense<0.000000e+00> : vector<2x2xf32>
    %12 = tpu.matmul %10, %11, %cst_10 {dimension_numbers = #tpu.dot_dimension_numbers<[1], [0], [0], [1], [0, 0, 1, 1], [], []>} : vector<2x128xf32>, vector<128x2xf32>, vector<2x2xf32> -> vector<2x2xf32>
    %c0_11 = arith.constant 0 : index
    %c0_12 = arith.constant 0 : index
    %13 = vector.load %arg4[%c0_11, %c0_12] : memref<1x2xf32, #tpu.memory_space<vmem>>, vector<1x2xf32>
    %14 = vector.broadcast %13 : vector<1x2xf32> to vector<2x2xf32>
    %15 = arith.addf %12, %14 : vector<2x2xf32>
    %cst_13 = arith.constant dense<0xFF800000> : vector<2xf32>
    %16 = vector.multi_reduction <maximumf>, %15, %cst_13 [1] : vector<2x2xf32> to vector<2xf32>
    %17 = vector.shape_cast %16 : vector<2xf32> to vector<2x1xf32>
    %18 = vector.broadcast %17 : vector<2x1xf32> to vector<2x2xf32>
    %19 = arith.subf %15, %18 : vector<2x2xf32>
    %20 = math.exp %19 : vector<2x2xf32>
    %cst_14 = arith.constant dense<0.000000e+00> : vector<2xf32>
    %21 = vector.multi_reduction <add>, %20, %cst_14 [1] : vector<2x2xf32> to vector<2xf32>
    %22 = vector.shape_cast %21 : vector<2xf32> to vector<2x1xf32>
    %23 = vector.broadcast %22 : vector<2x1xf32> to vector<2x2xf32>
    %24 = arith.divf %20, %23 : vector<2x2xf32>
    %c0_15 = arith.constant 0 : index
    %c0_16 = arith.constant 0 : index
    %25 = vector.load %arg6[%c0_15, %c0_16] : memref<2x2xf32, #tpu.memory_space<vmem>>, vector<2x2xf32>
    tpu.vector_store %arg6[%c0_15, %c0_16], %24 {strides = array<i32>} : memref<2x2xf32, #tpu.memory_space<vmem>>, vector<2x2xf32>,
    return
  }
}

</mosaic_0001>

<llo_original>
// kernel: eegnet_with_dat_forward.3
$region0: #{eegnet_with_dat_forward.3}
  #allocation0 [shape = 'u32[]', space=smem, size = 0x4, offset = 0x4, fixed_abs, tag = 'smem constant byte address 0x4 - core index']
  #allocation1 [shape = 'u32[144,128]{1,0:T(1,128)}', space=vmem, size = 0x12000, scoped, tag = 'internal scratch']
  %s0 = inlined_call_operand.vmem [shape: f32[2,1056], index: 0, kind: input, shape index: {}]
  %s1 = inlined_call_operand.vmem [shape: f32[1056,132], index: 1, kind: input, shape index: {}]
  %s2 = inlined_call_operand.vmem [shape: f32[1,132], index: 2, kind: input, shape index: {}]
  %s3 = inlined_call_operand.vmem [shape: f32[128,2], index: 3, kind: input, shape index: {}]
  %s4 = inlined_call_operand.vmem [shape: f32[1,2], index: 4, kind: input, shape index: {}]
  %s5 = inlined_call_operand.hbm [shape: f32[2,4], index: 5, kind: output, shape index: {0}]
  %s6 = inlined_call_operand.hbm [shape: f32[2,2], index: 6, kind: output, shape index: {1}]
  %7 = xla_tuple %s5, %s6
  %s8 = sld [smem:[#allocation0]]
  $region38: #{eegnet_with_dat_forward.3} parent=0
    _
  %s10 = ssub.s32 1, %s8
  %s11 = scalar_select 0, %s10, %s8
  $region1: #{eegnet_with_dat_forward.3} parent=0
    #allocation2 [shape = 'u8[1024]{0}', space=vmem, size = 0x400, scoped, tag = 'output window, operand 0, single buffered']
    #allocation3 [shape = 's32[1]{0}', space=sflag, size = 0x4, scoped, tag = 'scoped memory for eegnet_with_dat_forward.3']
    #allocation4 [shape = 'u8[1024]{0}', space=vmem, size = 0x400, scoped, tag = 'output window, operand 1, single buffered']
    #allocation5 [shape = 's32[1]{0}', space=sflag, size = 0x4, scoped, tag = 'scoped memory for eegnet_with_dat_forward.3']
    %12 = vsyncpa [#allocation3], 0
    %13 = vsyncpa [#allocation5], 0
    // Predicated region
    $region2: #{eegnet_with_dat_forward.3} parent=1 // pred_check
      _
    $region3: #{eegnet_with_dat_forward.3} parent=1 // pred_check_branch
      %15 = sbr.rel (0) target = $region5
    $region4: #{eegnet_with_dat_forward.3} parent=1 // pred_region
      _
    $region5: #{eegnet_with_dat_forward.3} parent=1 // pred_fallthru
      _
    // Predicated region
    $region6: #{eegnet_with_dat_forward.3} parent=1 // pred_check
      _
    $region7: #{eegnet_with_dat_forward.3} parent=1 // pred_check_branch
      %17 = sbr.rel (0) target = $region9
    $region8: #{eegnet_with_dat_forward.3} parent=1 // pred_region
      _
    $region9: #{eegnet_with_dat_forward.3} parent=1 // pred_fallthru
      _
    // Predicated region
    $region10: #{eegnet_with_dat_forward.3} parent=1 // pred_check
      _
    $region11: #{eegnet_with_dat_forward.3} parent=1 // pred_check_branch
      %19 = sbr.rel (0) target = $region13
    $region12: #{eegnet_with_dat_forward.3} parent=1 // pred_region
      _
    $region13: #{eegnet_with_dat_forward.3} parent=1 // pred_fallthru
      _
    // Predicated region
    $region14: #{eegnet_with_dat_forward.3} parent=1 // pred_check
      _
    $region15: #{eegnet_with_dat_forward.3} parent=1 // pred_check_branch
      %21 = sbr.rel (0) target = $region17
    $region16: #{eegnet_with_dat_forward.3} parent=1 // pred_region
      _
    $region17: #{eegnet_with_dat_forward.3} parent=1 // pred_fallthru
      _
    // Predicated region
    $region18: #{eegnet_with_dat_forward.3} parent=1 // pred_check
      _
    $region19: #{eegnet_with_dat_forward.3} parent=1 // pred_check_branch
      %23 = sbr.rel (0) target = $region21
    $region20: #{eegnet_with_dat_forward.3} parent=1 // pred_region
      _
    $region21: #{eegnet_with_dat_forward.3} parent=1 // pred_fallthru
      _
    %v24 = vld [vmem:[%s0] sm:$0xff]
    %v25 = vld [vmem:[%s0 + $0x8] sm:$0xff]
    %v26 = vld [vmem:[%s0 + $0x10] sm:$0x3]
    %v27 = vld [vmem:[%s1] sm:$0xff]
    %v28 = vld [vmem:[%s1 + $0x8] sm:$0xff]
    %v29 = vld [vmem:[%s1 + $0x10] sm:$0xff]
    %v30 = vld [vmem:[%s1 + $0x18] sm:$0xff]
    %v31 = vld [vmem:[%s1 + $0x20] sm:$0xff]
    %v32 = vld [vmem:[%s1 + $0x28] sm:$0xff]
    %v33 = vld [vmem:[%s1 + $0x30] sm:$0xff]
    %v34 = vld [vmem:[%s1 + $0x38] sm:$0xff]
    %v35 = vld [vmem:[%s1 + $0x40] sm:$0xff]
    %v36 = vld [vmem:[%s1 + $0x48] sm:$0xff]
    %v37 = vld [vmem:[%s1 + $0x50] sm:$0xff]
    %v38 = vld [vmem:[%s1 + $0x58] sm:$0xff]
    %v39 = vld [vmem:[%s1 + $0x60] sm:$0xff]
    %v40 = vld [vmem:[%s1 + $0x68] sm:$0xff]
    %v41 = vld [vmem:[%s1 + $0x70] sm:$0xff]
    %v42 = vld [vmem:[%s1 + $0x78] sm:$0xff]
    %v43 = vld [vmem:[%s1 + $0x80] sm:$0xff]
    %v44 = vld [vmem:[%s1 + $0x88] sm:$0xff]
    %v45 = vld [vmem:[%s1 + $0x90] sm:$0xff]
    %v46 = vld [vmem:[%s1 + $0x98] sm:$0xff]
    %v47 = vld [vmem:[%s1 + $0xa0] sm:$0xff]
    %v48 = vld [vmem:[%s1 + $0xa8] sm:$0xff]
    %v49 = vld [vmem:[%s1 + $0xb0] sm:$0xff]
    %v50 = vld [vmem:[%s1 + $0xb8] sm:$0xff]
    %v51 = vld [vmem:[%s1 + $0xc0] sm:$0xff]
    %v52 = vld [vmem:[%s1 + $0xc8] sm:$0xff]
    %v53 = vld [vmem:[%s1 + $0xd0] sm:$0xff]
    %v54 = vld [vmem:[%s1 + $0xd8] sm:$0xff]
    %v55 = vld [vmem:[%s1 + $0xe0] sm:$0xff]
    %v56 = vld [vmem:[%s1 + $0xe8] sm:$0xff]
    %v57 = vld [vmem:[%s1 + $0xf0] sm:$0xff]
    %v58 = vld [vmem:[%s1 + $0xf8] sm:$0xff]
    %v59 = vld [vmem:[%s1 + $0x100] sm:$0xff]
    %v60 = vld [vmem:[%s1 + $0x108] sm:$0xff]
    %v61 = vld [vmem:[%s1 + $0x110] sm:$0xff]
    %v62 = vld [vmem:[%s1 + $0x118] sm:$0xff]
    %v63 = vld [vmem:[%s1 + $0x120] sm:$0xff]
    %v64 = vld [vmem:[%s1 + $0x128] sm:$0xff]
    %v65 = vld [vmem:[%s1 + $0x130] sm:$0xff]
    %v66 = vld [vmem:[%s1 + $0x138] sm:$0xff]
    %v67 = vld [vmem:[%s1 + $0x140] sm:$0xff]
    %v68 = vld [vmem:[%s1 + $0x148] sm:$0xff]
    %v69 = vld [vmem:[%s1 + $0x150] sm:$0xff]
    %v70 = vld [vmem:[%s1 + $0x158] sm:$0xff]
    %v71 = vld [vmem:[%s1 + $0x160] sm:$0xff]
    %v72 = vld [vmem:[%s1 + $0x168] sm:$0xff]
    %v73 = vld [vmem:[%s1 + $0x170] sm:$0xff]
    %v74 = vld [vmem:[%s1 + $0x178] sm:$0xff]
    %v75 = vld [vmem:[%s1 + $0x180] sm:$0xff]
    %v76 = vld [vmem:[%s1 + $0x188] sm:$0xff]
    %v77 = vld [vmem:[%s1 + $0x190] sm:$0xff]
    %v78 = vld [vmem:[%s1 + $0x198] sm:$0xff]
    %v79 = vld [vmem:[%s1 + $0x1a0] sm:$0xff]
    %v80 = vld [vmem:[%s1 + $0x1a8] sm:$0xff]
    %v81 = vld [vmem:[%s1 + $0x1b0] sm:$0xff]
    %v82 = vld [vmem:[%s1 + $0x1b8] sm:$0xff]
    %v83 = vld [vmem:[%s1 + $0x1c0] sm:$0xff]
    %v84 = vld [vmem:[%s1 + $0x1c8] sm:$0xff]
    %v85 = vld [vmem:[%s1 + $0x1d0] sm:$0xff]
    %v86 = vld [vmem:[%s1 + $0x1d8] sm:$0xff]
    %v87 = vld [vmem:[%s1 + $0x1e0] sm:$0xff]
    %v88 = vld [vmem:[%s1 + $0x1e8] sm:$0xff]
    %v89 = vld [vmem:[%s1 + $0x1f0] sm:$0xff]
    %v90 = vld [vmem:[%s1 + $0x1f8] sm:$0xff]
    %v91 = vld [vmem:[%s1 + $0x200] sm:$0xff]
    %v92 = vld [vmem:[%s1 + $0x208] sm:$0xff]
    %v93 = vld [vmem:[%s1 + $0x210] sm:$0xff]
    %v94 = vld [vmem:[%s1 + $0x218] sm:$0xff]
    %v95 = vld [vmem:[%s1 + $0x220] sm:$0xff]
    %v96 = vld [vmem:[%s1 + $0x228] sm:$0xff]
    %v97 = vld [vmem:[%s1 + $0x230] sm:$0xff]
    %v98 = vld [vmem:[%s1 + $0x238] sm:$0xff]
    %v99 = vld [vmem:[%s1 + $0x240] sm:$0xff]
    %v100 = vld [vmem:[%s1 + $0x248] sm:$0xff]
    %v101 = vld [vmem:[%s1 + $0x250] sm:$0xff]
    %v102 = vld [vmem:[%s1 + $0x258] sm:$0xff]
    %v103 = vld [vmem:[%s1 + $0x260] sm:$0xff]
    %v104 = vld [vmem:[%s1 + $0x268] sm:$0xff]
    %v105 = vld [vmem:[%s1 + $0x270] sm:$0xff]
    %v106 = vld [vmem:[%s1 + $0x278] sm:$0xff]
    %v107 = vld [vmem:[%s1 + $0x280] sm:$0xff]
    %v108 = vld [vmem:[%s1 + $0x288] sm:$0xff]
    %v109 = vld [vmem:[%s1 + $0x290] sm:$0xff]
    %v110 = vld [vmem:[%s1 + $0x298] sm:$0xff]
    %v111 = vld [vmem:[%s1 + $0x2a0] sm:$0xff]
    %v112 = vld [vmem:[%s1 + $0x2a8] sm:$0xff]
    %v113 = vld [vmem:[%s1 + $0x2b0] sm:$0xff]
    %v114 = vld [vmem:[%s1 + $0x2b8] sm:$0xff]
    %v115 = vld [vmem:[%s1 + $0x2c0] sm:$0xff]
    %v116 = vld [vmem:[%s1 + $0x2c8] sm:$0xff]
    %v117 = vld [vmem:[%s1 + $0x2d0] sm:$0xff]
    %v118 = vld [vmem:[%s1 + $0x2d8] sm:$0xff]
    %v119 = vld [vmem:[%s1 + $0x2e0] sm:$0xff]
    %v120 = vld [vmem:[%s1 + $0x2e8] sm:$0xff]
    %v121 = vld [vmem:[%s1 + $0x2f0] sm:$0xff]
    %v122 = vld [vmem:[%s1 + $0x2f8] sm:$0xff]
    %v123 = vld [vmem:[%s1 + $0x300] sm:$0xff]
    %v124 = vld [vmem:[%s1 + $0x308] sm:$0xff]
    %v125 = vld [vmem:[%s1 + $0x310] sm:$0xff]
    %v126 = vld [vmem:[%s1 + $0x318] sm:$0xff]
    %v127 = vld [vmem:[%s1 + $0x320] sm:$0xff]
    %v128 = vld [vmem:[%s1 + $0x328] sm:$0xff]
    %v129 = vld [vmem:[%s1 + $0x330] sm:$0xff]
    %v130 = vld [vmem:[%s1 + $0x338] sm:$0xff]
    %v131 = vld [vmem:[%s1 + $0x340] sm:$0xff]
    %v132 = vld [vmem:[%s1 + $0x348] sm:$0xff]
    %v133 = vld [vmem:[%s1 + $0x350] sm:$0xff]
    %v134 = vld [vmem:[%s1 + $0x358] sm:$0xff]
    %v135 = vld [vmem:[%s1 + $0x360] sm:$0xff]
    %v136 = vld [vmem:[%s1 + $0x368] sm:$0xff]
    %v137 = vld [vmem:[%s1 + $0x370] sm:$0xff]
    %v138 = vld [vmem:[%s1 + $0x378] sm:$0xff]
    %v139 = vld [vmem:[%s1 + $0x380] sm:$0xff]
    %v140 = vld [vmem:[%s1 + $0x388] sm:$0xff]
    %v141 = vld [vmem:[%s1 + $0x390] sm:$0xff]
    %v142 = vld [vmem:[%s1 + $0x398] sm:$0xff]
    %v143 = vld [vmem:[%s1 + $0x3a0] sm:$0xff]
    %v144 = vld [vmem:[%s1 + $0x3a8] sm:$0xff]
    %v145 = vld [vmem:[%s1 + $0x3b0] sm:$0xff]
    %v146 = vld [vmem:[%s1 + $0x3b8] sm:$0xff]
    %v147 = vld [vmem:[%s1 + $0x3c0] sm:$0xff]
    %v148 = vld [vmem:[%s1 + $0x3c8] sm:$0xff]
    %v149 = vld [vmem:[%s1 + $0x3d0] sm:$0xff]
    %v150 = vld [vmem:[%s1 + $0x3d8] sm:$0xff]
    %v151 = vld [vmem:[%s1 + $0x3e0] sm:$0xff]
    %v152 = vld [vmem:[%s1 + $0x3e8] sm:$0xff]
    %v153 = vld [vmem:[%s1 + $0x3f0] sm:$0xff]
    %v154 = vld [vmem:[%s1 + $0x3f8] sm:$0xff]
    %v155 = vld [vmem:[%s1 + $0x400] sm:$0xff]
    %v156 = vld [vmem:[%s1 + $0x408] sm:$0xff]
    %v157 = vld [vmem:[%s1 + $0x410] sm:$0xff]
    %v158 = vld [vmem:[%s1 + $0x418] sm:$0xff]
    %v159 = vld [vmem:[%s1 + $0x420] sm:$0xff]
    %v160 = vld [vmem:[%s1 + $0x428] sm:$0xff]
    %v161 = vld [vmem:[%s1 + $0x430] sm:$0xff]
    %v162 = vld [vmem:[%s1 + $0x438] sm:$0xff]
    %v163 = vld [vmem:[%s1 + $0x440] sm:$0xff]
    %v164 = vld [vmem:[%s1 + $0x448] sm:$0xff]
    %v165 = vld [vmem:[%s1 + $0x450] sm:$0xff]
    %v166 = vld [vmem:[%s1 + $0x458] sm:$0xff]
    %v167 = vld [vmem:[%s1 + $0x460] sm:$0xff]
    %v168 = vld [vmem:[%s1 + $0x468] sm:$0xff]
    %v169 = vld [vmem:[%s1 + $0x470] sm:$0xff]
    %v170 = vld [vmem:[%s1 + $0x478] sm:$0xff]
    %v171 = vld [vmem:[%s1 + $0x480] sm:$0xff]
    %v172 = vld [vmem:[%s1 + $0x488] sm:$0xff]
    %v173 = vld [vmem:[%s1 + $0x490] sm:$0xff]
    %v174 = vld [vmem:[%s1 + $0x498] sm:$0xff]
    %v175 = vld [vmem:[%s1 + $0x4a0] sm:$0xff]
    %v176 = vld [vmem:[%s1 + $0x4a8] sm:$0xff]
    %v177 = vld [vmem:[%s1 + $0x4b0] sm:$0xff]
    %v178 = vld [vmem:[%s1 + $0x4b8] sm:$0xff]
    %v179 = vld [vmem:[%s1 + $0x4c0] sm:$0xff]
    %v180 = vld [vmem:[%s1 + $0x4c8] sm:$0xff]
    %v181 = vld [vmem:[%s1 + $0x4d0] sm:$0xff]
    %v182 = vld [vmem:[%s1 + $0x4d8] sm:$0xff]
    %v183 = vld [vmem:[%s1 + $0x4e0] sm:$0xff]
    %v184 = vld [vmem:[%s1 + $0x4e8] sm:$0xff]
    %v185 = vld [vmem:[%s1 + $0x4f0] sm:$0xff]
    %v186 = vld [vmem:[%s1 + $0x4f8] sm:$0xff]
    %v187 = vld [vmem:[%s1 + $0x500] sm:$0xff]
    %v188 = vld [vmem:[%s1 + $0x508] sm:$0xff]
    %v189 = vld [vmem:[%s1 + $0x510] sm:$0xff]
    %v190 = vld [vmem:[%s1 + $0x518] sm:$0xff]
    %v191 = vld [vmem:[%s1 + $0x520] sm:$0xff]
    %v192 = vld [vmem:[%s1 + $0x528] sm:$0xff]
    %v193 = vld [vmem:[%s1 + $0x530] sm:$0xff]
    %v194 = vld [vmem:[%s1 + $0x538] sm:$0xff]
    %v195 = vld [vmem:[%s1 + $0x540] sm:$0xff]
    %v196 = vld [vmem:[%s1 + $0x548] sm:$0xff]
    %v197 = vld [vmem:[%s1 + $0x550] sm:$0xff]
    %v198 = vld [vmem:[%s1 + $0x558] sm:$0xff]
    %v199 = vld [vmem:[%s1 + $0x560] sm:$0xff]
    %v200 = vld [vmem:[%s1 + $0x568] sm:$0xff]
    %v201 = vld [vmem:[%s1 + $0x570] sm:$0xff]
    %v202 = vld [vmem:[%s1 + $0x578] sm:$0xff]
    %v203 = vld [vmem:[%s1 + $0x580] sm:$0xff]
    %v204 = vld [vmem:[%s1 + $0x588] sm:$0xff]
    %v205 = vld [vmem:[%s1 + $0x590] sm:$0xff]
    %v206 = vld [vmem:[%s1 + $0x598] sm:$0xff]
    %v207 = vld [vmem:[%s1 + $0x5a0] sm:$0xff]
    %v208 = vld [vmem:[%s1 + $0x5a8] sm:$0xff]
    %v209 = vld [vmem:[%s1 + $0x5b0] sm:$0xff]
    %v210 = vld [vmem:[%s1 + $0x5b8] sm:$0xff]
    %v211 = vld [vmem:[%s1 + $0x5c0] sm:$0xff]
    %v212 = vld [vmem:[%s1 + $0x5c8] sm:$0xff]
    %v213 = vld [vmem:[%s1 + $0x5d0] sm:$0xff]
    %v214 = vld [vmem:[%s1 + $0x5d8] sm:$0xff]
    %v215 = vld [vmem:[%s1 + $0x5e0] sm:$0xff]
    %v216 = vld [vmem:[%s1 + $0x5e8] sm:$0xff]
    %v217 = vld [vmem:[%s1 + $0x5f0] sm:$0xff]
    %v218 = vld [vmem:[%s1 + $0x5f8] sm:$0xff]
    %v219 = vld [vmem:[%s1 + $0x600] sm:$0xff]
    %v220 = vld [vmem:[%s1 + $0x608] sm:$0xff]
    %v221 = vld [vmem:[%s1 + $0x610] sm:$0xff]
    %v222 = vld [vmem:[%s1 + $0x618] sm:$0xff]
    %v223 = vld [vmem:[%s1 + $0x620] sm:$0xff]
    %v224 = vld [vmem:[%s1 + $0x628] sm:$0xff]
    %v225 = vld [vmem:[%s1 + $0x630] sm:$0xff]
    %v226 = vld [vmem:[%s1 + $0x638] sm:$0xff]
    %v227 = vld [vmem:[%s1 + $0x640] sm:$0xff]
    %v228 = vld [vmem:[%s1 + $0x648] sm:$0xff]
    %v229 = vld [vmem:[%s1 + $0x650] sm:$0xff]
    %v230 = vld [vmem:[%s1 + $0x658] sm:$0xff]
    %v231 = vld [vmem:[%s1 + $0x660] sm:$0xff]
    %v232 = vld [vmem:[%s1 + $0x668] sm:$0xff]
    %v233 = vld [vmem:[%s1 + $0x670] sm:$0xff]
    %v234 = vld [vmem:[%s1 + $0x678] sm:$0xff]
    %v235 = vld [vmem:[%s1 + $0x680] sm:$0xff]
    %v236 = vld [vmem:[%s1 + $0x688] sm:$0xff]
    %v237 = vld [vmem:[%s1 + $0x690] sm:$0xff]
    %v238 = vld [vmem:[%s1 + $0x698] sm:$0xff]
    %v239 = vld [vmem:[%s1 + $0x6a0] sm:$0xff]
    %v240 = vld [vmem:[%s1 + $0x6a8] sm:$0xff]
    %v241 = vld [vmem:[%s1 + $0x6b0] sm:$0xff]
    %v242 = vld [vmem:[%s1 + $0x6b8] sm:$0xff]
    %v243 = vld [vmem:[%s1 + $0x6c0] sm:$0xff]
    %v244 = vld [vmem:[%s1 + $0x6c8] sm:$0xff]
    %v245 = vld [vmem:[%s1 + $0x6d0] sm:$0xff]
    %v246 = vld [vmem:[%s1 + $0x6d8] sm:$0xff]
    %v247 = vld [vmem:[%s1 + $0x6e0] sm:$0xff]
    %v248 = vld [vmem:[%s1 + $0x6e8] sm:$0xff]
    %v249 = vld [vmem:[%s1 + $0x6f0] sm:$0xff]
    %v250 = vld [vmem:[%s1 + $0x6f8] sm:$0xff]
    %v251 = vld [vmem:[%s1 + $0x700] sm:$0xff]
    %v252 = vld [vmem:[%s1 + $0x708] sm:$0xff]
    %v253 = vld [vmem:[%s1 + $0x710] sm:$0xff]
    %v254 = vld [vmem:[%s1 + $0x718] sm:$0xff]
    %v255 = vld [vmem:[%s1 + $0x720] sm:$0xff]
    %v256 = vld [vmem:[%s1 + $0x728] sm:$0xff]
    %v257 = vld [vmem:[%s1 + $0x730] sm:$0xff]
    %v258 = vld [vmem:[%s1 + $0x738] sm:$0xff]
    %v259 = vld [vmem:[%s1 + $0x740] sm:$0xff]
    %v260 = vld [vmem:[%s1 + $0x748] sm:$0xff]
    %v261 = vld [vmem:[%s1 + $0x750] sm:$0xff]
    %v262 = vld [vmem:[%s1 + $0x758] sm:$0xff]
    %v263 = vld [vmem:[%s1 + $0x760] sm:$0xff]
    %v264 = vld [vmem:[%s1 + $0x768] sm:$0xff]
    %v265 = vld [vmem:[%s1 + $0x770] sm:$0xff]
    %v266 = vld [vmem:[%s1 + $0x778] sm:$0xff]
    %v267 = vld [vmem:[%s1 + $0x780] sm:$0xff]
    %v268 = vld [vmem:[%s1 + $0x788] sm:$0xff]
    %v269 = vld [vmem:[%s1 + $0x790] sm:$0xff]
    %v270 = vld [vmem:[%s1 + $0x798] sm:$0xff]
    %v271 = vld [vmem:[%s1 + $0x7a0] sm:$0xff]
    %v272 = vld [vmem:[%s1 + $0x7a8] sm:$0xff]
    %v273 = vld [vmem:[%s1 + $0x7b0] sm:$0xff]
    %v274 = vld [vmem:[%s1 + $0x7b8] sm:$0xff]
    %v275 = vld [vmem:[%s1 + $0x7c0] sm:$0xff]
    %v276 = vld [vmem:[%s1 + $0x7c8] sm:$0xff]
    %v277 = vld [vmem:[%s1 + $0x7d0] sm:$0xff]
    %v278 = vld [vmem:[%s1 + $0x7d8] sm:$0xff]
    %v279 = vld [vmem:[%s1 + $0x7e0] sm:$0xff]
    %v280 = vld [vmem:[%s1 + $0x7e8] sm:$0xff]
    %v281 = vld [vmem:[%s1 + $0x7f0] sm:$0xff]
    %v282 = vld [vmem:[%s1 + $0x7f8] sm:$0xff]
    %v283 = vld [vmem:[%s1 + $0x800] sm:$0xff]
    %v284 = vld [vmem:[%s1 + $0x808] sm:$0xff]
    %v285 = vld [vmem:[%s1 + $0x810] sm:$0xff]
    %v286 = vld [vmem:[%s1 + $0x818] sm:$0xff]
    %v287 = vld [vmem:[%s1 + $0x820] sm:$0xff]
    %v288 = vld [vmem:[%s1 + $0x828] sm:$0xff]
    %v289 = vld [vmem:[%s1 + $0x830] sm:$0xff]
    %v290 = vld [vmem:[%s1 + $0x838] sm:$0xff]
    %v291 = vld [vmem:[%s2] sm:$0x3]
    %v293 = vlaneseq
    %v294 = vshrl.u32 %v293, 7
    %v295 = vsub.s32 0, %v294
    %v296 = vrot.slane %v291, %v295
    %v297 = vlaneseq
    %v298 = vshrl.u32 %v297, 7
    %v299 = vsub.s32 1, %v298
    %v300 = vrot.slane %v291, %v299
    %v306 = vcombine.high %v24, %v24
    %v308 = vunpack.c.l.s4 1983009808
    %v309 = vunpack.c.0.s8 %v308
    %v310 = vlaneseq
    %v311 = vshrl.u32 %v310, 7
    %v312 = vsub.s32 %v309, %v311
    %v313 = vrot.slane %v24, %v312
    %v315 = vunpack.c.l.s4 1983009808
    %v316 = vunpack.c.0.s8 %v315
    %v317 = vlaneseq
    %v318 = vshrl.u32 %v317, 7
    %v319 = vsub.s32 %v316, %v318
    %v320 = vrot.slane %v306, %v319
    %v321 = vcombine.high %v313, %v313
    %v322 = vcombine.high %v320, %v320
    %v323 = vcombine.high %v25, %v25
    %v325 = vunpack.c.l.s4 1983009808
    %v326 = vunpack.c.0.s8 %v325
    %v327 = vlaneseq
    %v328 = vshrl.u32 %v327, 7
    %v329 = vsub.s32 %v326, %v328
    %v330 = vrot.slane %v25, %v329
    %v332 = vunpack.c.l.s4 1983009808
    %v333 = vunpack.c.0.s8 %v332
    %v334 = vlaneseq
    %v335 = vshrl.u32 %v334, 7
    %v336 = vsub.s32 %v333, %v335
    %v337 = vrot.slane %v323, %v336
    %v338 = vcombine.high %v330, %v330
    %v339 = vcombine.high %v337, %v337
    %v341 = vunpack.c.l.s4 1983009808
    %v342 = vunpack.c.0.s8 %v341
    %v343 = vlaneseq
    %v344 = vshrl.u32 %v343, 7
    %v345 = vsub.s32 %v342, %v344
    %v346 = vrot.slane %v26, %v345
    %vm355 = vcmask 261120
    %v356 = vsel %vm355, %v346, 0
    %358 = vmatprep.subr.mxu0 %v58
    %359 = vmatpush1.msra.mxu0 %v57
    %360 = vmatprep.subr.mxu0 %v56
    %361 = vmatpush1.msra.mxu0 %v55
    %362 = vmatprep.subr.mxu0 %v54
    %363 = vmatpush1.msra.mxu0 %v53
    %364 = vmatprep.subr.mxu0 %v52
    %365 = vmatpush1.msra.mxu0 %v51
    %366 = vmatprep.subr.mxu0 %v50
    %367 = vmatpush1.msra.mxu0 %v49
    %368 = vmatprep.subr.mxu0 %v48
    %369 = vmatpush1.msra.mxu0 %v47
    %370 = vmatprep.subr.mxu0 %v46
    %371 = vmatpush1.msra.mxu0 %v45
    %372 = vmatprep.subr.mxu0 %v44
    %373 = vmatpush1.msra.mxu0 %v43
    %374 = vmatprep.subr.mxu0 %v42
    %375 = vmatpush1.msra.mxu0 %v41
    %376 = vmatprep.subr.mxu0 %v40
    %377 = vmatpush1.msra.mxu0 %v39
    %378 = vmatprep.subr.mxu0 %v38
    %379 = vmatpush1.msra.mxu0 %v37
    %380 = vmatprep.subr.mxu0 %v36
    %381 = vmatpush1.msra.mxu0 %v35
    %382 = vmatprep.subr.mxu0 %v34
    %383 = vmatpush1.msra.mxu0 %v33
    %384 = vmatprep.subr.mxu0 %v32
    %385 = vmatpush1.msra.mxu0 %v31
    %386 = vmatprep.subr.mxu0 %v30
    %387 = vmatpush1.msra.mxu0 %v29
    %388 = vmatprep.subr.mxu0 %v28
    %389 = vmatpush1.msra.mxu0 %v27
    %390 = vmatprep.subr.mxu0 %v90
    %391 = vmatpush2.msra.mxu0 %v89
    %392 = vmatprep.subr.mxu0 %v88
    %393 = vmatpush2.msra.mxu0 %v87
    %394 = vmatprep.subr.mxu0 %v86
    %395 = vmatpush2.msra.mxu0 %v85
    %396 = vmatprep.subr.mxu0 %v84
    %397 = vmatpush2.msra.mxu0 %v83
    %398 = vmatprep.subr.mxu0 %v82
    %399 = vmatpush2.msra.mxu0 %v81
    %400 = vmatprep.subr.mxu0 %v80
    %401 = vmatpush2.msra.mxu0 %v79
    %402 = vmatprep.subr.mxu0 %v78
    %403 = vmatpush2.msra.mxu0 %v77
    %404 = vmatprep.subr.mxu0 %v76
    %405 = vmatpush2.msra.mxu0 %v75
    %406 = vmatprep.subr.mxu0 %v74
    %407 = vmatpush2.msra.mxu0 %v73
    %408 = vmatprep.subr.mxu0 %v72
    %409 = vmatpush2.msra.mxu0 %v71
    %410 = vmatprep.subr.mxu0 %v70
    %411 = vmatpush2.msra.mxu0 %v69
    %412 = vmatprep.subr.mxu0 %v68
    %413 = vmatpush2.msra.mxu0 %v67
    %414 = vmatprep.subr.mxu0 %v66
    %415 = vmatpush2.msra.mxu0 %v65
    %416 = vmatprep.subr.mxu0 %v64
    %417 = vmatpush2.msra.mxu0 %v63
    %418 = vmatprep.subr.mxu0 %v62
    %419 = vmatpush2.msra.mxu0 %v61
    %420 = vmatprep.subr.mxu0 %v60
    %421 = vmatpush2.msra.mxu0 %v59
    %422 = vmatprep.mubr.f32.mxu0 %v321
    %423 = vmatmul.mubr.f32.gmra.mxu0 %v313
    %v424 = vpop.f32.mrf.mxu0
    %v425 = vadd.f32 %v296, %v424
    %v426 = vpop.f32.mrf.mxu0
    %v427 = vadd.f32 %v300, %v426
    %428 = vdwg.mxu0
    %429 = vmatprep.subr.mxu0 %v122
    %430 = vmatpush1.msra.mxu0 %v121
    %431 = vmatprep.subr.mxu0 %v120
    %432 = vmatpush1.msra.mxu0 %v119
    %433 = vmatprep.subr.mxu0 %v118
    %434 = vmatpush1.msra.mxu0 %v117
    %435 = vmatprep.subr.mxu0 %v116
    %436 = vmatpush1.msra.mxu0 %v115
    %437 = vmatprep.subr.mxu0 %v114
    %438 = vmatpush1.msra.mxu0 %v113
    %439 = vmatprep.subr.mxu0 %v112
    %440 = vmatpush1.msra.mxu0 %v111
    %441 = vmatprep.subr.mxu0 %v110
    %442 = vmatpush1.msra.mxu0 %v109
    %443 = vmatprep.subr.mxu0 %v108
    %444 = vmatpush1.msra.mxu0 %v107
    %445 = vmatprep.subr.mxu0 %v106
    %446 = vmatpush1.msra.mxu0 %v105
    %447 = vmatprep.subr.mxu0 %v104
    %448 = vmatpush1.msra.mxu0 %v103
    %449 = vmatprep.subr.mxu0 %v102
    %450 = vmatpush1.msra.mxu0 %v101
    %451 = vmatprep.subr.mxu0 %v100
    %452 = vmatpush1.msra.mxu0 %v99
    %453 = vmatprep.subr.mxu0 %v98
    %454 = vmatpush1.msra.mxu0 %v97
    %455 = vmatprep.subr.mxu0 %v96
    %456 = vmatpush1.msra.mxu0 %v95
    %457 = vmatprep.subr.mxu0 %v94
    %458 = vmatpush1.msra.mxu0 %v93
    %459 = vmatprep.subr.mxu0 %v92
    %460 = vmatpush1.msra.mxu0 %v91
    %461 = vmatprep.subr.mxu0 %v154
    %462 = vmatpush2.msra.mxu0 %v153
    %463 = vmatprep.subr.mxu0 %v152
    %464 = vmatpush2.msra.mxu0 %v151
    %465 = vmatprep.subr.mxu0 %v150
    %466 = vmatpush2.msra.mxu0 %v149
    %467 = vmatprep.subr.mxu0 %v148
    %468 = vmatpush2.msra.mxu0 %v147
    %469 = vmatprep.subr.mxu0 %v146
    %470 = vmatpush2.msra.mxu0 %v145
    %471 = vmatprep.subr.mxu0 %v144
    %472 = vmatpush2.msra.mxu0 %v143
    %473 = vmatprep.subr.mxu0 %v142
    %474 = vmatpush2.msra.mxu0 %v141
    %475 = vmatprep.subr.mxu0 %v140
    %476 = vmatpush2.msra.mxu0 %v139
    %477 = vmatprep.subr.mxu0 %v138
    %478 = vmatpush2.msra.mxu0 %v137
    %479 = vmatprep.subr.mxu0 %v136
    %480 = vmatpush2.msra.mxu0 %v135
    %481 = vmatprep.subr.mxu0 %v134
    %482 = vmatpush2.msra.mxu0 %v133
    %483 = vmatprep.subr.mxu0 %v132
    %484 = vmatpush2.msra.mxu0 %v131
    %485 = vmatprep.subr.mxu0 %v130
    %486 = vmatpush2.msra.mxu0 %v129
    %487 = vmatprep.subr.mxu0 %v128
    %488 = vmatpush2.msra.mxu0 %v127
    %489 = vmatprep.subr.mxu0 %v126
    %490 = vmatpush2.msra.mxu0 %v125
    %491 = vmatprep.subr.mxu0 %v124
    %492 = vmatpush2.msra.mxu0 %v123
    %493 = vmatprep.mubr.f32.mxu0 %v322
    %494 = vmatmul.mubr.f32.gmra.mxu0 %v320
    %v495 = vpop.f32.mrf.mxu0
    %v496 = vadd.f32 %v425, %v495
    %v497 = vpop.f32.mrf.mxu0
    %v498 = vadd.f32 %v427, %v497
    %499 = vdwg.mxu0
    %500 = vmatprep.subr.mxu0 %v186
    %501 = vmatpush1.msra.mxu0 %v185
    %502 = vmatprep.subr.mxu0 %v184
    %503 = vmatpush1.msra.mxu0 %v183
    %504 = vmatprep.subr.mxu0 %v182
    %505 = vmatpush1.msra.mxu0 %v181
    %506 = vmatprep.subr.mxu0 %v180
    %507 = vmatpush1.msra.mxu0 %v179
    %508 = vmatprep.subr.mxu0 %v178
    %509 = vmatpush1.msra.mxu0 %v177
    %510 = vmatprep.subr.mxu0 %v176
    %511 = vmatpush1.msra.mxu0 %v175
    %512 = vmatprep.subr.mxu0 %v174
    %513 = vmatpush1.msra.mxu0 %v173
    %514 = vmatprep.subr.mxu0 %v172
    %515 = vmatpush1.msra.mxu0 %v171
    %516 = vmatprep.subr.mxu0 %v170
    %517 = vmatpush1.msra.mxu0 %v169
    %518 = vmatprep.subr.mxu0 %v168
    %519 = vmatpush1.msra.mxu0 %v167
    %520 = vmatprep.subr.mxu0 %v166
    %521 = vmatpush1.msra.mxu0 %v165
    %522 = vmatprep.subr.mxu0 %v164
    %523 = vmatpush1.msra.mxu0 %v163
    %524 = vmatprep.subr.mxu0 %v162
    %525 = vmatpush1.msra.mxu0 %v161
    %526 = vmatprep.subr.mxu0 %v160
    %527 = vmatpush1.msra.mxu0 %v159
    %528 = vmatprep.subr.mxu0 %v158
    %529 = vmatpush1.msra.mxu0 %v157
    %530 = vmatprep.subr.mxu0 %v156
    %531 = vmatpush1.msra.mxu0 %v155
    %532 = vmatprep.subr.mxu0 %v218
    %533 = vmatpush2.msra.mxu0 %v217
    %534 = vmatprep.subr.mxu0 %v216
    %535 = vmatpush2.msra.mxu0 %v215
    %536 = vmatprep.subr.mxu0 %v214
    %537 = vmatpush2.msra.mxu0 %v213
    %538 = vmatprep.subr.mxu0 %v212
    %539 = vmatpush2.msra.mxu0 %v211
    %540 = vmatprep.subr.mxu0 %v210
    %541 = vmatpush2.msra.mxu0 %v209
    %542 = vmatprep.subr.mxu0 %v208
    %543 = vmatpush2.msra.mxu0 %v207
    %544 = vmatprep.subr.mxu0 %v206
    %545 = vmatpush2.msra.mxu0 %v205
    %546 = vmatprep.subr.mxu0 %v204
    %547 = vmatpush2.msra.mxu0 %v203
    %548 = vmatprep.subr.mxu0 %v202
    %549 = vmatpush2.msra.mxu0 %v201
    %550 = vmatprep.subr.mxu0 %v200
    %551 = vmatpush2.msra.mxu0 %v199
    %552 = vmatprep.subr.mxu0 %v198
    %553 = vmatpush2.msra.mxu0 %v197
    %554 = vmatprep.subr.mxu0 %v196
    %555 = vmatpush2.msra.mxu0 %v195
    %556 = vmatprep.subr.mxu0 %v194
    %557 = vmatpush2.msra.mxu0 %v193
    %558 = vmatprep.subr.mxu0 %v192
    %559 = vmatpush2.msra.mxu0 %v191
    %560 = vmatprep.subr.mxu0 %v190
    %561 = vmatpush2.msra.mxu0 %v189
    %562 = vmatprep.subr.mxu0 %v188
    %563 = vmatpush2.msra.mxu0 %v187
    %564 = vmatprep.mubr.f32.mxu0 %v338
    %565 = vmatmul.mubr.f32.gmra.mxu0 %v330
    %v566 = vpop.f32.mrf.mxu0
    %v567 = vadd.f32 %v496, %v566
    %v568 = vpop.f32.mrf.mxu0
    %v569 = vadd.f32 %v498, %v568
    %570 = vdwg.mxu0
    %571 = vmatprep.subr.mxu0 %v250
    %572 = vmatpush1.msra.mxu0 %v249
    %573 = vmatprep.subr.mxu0 %v248
    %574 = vmatpush1.msra.mxu0 %v247
    %575 = vmatprep.subr.mxu0 %v246
    %576 = vmatpush1.msra.mxu0 %v245
    %577 = vmatprep.subr.mxu0 %v244
    %578 = vmatpush1.msra.mxu0 %v243
    %579 = vmatprep.subr.mxu0 %v242
    %580 = vmatpush1.msra.mxu0 %v241
    %581 = vmatprep.subr.mxu0 %v240
    %582 = vmatpush1.msra.mxu0 %v239
    %583 = vmatprep.subr.mxu0 %v238
    %584 = vmatpush1.msra.mxu0 %v237
    %585 = vmatprep.subr.mxu0 %v236
    %586 = vmatpush1.msra.mxu0 %v235
    %587 = vmatprep.subr.mxu0 %v234
    %588 = vmatpush1.msra.mxu0 %v233
    %589 = vmatprep.subr.mxu0 %v232
    %590 = vmatpush1.msra.mxu0 %v231
    %591 = vmatprep.subr.mxu0 %v230
    %592 = vmatpush1.msra.mxu0 %v229
    %593 = vmatprep.subr.mxu0 %v228
    %594 = vmatpush1.msra.mxu0 %v227
    %595 = vmatprep.subr.mxu0 %v226
    %596 = vmatpush1.msra.mxu0 %v225
    %597 = vmatprep.subr.mxu0 %v224
    %598 = vmatpush1.msra.mxu0 %v223
    %599 = vmatprep.subr.mxu0 %v222
    %600 = vmatpush1.msra.mxu0 %v221
    %601 = vmatprep.subr.mxu0 %v220
    %602 = vmatpush1.msra.mxu0 %v219
    %603 = vmatprep.subr.mxu0 %v282
    %604 = vmatpush2.msra.mxu0 %v281
    %605 = vmatprep.subr.mxu0 %v280
    %606 = vmatpush2.msra.mxu0 %v279
    %607 = vmatprep.subr.mxu0 %v278
    %608 = vmatpush2.msra.mxu0 %v277
    %609 = vmatprep.subr.mxu0 %v276
    %610 = vmatpush2.msra.mxu0 %v275
    %611 = vmatprep.subr.mxu0 %v274
    %612 = vmatpush2.msra.mxu0 %v273
    %613 = vmatprep.subr.mxu0 %v272
    %614 = vmatpush2.msra.mxu0 %v271
    %615 = vmatprep.subr.mxu0 %v270
    %616 = vmatpush2.msra.mxu0 %v269
    %617 = vmatprep.subr.mxu0 %v268
    %618 = vmatpush2.msra.mxu0 %v267
    %619 = vmatprep.subr.mxu0 %v266
    %620 = vmatpush2.msra.mxu0 %v265
    %621 = vmatprep.subr.mxu0 %v264
    %622 = vmatpush2.msra.mxu0 %v263
    %623 = vmatprep.subr.mxu0 %v262
    %624 = vmatpush2.msra.mxu0 %v261
    %625 = vmatprep.subr.mxu0 %v260
    %626 = vmatpush2.msra.mxu0 %v259
    %627 = vmatprep.subr.mxu0 %v258
    %628 = vmatpush2.msra.mxu0 %v257
    %629 = vmatprep.subr.mxu0 %v256
    %630 = vmatpush2.msra.mxu0 %v255
    %631 = vmatprep.subr.mxu0 %v254
    %632 = vmatpush2.msra.mxu0 %v253
    %633 = vmatprep.subr.mxu0 %v252
    %634 = vmatpush2.msra.mxu0 %v251
    %635 = vmatprep.mubr.f32.mxu0 %v339
    %636 = vmatmul.mubr.f32.gmra.mxu0 %v337
    %v637 = vpop.f32.mrf.mxu0
    %v638 = vadd.f32 %v567, %v637
    %v639 = vpop.f32.mrf.mxu0
    %v640 = vadd.f32 %v569, %v639
    %641 = vdwg.mxu0
    %642 = vmatprep.subr.mxu0 0.0
    %643 = vmatpush1.msra.mxu0 0.0
    %644 = vmatprep.subr.mxu0 0.0
    %645 = vmatpush1.msra.mxu0 0.0
    %646 = vmatprep.subr.mxu0 0.0
    %647 = vmatpush1.msra.mxu0 0.0
    %648 = vmatprep.subr.mxu0 0.0
    %649 = vmatpush1.msra.mxu0 0.0
    %650 = vmatprep.subr.mxu0 0.0
    %651 = vmatpush1.msra.mxu0 0.0
    %652 = vmatprep.subr.mxu0 0.0
    %653 = vmatpush1.msra.mxu0 0.0
    %654 = vmatprep.subr.mxu0 0.0
    %655 = vmatpush1.msra.mxu0 0.0
    %656 = vmatprep.subr.mxu0 0.0
    %657 = vmatpush1.msra.mxu0 0.0
    %658 = vmatprep.subr.mxu0 0.0
    %659 = vmatpush1.msra.mxu0 0.0
    %660 = vmatprep.subr.mxu0 0.0
    %661 = vmatpush1.msra.mxu0 0.0
    %662 = vmatprep.subr.mxu0 0.0
    %663 = vmatpush1.msra.mxu0 0.0
    %664 = vmatprep.subr.mxu0 0.0
    %665 = vmatpush1.msra.mxu0 0.0
    %666 = vmatprep.subr.mxu0 %v290
    %667 = vmatpush1.msra.mxu0 %v289
    %668 = vmatprep.subr.mxu0 %v288
    %669 = vmatpush1.msra.mxu0 %v287
    %670 = vmatprep.subr.mxu0 %v286
    %671 = vmatpush1.msra.mxu0 %v285
    %672 = vmatprep.subr.mxu0 %v284
    %673 = vmatpush1.msra.mxu0 %v283
    %674 = vmatprep.subr.mxu0 0.0
    %675 = vmatpush2.msra.mxu0 0.0
    %676 = vmatprep.subr.mxu0 0.0
    %677 = vmatpush2.msra.mxu0 0.0
    %678 = vmatprep.subr.mxu0 0.0
    %679 = vmatpush2.msra.mxu0 0.0
    %680 = vmatprep.subr.mxu0 0.0
    %681 = vmatpush2.msra.mxu0 0.0
    %682 = vmatprep.subr.mxu0 0.0
    %683 = vmatpush2.msra.mxu0 0.0
    %684 = vmatprep.subr.mxu0 0.0
    %685 = vmatpush2.msra.mxu0 0.0
    %686 = vmatprep.subr.mxu0 0.0
    %687 = vmatpush2.msra.mxu0 0.0
    %688 = vmatprep.subr.mxu0 0.0
    %689 = vmatpush2.msra.mxu0 0.0
    %690 = vmatprep.subr.mxu0 0.0
    %691 = vmatpush2.msra.mxu0 0.0
    %692 = vmatprep.subr.mxu0 0.0
    %693 = vmatpush2.msra.mxu0 0.0
    %694 = vmatprep.subr.mxu0 0.0
    %695 = vmatpush2.msra.mxu0 0.0
    %696 = vmatprep.subr.mxu0 0.0
    %697 = vmatpush2.msra.mxu0 0.0
    %698 = vmatprep.subr.mxu0 0.0
    %699 = vmatpush2.msra.mxu0 0.0
    %700 = vmatprep.subr.mxu0 0.0
    %701 = vmatpush2.msra.mxu0 0.0
    %702 = vmatprep.subr.mxu0 0.0
    %703 = vmatpush2.msra.mxu0 0.0
    %704 = vmatprep.subr.mxu0 0.0
    %705 = vmatpush2.msra.mxu0 0.0
    %706 = vmatprep.mubr.f32.mxu0 0.0
    %707 = vmatmul.mubr.f32.gmra.mxu0 %v356
    %v708 = vpop.f32.mrf.mxu0
    %v709 = vadd.f32 %v638, %v708
    %v710 = vpop.f32.mrf.mxu0
    %v711 = vadd.f32 %v640, %v710
    %712 = vdwg.mxu0
    %vm713 = vcmask 25600
    %714 = vst.msk [vmem:[#allocation2] sm:$0x3] %vm713, %v709
    %v715 = vmax.f32 %v709, 0.0
    %v716 = vmax.f32 %v711, 0.0
    %v717 = vld [vmem:[%s3] sm:$0xff]
    %v718 = vld [vmem:[%s3 + $0x8] sm:$0xff]
    %v719 = vld [vmem:[%s3 + $0x10] sm:$0xff]
    %v720 = vld [vmem:[%s3 + $0x18] sm:$0xff]
    %v721 = vld [vmem:[%s3 + $0x20] sm:$0xff]
    %v722 = vld [vmem:[%s3 + $0x28] sm:$0xff]
    %v723 = vld [vmem:[%s3 + $0x30] sm:$0xff]
    %v724 = vld [vmem:[%s3 + $0x38] sm:$0xff]
    %v725 = vld [vmem:[%s3 + $0x40] sm:$0xff]
    %v726 = vld [vmem:[%s3 + $0x48] sm:$0xff]
    %v727 = vld [vmem:[%s3 + $0x50] sm:$0xff]
    %v728 = vld [vmem:[%s3 + $0x58] sm:$0xff]
    %v729 = vld [vmem:[%s3 + $0x60] sm:$0xff]
    %v730 = vld [vmem:[%s3 + $0x68] sm:$0xff]
    %v731 = vld [vmem:[%s3 + $0x70] sm:$0xff]
    %v732 = vld [vmem:[%s3 + $0x78] sm:$0xff]
    %v733 = vld [vmem:[%s4] sm:$0x1]
    %v735 = vlaneseq
    %v736 = vshrl.u32 %v735, 7
    %v737 = vsub.s32 0, %v736
    %v738 = vrot.slane %v733, %v737
    %742 = vrot.lane.b32.xlu0 %v715, 124
    %v743 = vpop.permute.xlu0 %742
    %744 = vrot.lane.b32.xlu0 %v716, 124
    %v745 = vpop.permute.xlu0 %744
    %vm746 = vcmask 1014784
    %v747 = vsel %vm746, %v743, %v745
    %749 = vmatprep.subr.mxu0 0.0
    %750 = vmatpush1.msra.mxu0 %v732
    %751 = vmatprep.subr.mxu0 0.0
    %752 = vmatpush1.msra.mxu0 %v731
    %753 = vmatprep.subr.mxu0 0.0
    %754 = vmatpush1.msra.mxu0 %v730
    %755 = vmatprep.subr.mxu0 0.0
    %756 = vmatpush1.msra.mxu0 %v729
    %757 = vmatprep.subr.mxu0 0.0
    %758 = vmatpush1.msra.mxu0 %v728
    %759 = vmatprep.subr.mxu0 0.0
    %760 = vmatpush1.msra.mxu0 %v727
    %761 = vmatprep.subr.mxu0 0.0
    %762 = vmatpush1.msra.mxu0 %v726
    %763 = vmatprep.subr.mxu0 0.0
    %764 = vmatpush1.msra.mxu0 %v725
    %765 = vmatprep.subr.mxu0 0.0
    %766 = vmatpush1.msra.mxu0 %v724
    %767 = vmatprep.subr.mxu0 0.0
    %768 = vmatpush1.msra.mxu0 %v723
    %769 = vmatprep.subr.mxu0 0.0
    %770 = vmatpush1.msra.mxu0 %v722
    %771 = vmatprep.subr.mxu0 0.0
    %772 = vmatpush1.msra.mxu0 %v721
    %773 = vmatprep.subr.mxu0 0.0
    %774 = vmatpush1.msra.mxu0 %v720
    %775 = vmatprep.subr.mxu0 0.0
    %776 = vmatpush1.msra.mxu0 %v719
    %777 = vmatprep.subr.mxu0 0.0
    %778 = vmatpush1.msra.mxu0 %v718
    %779 = vmatprep.subr.mxu0 0.0
    %780 = vmatpush1.msra.mxu0 %v717
    %781 = vmatprep.subr.mxu0 0.0
    %782 = vmatpush2.msra.mxu0 0.0
    %783 = vmatprep.subr.mxu0 0.0
    %784 = vmatpush2.msra.mxu0 0.0
    %785 = vmatprep.subr.mxu0 0.0
    %786 = vmatpush2.msra.mxu0 0.0
    %787 = vmatprep.subr.mxu0 0.0
    %788 = vmatpush2.msra.mxu0 0.0
    %789 = vmatprep.subr.mxu0 0.0
    %790 = vmatpush2.msra.mxu0 0.0
    %791 = vmatprep.subr.mxu0 0.0
    %792 = vmatpush2.msra.mxu0 0.0
    %793 = vmatprep.subr.mxu0 0.0
    %794 = vmatpush2.msra.mxu0 0.0
    %795 = vmatprep.subr.mxu0 0.0
    %796 = vmatpush2.msra.mxu0 0.0
    %797 = vmatprep.subr.mxu0 0.0
    %798 = vmatpush2.msra.mxu0 0.0
    %799 = vmatprep.subr.mxu0 0.0
    %800 = vmatpush2.msra.mxu0 0.0
    %801 = vmatprep.subr.mxu0 0.0
    %802 = vmatpush2.msra.mxu0 0.0
    %803 = vmatprep.subr.mxu0 0.0
    %804 = vmatpush2.msra.mxu0 0.0
    %805 = vmatprep.subr.mxu0 0.0
    %806 = vmatpush2.msra.mxu0 0.0
    %807 = vmatprep.subr.mxu0 0.0
    %808 = vmatpush2.msra.mxu0 0.0
    %809 = vmatprep.subr.mxu0 0.0
    %810 = vmatpush2.msra.mxu0 0.0
    %811 = vmatprep.subr.mxu0 0.0
    %812 = vmatpush2.msra.mxu0 0.0
    %813 = vmatprep.mubr.f32.mxu0 0.0
    %814 = vmatmul.mubr.f32.gmra.mxu0 %v747
    %v815 = vpop.f32.mrf.mxu0
    %v816 = vadd.f32 %v738, %v815
    %v817 = vpop.f32.mrf.mxu0
    %818 = vdwg.mxu0
    %vm819 = vcmask 9216
    %v820 = vsel %vm819, %v816, -inf
    %821 = vmax.xlane.f32.xlu0 %v820
    %v822 = vpop.xlane.xlu0 %821
    %v823 = vsub.f32 %v816, %v822
    %v824 = vmul.f32 %v823, 1.442695
    %v825 = vpow.pop %v824
    %v826 = vsel %vm819, %v825, 0.0
    %827 = vadd.xlane.f32.xlu0 %v826
    %v828 = vpop.xlane.xlu0 %827
    %v829 = vrcp.pop %v828
    %v830 = vmul.f32 %v825, %v829
    %831 = vst.msk [vmem:[#allocation4] sm:$0x3] %vm819, %v830
    // Predicated region
    $region22: #{eegnet_with_dat_forward.3} parent=1 // pred_check
      _
    $region23: #{eegnet_with_dat_forward.3} parent=1 // pred_check_branch
      %833 = sbr.rel (0) target = $region25
    $region24: #{eegnet_with_dat_forward.3} parent=1 // pred_region
      %s835 = ssub.s32 32, 32
      %836 = vsyncadd [#allocation3], %s835
      %s838 = sshll.u32 [#allocation2], 4
      %s839 = int_to_ptr.vmem [resolvable:$true] %s838
      %841 = dma.vmem_to_hbm [thread:$0]  %s839, 32, %s5, [#allocation3]
    $region25: #{eegnet_with_dat_forward.3} parent=1 // pred_fallthru
      _
    // Predicated region
    $region26: #{eegnet_with_dat_forward.3} parent=1 // pred_check
      _
    $region27: #{eegnet_with_dat_forward.3} parent=1 // pred_check_branch
      %843 = sbr.rel (0) target = $region29
    $region28: #{eegnet_with_dat_forward.3} parent=1 // pred_region
      %s845 = ssub.s32 32, 32
      %846 = vsyncadd [#allocation5], %s845
      %s848 = sshll.u32 [#allocation4], 4
      %s849 = int_to_ptr.vmem [resolvable:$true] %s848
      %851 = dma.vmem_to_hbm [thread:$0]  %s849, 32, %s6, [#allocation5]
    $region29: #{eegnet_with_dat_forward.3} parent=1 // pred_fallthru
      _
    // Predicated region
    $region30: #{eegnet_with_dat_forward.3} parent=1 // pred_check
      _
    $region31: #{eegnet_with_dat_forward.3} parent=1 // pred_check_branch
      %853 = sbr.rel (0) target = $region33
    $region32: #{eegnet_with_dat_forward.3} parent=1 // pred_region
      %854 = dma.done [#allocation3], 32
    $region33: #{eegnet_with_dat_forward.3} parent=1 // pred_fallthru
      _
    // Predicated region
    $region34: #{eegnet_with_dat_forward.3} parent=1 // pred_check
      _
    $region35: #{eegnet_with_dat_forward.3} parent=1 // pred_check_branch
      %856 = sbr.rel (0) target = $region37
    $region36: #{eegnet_with_dat_forward.3} parent=1 // pred_region
      %857 = dma.done [#allocation5], 32
    $region37: #{eegnet_with_dat_forward.3} parent=1 // pred_fallthru
      _
    %858 = vsyncpa [#allocation3], 1
    %859 = vsyncpa [#allocation5], 1

// kernel: eegnet_with_dat_forward.2
$region0: #{eegnet_with_dat_forward.2}
  #allocation0 [shape = 'u32[]', space=smem, size = 0x4, offset = 0x4, fixed_abs, tag = 'smem constant byte address 0x4 - core index']
  #allocation1 [shape = 'u32[144,128]{1,0:T(1,128)}', space=vmem, size = 0x12000, scoped, tag = 'internal scratch']
  %s0 = inlined_call_operand.vmem [shape: bf16[2,512,1125], index: 0, kind: input, shape index: {}]
  %s1 = inlined_call_operand.vmem [shape: bf16[32,512], index: 1, kind: input, shape index: {}]
  %s2 = inlined_call_operand.vmem [shape: f32[32,1], index: 2, kind: input, shape index: {}]
  %s3 = inlined_call_operand.vmem [shape: bf16[1124,281], index: 3, kind: input, shape index: {}]
  %s4 = inlined_call_operand.vmem [shape: f32[32,16], index: 4, kind: input, shape index: {}]
  %s5 = inlined_call_operand.vmem [shape: f32[32,32], index: 5, kind: input, shape index: {}]
  %s6 = inlined_call_operand.vmem [shape: f32[32,1], index: 6, kind: input, shape index: {}]
  %s7 = inlined_call_operand.vmem [shape: bf16[264,33], index: 7, kind: input, shape index: {}]
  %s8 = inlined_call_operand.vmem [shape: f32[2,32,33], index: 8, kind: output, shape index: {}]
  %s9 = sld [smem:[#allocation0]]
  $region42: #{eegnet_with_dat_forward.2} parent=0
    _
  %s11 = ssub.s32 1, %s9
  %s12 = scalar_select 0, %s11, %s9
  // Predicated region
  $region2: #{eegnet_with_dat_forward.2} parent=0 // pred_check
    _
  $region3: #{eegnet_with_dat_forward.2} parent=0 // pred_check_branch
    %14 = sbr.rel (0) target = $region5
  $region4: #{eegnet_with_dat_forward.2} parent=0 // pred_region
    _
  $region5: #{eegnet_with_dat_forward.2} parent=0 // pred_fallthru
    _
  // Predicated region
  $region6: #{eegnet_with_dat_forward.2} parent=0 // pred_check
    _
  $region7: #{eegnet_with_dat_forward.2} parent=0 // pred_check_branch
    %16 = sbr.rel (0) target = $region9
  $region8: #{eegnet_with_dat_forward.2} parent=0 // pred_region
    _
  $region9: #{eegnet_with_dat_forward.2} parent=0 // pred_fallthru
    _
  // Predicated region
  $region10: #{eegnet_with_dat_forward.2} parent=0 // pred_check
    _
  $region11: #{eegnet_with_dat_forward.2} parent=0 // pred_check_branch
    %18 = sbr.rel (0) target = $region13
  $region12: #{eegnet_with_dat_forward.2} parent=0 // pred_region
    _
  $region13: #{eegnet_with_dat_forward.2} parent=0 // pred_fallthru
    _
  // Predicated region
  $region14: #{eegnet_with_dat_forward.2} parent=0 // pred_check
    _
  $region15: #{eegnet_with_dat_forward.2} parent=0 // pred_check_branch
    %20 = sbr.rel (0) target = $region17
  $region16: #{eegnet_with_dat_forward.2} parent=0 // pred_region
    _
  $region17: #{eegnet_with_dat_forward.2} parent=0 // pred_fallthru
    _
  // Predicated region
  $region18: #{eegnet_with_dat_forward.2} parent=0 // pred_check
    _
  $region19: #{eegnet_with_dat_forward.2} parent=0 // pred_check_branch
    %22 = sbr.rel (0) target = $region21
  $region20: #{eegnet_with_dat_forward.2} parent=0 // pred_region
    _
  $region21: #{eegnet_with_dat_forward.2} parent=0 // pred_fallthru
    _
  // Predicated region
  $region22: #{eegnet_with_dat_forward.2} parent=0 // pred_check
    _
  $region23: #{eegnet_with_dat_forward.2} parent=0 // pred_check_branch
    %24 = sbr.rel (0) target = $region25
  $region24: #{eegnet_with_dat_forward.2} parent=0 // pred_region
    _
  $region25: #{eegnet_with_dat_forward.2} parent=0 // pred_fallthru
    _
  // Predicated region
  $region26: #{eegnet_with_dat_forward.2} parent=0 // pred_check
    _
  $region27: #{eegnet_with_dat_forward.2} parent=0 // pred_check_branch
    %26 = sbr.rel (0) target = $region29
  $region28: #{eegnet_with_dat_forward.2} parent=0 // pred_region
    _
  $region29: #{eegnet_with_dat_forward.2} parent=0 // pred_fallthru
    _
  // Predicated region
  $region30: #{eegnet_with_dat_forward.2} parent=0 // pred_check
    _
  $region31: #{eegnet_with_dat_forward.2} parent=0 // pred_check_branch
    %28 = sbr.rel (0) target = $region33
  $region32: #{eegnet_with_dat_forward.2} parent=0 // pred_region
    _
  $region33: #{eegnet_with_dat_forward.2} parent=0 // pred_fallthru
    _
  %v30 = vld [vmem:[%s1] sm:$0xff]
  %v31 = vld [vmem:[%s1 + $0x8] sm:$0xff]
  %v32 = vld [vmem:[%s1 + $0x10] sm:$0xff]
  %v33 = vld [vmem:[%s1 + $0x18] sm:$0xff]
  %v34 = vld [vmem:[%s1 + $0x20] sm:$0xff]
  %v35 = vld [vmem:[%s1 + $0x28] sm:$0xff]
  %v36 = vld [vmem:[%s1 + $0x30] sm:$0xff]
  %v37 = vld [vmem:[%s1 + $0x38] sm:$0xff]
  %v38 = vld [vmem:[%s4] sm:$0xff]
  %v39 = vld [vmem:[%s4 + $0x8] sm:$0xff]
  %v40 = vld [vmem:[%s4 + $0x10] sm:$0xff]
  %v41 = vld [vmem:[%s4 + $0x18] sm:$0xff]
  %v42 = vld [vmem:[%s5] sm:$0xff]
  %v43 = vld [vmem:[%s5 + $0x8] sm:$0xff]
  %v44 = vld [vmem:[%s5 + $0x10] sm:$0xff]
  %v45 = vld [vmem:[%s5 + $0x18] sm:$0xff]
  %v46 = vld [vmem:[%s0] sm:$0xff]
  %v47 = vld [vmem:[%s0 + $0x8] sm:$0xff]
  %v48 = vld [vmem:[%s0 + $0x10] sm:$0xff]
  %v49 = vld [vmem:[%s0 + $0x18] sm:$0xff]
  %v50 = vld [vmem:[%s0 + $0x20] sm:$0xf]
  %v51 = vld [vmem:[%s0 + $0x24] sm:$0xff]
  %v52 = vld [vmem:[%s0 + $0x2c] sm:$0xff]
  %v53 = vld [vmem:[%s0 + $0x34] sm:$0xff]
  %v54 = vld [vmem:[%s0 + $0x3c] sm:$0xff]
  %v55 = vld [vmem:[%s0 + $0x44] sm:$0xf]
  %v56 = vld [vmem:[%s0 + $0x48] sm:$0xff]
  %v57 = vld [vmem:[%s0 + $0x50] sm:$0xff]
  %v58 = vld [vmem:[%s0 + $0x58] sm:$0xff]
  %v59 = vld [vmem:[%s0 + $0x60] sm:$0xff]
  %v60 = vld [vmem:[%s0 + $0x68] sm:$0xf]
  %v61 = vld [vmem:[%s0 + $0x6c] sm:$0xff]
  %v62 = vld [vmem:[%s0 + $0x74] sm:$0xff]
  %v63 = vld [vmem:[%s0 + $0x7c] sm:$0xff]
  %v64 = vld [vmem:[%s0 + $0x84] sm:$0xff]
  %v65 = vld [vmem:[%s0 + $0x8c] sm:$0xf]
  %v66 = vld [vmem:[%s0 + $0x90] sm:$0xff]
  %v67 = vld [vmem:[%s0 + $0x98] sm:$0xff]
  %v68 = vld [vmem:[%s0 + $0xa0] sm:$0xff]
  %v69 = vld [vmem:[%s0 + $0xa8] sm:$0xff]
  %v70 = vld [vmem:[%s0 + $0xb0] sm:$0xf]
  %v71 = vld [vmem:[%s0 + $0xb4] sm:$0xff]
  %v72 = vld [vmem:[%s0 + $0xbc] sm:$0xff]
  %v73 = vld [vmem:[%s0 + $0xc4] sm:$0xff]
  %v74 = vld [vmem:[%s0 + $0xcc] sm:$0xff]
  %v75 = vld [vmem:[%s0 + $0xd4] sm:$0xf]
  %v76 = vld [vmem:[%s0 + $0xd8] sm:$0xff]
  %v77 = vld [vmem:[%s0 + $0xe0] sm:$0xff]
  %v78 = vld [vmem:[%s0 + $0xe8] sm:$0xff]
  %v79 = vld [vmem:[%s0 + $0xf0] sm:$0xff]
  %v80 = vld [vmem:[%s0 + $0xf8] sm:$0xf]
  %v81 = vld [vmem:[%s0 + $0xfc] sm:$0xff]
  %v82 = vld [vmem:[%s0 + $0x104] sm:$0xff]
  %v83 = vld [vmem:[%s0 + $0x10c] sm:$0xff]
  %v84 = vld [vmem:[%s0 + $0x114] sm:$0xff]
  %v85 = vld [vmem:[%s0 + $0x11c] sm:$0xf]
  %v86 = vld [vmem:[%s0 + $0x120] sm:$0xff]
  %v87 = vld [vmem:[%s0 + $0x128] sm:$0xff]
  %v88 = vld [vmem:[%s0 + $0x130] sm:$0xff]
  %v89 = vld [vmem:[%s0 + $0x138] sm:$0xff]
  %v90 = vld [vmem:[%s0 + $0x140] sm:$0xf]
  %v91 = vld [vmem:[%s0 + $0x144] sm:$0xff]
  %v92 = vld [vmem:[%s0 + $0x14c] sm:$0xff]
  %v93 = vld [vmem:[%s0 + $0x154] sm:$0xff]
  %v94 = vld [vmem:[%s0 + $0x15c] sm:$0xff]
  %v95 = vld [vmem:[%s0 + $0x164] sm:$0xf]
  %v96 = vld [vmem:[%s0 + $0x168] sm:$0xff]
  %v97 = vld [vmem:[%s0 + $0x170] sm:$0xff]
  %v98 = vld [vmem:[%s0 + $0x178] sm:$0xff]
  %v99 = vld [vmem:[%s0 + $0x180] sm:$0xff]
  %v100 = vld [vmem:[%s0 + $0x188] sm:$0xf]
  %v101 = vld [vmem:[%s0 + $0x18c] sm:$0xff]
  %v102 = vld [vmem:[%s0 + $0x194] sm:$0xff]
  %v103 = vld [vmem:[%s0 + $0x19c] sm:$0xff]
  %v104 = vld [vmem:[%s0 + $0x1a4] sm:$0xff]
  %v105 = vld [vmem:[%s0 + $0x1ac] sm:$0xf]
  %v106 = vld [vmem:[%s0 + $0x1b0] sm:$0xff]
  %v107 = vld [vmem:[%s0 + $0x1b8] sm:$0xff]
  %v108 = vld [vmem:[%s0 + $0x1c0] sm:$0xff]
  %v109 = vld [vmem:[%s0 + $0x1c8] sm:$0xff]
  %v110 = vld [vmem:[%s0 + $0x1d0] sm:$0xf]
  %v111 = vld [vmem:[%s0 + $0x1d4] sm:$0xff]
  %v112 = vld [vmem:[%s0 + $0x1dc] sm:$0xff]
  %v113 = vld [vmem:[%s0 + $0x1e4] sm:$0xff]
  %v114 = vld [vmem:[%s0 + $0x1ec] sm:$0xff]
  %v115 = vld [vmem:[%s0 + $0x1f4] sm:$0xf]
  %v116 = vld [vmem:[%s0 + $0x1f8] sm:$0xff]
  %v117 = vld [vmem:[%s0 + $0x200] sm:$0xff]
  %v118 = vld [vmem:[%s0 + $0x208] sm:$0xff]
  %v119 = vld [vmem:[%s0 + $0x210] sm:$0xff]
  %v120 = vld [vmem:[%s0 + $0x218] sm:$0xf]
  %v121 = vld [vmem:[%s0 + $0x21c] sm:$0xff]
  %v122 = vld [vmem:[%s0 + $0x224] sm:$0xff]
  %v123 = vld [vmem:[%s0 + $0x22c] sm:$0xff]
  %v124 = vld [vmem:[%s0 + $0x234] sm:$0xff]
  %v125 = vld [vmem:[%s0 + $0x23c] sm:$0xf]
  %v126 = vld [vmem:[%s0 + $0x240] sm:$0xff]
  %v127 = vld [vmem:[%s0 + $0x248] sm:$0xff]
  %v128 = vld [vmem:[%s0 + $0x250] sm:$0xff]
  %v129 = vld [vmem:[%s0 + $0x258] sm:$0xff]
  %v130 = vld [vmem:[%s0 + $0x260] sm:$0xf]
  %v131 = vld [vmem:[%s0 + $0x264] sm:$0xff]
  %v132 = vld [vmem:[%s0 + $0x26c] sm:$0xff]
  %v133 = vld [vmem:[%s0 + $0x274] sm:$0xff]
  %v134 = vld [vmem:[%s0 + $0x27c] sm:$0xff]
  %v135 = vld [vmem:[%s0 + $0x284] sm:$0xf]
  %v136 = vld [vmem:[%s0 + $0x288] sm:$0xff]
  %v137 = vld [vmem:[%s0 + $0x290] sm:$0xff]
  %v138 = vld [vmem:[%s0 + $0x298] sm:$0xff]
  %v139 = vld [vmem:[%s0 + $0x2a0] sm:$0xff]
  %v140 = vld [vmem:[%s0 + $0x2a8] sm:$0xf]
  %v141 = vld [vmem:[%s0 + $0x2ac] sm:$0xff]
  %v142 = vld [vmem:[%s0 + $0x2b4] sm:$0xff]
  %v143 = vld [vmem:[%s0 + $0x2bc] sm:$0xff]
  %v144 = vld [vmem:[%s0 + $0x2c4] sm:$0xff]
  %v145 = vld [vmem:[%s0 + $0x2cc] sm:$0xf]
  %v146 = vld [vmem:[%s0 + $0x2d0] sm:$0xff]
  %v147 = vld [vmem:[%s0 + $0x2d8] sm:$0xff]
  %v148 = vld [vmem:[%s0 + $0x2e0] sm:$0xff]
  %v149 = vld [vmem:[%s0 + $0x2e8] sm:$0xff]
  %v150 = vld [vmem:[%s0 + $0x2f0] sm:$0xf]
  %v151 = vld [vmem:[%s0 + $0x2f4] sm:$0xff]
  %v152 = vld [vmem:[%s0 + $0x2fc] sm:$0xff]
  %v153 = vld [vmem:[%s0 + $0x304] sm:$0xff]
  %v154 = vld [vmem:[%s0 + $0x30c] sm:$0xff]
  %v155 = vld [vmem:[%s0 + $0x314] sm:$0xf]
  %v156 = vld [vmem:[%s0 + $0x318] sm:$0xff]
  %v157 = vld [vmem:[%s0 + $0x320] sm:$0xff]
  %v158 = vld [vmem:[%s0 + $0x328] sm:$0xff]
  %v159 = vld [vmem:[%s0 + $0x330] sm:$0xff]
  %v160 = vld [vmem:[%s0 + $0x338] sm:$0xf]
  %v161 = vld [vmem:[%s0 + $0x33c] sm:$0xff]
  %v162 = vld [vmem:[%s0 + $0x344] sm:$0xff]
  %v163 = vld [vmem:[%s0 + $0x34c] sm:$0xff]
  %v164 = vld [vmem:[%s0 + $0x354] sm:$0xff]
  %v165 = vld [vmem:[%s0 + $0x35c] sm:$0xf]
  %v166 = vld [vmem:[%s0 + $0x360] sm:$0xff]
  %v167 = vld [vmem:[%s0 + $0x368] sm:$0xff]
  %v168 = vld [vmem:[%s0 + $0x370] sm:$0xff]
  %v169 = vld [vmem:[%s0 + $0x378] sm:$0xff]
  %v170 = vld [vmem:[%s0 + $0x380] sm:$0xf]
  %v171 = vld [vmem:[%s0 + $0x384] sm:$0xff]
  %v172 = vld [vmem:[%s0 + $0x38c] sm:$0xff]
  %v173 = vld [vmem:[%s0 + $0x394] sm:$0xff]
  %v174 = vld [vmem:[%s0 + $0x39c] sm:$0xff]
  %v175 = vld [vmem:[%s0 + $0x3a4] sm:$0xf]
  %v176 = vld [vmem:[%s0 + $0x3a8] sm:$0xff]
  %v177 = vld [vmem:[%s0 + $0x3b0] sm:$0xff]
  %v178 = vld [vmem:[%s0 + $0x3b8] sm:$0xff]
  %v179 = vld [vmem:[%s0 + $0x3c0] sm:$0xff]
  %v180 = vld [vmem:[%s0 + $0x3c8] sm:$0xf]
  %v181 = vld [vmem:[%s0 + $0x3cc] sm:$0xff]
  %v182 = vld [vmem:[%s0 + $0x3d4] sm:$0xff]
  %v183 = vld [vmem:[%s0 + $0x3dc] sm:$0xff]
  %v184 = vld [vmem:[%s0 + $0x3e4] sm:$0xff]
  %v185 = vld [vmem:[%s0 + $0x3ec] sm:$0xf]
  %v186 = vld [vmem:[%s0 + $0x3f0] sm:$0xff]
  %v187 = vld [vmem:[%s0 + $0x3f8] sm:$0xff]
  %v188 = vld [vmem:[%s0 + $0x400] sm:$0xff]
  %v189 = vld [vmem:[%s0 + $0x408] sm:$0xff]
  %v190 = vld [vmem:[%s0 + $0x410] sm:$0xf]
  %v191 = vld [vmem:[%s0 + $0x414] sm:$0xff]
  %v192 = vld [vmem:[%s0 + $0x41c] sm:$0xff]
  %v193 = vld [vmem:[%s0 + $0x424] sm:$0xff]
  %v194 = vld [vmem:[%s0 + $0x42c] sm:$0xff]
  %v195 = vld [vmem:[%s0 + $0x434] sm:$0xf]
  %v196 = vld [vmem:[%s0 + $0x438] sm:$0xff]
  %v197 = vld [vmem:[%s0 + $0x440] sm:$0xff]
  %v198 = vld [vmem:[%s0 + $0x448] sm:$0xff]
  %v199 = vld [vmem:[%s0 + $0x450] sm:$0xff]
  %v200 = vld [vmem:[%s0 + $0x458] sm:$0xf]
  %v201 = vld [vmem:[%s0 + $0x45c] sm:$0xff]
  %v202 = vld [vmem:[%s0 + $0x464] sm:$0xff]
  %v203 = vld [vmem:[%s0 + $0x46c] sm:$0xff]
  %v204 = vld [vmem:[%s0 + $0x474] sm:$0xff]
  %v205 = vld [vmem:[%s0 + $0x47c] sm:$0xf]
  %v206 = vld [vmem:[%s0 + $0x480] sm:$0xff]
  %v207 = vld [vmem:[%s0 + $0x488] sm:$0xff]
  %v208 = vld [vmem:[%s0 + $0x490] sm:$0xff]
  %v209 = vld [vmem:[%s0 + $0x498] sm:$0xff]
  %v210 = vld [vmem:[%s0 + $0x4a0] sm:$0xf]
  %v211 = vld [vmem:[%s0 + $0x4a4] sm:$0xff]
  %v212 = vld [vmem:[%s0 + $0x4ac] sm:$0xff]
  %v213 = vld [vmem:[%s0 + $0x4b4] sm:$0xff]
  %v214 = vld [vmem:[%s0 + $0x4bc] sm:$0xff]
  %v215 = vld [vmem:[%s0 + $0x4c4] sm:$0xf]
  %v216 = vld [vmem:[%s0 + $0x4c8] sm:$0xff]
  %v217 = vld [vmem:[%s0 + $0x4d0] sm:$0xff]
  %v218 = vld [vmem:[%s0 + $0x4d8] sm:$0xff]
  %v219 = vld [vmem:[%s0 + $0x4e0] sm:$0xff]
  %v220 = vld [vmem:[%s0 + $0x4e8] sm:$0xf]
  %v221 = vld [vmem:[%s0 + $0x4ec] sm:$0xff]
  %v222 = vld [vmem:[%s0 + $0x4f4] sm:$0xff]
  %v223 = vld [vmem:[%s0 + $0x4fc] sm:$0xff]
  %v224 = vld [vmem:[%s0 + $0x504] sm:$0xff]
  %v225 = vld [vmem:[%s0 + $0x50c] sm:$0xf]
  %v226 = vld [vmem:[%s0 + $0x510] sm:$0xff]
  %v227 = vld [vmem:[%s0 + $0x518] sm:$0xff]
  %v228 = vld [vmem:[%s0 + $0x520] sm:$0xff]
  %v229 = vld [vmem:[%s0 + $0x528] sm:$0xff]
  %v230 = vld [vmem:[%s0 + $0x530] sm:$0xf]
  %v231 = vld [vmem:[%s0 + $0x534] sm:$0xff]
  %v232 = vld [vmem:[%s0 + $0x53c] sm:$0xff]
  %v233 = vld [vmem:[%s0 + $0x544] sm:$0xff]
  %v234 = vld [vmem:[%s0 + $0x54c] sm:$0xff]
  %v235 = vld [vmem:[%s0 + $0x554] sm:$0xf]
  %v236 = vld [vmem:[%s0 + $0x558] sm:$0xff]
  %v237 = vld [vmem:[%s0 + $0x560] sm:$0xff]
  %v238 = vld [vmem:[%s0 + $0x568] sm:$0xff]
  %v239 = vld [vmem:[%s0 + $0x570] sm:$0xff]
  %v240 = vld [vmem:[%s0 + $0x578] sm:$0xf]
  %v241 = vld [vmem:[%s0 + $0x57c] sm:$0xff]
  %v242 = vld [vmem:[%s0 + $0x584] sm:$0xff]
  %v243 = vld [vmem:[%s0 + $0x58c] sm:$0xff]
  %v244 = vld [vmem:[%s0 + $0x594] sm:$0xff]
  %v245 = vld [vmem:[%s0 + $0x59c] sm:$0xf]
  %v246 = vld [vmem:[%s0 + $0x5a0] sm:$0xff]
  %v247 = vld [vmem:[%s0 + $0x5a8] sm:$0xff]
  %v248 = vld [vmem:[%s0 + $0x5b0] sm:$0xff]
  %v249 = vld [vmem:[%s0 + $0x5b8] sm:$0xff]
  %v250 = vld [vmem:[%s0 + $0x5c0] sm:$0xf]
  %v251 = vld [vmem:[%s0 + $0x5c4] sm:$0xff]
  %v252 = vld [vmem:[%s0 + $0x5cc] sm:$0xff]
  %v253 = vld [vmem:[%s0 + $0x5d4] sm:$0xff]
  %v254 = vld [vmem:[%s0 + $0x5dc] sm:$0xff]
  %v255 = vld [vmem:[%s0 + $0x5e4] sm:$0xf]
  %v256 = vld [vmem:[%s0 + $0x5e8] sm:$0xff]
  %v257 = vld [vmem:[%s0 + $0x5f0] sm:$0xff]
  %v258 = vld [vmem:[%s0 + $0x5f8] sm:$0xff]
  %v259 = vld [vmem:[%s0 + $0x600] sm:$0xff]
  %v260 = vld [vmem:[%s0 + $0x608] sm:$0xf]
  %v261 = vld [vmem:[%s0 + $0x60c] sm:$0xff]
  %v262 = vld [vmem:[%s0 + $0x614] sm:$0xff]
  %v263 = vld [vmem:[%s0 + $0x61c] sm:$0xff]
  %v264 = vld [vmem:[%s0 + $0x624] sm:$0xff]
  %v265 = vld [vmem:[%s0 + $0x62c] sm:$0xf]
  %v266 = vld [vmem:[%s0 + $0x630] sm:$0xff]
  %v267 = vld [vmem:[%s0 + $0x638] sm:$0xff]
  %v268 = vld [vmem:[%s0 + $0x640] sm:$0xff]
  %v269 = vld [vmem:[%s0 + $0x648] sm:$0xff]
  %v270 = vld [vmem:[%s0 + $0x650] sm:$0xf]
  %v271 = vld [vmem:[%s0 + $0x654] sm:$0xff]
  %v272 = vld [vmem:[%s0 + $0x65c] sm:$0xff]
  %v273 = vld [vmem:[%s0 + $0x664] sm:$0xff]
  %v274 = vld [vmem:[%s0 + $0x66c] sm:$0xff]
  %v275 = vld [vmem:[%s0 + $0x674] sm:$0xf]
  %v276 = vld [vmem:[%s0 + $0x678] sm:$0xff]
  %v277 = vld [vmem:[%s0 + $0x680] sm:$0xff]
  %v278 = vld [vmem:[%s0 + $0x688] sm:$0xff]
  %v279 = vld [vmem:[%s0 + $0x690] sm:$0xff]
  %v280 = vld [vmem:[%s0 + $0x698] sm:$0xf]
  %v281 = vld [vmem:[%s0 + $0x69c] sm:$0xff]
  %v282 = vld [vmem:[%s0 + $0x6a4] sm:$0xff]
  %v283 = vld [vmem:[%s0 + $0x6ac] sm:$0xff]
  %v284 = vld [vmem:[%s0 + $0x6b4] sm:$0xff]
  %v285 = vld [vmem:[%s0 + $0x6bc] sm:$0xf]
  %v286 = vld [vmem:[%s0 + $0x6c0] sm:$0xff]
  %v287 = vld [vmem:[%s0 + $0x6c8] sm:$0xff]
  %v288 = vld [vmem:[%s0 + $0x6d0] sm:$0xff]
  %v289 = vld [vmem:[%s0 + $0x6d8] sm:$0xff]
  %v290 = vld [vmem:[%s0 + $0x6e0] sm:$0xf]
  %v291 = vld [vmem:[%s0 + $0x6e4] sm:$0xff]
  %v292 = vld [vmem:[%s0 + $0x6ec] sm:$0xff]
  %v293 = vld [vmem:[%s0 + $0x6f4] sm:$0xff]
  %v294 = vld [vmem:[%s0 + $0x6fc] sm:$0xff]
  %v295 = vld [vmem:[%s0 + $0x704] sm:$0xf]
  %v296 = vld [vmem:[%s0 + $0x708] sm:$0xff]
  %v297 = vld [vmem:[%s0 + $0x710] sm:$0xff]
  %v298 = vld [vmem:[%s0 + $0x718] sm:$0xff]
  %v299 = vld [vmem:[%s0 + $0x720] sm:$0xff]
  %v300 = vld [vmem:[%s0 + $0x728] sm:$0xf]
  %v301 = vld [vmem:[%s0 + $0x72c] sm:$0xff]
  %v302 = vld [vmem:[%s0 + $0x734] sm:$0xff]
  %v303 = vld [vmem:[%s0 + $0x73c] sm:$0xff]
  %v304 = vld [vmem:[%s0 + $0x744] sm:$0xff]
  %v305 = vld [vmem:[%s0 + $0x74c] sm:$0xf]
  %v306 = vld [vmem:[%s0 + $0x750] sm:$0xff]
  %v307 = vld [vmem:[%s0 + $0x758] sm:$0xff]
  %v308 = vld [vmem:[%s0 + $0x760] sm:$0xff]
  %v309 = vld [vmem:[%s0 + $0x768] sm:$0xff]
  %v310 = vld [vmem:[%s0 + $0x770] sm:$0xf]
  %v311 = vld [vmem:[%s0 + $0x774] sm:$0xff]
  %v312 = vld [vmem:[%s0 + $0x77c] sm:$0xff]
  %v313 = vld [vmem:[%s0 + $0x784] sm:$0xff]
  %v314 = vld [vmem:[%s0 + $0x78c] sm:$0xff]
  %v315 = vld [vmem:[%s0 + $0x794] sm:$0xf]
  %v316 = vld [vmem:[%s0 + $0x798] sm:$0xff]
  %v317 = vld [vmem:[%s0 + $0x7a0] sm:$0xff]
  %v318 = vld [vmem:[%s0 + $0x7a8] sm:$0xff]
  %v319 = vld [vmem:[%s0 + $0x7b0] sm:$0xff]
  %v320 = vld [vmem:[%s0 + $0x7b8] sm:$0xf]
  %v321 = vld [vmem:[%s0 + $0x7bc] sm:$0xff]
  %v322 = vld [vmem:[%s0 + $0x7c4] sm:$0xff]
  %v323 = vld [vmem:[%s0 + $0x7cc] sm:$0xff]
  %v324 = vld [vmem:[%s0 + $0x7d4] sm:$0xff]
  %v325 = vld [vmem:[%s0 + $0x7dc] sm:$0xf]
  %v326 = vld [vmem:[%s0 + $0x7e0] sm:$0xff]
  %v327 = vld [vmem:[%s0 + $0x7e8] sm:$0xff]
  %v328 = vld [vmem:[%s0 + $0x7f0] sm:$0xff]
  %v329 = vld [vmem:[%s0 + $0x7f8] sm:$0xff]
  %v330 = vld [vmem:[%s0 + $0x800] sm:$0xf]
  %v331 = vld [vmem:[%s0 + $0x804] sm:$0xff]
  %v332 = vld [vmem:[%s0 + $0x80c] sm:$0xff]
  %v333 = vld [vmem:[%s0 + $0x814] sm:$0xff]
  %v334 = vld [vmem:[%s0 + $0x81c] sm:$0xff]
  %v335 = vld [vmem:[%s0 + $0x824] sm:$0xf]
  %v336 = vld [vmem:[%s0 + $0x828] sm:$0xff]
  %v337 = vld [vmem:[%s0 + $0x830] sm:$0xff]
  %v338 = vld [vmem:[%s0 + $0x838] sm:$0xff]
  %v339 = vld [vmem:[%s0 + $0x840] sm:$0xff]
  %v340 = vld [vmem:[%s0 + $0x848] sm:$0xf]
  %v341 = vld [vmem:[%s0 + $0x84c] sm:$0xff]
  %v342 = vld [vmem:[%s0 + $0x854] sm:$0xff]
  %v343 = vld [vmem:[%s0 + $0x85c] sm:$0xff]
  %v344 = vld [vmem:[%s0 + $0x864] sm:$0xff]
  %v345 = vld [vmem:[%s0 + $0x86c] sm:$0xf]
  %v346 = vld [vmem:[%s0 + $0x870] sm:$0xff]
  %v347 = vld [vmem:[%s0 + $0x878] sm:$0xff]
  %v348 = vld [vmem:[%s0 + $0x880] sm:$0xff]
  %v349 = vld [vmem:[%s0 + $0x888] sm:$0xff]
  %v350 = vld [vmem:[%s0 + $0x890] sm:$0xf]
  %v351 = vld [vmem:[%s0 + $0x894] sm:$0xff]
  %v352 = vld [vmem:[%s0 + $0x89c] sm:$0xff]
  %v353 = vld [vmem:[%s0 + $0x8a4] sm:$0xff]
  %v354 = vld [vmem:[%s0 + $0x8ac] sm:$0xff]
  %v355 = vld [vmem:[%s0 + $0x8b4] sm:$0xf]
  %v356 = vld [vmem:[%s0 + $0x8b8] sm:$0xff]
  %v357 = vld [vmem:[%s0 + $0x8c0] sm:$0xff]
  %v358 = vld [vmem:[%s0 + $0x8c8] sm:$0xff]
  %v359 = vld [vmem:[%s0 + $0x8d0] sm:$0xff]
  %v360 = vld [vmem:[%s0 + $0x8d8] sm:$0xf]
  %v361 = vld [vmem:[%s0 + $0x8dc] sm:$0xff]
  %v362 = vld [vmem:[%s0 + $0x8e4] sm:$0xff]
  %v363 = vld [vmem:[%s0 + $0x8ec] sm:$0xff]
  %v364 = vld [vmem:[%s0 + $0x8f4] sm:$0xff]
  %v365 = vld [vmem:[%s0 + $0x8fc] sm:$0xf]
  %v366 = vld [vmem:[%s2] sm:$0xff]
  %v367 = vld [vmem:[%s2 + $0x8] sm:$0xff]
  %v368 = vld [vmem:[%s2 + $0x10] sm:$0xff]
  %v369 = vld [vmem:[%s2 + $0x18] sm:$0xff]
  %371 = vset.pattern.permute.xlu0 0
  %372 = vperm.xlu0 %371, %v366
  %v373 = vpop.permute.xlu0 %372
  %376 = vset.pattern.permute.xlu0 0
  %377 = vperm.xlu0 %376, %v367
  %v378 = vpop.permute.xlu0 %377
  %381 = vset.pattern.permute.xlu0 0
  %382 = vperm.xlu0 %381, %v368
  %v383 = vpop.permute.xlu0 %382
  %386 = vset.pattern.permute.xlu0 0
  %387 = vperm.xlu0 %386, %v369
  %v388 = vpop.permute.xlu0 %387
  %v398 = vunpack.c.l.b16 %v30
  %v399 = vunpack.c.h.b16 %v30
  %v400 = vunpack.c.l.b16 %v31
  %v401 = vunpack.c.h.b16 %v31
  %v402 = vunpack.c.l.b16 %v32
  %v403 = vunpack.c.h.b16 %v32
  %v404 = vunpack.c.l.b16 %v33
  %v405 = vunpack.c.h.b16 %v33
  %v406 = vunpack.c.l.b16 %v34
  %v407 = vunpack.c.h.b16 %v34
  %v408 = vunpack.c.l.b16 %v35
  %v409 = vunpack.c.h.b16 %v35
  %v410 = vunpack.c.l.b16 %v36
  %v411 = vunpack.c.h.b16 %v36
  %v412 = vunpack.c.l.b16 %v37
  %v413 = vunpack.c.h.b16 %v37
  %v414 = vpack.c.b16 %v402, %v398
  %v415 = vpack.c.b16 %v403, %v399
  %v416 = vpack.c.b16 %v404, %v400
  %v417 = vpack.c.b16 %v405, %v401
  %v418 = vpack.c.b16 %v410, %v406
  %v419 = vpack.c.b16 %v411, %v407
  %v420 = vpack.c.b16 %v412, %v408
  %v421 = vpack.c.b16 %v413, %v409
  %v750 = vunpack.c.l.b16 %v46
  %v751 = vunpack.c.h.b16 %v46
  %v752 = vunpack.c.l.b16 %v47
  %v753 = vunpack.c.h.b16 %v47
  %v754 = vunpack.c.l.b16 %v48
  %v755 = vunpack.c.h.b16 %v48
  %v756 = vunpack.c.l.b16 %v49
  %v757 = vunpack.c.h.b16 %v49
  %v758 = vunpack.c.l.b16 %v50
  %v759 = vunpack.c.l.b16 %v51
  %v760 = vunpack.c.h.b16 %v51
  %v761 = vunpack.c.l.b16 %v52
  %v762 = vunpack.c.h.b16 %v52
  %v763 = vunpack.c.l.b16 %v53
  %v764 = vunpack.c.h.b16 %v53
  %v765 = vunpack.c.l.b16 %v54
  %v766 = vunpack.c.h.b16 %v54
  %v767 = vunpack.c.l.b16 %v55
  %v768 = vunpack.c.l.b16 %v56
  %v769 = vunpack.c.h.b16 %v56
  %v770 = vunpack.c.l.b16 %v57
  %v771 = vunpack.c.h.b16 %v57
  %v772 = vunpack.c.l.b16 %v58
  %v773 = vunpack.c.h.b16 %v58
  %v774 = vunpack.c.l.b16 %v59
  %v775 = vunpack.c.h.b16 %v59
  %v776 = vunpack.c.l.b16 %v60
  %v777 = vunpack.c.l.b16 %v61
  %v778 = vunpack.c.h.b16 %v61
  %v779 = vunpack.c.l.b16 %v62
  %v780 = vunpack.c.h.b16 %v62
  %v781 = vunpack.c.l.b16 %v63
  %v782 = vunpack.c.h.b16 %v63
  %v783 = vunpack.c.l.b16 %v64
  %v784 = vunpack.c.h.b16 %v64
  %v785 = vunpack.c.l.b16 %v65
  %v786 = vunpack.c.l.b16 %v66
  %v787 = vunpack.c.h.b16 %v66
  %v788 = vunpack.c.l.b16 %v67
  %v789 = vunpack.c.h.b16 %v67
  %v790 = vunpack.c.l.b16 %v68
  %v791 = vunpack.c.h.b16 %v68
  %v792 = vunpack.c.l.b16 %v69
  %v793 = vunpack.c.h.b16 %v69
  %v794 = vunpack.c.l.b16 %v70
  %v795 = vunpack.c.l.b16 %v71
  %v796 = vunpack.c.h.b16 %v71
  %v797 = vunpack.c.l.b16 %v72
  %v798 = vunpack.c.h.b16 %v72
  %v799 = vunpack.c.l.b16 %v73
  %v800 = vunpack.c.h.b16 %v73
  %v801 = vunpack.c.l.b16 %v74
  %v802 = vunpack.c.h.b16 %v74
  %v803 = vunpack.c.l.b16 %v75
  %v804 = vunpack.c.l.b16 %v76
  %v805 = vunpack.c.h.b16 %v76
  %v806 = vunpack.c.l.b16 %v77
  %v807 = vunpack.c.h.b16 %v77
  %v808 = vunpack.c.l.b16 %v78
  %v809 = vunpack.c.h.b16 %v78
  %v810 = vunpack.c.l.b16 %v79
  %v811 = vunpack.c.h.b16 %v79
  %v812 = vunpack.c.l.b16 %v80
  %v813 = vunpack.c.l.b16 %v81
  %v814 = vunpack.c.h.b16 %v81
  %v815 = vunpack.c.l.b16 %v82
  %v816 = vunpack.c.h.b16 %v82
  %v817 = vunpack.c.l.b16 %v83
  %v818 = vunpack.c.h.b16 %v83
  %v819 = vunpack.c.l.b16 %v84
  %v820 = vunpack.c.h.b16 %v84
  %v821 = vunpack.c.l.b16 %v85
  %v822 = vunpack.c.l.b16 %v86
  %v823 = vunpack.c.h.b16 %v86
  %v824 = vunpack.c.l.b16 %v87
  %v825 = vunpack.c.h.b16 %v87
  %v826 = vunpack.c.l.b16 %v88
  %v827 = vunpack.c.h.b16 %v88
  %v828 = vunpack.c.l.b16 %v89
  %v829 = vunpack.c.h.b16 %v89
  %v830 = vunpack.c.l.b16 %v90
  %v831 = vunpack.c.l.b16 %v91
  %v832 = vunpack.c.h.b16 %v91
  %v833 = vunpack.c.l.b16 %v92
  %v834 = vunpack.c.h.b16 %v92
  %v835 = vunpack.c.l.b16 %v93
  %v836 = vunpack.c.h.b16 %v93
  %v837 = vunpack.c.l.b16 %v94
  %v838 = vunpack.c.h.b16 %v94
  %v839 = vunpack.c.l.b16 %v95
  %v840 = vunpack.c.l.b16 %v96
  %v841 = vunpack.c.h.b16 %v96
  %v842 = vunpack.c.l.b16 %v97
  %v843 = vunpack.c.h.b16 %v97
  %v844 = vunpack.c.l.b16 %v98
  %v845 = vunpack.c.h.b16 %v98
  %v846 = vunpack.c.l.b16 %v99
  %v847 = vunpack.c.h.b16 %v99
  %v848 = vunpack.c.l.b16 %v100
  %v849 = vunpack.c.l.b16 %v101
  %v850 = vunpack.c.h.b16 %v101
  %v851 = vunpack.c.l.b16 %v102
  %v852 = vunpack.c.h.b16 %v102
  %v853 = vunpack.c.l.b16 %v103
  %v854 = vunpack.c.h.b16 %v103
  %v855 = vunpack.c.l.b16 %v104
  %v856 = vunpack.c.h.b16 %v104
  %v857 = vunpack.c.l.b16 %v105
  %v858 = vunpack.c.l.b16 %v106
  %v859 = vunpack.c.h.b16 %v106
  %v860 = vunpack.c.l.b16 %v107
  %v861 = vunpack.c.h.b16 %v107
  %v862 = vunpack.c.l.b16 %v108
  %v863 = vunpack.c.h.b16 %v108
  %v864 = vunpack.c.l.b16 %v109
  %v865 = vunpack.c.h.b16 %v109
  %v866 = vunpack.c.l.b16 %v110
  %v867 = vunpack.c.l.b16 %v111
  %v868 = vunpack.c.h.b16 %v111
  %v869 = vunpack.c.l.b16 %v112
  %v870 = vunpack.c.h.b16 %v112
  %v871 = vunpack.c.l.b16 %v113
  %v872 = vunpack.c.h.b16 %v113
  %v873 = vunpack.c.l.b16 %v114
  %v874 = vunpack.c.h.b16 %v114
  %v875 = vunpack.c.l.b16 %v115
  %v876 = vunpack.c.l.b16 %v116
  %v877 = vunpack.c.h.b16 %v116
  %v878 = vunpack.c.l.b16 %v117
  %v879 = vunpack.c.h.b16 %v117
  %v880 = vunpack.c.l.b16 %v118
  %v881 = vunpack.c.h.b16 %v118
  %v882 = vunpack.c.l.b16 %v119
  %v883 = vunpack.c.h.b16 %v119
  %v884 = vunpack.c.l.b16 %v120
  %v885 = vunpack.c.l.b16 %v121
  %v886 = vunpack.c.h.b16 %v121
  %v887 = vunpack.c.l.b16 %v122
  %v888 = vunpack.c.h.b16 %v122
  %v889 = vunpack.c.l.b16 %v123
  %v890 = vunpack.c.h.b16 %v123
  %v891 = vunpack.c.l.b16 %v124
  %v892 = vunpack.c.h.b16 %v124
  %v893 = vunpack.c.l.b16 %v125
  %v894 = vunpack.c.l.b16 %v126
  %v895 = vunpack.c.h.b16 %v126
  %v896 = vunpack.c.l.b16 %v127
  %v897 = vunpack.c.h.b16 %v127
  %v898 = vunpack.c.l.b16 %v128
  %v899 = vunpack.c.h.b16 %v128
  %v900 = vunpack.c.l.b16 %v129
  %v901 = vunpack.c.h.b16 %v129
  %v902 = vunpack.c.l.b16 %v130
  %v903 = vunpack.c.l.b16 %v131
  %v904 = vunpack.c.h.b16 %v131
  %v905 = vunpack.c.l.b16 %v132
  %v906 = vunpack.c.h.b16 %v132
  %v907 = vunpack.c.l.b16 %v133
  %v908 = vunpack.c.h.b16 %v133
  %v909 = vunpack.c.l.b16 %v134
  %v910 = vunpack.c.h.b16 %v134
  %v911 = vunpack.c.l.b16 %v135
  %v912 = vunpack.c.l.b16 %v136
  %v913 = vunpack.c.h.b16 %v136
  %v914 = vunpack.c.l.b16 %v137
  %v915 = vunpack.c.h.b16 %v137
  %v916 = vunpack.c.l.b16 %v138
  %v917 = vunpack.c.h.b16 %v138
  %v918 = vunpack.c.l.b16 %v139
  %v919 = vunpack.c.h.b16 %v139
  %v920 = vunpack.c.l.b16 %v140
  %v921 = vunpack.c.l.b16 %v141
  %v922 = vunpack.c.h.b16 %v141
  %v923 = vunpack.c.l.b16 %v142
  %v924 = vunpack.c.h.b16 %v142
  %v925 = vunpack.c.l.b16 %v143
  %v926 = vunpack.c.h.b16 %v143
  %v927 = vunpack.c.l.b16 %v144
  %v928 = vunpack.c.h.b16 %v144
  %v929 = vunpack.c.l.b16 %v145
  %v930 = vunpack.c.l.b16 %v146
  %v931 = vunpack.c.h.b16 %v146
  %v932 = vunpack.c.l.b16 %v147
  %v933 = vunpack.c.h.b16 %v147
  %v934 = vunpack.c.l.b16 %v148
  %v935 = vunpack.c.h.b16 %v148
  %v936 = vunpack.c.l.b16 %v149
  %v937 = vunpack.c.h.b16 %v149
  %v938 = vunpack.c.l.b16 %v150
  %v939 = vunpack.c.l.b16 %v151
  %v940 = vunpack.c.h.b16 %v151
  %v941 = vunpack.c.l.b16 %v152
  %v942 = vunpack.c.h.b16 %v152
  %v943 = vunpack.c.l.b16 %v153
  %v944 = vunpack.c.h.b16 %v153
  %v945 = vunpack.c.l.b16 %v154
  %v946 = vunpack.c.h.b16 %v154
  %v947 = vunpack.c.l.b16 %v155
  %v948 = vunpack.c.l.b16 %v156
  %v949 = vunpack.c.h.b16 %v156
  %v950 = vunpack.c.l.b16 %v157
  %v951 = vunpack.c.h.b16 %v157
  %v952 = vunpack.c.l.b16 %v158
  %v953 = vunpack.c.h.b16 %v158
  %v954 = vunpack.c.l.b16 %v159
  %v955 = vunpack.c.h.b16 %v159
  %v956 = vunpack.c.l.b16 %v160
  %v957 = vunpack.c.l.b16 %v161
  %v958 = vunpack.c.h.b16 %v161
  %v959 = vunpack.c.l.b16 %v162
  %v960 = vunpack.c.h.b16 %v162
  %v961 = vunpack.c.l.b16 %v163
  %v962 = vunpack.c.h.b16 %v163
  %v963 = vunpack.c.l.b16 %v164
  %v964 = vunpack.c.h.b16 %v164
  %v965 = vunpack.c.l.b16 %v165
  %v966 = vunpack.c.l.b16 %v166
  %v967 = vunpack.c.h.b16 %v166
  %v968 = vunpack.c.l.b16 %v167
  %v969 = vunpack.c.h.b16 %v167
  %v970 = vunpack.c.l.b16 %v168
  %v971 = vunpack.c.h.b16 %v168
  %v972 = vunpack.c.l.b16 %v169
  %v973 = vunpack.c.h.b16 %v169
  %v974 = vunpack.c.l.b16 %v170
  %v975 = vunpack.c.l.b16 %v171
  %v976 = vunpack.c.h.b16 %v171
  %v977 = vunpack.c.l.b16 %v172
  %v978 = vunpack.c.h.b16 %v172
  %v979 = vunpack.c.l.b16 %v173
  %v980 = vunpack.c.h.b16 %v173
  %v981 = vunpack.c.l.b16 %v174
  %v982 = vunpack.c.h.b16 %v174
  %v983 = vunpack.c.l.b16 %v175
  %v984 = vunpack.c.l.b16 %v176
  %v985 = vunpack.c.h.b16 %v176
  %v986 = vunpack.c.l.b16 %v177
  %v987 = vunpack.c.h.b16 %v177
  %v988 = vunpack.c.l.b16 %v178
  %v989 = vunpack.c.h.b16 %v178
  %v990 = vunpack.c.l.b16 %v179
  %v991 = vunpack.c.h.b16 %v179
  %v992 = vunpack.c.l.b16 %v180
  %v993 = vunpack.c.l.b16 %v181
  %v994 = vunpack.c.h.b16 %v181
  %v995 = vunpack.c.l.b16 %v182
  %v996 = vunpack.c.h.b16 %v182
  %v997 = vunpack.c.l.b16 %v183
  %v998 = vunpack.c.h.b16 %v183
  %v999 = vunpack.c.l.b16 %v184
  %v1000 = vunpack.c.h.b16 %v184
  %v1001 = vunpack.c.l.b16 %v185
  %v1002 = vunpack.c.l.b16 %v186
  %v1003 = vunpack.c.h.b16 %v186
  %v1004 = vunpack.c.l.b16 %v187
  %v1005 = vunpack.c.h.b16 %v187
  %v1006 = vunpack.c.l.b16 %v188
  %v1007 = vunpack.c.h.b16 %v188
  %v1008 = vunpack.c.l.b16 %v189
  %v1009 = vunpack.c.h.b16 %v189
  %v1010 = vunpack.c.l.b16 %v190
  %v1011 = vunpack.c.l.b16 %v191
  %v1012 = vunpack.c.h.b16 %v191
  %v1013 = vunpack.c.l.b16 %v192
  %v1014 = vunpack.c.h.b16 %v192
  %v1015 = vunpack.c.l.b16 %v193
  %v1016 = vunpack.c.h.b16 %v193
  %v1017 = vunpack.c.l.b16 %v194
  %v1018 = vunpack.c.h.b16 %v194
  %v1019 = vunpack.c.l.b16 %v195
  %v1020 = vunpack.c.l.b16 %v196
  %v1021 = vunpack.c.h.b16 %v196
  %v1022 = vunpack.c.l.b16 %v197
  %v1023 = vunpack.c.h.b16 %v197
  %v1024 = vunpack.c.l.b16 %v198
  %v1025 = vunpack.c.h.b16 %v198
  %v1026 = vunpack.c.l.b16 %v199
  %v1027 = vunpack.c.h.b16 %v199
  %v1028 = vunpack.c.l.b16 %v200
  %v1029 = vunpack.c.l.b16 %v201
  %v1030 = vunpack.c.h.b16 %v201
  %v1031 = vunpack.c.l.b16 %v202
  %v1032 = vunpack.c.h.b16 %v202
  %v1033 = vunpack.c.l.b16 %v203
  %v1034 = vunpack.c.h.b16 %v203
  %v1035 = vunpack.c.l.b16 %v204
  %v1036 = vunpack.c.h.b16 %v204
  %v1037 = vunpack.c.l.b16 %v205
  %v1038 = vunpack.c.l.b16 %v206
  %v1039 = vunpack.c.h.b16 %v206
  %v1040 = vunpack.c.l.b16 %v207
  %v1041 = vunpack.c.h.b16 %v207
  %v1042 = vunpack.c.l.b16 %v208
  %v1043 = vunpack.c.h.b16 %v208
  %v1044 = vunpack.c.l.b16 %v209
  %v1045 = vunpack.c.h.b16 %v209
  %v1046 = vunpack.c.l.b16 %v210
  %v1047 = vunpack.c.l.b16 %v211
  %v1048 = vunpack.c.h.b16 %v211
  %v1049 = vunpack.c.l.b16 %v212
  %v1050 = vunpack.c.h.b16 %v212
  %v1051 = vunpack.c.l.b16 %v213
  %v1052 = vunpack.c.h.b16 %v213
  %v1053 = vunpack.c.l.b16 %v214
  %v1054 = vunpack.c.h.b16 %v214
  %v1055 = vunpack.c.l.b16 %v215
  %v1056 = vunpack.c.l.b16 %v216
  %v1057 = vunpack.c.h.b16 %v216
  %v1058 = vunpack.c.l.b16 %v217
  %v1059 = vunpack.c.h.b16 %v217
  %v1060 = vunpack.c.l.b16 %v218
  %v1061 = vunpack.c.h.b16 %v218
  %v1062 = vunpack.c.l.b16 %v219
  %v1063 = vunpack.c.h.b16 %v219
  %v1064 = vunpack.c.l.b16 %v220
  %v1065 = vunpack.c.l.b16 %v221
  %v1066 = vunpack.c.h.b16 %v221
  %v1067 = vunpack.c.l.b16 %v222
  %v1068 = vunpack.c.h.b16 %v222
  %v1069 = vunpack.c.l.b16 %v223
  %v1070 = vunpack.c.h.b16 %v223
  %v1071 = vunpack.c.l.b16 %v224
  %v1072 = vunpack.c.h.b16 %v224
  %v1073 = vunpack.c.l.b16 %v225
  %v1074 = vunpack.c.l.b16 %v226
  %v1075 = vunpack.c.h.b16 %v226
  %v1076 = vunpack.c.l.b16 %v227
  %v1077 = vunpack.c.h.b16 %v227
  %v1078 = vunpack.c.l.b16 %v228
  %v1079 = vunpack.c.h.b16 %v228
  %v1080 = vunpack.c.l.b16 %v229
  %v1081 = vunpack.c.h.b16 %v229
  %v1082 = vunpack.c.l.b16 %v230
  %v1083 = vunpack.c.l.b16 %v231
  %v1084 = vunpack.c.h.b16 %v231
  %v1085 = vunpack.c.l.b16 %v232
  %v1086 = vunpack.c.h.b16 %v232
  %v1087 = vunpack.c.l.b16 %v233
  %v1088 = vunpack.c.h.b16 %v233
  %v1089 = vunpack.c.l.b16 %v234
  %v1090 = vunpack.c.h.b16 %v234
  %v1091 = vunpack.c.l.b16 %v235
  %v1092 = vunpack.c.l.b16 %v236
  %v1093 = vunpack.c.h.b16 %v236
  %v1094 = vunpack.c.l.b16 %v237
  %v1095 = vunpack.c.h.b16 %v237
  %v1096 = vunpack.c.l.b16 %v238
  %v1097 = vunpack.c.h.b16 %v238
  %v1098 = vunpack.c.l.b16 %v239
  %v1099 = vunpack.c.h.b16 %v239
  %v1100 = vunpack.c.l.b16 %v240
  %v1101 = vunpack.c.l.b16 %v241
  %v1102 = vunpack.c.h.b16 %v241
  %v1103 = vunpack.c.l.b16 %v242
  %v1104 = vunpack.c.h.b16 %v242
  %v1105 = vunpack.c.l.b16 %v243
  %v1106 = vunpack.c.h.b16 %v243
  %v1107 = vunpack.c.l.b16 %v244
  %v1108 = vunpack.c.h.b16 %v244
  %v1109 = vunpack.c.l.b16 %v245
  %v1110 = vunpack.c.l.b16 %v246
  %v1111 = vunpack.c.h.b16 %v246
  %v1112 = vunpack.c.l.b16 %v247
  %v1113 = vunpack.c.h.b16 %v247
  %v1114 = vunpack.c.l.b16 %v248
  %v1115 = vunpack.c.h.b16 %v248
  %v1116 = vunpack.c.l.b16 %v249
  %v1117 = vunpack.c.h.b16 %v249
  %v1118 = vunpack.c.l.b16 %v250
  %v1119 = vunpack.c.l.b16 %v251
  %v1120 = vunpack.c.h.b16 %v251
  %v1121 = vunpack.c.l.b16 %v252
  %v1122 = vunpack.c.h.b16 %v252
  %v1123 = vunpack.c.l.b16 %v253
  %v1124 = vunpack.c.h.b16 %v253
  %v1125 = vunpack.c.l.b16 %v254
  %v1126 = vunpack.c.h.b16 %v254
  %v1127 = vunpack.c.l.b16 %v255
  %v1128 = vunpack.c.l.b16 %v256
  %v1129 = vunpack.c.h.b16 %v256
  %v1130 = vunpack.c.l.b16 %v257
  %v1131 = vunpack.c.h.b16 %v257
  %v1132 = vunpack.c.l.b16 %v258
  %v1133 = vunpack.c.h.b16 %v258
  %v1134 = vunpack.c.l.b16 %v259
  %v1135 = vunpack.c.h.b16 %v259
  %v1136 = vunpack.c.l.b16 %v260
  %v1137 = vunpack.c.l.b16 %v261
  %v1138 = vunpack.c.h.b16 %v261
  %v1139 = vunpack.c.l.b16 %v262
  %v1140 = vunpack.c.h.b16 %v262
  %v1141 = vunpack.c.l.b16 %v263
  %v1142 = vunpack.c.h.b16 %v263
  %v1143 = vunpack.c.l.b16 %v264
  %v1144 = vunpack.c.h.b16 %v264
  %v1145 = vunpack.c.l.b16 %v265
  %v1146 = vunpack.c.l.b16 %v266
  %v1147 = vunpack.c.h.b16 %v266
  %v1148 = vunpack.c.l.b16 %v267
  %v1149 = vunpack.c.h.b16 %v267
  %v1150 = vunpack.c.l.b16 %v268
  %v1151 = vunpack.c.h.b16 %v268
  %v1152 = vunpack.c.l.b16 %v269
  %v1153 = vunpack.c.h.b16 %v269
  %v1154 = vunpack.c.l.b16 %v270
  %v1155 = vunpack.c.l.b16 %v271
  %v1156 = vunpack.c.h.b16 %v271
  %v1157 = vunpack.c.l.b16 %v272
  %v1158 = vunpack.c.h.b16 %v272
  %v1159 = vunpack.c.l.b16 %v273
  %v1160 = vunpack.c.h.b16 %v273
  %v1161 = vunpack.c.l.b16 %v274
  %v1162 = vunpack.c.h.b16 %v274
  %v1163 = vunpack.c.l.b16 %v275
  %v1164 = vunpack.c.l.b16 %v276
  %v1165 = vunpack.c.h.b16 %v276
  %v1166 = vunpack.c.l.b16 %v277
  %v1167 = vunpack.c.h.b16 %v277
  %v1168 = vunpack.c.l.b16 %v278
  %v1169 = vunpack.c.h.b16 %v278
  %v1170 = vunpack.c.l.b16 %v279
  %v1171 = vunpack.c.h.b16 %v279
  %v1172 = vunpack.c.l.b16 %v280
  %v1173 = vunpack.c.l.b16 %v281
  %v1174 = vunpack.c.h.b16 %v281
  %v1175 = vunpack.c.l.b16 %v282
  %v1176 = vunpack.c.h.b16 %v282
  %v1177 = vunpack.c.l.b16 %v283
  %v1178 = vunpack.c.h.b16 %v283
  %v1179 = vunpack.c.l.b16 %v284
  %v1180 = vunpack.c.h.b16 %v284
  %v1181 = vunpack.c.l.b16 %v285
  %v1182 = vunpack.c.l.b16 %v286
  %v1183 = vunpack.c.h.b16 %v286
  %v1184 = vunpack.c.l.b16 %v287
  %v1185 = vunpack.c.h.b16 %v287
  %v1186 = vunpack.c.l.b16 %v288
  %v1187 = vunpack.c.h.b16 %v288
  %v1188 = vunpack.c.l.b16 %v289
  %v1189 = vunpack.c.h.b16 %v289
  %v1190 = vunpack.c.l.b16 %v290
  %v1191 = vunpack.c.l.b16 %v291
  %v1192 = vunpack.c.h.b16 %v291
  %v1193 = vunpack.c.l.b16 %v292
  %v1194 = vunpack.c.h.b16 %v292
  %v1195 = vunpack.c.l.b16 %v293
  %v1196 = vunpack.c.h.b16 %v293
  %v1197 = vunpack.c.l.b16 %v294
  %v1198 = vunpack.c.h.b16 %v294
  %v1199 = vunpack.c.l.b16 %v295
  %v1200 = vunpack.c.l.b16 %v296
  %v1201 = vunpack.c.h.b16 %v296
  %v1202 = vunpack.c.l.b16 %v297
  %v1203 = vunpack.c.h.b16 %v297
  %v1204 = vunpack.c.l.b16 %v298
  %v1205 = vunpack.c.h.b16 %v298
  %v1206 = vunpack.c.l.b16 %v299
  %v1207 = vunpack.c.h.b16 %v299
  %v1208 = vunpack.c.l.b16 %v300
  %v1209 = vunpack.c.l.b16 %v301
  %v1210 = vunpack.c.h.b16 %v301
  %v1211 = vunpack.c.l.b16 %v302
  %v1212 = vunpack.c.h.b16 %v302
  %v1213 = vunpack.c.l.b16 %v303
  %v1214 = vunpack.c.h.b16 %v303
  %v1215 = vunpack.c.l.b16 %v304
  %v1216 = vunpack.c.h.b16 %v304
  %v1217 = vunpack.c.l.b16 %v305
  %v1218 = vunpack.c.l.b16 %v306
  %v1219 = vunpack.c.h.b16 %v306
  %v1220 = vunpack.c.l.b16 %v307
  %v1221 = vunpack.c.h.b16 %v307
  %v1222 = vunpack.c.l.b16 %v308
  %v1223 = vunpack.c.h.b16 %v308
  %v1224 = vunpack.c.l.b16 %v309
  %v1225 = vunpack.c.h.b16 %v309
  %v1226 = vunpack.c.l.b16 %v310
  %v1227 = vunpack.c.l.b16 %v311
  %v1228 = vunpack.c.h.b16 %v311
  %v1229 = vunpack.c.l.b16 %v312
  %v1230 = vunpack.c.h.b16 %v312
  %v1231 = vunpack.c.l.b16 %v313
  %v1232 = vunpack.c.h.b16 %v313
  %v1233 = vunpack.c.l.b16 %v314
  %v1234 = vunpack.c.h.b16 %v314
  %v1235 = vunpack.c.l.b16 %v315
  %v1236 = vunpack.c.l.b16 %v316
  %v1237 = vunpack.c.h.b16 %v316
  %v1238 = vunpack.c.l.b16 %v317
  %v1239 = vunpack.c.h.b16 %v317
  %v1240 = vunpack.c.l.b16 %v318
  %v1241 = vunpack.c.h.b16 %v318
  %v1242 = vunpack.c.l.b16 %v319
  %v1243 = vunpack.c.h.b16 %v319
  %v1244 = vunpack.c.l.b16 %v320
  %v1245 = vunpack.c.l.b16 %v321
  %v1246 = vunpack.c.h.b16 %v321
  %v1247 = vunpack.c.l.b16 %v322
  %v1248 = vunpack.c.h.b16 %v322
  %v1249 = vunpack.c.l.b16 %v323
  %v1250 = vunpack.c.h.b16 %v323
  %v1251 = vunpack.c.l.b16 %v324
  %v1252 = vunpack.c.h.b16 %v324
  %v1253 = vunpack.c.l.b16 %v325
  %v1254 = vunpack.c.l.b16 %v326
  %v1255 = vunpack.c.h.b16 %v326
  %v1256 = vunpack.c.l.b16 %v327
  %v1257 = vunpack.c.h.b16 %v327
  %v1258 = vunpack.c.l.b16 %v328
  %v1259 = vunpack.c.h.b16 %v328
  %v1260 = vunpack.c.l.b16 %v329
  %v1261 = vunpack.c.h.b16 %v329
  %v1262 = vunpack.c.l.b16 %v330
  %v1263 = vunpack.c.l.b16 %v331
  %v1264 = vunpack.c.h.b16 %v331
  %v1265 = vunpack.c.l.b16 %v332
  %v1266 = vunpack.c.h.b16 %v332
  %v1267 = vunpack.c.l.b16 %v333
  %v1268 = vunpack.c.h.b16 %v333
  %v1269 = vunpack.c.l.b16 %v334
  %v1270 = vunpack.c.h.b16 %v334
  %v1271 = vunpack.c.l.b16 %v335
  %v1272 = vunpack.c.l.b16 %v336
  %v1273 = vunpack.c.h.b16 %v336
  %v1274 = vunpack.c.l.b16 %v337
  %v1275 = vunpack.c.h.b16 %v337
  %v1276 = vunpack.c.l.b16 %v338
  %v1277 = vunpack.c.h.b16 %v338
  %v1278 = vunpack.c.l.b16 %v339
  %v1279 = vunpack.c.h.b16 %v339
  %v1280 = vunpack.c.l.b16 %v340
  %v1281 = vunpack.c.l.b16 %v341
  %v1282 = vunpack.c.h.b16 %v341
  %v1283 = vunpack.c.l.b16 %v342
  %v1284 = vunpack.c.h.b16 %v342
  %v1285 = vunpack.c.l.b16 %v343
  %v1286 = vunpack.c.h.b16 %v343
  %v1287 = vunpack.c.l.b16 %v344
  %v1288 = vunpack.c.h.b16 %v344
  %v1289 = vunpack.c.l.b16 %v345
  %v1290 = vunpack.c.l.b16 %v346
  %v1291 = vunpack.c.h.b16 %v346
  %v1292 = vunpack.c.l.b16 %v347
  %v1293 = vunpack.c.h.b16 %v347
  %v1294 = vunpack.c.l.b16 %v348
  %v1295 = vunpack.c.h.b16 %v348
  %v1296 = vunpack.c.l.b16 %v349
  %v1297 = vunpack.c.h.b16 %v349
  %v1298 = vunpack.c.l.b16 %v350
  %v1299 = vunpack.c.l.b16 %v351
  %v1300 = vunpack.c.h.b16 %v351
  %v1301 = vunpack.c.l.b16 %v352
  %v1302 = vunpack.c.h.b16 %v352
  %v1303 = vunpack.c.l.b16 %v353
  %v1304 = vunpack.c.h.b16 %v353
  %v1305 = vunpack.c.l.b16 %v354
  %v1306 = vunpack.c.h.b16 %v354
  %v1307 = vunpack.c.l.b16 %v355
  %v1308 = vunpack.c.l.b16 %v356
  %v1309 = vunpack.c.h.b16 %v356
  %v1310 = vunpack.c.l.b16 %v357
  %v1311 = vunpack.c.h.b16 %v357
  %v1312 = vunpack.c.l.b16 %v358
  %v1313 = vunpack.c.h.b16 %v358
  %v1314 = vunpack.c.l.b16 %v359
  %v1315 = vunpack.c.h.b16 %v359
  %v1316 = vunpack.c.l.b16 %v360
  %v1317 = vunpack.c.l.b16 %v361
  %v1318 = vunpack.c.h.b16 %v361
  %v1319 = vunpack.c.l.b16 %v362
  %v1320 = vunpack.c.h.b16 %v362
  %v1321 = vunpack.c.l.b16 %v363
  %v1322 = vunpack.c.h.b16 %v363
  %v1323 = vunpack.c.l.b16 %v364
  %v1324 = vunpack.c.h.b16 %v364
  %v1325 = vunpack.c.l.b16 %v365
  %v1326 = vpack.c.b16 %v759, %v750
  %v1327 = vpack.c.b16 %v760, %v751
  %v1328 = vpack.c.b16 %v761, %v752
  %v1329 = vpack.c.b16 %v762, %v753
  %v1330 = vpack.c.b16 %v763, %v754
  %v1331 = vpack.c.b16 %v764, %v755
  %v1332 = vpack.c.b16 %v765, %v756
  %v1333 = vpack.c.b16 %v766, %v757
  %v1334 = vpack.c.b16 %v767, %v758
  %v1335 = vpack.c.b16 %v777, %v768
  %v1336 = vpack.c.b16 %v778, %v769
  %v1337 = vpack.c.b16 %v779, %v770
  %v1338 = vpack.c.b16 %v780, %v771
  %v1339 = vpack.c.b16 %v781, %v772
  %v1340 = vpack.c.b16 %v782, %v773
  %v1341 = vpack.c.b16 %v783, %v774
  %v1342 = vpack.c.b16 %v784, %v775
  %v1343 = vpack.c.b16 %v785, %v776
  %v1344 = vpack.c.b16 %v795, %v786
  %v1345 = vpack.c.b16 %v796, %v787
  %v1346 = vpack.c.b16 %v797, %v788
  %v1347 = vpack.c.b16 %v798, %v789
  %v1348 = vpack.c.b16 %v799, %v790
  %v1349 = vpack.c.b16 %v800, %v791
  %v1350 = vpack.c.b16 %v801, %v792
  %v1351 = vpack.c.b16 %v802, %v793
  %v1352 = vpack.c.b16 %v803, %v794
  %v1353 = vpack.c.b16 %v813, %v804
  %v1354 = vpack.c.b16 %v814, %v805
  %v1355 = vpack.c.b16 %v815, %v806
  %v1356 = vpack.c.b16 %v816, %v807
  %v1357 = vpack.c.b16 %v817, %v808
  %v1358 = vpack.c.b16 %v818, %v809
  %v1359 = vpack.c.b16 %v819, %v810
  %v1360 = vpack.c.b16 %v820, %v811
  %v1361 = vpack.c.b16 %v821, %v812
  %v1362 = vpack.c.b16 %v831, %v822
  %v1363 = vpack.c.b16 %v832, %v823
  %v1364 = vpack.c.b16 %v833, %v824
  %v1365 = vpack.c.b16 %v834, %v825
  %v1366 = vpack.c.b16 %v835, %v826
  %v1367 = vpack.c.b16 %v836, %v827
  %v1368 = vpack.c.b16 %v837, %v828
  %v1369 = vpack.c.b16 %v838, %v829
  %v1370 = vpack.c.b16 %v839, %v830
  %v1371 = vpack.c.b16 %v849, %v840
  %v1372 = vpack.c.b16 %v850, %v841
  %v1373 = vpack.c.b16 %v851, %v842
  %v1374 = vpack.c.b16 %v852, %v843
  %v1375 = vpack.c.b16 %v853, %v844
  %v1376 = vpack.c.b16 %v854, %v845
  %v1377 = vpack.c.b16 %v855, %v846
  %v1378 = vpack.c.b16 %v856, %v847
  %v1379 = vpack.c.b16 %v857, %v848
  %v1380 = vpack.c.b16 %v867, %v858
  %v1381 = vpack.c.b16 %v868, %v859
  %v1382 = vpack.c.b16 %v869, %v860
  %v1383 = vpack.c.b16 %v870, %v861
  %v1384 = vpack.c.b16 %v871, %v862
  %v1385 = vpack.c.b16 %v872, %v863
  %v1386 = vpack.c.b16 %v873, %v864
  %v1387 = vpack.c.b16 %v874, %v865
  %v1388 = vpack.c.b16 %v875, %v866
  %v1389 = vpack.c.b16 %v885, %v876
  %v1390 = vpack.c.b16 %v886, %v877
  %v1391 = vpack.c.b16 %v887, %v878
  %v1392 = vpack.c.b16 %v888, %v879
  %v1393 = vpack.c.b16 %v889, %v880
  %v1394 = vpack.c.b16 %v890, %v881
  %v1395 = vpack.c.b16 %v891, %v882
  %v1396 = vpack.c.b16 %v892, %v883
  %v1397 = vpack.c.b16 %v893, %v884
  %v1398 = vpack.c.b16 %v903, %v894
  %v1399 = vpack.c.b16 %v904, %v895
  %v1400 = vpack.c.b16 %v905, %v896
  %v1401 = vpack.c.b16 %v906, %v897
  %v1402 = vpack.c.b16 %v907, %v898
  %v1403 = vpack.c.b16 %v908, %v899
  %v1404 = vpack.c.b16 %v909, %v900
  %v1405 = vpack.c.b16 %v910, %v901
  %v1406 = vpack.c.b16 %v911, %v902
  %v1407 = vpack.c.b16 %v921, %v912
  %v1408 = vpack.c.b16 %v922, %v913
  %v1409 = vpack.c.b16 %v923, %v914
  %v1410 = vpack.c.b16 %v924, %v915
  %v1411 = vpack.c.b16 %v925, %v916
  %v1412 = vpack.c.b16 %v926, %v917
  %v1413 = vpack.c.b16 %v927, %v918
  %v1414 = vpack.c.b16 %v928, %v919
  %v1415 = vpack.c.b16 %v929, %v920
  %v1416 = vpack.c.b16 %v939, %v930
  %v1417 = vpack.c.b16 %v940, %v931
  %v1418 = vpack.c.b16 %v941, %v932
  %v1419 = vpack.c.b16 %v942, %v933
  %v1420 = vpack.c.b16 %v943, %v934
  %v1421 = vpack.c.b16 %v944, %v935
  %v1422 = vpack.c.b16 %v945, %v936
  %v1423 = vpack.c.b16 %v946, %v937
  %v1424 = vpack.c.b16 %v947, %v938
  %v1425 = vpack.c.b16 %v957, %v948
  %v1426 = vpack.c.b16 %v958, %v949
  %v1427 = vpack.c.b16 %v959, %v950
  %v1428 = vpack.c.b16 %v960, %v951
  %v1429 = vpack.c.b16 %v961, %v952
  %v1430 = vpack.c.b16 %v962, %v953
  %v1431 = vpack.c.b16 %v963, %v954
  %v1432 = vpack.c.b16 %v964, %v955
  %v1433 = vpack.c.b16 %v965, %v956
  %v1434 = vpack.c.b16 %v975, %v966
  %v1435 = vpack.c.b16 %v976, %v967
  %v1436 = vpack.c.b16 %v977, %v968
  %v1437 = vpack.c.b16 %v978, %v969
  %v1438 = vpack.c.b16 %v979, %v970
  %v1439 = vpack.c.b16 %v980, %v971
  %v1440 = vpack.c.b16 %v981, %v972
  %v1441 = vpack.c.b16 %v982, %v973
  %v1442 = vpack.c.b16 %v983, %v974
  %v1443 = vpack.c.b16 %v993, %v984
  %v1444 = vpack.c.b16 %v994, %v985
  %v1445 = vpack.c.b16 %v995, %v986
  %v1446 = vpack.c.b16 %v996, %v987
  %v1447 = vpack.c.b16 %v997, %v988
  %v1448 = vpack.c.b16 %v998, %v989
  %v1449 = vpack.c.b16 %v999, %v990
  %v1450 = vpack.c.b16 %v1000, %v991
  %v1451 = vpack.c.b16 %v1001, %v992
  %v1452 = vpack.c.b16 %v1011, %v1002
  %v1453 = vpack.c.b16 %v1012, %v1003
  %v1454 = vpack.c.b16 %v1013, %v1004
  %v1455 = vpack.c.b16 %v1014, %v1005
  %v1456 = vpack.c.b16 %v1015, %v1006
  %v1457 = vpack.c.b16 %v1016, %v1007
  %v1458 = vpack.c.b16 %v1017, %v1008
  %v1459 = vpack.c.b16 %v1018, %v1009
  %v1460 = vpack.c.b16 %v1019, %v1010
  %v1461 = vpack.c.b16 %v1029, %v1020
  %v1462 = vpack.c.b16 %v1030, %v1021
  %v1463 = vpack.c.b16 %v1031, %v1022
  %v1464 = vpack.c.b16 %v1032, %v1023
  %v1465 = vpack.c.b16 %v1033, %v1024
  %v1466 = vpack.c.b16 %v1034, %v1025
  %v1467 = vpack.c.b16 %v1035, %v1026
  %v1468 = vpack.c.b16 %v1036, %v1027
  %v1469 = vpack.c.b16 %v1037, %v1028
  %v1470 = vpack.c.b16 %v1047, %v1038
  %v1471 = vpack.c.b16 %v1048, %v1039
  %v1472 = vpack.c.b16 %v1049, %v1040
  %v1473 = vpack.c.b16 %v1050, %v1041
  %v1474 = vpack.c.b16 %v1051, %v1042
  %v1475 = vpack.c.b16 %v1052, %v1043
  %v1476 = vpack.c.b16 %v1053, %v1044
  %v1477 = vpack.c.b16 %v1054, %v1045
  %v1478 = vpack.c.b16 %v1055, %v1046
  %v1479 = vpack.c.b16 %v1065, %v1056
  %v1480 = vpack.c.b16 %v1066, %v1057
  %v1481 = vpack.c.b16 %v1067, %v1058
  %v1482 = vpack.c.b16 %v1068, %v1059
  %v1483 = vpack.c.b16 %v1069, %v1060
  %v1484 = vpack.c.b16 %v1070, %v1061
  %v1485 = vpack.c.b16 %v1071, %v1062
  %v1486 = vpack.c.b16 %v1072, %v1063
  %v1487 = vpack.c.b16 %v1073, %v1064
  %v1488 = vpack.c.b16 %v1083, %v1074
  %v1489 = vpack.c.b16 %v1084, %v1075
  %v1490 = vpack.c.b16 %v1085, %v1076
  %v1491 = vpack.c.b16 %v1086, %v1077
  %v1492 = vpack.c.b16 %v1087, %v1078
  %v1493 = vpack.c.b16 %v1088, %v1079
  %v1494 = vpack.c.b16 %v1089, %v1080
  %v1495 = vpack.c.b16 %v1090, %v1081
  %v1496 = vpack.c.b16 %v1091, %v1082
  %v1497 = vpack.c.b16 %v1101, %v1092
  %v1498 = vpack.c.b16 %v1102, %v1093
  %v1499 = vpack.c.b16 %v1103, %v1094
  %v1500 = vpack.c.b16 %v1104, %v1095
  %v1501 = vpack.c.b16 %v1105, %v1096
  %v1502 = vpack.c.b16 %v1106, %v1097
  %v1503 = vpack.c.b16 %v1107, %v1098
  %v1504 = vpack.c.b16 %v1108, %v1099
  %v1505 = vpack.c.b16 %v1109, %v1100
  %v1506 = vpack.c.b16 %v1119, %v1110
  %v1507 = vpack.c.b16 %v1120, %v1111
  %v1508 = vpack.c.b16 %v1121, %v1112
  %v1509 = vpack.c.b16 %v1122, %v1113
  %v1510 = vpack.c.b16 %v1123, %v1114
  %v1511 = vpack.c.b16 %v1124, %v1115
  %v1512 = vpack.c.b16 %v1125, %v1116
  %v1513 = vpack.c.b16 %v1126, %v1117
  %v1514 = vpack.c.b16 %v1127, %v1118
  %v1515 = vpack.c.b16 %v1137, %v1128
  %v1516 = vpack.c.b16 %v1138, %v1129
  %v1517 = vpack.c.b16 %v1139, %v1130
  %v1518 = vpack.c.b16 %v1140, %v1131
  %v1519 = vpack.c.b16 %v1141, %v1132
  %v1520 = vpack.c.b16 %v1142, %v1133
  %v1521 = vpack.c.b16 %v1143, %v1134
  %v1522 = vpack.c.b16 %v1144, %v1135
  %v1523 = vpack.c.b16 %v1145, %v1136
  %v1524 = vpack.c.b16 %v1155, %v1146
  %v1525 = vpack.c.b16 %v1156, %v1147
  %v1526 = vpack.c.b16 %v1157, %v1148
  %v1527 = vpack.c.b16 %v1158, %v1149
  %v1528 = vpack.c.b16 %v1159, %v1150
  %v1529 = vpack.c.b16 %v1160, %v1151
  %v1530 = vpack.c.b16 %v1161, %v1152
  %v1531 = vpack.c.b16 %v1162, %v1153
  %v1532 = vpack.c.b16 %v1163, %v1154
  %v1533 = vpack.c.b16 %v1173, %v1164
  %v1534 = vpack.c.b16 %v1174, %v1165
  %v1535 = vpack.c.b16 %v1175, %v1166
  %v1536 = vpack.c.b16 %v1176, %v1167
  %v1537 = vpack.c.b16 %v1177, %v1168
  %v1538 = vpack.c.b16 %v1178, %v1169
  %v1539 = vpack.c.b16 %v1179, %v1170
  %v1540 = vpack.c.b16 %v1180, %v1171
  %v1541 = vpack.c.b16 %v1181, %v1172
  %v1542 = vpack.c.b16 %v1191, %v1182
  %v1543 = vpack.c.b16 %v1192, %v1183
  %v1544 = vpack.c.b16 %v1193, %v1184
  %v1545 = vpack.c.b16 %v1194, %v1185
  %v1546 = vpack.c.b16 %v1195, %v1186
  %v1547 = vpack.c.b16 %v1196, %v1187
  %v1548 = vpack.c.b16 %v1197, %v1188
  %v1549 = vpack.c.b16 %v1198, %v1189
  %v1550 = vpack.c.b16 %v1199, %v1190
  %v1551 = vpack.c.b16 %v1209, %v1200
  %v1552 = vpack.c.b16 %v1210, %v1201
  %v1553 = vpack.c.b16 %v1211, %v1202
  %v1554 = vpack.c.b16 %v1212, %v1203
  %v1555 = vpack.c.b16 %v1213, %v1204
  %v1556 = vpack.c.b16 %v1214, %v1205
  %v1557 = vpack.c.b16 %v1215, %v1206
  %v1558 = vpack.c.b16 %v1216, %v1207
  %v1559 = vpack.c.b16 %v1217, %v1208
  %v1560 = vpack.c.b16 %v1227, %v1218
  %v1561 = vpack.c.b16 %v1228, %v1219
  %v1562 = vpack.c.b16 %v1229, %v1220
  %v1563 = vpack.c.b16 %v1230, %v1221
  %v1564 = vpack.c.b16 %v1231, %v1222
  %v1565 = vpack.c.b16 %v1232, %v1223
  %v1566 = vpack.c.b16 %v1233, %v1224
  %v1567 = vpack.c.b16 %v1234, %v1225
  %v1568 = vpack.c.b16 %v1235, %v1226
  %v1569 = vpack.c.b16 %v1245, %v1236
  %v1570 = vpack.c.b16 %v1246, %v1237
  %v1571 = vpack.c.b16 %v1247, %v1238
  %v1572 = vpack.c.b16 %v1248, %v1239
  %v1573 = vpack.c.b16 %v1249, %v1240
  %v1574 = vpack.c.b16 %v1250, %v1241
  %v1575 = vpack.c.b16 %v1251, %v1242
  %v1576 = vpack.c.b16 %v1252, %v1243
  %v1577 = vpack.c.b16 %v1253, %v1244
  %v1578 = vpack.c.b16 %v1263, %v1254
  %v1579 = vpack.c.b16 %v1264, %v1255
  %v1580 = vpack.c.b16 %v1265, %v1256
  %v1581 = vpack.c.b16 %v1266, %v1257
  %v1582 = vpack.c.b16 %v1267, %v1258
  %v1583 = vpack.c.b16 %v1268, %v1259
  %v1584 = vpack.c.b16 %v1269, %v1260
  %v1585 = vpack.c.b16 %v1270, %v1261
  %v1586 = vpack.c.b16 %v1271, %v1262
  %v1587 = vpack.c.b16 %v1281, %v1272
  %v1588 = vpack.c.b16 %v1282, %v1273
  %v1589 = vpack.c.b16 %v1283, %v1274
  %v1590 = vpack.c.b16 %v1284, %v1275
  %v1591 = vpack.c.b16 %v1285, %v1276
  %v1592 = vpack.c.b16 %v1286, %v1277
  %v1593 = vpack.c.b16 %v1287, %v1278
  %v1594 = vpack.c.b16 %v1288, %v1279
  %v1595 = vpack.c.b16 %v1289, %v1280
  %v1596 = vpack.c.b16 %v1299, %v1290
  %v1597 = vpack.c.b16 %v1300, %v1291
  %v1598 = vpack.c.b16 %v1301, %v1292
  %v1599 = vpack.c.b16 %v1302, %v1293
  %v1600 = vpack.c.b16 %v1303, %v1294
  %v1601 = vpack.c.b16 %v1304, %v1295
  %v1602 = vpack.c.b16 %v1305, %v1296
  %v1603 = vpack.c.b16 %v1306, %v1297
  %v1604 = vpack.c.b16 %v1307, %v1298
  %v1605 = vpack.c.b16 %v1317, %v1308
  %v1606 = vpack.c.b16 %v1318, %v1309
  %v1607 = vpack.c.b16 %v1319, %v1310
  %v1608 = vpack.c.b16 %v1320, %v1311
  %v1609 = vpack.c.b16 %v1321, %v1312
  %v1610 = vpack.c.b16 %v1322, %v1313
  %v1611 = vpack.c.b16 %v1323, %v1314
  %v1612 = vpack.c.b16 %v1324, %v1315
  %v1613 = vpack.c.b16 %v1325, %v1316
  %1902 = vmatprep.subr.bf16.mxu0 %v1390
  %1903 = vmatpush1.bf16.msra.mxu0 %v1389
  %1904 = vmatprep.subr.bf16.mxu0 %v1381
  %1905 = vmatpush1.bf16.msra.mxu0 %v1380
  %1906 = vmatprep.subr.bf16.mxu0 %v1372
  %1907 = vmatpush1.bf16.msra.mxu0 %v1371
  %1908 = vmatprep.subr.bf16.mxu0 %v1363
  %1909 = vmatpush1.bf16.msra.mxu0 %v1362
  %1910 = vmatprep.subr.bf16.mxu0 %v1354
  %1911 = vmatpush1.bf16.msra.mxu0 %v1353
  %1912 = vmatprep.subr.bf16.mxu0 %v1345
  %1913 = vmatpush1.bf16.msra.mxu0 %v1344
  %1914 = vmatprep.subr.bf16.mxu0 %v1336
  %1915 = vmatpush1.bf16.msra.mxu0 %v1335
  %1916 = vmatprep.subr.bf16.mxu0 %v1327
  %1917 = vmatpush1.bf16.msra.mxu0 %v1326
  %1918 = vmatprep.subr.bf16.mxu0 %v1462
  %1919 = vmatpush2.bf16.msra.mxu0 %v1461
  %1920 = vmatprep.subr.bf16.mxu0 %v1453
  %1921 = vmatpush2.bf16.msra.mxu0 %v1452
  %1922 = vmatprep.subr.bf16.mxu0 %v1444
  %1923 = vmatpush2.bf16.msra.mxu0 %v1443
  %1924 = vmatprep.subr.bf16.mxu0 %v1435
  %1925 = vmatpush2.bf16.msra.mxu0 %v1434
  %1926 = vmatprep.subr.bf16.mxu0 %v1426
  %1927 = vmatpush2.bf16.msra.mxu0 %v1425
  %1928 = vmatprep.subr.bf16.mxu0 %v1417
  %1929 = vmatpush2.bf16.msra.mxu0 %v1416
  %1930 = vmatprep.subr.bf16.mxu0 %v1408
  %1931 = vmatpush2.bf16.msra.mxu0 %v1407
  %1932 = vmatprep.subr.bf16.mxu0 %v1399
  %1933 = vmatpush2.bf16.msra.mxu0 %v1398
  %1934 = vmatprep.mubr.bf16.mxu0 %v415
  %1935 = vmatmul.mubr.bf16.gmra.mxu0 %v414
  %v1936 = vpop.f32.mrf.mxu0
  %v1937 = vadd.f32 %v373, %v1936
  %v1938 = vpop.f32.mrf.mxu0
  %v1939 = vadd.f32 %v373, %v1938
  %v1940 = vpop.f32.mrf.mxu0
  %v1941 = vadd.f32 %v378, %v1940
  %v1942 = vpop.f32.mrf.mxu0
  %v1943 = vadd.f32 %v378, %v1942
  %1944 = vmatprep.mubr.bf16.mxu0 %v419
  %1945 = vmatmul.mubr.bf16.gmra.mxu0 %v418
  %v1946 = vpop.f32.mrf.mxu0
  %v1947 = vadd.f32 %v383, %v1946
  %v1948 = vpop.f32.mrf.mxu0
  %v1949 = vadd.f32 %v383, %v1948
  %v1950 = vpop.f32.mrf.mxu0
  %v1951 = vadd.f32 %v388, %v1950
  %v1952 = vpop.f32.mrf.mxu0
  %v1953 = vadd.f32 %v388, %v1952
  %1954 = vdwg.mxu0
  %1955 = vmatprep.subr.bf16.mxu0 %v1534
  %1956 = vmatpush1.bf16.msra.mxu0 %v1533
  %1957 = vmatprep.subr.bf16.mxu0 %v1525
  %1958 = vmatpush1.bf16.msra.mxu0 %v1524
  %1959 = vmatprep.subr.bf16.mxu0 %v1516
  %1960 = vmatpush1.bf16.msra.mxu0 %v1515
  %1961 = vmatprep.subr.bf16.mxu0 %v1507
  %1962 = vmatpush1.bf16.msra.mxu0 %v1506
  %1963 = vmatprep.subr.bf16.mxu0 %v1498
  %1964 = vmatpush1.bf16.msra.mxu0 %v1497
  %1965 = vmatprep.subr.bf16.mxu0 %v1489
  %1966 = vmatpush1.bf16.msra.mxu0 %v1488
  %1967 = vmatprep.subr.bf16.mxu0 %v1480
  %1968 = vmatpush1.bf16.msra.mxu0 %v1479
  %1969 = vmatprep.subr.bf16.mxu0 %v1471
  %1970 = vmatpush1.bf16.msra.mxu0 %v1470
  %1971 = vmatprep.subr.bf16.mxu0 %v1606
  %1972 = vmatpush2.bf16.msra.mxu0 %v1605
  %1973 = vmatprep.subr.bf16.mxu0 %v1597
  %1974 = vmatpush2.bf16.msra.mxu0 %v1596
  %1975 = vmatprep.subr.bf16.mxu0 %v1588
  %1976 = vmatpush2.bf16.msra.mxu0 %v1587
  %1977 = vmatprep.subr.bf16.mxu0 %v1579
  %1978 = vmatpush2.bf16.msra.mxu0 %v1578
  %1979 = vmatprep.subr.bf16.mxu0 %v1570
  %1980 = vmatpush2.bf16.msra.mxu0 %v1569
  %1981 = vmatprep.subr.bf16.mxu0 %v1561
  %1982 = vmatpush2.bf16.msra.mxu0 %v1560
  %1983 = vmatprep.subr.bf16.mxu0 %v1552
  %1984 = vmatpush2.bf16.msra.mxu0 %v1551
  %1985 = vmatprep.subr.bf16.mxu0 %v1543
  %1986 = vmatpush2.bf16.msra.mxu0 %v1542
  %1987 = vmatprep.mubr.bf16.mxu0 %v417
  %1988 = vmatmul.mubr.bf16.gmra.mxu0 %v416
  %v1989 = vpop.f32.mrf.mxu0
  %v1990 = vadd.f32 %v1937, %v1989
  %v1991 = vpop.f32.mrf.mxu0
  %v1992 = vadd.f32 %v1939, %v1991
  %v1993 = vpop.f32.mrf.mxu0
  %v1994 = vadd.f32 %v1941, %v1993
  %v1995 = vpop.f32.mrf.mxu0
  %v1996 = vadd.f32 %v1943, %v1995
  %1997 = vmatprep.mubr.bf16.mxu0 %v421
  %1998 = vmatmul.mubr.bf16.gmra.mxu0 %v420
  %v1999 = vpop.f32.mrf.mxu0
  %v2000 = vadd.f32 %v1947, %v1999
  %v2001 = vpop.f32.mrf.mxu0
  %v2002 = vadd.f32 %v1949, %v2001
  %v2003 = vpop.f32.mrf.mxu0
  %v2004 = vadd.f32 %v1951, %v2003
  %v2005 = vpop.f32.mrf.mxu0
  %v2006 = vadd.f32 %v1953, %v2005
  %2007 = vdwg.mxu0
  %2008 = vmatprep.subr.bf16.mxu0 %v1392
  %2009 = vmatpush1.bf16.msra.mxu0 %v1391
  %2010 = vmatprep.subr.bf16.mxu0 %v1383
  %2011 = vmatpush1.bf16.msra.mxu0 %v1382
  %2012 = vmatprep.subr.bf16.mxu0 %v1374
  %2013 = vmatpush1.bf16.msra.mxu0 %v1373
  %2014 = vmatprep.subr.bf16.mxu0 %v1365
  %2015 = vmatpush1.bf16.msra.mxu0 %v1364
  %2016 = vmatprep.subr.bf16.mxu0 %v1356
  %2017 = vmatpush1.bf16.msra.mxu0 %v1355
  %2018 = vmatprep.subr.bf16.mxu0 %v1347
  %2019 = vmatpush1.bf16.msra.mxu0 %v1346
  %2020 = vmatprep.subr.bf16.mxu0 %v1338
  %2021 = vmatpush1.bf16.msra.mxu0 %v1337
  %2022 = vmatprep.subr.bf16.mxu0 %v1329
  %2023 = vmatpush1.bf16.msra.mxu0 %v1328
  %2024 = vmatprep.subr.bf16.mxu0 %v1464
  %2025 = vmatpush2.bf16.msra.mxu0 %v1463
  %2026 = vmatprep.subr.bf16.mxu0 %v1455
  %2027 = vmatpush2.bf16.msra.mxu0 %v1454
  %2028 = vmatprep.subr.bf16.mxu0 %v1446
  %2029 = vmatpush2.bf16.msra.mxu0 %v1445
  %2030 = vmatprep.subr.bf16.mxu0 %v1437
  %2031 = vmatpush2.bf16.msra.mxu0 %v1436
  %2032 = vmatprep.subr.bf16.mxu0 %v1428
  %2033 = vmatpush2.bf16.msra.mxu0 %v1427
  %2034 = vmatprep.subr.bf16.mxu0 %v1419
  %2035 = vmatpush2.bf16.msra.mxu0 %v1418
  %2036 = vmatprep.subr.bf16.mxu0 %v1410
  %2037 = vmatpush2.bf16.msra.mxu0 %v1409
  %2038 = vmatprep.subr.bf16.mxu0 %v1401
  %2039 = vmatpush2.bf16.msra.mxu0 %v1400
  %2040 = vmatprep.mubr.bf16.mxu0 %v415
  %2041 = vmatmul.mubr.bf16.gmra.mxu0 %v414
  %v2042 = vpop.f32.mrf.mxu0
  %v2043 = vadd.f32 %v373, %v2042
  %v2044 = vpop.f32.mrf.mxu0
  %v2045 = vadd.f32 %v373, %v2044
  %v2046 = vpop.f32.mrf.mxu0
  %v2047 = vadd.f32 %v378, %v2046
  %v2048 = vpop.f32.mrf.mxu0
  %v2049 = vadd.f32 %v378, %v2048
  %2050 = vmatprep.mubr.bf16.mxu0 %v419
  %2051 = vmatmul.mubr.bf16.gmra.mxu0 %v418
  %v2052 = vpop.f32.mrf.mxu0
  %v2053 = vadd.f32 %v383, %v2052
  %v2054 = vpop.f32.mrf.mxu0
  %v2055 = vadd.f32 %v383, %v2054
  %v2056 = vpop.f32.mrf.mxu0
  %v2057 = vadd.f32 %v388, %v2056
  %v2058 = vpop.f32.mrf.mxu0
  %v2059 = vadd.f32 %v388, %v2058
  %2060 = vdwg.mxu0
  %2061 = vmatprep.subr.bf16.mxu0 %v1536
  %2062 = vmatpush1.bf16.msra.mxu0 %v1535
  %2063 = vmatprep.subr.bf16.mxu0 %v1527
  %2064 = vmatpush1.bf16.msra.mxu0 %v1526
  %2065 = vmatprep.subr.bf16.mxu0 %v1518
  %2066 = vmatpush1.bf16.msra.mxu0 %v1517
  %2067 = vmatprep.subr.bf16.mxu0 %v1509
  %2068 = vmatpush1.bf16.msra.mxu0 %v1508
  %2069 = vmatprep.subr.bf16.mxu0 %v1500
  %2070 = vmatpush1.bf16.msra.mxu0 %v1499
  %2071 = vmatprep.subr.bf16.mxu0 %v1491
  %2072 = vmatpush1.bf16.msra.mxu0 %v1490
  %2073 = vmatprep.subr.bf16.mxu0 %v1482
  %2074 = vmatpush1.bf16.msra.mxu0 %v1481
  %2075 = vmatprep.subr.bf16.mxu0 %v1473
  %2076 = vmatpush1.bf16.msra.mxu0 %v1472
  %2077 = vmatprep.subr.bf16.mxu0 %v1608
  %2078 = vmatpush2.bf16.msra.mxu0 %v1607
  %2079 = vmatprep.subr.bf16.mxu0 %v1599
  %2080 = vmatpush2.bf16.msra.mxu0 %v1598
  %2081 = vmatprep.subr.bf16.mxu0 %v1590
  %2082 = vmatpush2.bf16.msra.mxu0 %v1589
  %2083 = vmatprep.subr.bf16.mxu0 %v1581
  %2084 = vmatpush2.bf16.msra.mxu0 %v1580
  %2085 = vmatprep.subr.bf16.mxu0 %v1572
  %2086 = vmatpush2.bf16.msra.mxu0 %v1571
  %2087 = vmatprep.subr.bf16.mxu0 %v1563
  %2088 = vmatpush2.bf16.msra.mxu0 %v1562
  %2089 = vmatprep.subr.bf16.mxu0 %v1554
  %2090 = vmatpush2.bf16.msra.mxu0 %v1553
  %2091 = vmatprep.subr.bf16.mxu0 %v1545
  %2092 = vmatpush2.bf16.msra.mxu0 %v1544
  %2093 = vmatprep.mubr.bf16.mxu0 %v417
  %2094 = vmatmul.mubr.bf16.gmra.mxu0 %v416
  %v2095 = vpop.f32.mrf.mxu0
  %v2096 = vadd.f32 %v2043, %v2095
  %v2097 = vpop.f32.mrf.mxu0
  %v2098 = vadd.f32 %v2045, %v2097
  %v2099 = vpop.f32.mrf.mxu0
  %v2100 = vadd.f32 %v2047, %v2099
  %v2101 = vpop.f32.mrf.mxu0
  %v2102 = vadd.f32 %v2049, %v2101
  %2103 = vmatprep.mubr.bf16.mxu0 %v421
  %2104 = vmatmul.mubr.bf16.gmra.mxu0 %v420
  %v2105 = vpop.f32.mrf.mxu0
  %v2106 = vadd.f32 %v2053, %v2105
  %v2107 = vpop.f32.mrf.mxu0
  %v2108 = vadd.f32 %v2055, %v2107
  %v2109 = vpop.f32.mrf.mxu0
  %v2110 = vadd.f32 %v2057, %v2109
  %v2111 = vpop.f32.mrf.mxu0
  %v2112 = vadd.f32 %v2059, %v2111
  %2113 = vdwg.mxu0
  %2114 = vmatprep.subr.bf16.mxu0 %v1394
  %2115 = vmatpush1.bf16.msra.mxu0 %v1393
  %2116 = vmatprep.subr.bf16.mxu0 %v1385
  %2117 = vmatpush1.bf16.msra.mxu0 %v1384
  %2118 = vmatprep.subr.bf16.mxu0 %v1376
  %2119 = vmatpush1.bf16.msra.mxu0 %v1375
  %2120 = vmatprep.subr.bf16.mxu0 %v1367
  %2121 = vmatpush1.bf16.msra.mxu0 %v1366
  %2122 = vmatprep.subr.bf16.mxu0 %v1358
  %2123 = vmatpush1.bf16.msra.mxu0 %v1357
  %2124 = vmatprep.subr.bf16.mxu0 %v1349
  %2125 = vmatpush1.bf16.msra.mxu0 %v1348
  %2126 = vmatprep.subr.bf16.mxu0 %v1340
  %2127 = vmatpush1.bf16.msra.mxu0 %v1339
  %2128 = vmatprep.subr.bf16.mxu0 %v1331
  %2129 = vmatpush1.bf16.msra.mxu0 %v1330
  %2130 = vmatprep.subr.bf16.mxu0 %v1466
  %2131 = vmatpush2.bf16.msra.mxu0 %v1465
  %2132 = vmatprep.subr.bf16.mxu0 %v1457
  %2133 = vmatpush2.bf16.msra.mxu0 %v1456
  %2134 = vmatprep.subr.bf16.mxu0 %v1448
  %2135 = vmatpush2.bf16.msra.mxu0 %v1447
  %2136 = vmatprep.subr.bf16.mxu0 %v1439
  %2137 = vmatpush2.bf16.msra.mxu0 %v1438
  %2138 = vmatprep.subr.bf16.mxu0 %v1430
  %2139 = vmatpush2.bf16.msra.mxu0 %v1429
  %2140 = vmatprep.subr.bf16.mxu0 %v1421
  %2141 = vmatpush2.bf16.msra.mxu0 %v1420
  %2142 = vmatprep.subr.bf16.mxu0 %v1412
  %2143 = vmatpush2.bf16.msra.mxu0 %v1411
  %2144 = vmatprep.subr.bf16.mxu0 %v1403
  %2145 = vmatpush2.bf16.msra.mxu0 %v1402
  %2146 = vmatprep.mubr.bf16.mxu0 %v415
  %2147 = vmatmul.mubr.bf16.gmra.mxu0 %v414
  %v2148 = vpop.f32.mrf.mxu0
  %v2149 = vadd.f32 %v373, %v2148
  %v2150 = vpop.f32.mrf.mxu0
  %v2151 = vadd.f32 %v373, %v2150
  %v2152 = vpop.f32.mrf.mxu0
  %v2153 = vadd.f32 %v378, %v2152
  %v2154 = vpop.f32.mrf.mxu0
  %v2155 = vadd.f32 %v378, %v2154
  %2156 = vmatprep.mubr.bf16.mxu0 %v419
  %2157 = vmatmul.mubr.bf16.gmra.mxu0 %v418
  %v2158 = vpop.f32.mrf.mxu0
  %v2159 = vadd.f32 %v383, %v2158
  %v2160 = vpop.f32.mrf.mxu0
  %v2161 = vadd.f32 %v383, %v2160
  %v2162 = vpop.f32.mrf.mxu0
  %v2163 = vadd.f32 %v388, %v2162
  %v2164 = vpop.f32.mrf.mxu0
  %v2165 = vadd.f32 %v388, %v2164
  %2166 = vdwg.mxu0
  %2167 = vmatprep.subr.bf16.mxu0 %v1538
  %2168 = vmatpush1.bf16.msra.mxu0 %v1537
  %2169 = vmatprep.subr.bf16.mxu0 %v1529
  %2170 = vmatpush1.bf16.msra.mxu0 %v1528
  %2171 = vmatprep.subr.bf16.mxu0 %v1520
  %2172 = vmatpush1.bf16.msra.mxu0 %v1519
  %2173 = vmatprep.subr.bf16.mxu0 %v1511
  %2174 = vmatpush1.bf16.msra.mxu0 %v1510
  %2175 = vmatprep.subr.bf16.mxu0 %v1502
  %2176 = vmatpush1.bf16.msra.mxu0 %v1501
  %2177 = vmatprep.subr.bf16.mxu0 %v1493
  %2178 = vmatpush1.bf16.msra.mxu0 %v1492
  %2179 = vmatprep.subr.bf16.mxu0 %v1484
  %2180 = vmatpush1.bf16.msra.mxu0 %v1483
  %2181 = vmatprep.subr.bf16.mxu0 %v1475
  %2182 = vmatpush1.bf16.msra.mxu0 %v1474
  %2183 = vmatprep.subr.bf16.mxu0 %v1610
  %2184 = vmatpush2.bf16.msra.mxu0 %v1609
  %2185 = vmatprep.subr.bf16.mxu0 %v1601
  %2186 = vmatpush2.bf16.msra.mxu0 %v1600
  %2187 = vmatprep.subr.bf16.mxu0 %v1592
  %2188 = vmatpush2.bf16.msra.mxu0 %v1591
  %2189 = vmatprep.subr.bf16.mxu0 %v1583
  %2190 = vmatpush2.bf16.msra.mxu0 %v1582
  %2191 = vmatprep.subr.bf16.mxu0 %v1574
  %2192 = vmatpush2.bf16.msra.mxu0 %v1573
  %2193 = vmatprep.subr.bf16.mxu0 %v1565
  %2194 = vmatpush2.bf16.msra.mxu0 %v1564
  %2195 = vmatprep.subr.bf16.mxu0 %v1556
  %2196 = vmatpush2.bf16.msra.mxu0 %v1555
  %2197 = vmatprep.subr.bf16.mxu0 %v1547
  %2198 = vmatpush2.bf16.msra.mxu0 %v1546
  %2199 = vmatprep.mubr.bf16.mxu0 %v417
  %2200 = vmatmul.mubr.bf16.gmra.mxu0 %v416
  %v2201 = vpop.f32.mrf.mxu0
  %v2202 = vadd.f32 %v2149, %v2201
  %v2203 = vpop.f32.mrf.mxu0
  %v2204 = vadd.f32 %v2151, %v2203
  %v2205 = vpop.f32.mrf.mxu0
  %v2206 = vadd.f32 %v2153, %v2205
  %v2207 = vpop.f32.mrf.mxu0
  %v2208 = vadd.f32 %v2155, %v2207
  %2209 = vmatprep.mubr.bf16.mxu0 %v421
  %2210 = vmatmul.mubr.bf16.gmra.mxu0 %v420
  %v2211 = vpop.f32.mrf.mxu0
  %v2212 = vadd.f32 %v2159, %v2211
  %v2213 = vpop.f32.mrf.mxu0
  %v2214 = vadd.f32 %v2161, %v2213
  %v2215 = vpop.f32.mrf.mxu0
  %v2216 = vadd.f32 %v2163, %v2215
  %v2217 = vpop.f32.mrf.mxu0
  %v2218 = vadd.f32 %v2165, %v2217
  %2219 = vdwg.mxu0
  %2220 = vmatprep.subr.bf16.mxu0 %v1396
  %2221 = vmatpush1.bf16.msra.mxu0 %v1395
  %2222 = vmatprep.subr.bf16.mxu0 %v1387
  %2223 = vmatpush1.bf16.msra.mxu0 %v1386
  %2224 = vmatprep.subr.bf16.mxu0 %v1378
  %2225 = vmatpush1.bf16.msra.mxu0 %v1377
  %2226 = vmatprep.subr.bf16.mxu0 %v1369
  %2227 = vmatpush1.bf16.msra.mxu0 %v1368
  %2228 = vmatprep.subr.bf16.mxu0 %v1360
  %2229 = vmatpush1.bf16.msra.mxu0 %v1359
  %2230 = vmatprep.subr.bf16.mxu0 %v1351
  %2231 = vmatpush1.bf16.msra.mxu0 %v1350
  %2232 = vmatprep.subr.bf16.mxu0 %v1342
  %2233 = vmatpush1.bf16.msra.mxu0 %v1341
  %2234 = vmatprep.subr.bf16.mxu0 %v1333
  %2235 = vmatpush1.bf16.msra.mxu0 %v1332
  %2236 = vmatprep.subr.bf16.mxu0 %v1468
  %2237 = vmatpush2.bf16.msra.mxu0 %v1467
  %2238 = vmatprep.subr.bf16.mxu0 %v1459
  %2239 = vmatpush2.bf16.msra.mxu0 %v1458
  %2240 = vmatprep.subr.bf16.mxu0 %v1450
  %2241 = vmatpush2.bf16.msra.mxu0 %v1449
  %2242 = vmatprep.subr.bf16.mxu0 %v1441
  %2243 = vmatpush2.bf16.msra.mxu0 %v1440
  %2244 = vmatprep.subr.bf16.mxu0 %v1432
  %2245 = vmatpush2.bf16.msra.mxu0 %v1431
  %2246 = vmatprep.subr.bf16.mxu0 %v1423
  %2247 = vmatpush2.bf16.msra.mxu0 %v1422
  %2248 = vmatprep.subr.bf16.mxu0 %v1414
  %2249 = vmatpush2.bf16.msra.mxu0 %v1413
  %2250 = vmatprep.subr.bf16.mxu0 %v1405
  %2251 = vmatpush2.bf16.msra.mxu0 %v1404
  %2252 = vmatprep.mubr.bf16.mxu0 %v415
  %2253 = vmatmul.mubr.bf16.gmra.mxu0 %v414
  %v2254 = vpop.f32.mrf.mxu0
  %v2255 = vadd.f32 %v373, %v2254
  %v2256 = vpop.f32.mrf.mxu0
  %v2257 = vadd.f32 %v373, %v2256
  %v2258 = vpop.f32.mrf.mxu0
  %v2259 = vadd.f32 %v378, %v2258
  %v2260 = vpop.f32.mrf.mxu0
  %v2261 = vadd.f32 %v378, %v2260
  %2262 = vmatprep.mubr.bf16.mxu0 %v419
  %2263 = vmatmul.mubr.bf16.gmra.mxu0 %v418
  %v2264 = vpop.f32.mrf.mxu0
  %v2265 = vadd.f32 %v383, %v2264
  %v2266 = vpop.f32.mrf.mxu0
  %v2267 = vadd.f32 %v383, %v2266
  %v2268 = vpop.f32.mrf.mxu0
  %v2269 = vadd.f32 %v388, %v2268
  %v2270 = vpop.f32.mrf.mxu0
  %v2271 = vadd.f32 %v388, %v2270
  %2272 = vdwg.mxu0
  %2273 = vmatprep.subr.bf16.mxu0 %v1540
  %2274 = vmatpush1.bf16.msra.mxu0 %v1539
  %2275 = vmatprep.subr.bf16.mxu0 %v1531
  %2276 = vmatpush1.bf16.msra.mxu0 %v1530
  %2277 = vmatprep.subr.bf16.mxu0 %v1522
  %2278 = vmatpush1.bf16.msra.mxu0 %v1521
  %2279 = vmatprep.subr.bf16.mxu0 %v1513
  %2280 = vmatpush1.bf16.msra.mxu0 %v1512
  %2281 = vmatprep.subr.bf16.mxu0 %v1504
  %2282 = vmatpush1.bf16.msra.mxu0 %v1503
  %2283 = vmatprep.subr.bf16.mxu0 %v1495
  %2284 = vmatpush1.bf16.msra.mxu0 %v1494
  %2285 = vmatprep.subr.bf16.mxu0 %v1486
  %2286 = vmatpush1.bf16.msra.mxu0 %v1485
  %2287 = vmatprep.subr.bf16.mxu0 %v1477
  %2288 = vmatpush1.bf16.msra.mxu0 %v1476
  %2289 = vmatprep.subr.bf16.mxu0 %v1612
  %2290 = vmatpush2.bf16.msra.mxu0 %v1611
  %2291 = vmatprep.subr.bf16.mxu0 %v1603
  %2292 = vmatpush2.bf16.msra.mxu0 %v1602
  %2293 = vmatprep.subr.bf16.mxu0 %v1594
  %2294 = vmatpush2.bf16.msra.mxu0 %v1593
  %2295 = vmatprep.subr.bf16.mxu0 %v1585
  %2296 = vmatpush2.bf16.msra.mxu0 %v1584
  %2297 = vmatprep.subr.bf16.mxu0 %v1576
  %2298 = vmatpush2.bf16.msra.mxu0 %v1575
  %2299 = vmatprep.subr.bf16.mxu0 %v1567
  %2300 = vmatpush2.bf16.msra.mxu0 %v1566
  %2301 = vmatprep.subr.bf16.mxu0 %v1558
  %2302 = vmatpush2.bf16.msra.mxu0 %v1557
  %2303 = vmatprep.subr.bf16.mxu0 %v1549
  %2304 = vmatpush2.bf16.msra.mxu0 %v1548
  %2305 = vmatprep.mubr.bf16.mxu0 %v417
  %2306 = vmatmul.mubr.bf16.gmra.mxu0 %v416
  %v2307 = vpop.f32.mrf.mxu0
  %v2308 = vadd.f32 %v2255, %v2307
  %v2309 = vpop.f32.mrf.mxu0
  %v2310 = vadd.f32 %v2257, %v2309
  %v2311 = vpop.f32.mrf.mxu0
  %v2312 = vadd.f32 %v2259, %v2311
  %v2313 = vpop.f32.mrf.mxu0
  %v2314 = vadd.f32 %v2261, %v2313
  %2315 = vmatprep.mubr.bf16.mxu0 %v421
  %2316 = vmatmul.mubr.bf16.gmra.mxu0 %v420
  %v2317 = vpop.f32.mrf.mxu0
  %v2318 = vadd.f32 %v2265, %v2317
  %v2319 = vpop.f32.mrf.mxu0
  %v2320 = vadd.f32 %v2267, %v2319
  %v2321 = vpop.f32.mrf.mxu0
  %v2322 = vadd.f32 %v2269, %v2321
  %v2323 = vpop.f32.mrf.mxu0
  %v2324 = vadd.f32 %v2271, %v2323
  %2325 = vdwg.mxu0
  %2326 = vmatprep.subr.bf16.mxu0 0
  %2327 = vmatpush1.bf16.msra.mxu0 %v1397
  %2328 = vmatprep.subr.bf16.mxu0 0
  %2329 = vmatpush1.bf16.msra.mxu0 %v1388
  %2330 = vmatprep.subr.bf16.mxu0 0
  %2331 = vmatpush1.bf16.msra.mxu0 %v1379
  %2332 = vmatprep.subr.bf16.mxu0 0
  %2333 = vmatpush1.bf16.msra.mxu0 %v1370
  %2334 = vmatprep.subr.bf16.mxu0 0
  %2335 = vmatpush1.bf16.msra.mxu0 %v1361
  %2336 = vmatprep.subr.bf16.mxu0 0
  %2337 = vmatpush1.bf16.msra.mxu0 %v1352
  %2338 = vmatprep.subr.bf16.mxu0 0
  %2339 = vmatpush1.bf16.msra.mxu0 %v1343
  %2340 = vmatprep.subr.bf16.mxu0 0
  %2341 = vmatpush1.bf16.msra.mxu0 %v1334
  %2342 = vmatprep.subr.bf16.mxu0 0
  %2343 = vmatpush2.bf16.msra.mxu0 %v1469
  %2344 = vmatprep.subr.bf16.mxu0 0
  %2345 = vmatpush2.bf16.msra.mxu0 %v1460
  %2346 = vmatprep.subr.bf16.mxu0 0
  %2347 = vmatpush2.bf16.msra.mxu0 %v1451
  %2348 = vmatprep.subr.bf16.mxu0 0
  %2349 = vmatpush2.bf16.msra.mxu0 %v1442
  %2350 = vmatprep.subr.bf16.mxu0 0
  %2351 = vmatpush2.bf16.msra.mxu0 %v1433
  %2352 = vmatprep.subr.bf16.mxu0 0
  %2353 = vmatpush2.bf16.msra.mxu0 %v1424
  %2354 = vmatprep.subr.bf16.mxu0 0
  %2355 = vmatpush2.bf16.msra.mxu0 %v1415
  %2356 = vmatprep.subr.bf16.mxu0 0
  %2357 = vmatpush2.bf16.msra.mxu0 %v1406
  %2358 = vmatprep.mubr.bf16.mxu0 %v415
  %2359 = vmatmul.mubr.bf16.gmra.mxu0 %v414
  %v2360 = vpop.f32.mrf.mxu0
  %v2361 = vadd.f32 %v373, %v2360
  %v2362 = vpop.f32.mrf.mxu0
  %v2363 = vpop.f32.mrf.mxu0
  %v2364 = vadd.f32 %v378, %v2363
  %v2365 = vpop.f32.mrf.mxu0
  %2366 = vmatprep.mubr.bf16.mxu0 %v419
  %2367 = vmatmul.mubr.bf16.gmra.mxu0 %v418
  %v2368 = vpop.f32.mrf.mxu0
  %v2369 = vadd.f32 %v383, %v2368
  %v2370 = vpop.f32.mrf.mxu0
  %v2371 = vpop.f32.mrf.mxu0
  %v2372 = vadd.f32 %v388, %v2371
  %v2373 = vpop.f32.mrf.mxu0
  %2374 = vdwg.mxu0
  %2375 = vmatprep.subr.bf16.mxu0 0
  %2376 = vmatpush1.bf16.msra.mxu0 %v1541
  %2377 = vmatprep.subr.bf16.mxu0 0
  %2378 = vmatpush1.bf16.msra.mxu0 %v1532
  %2379 = vmatprep.subr.bf16.mxu0 0
  %2380 = vmatpush1.bf16.msra.mxu0 %v1523
  %2381 = vmatprep.subr.bf16.mxu0 0
  %2382 = vmatpush1.bf16.msra.mxu0 %v1514
  %2383 = vmatprep.subr.bf16.mxu0 0
  %2384 = vmatpush1.bf16.msra.mxu0 %v1505
  %2385 = vmatprep.subr.bf16.mxu0 0
  %2386 = vmatpush1.bf16.msra.mxu0 %v1496
  %2387 = vmatprep.subr.bf16.mxu0 0
  %2388 = vmatpush1.bf16.msra.mxu0 %v1487
  %2389 = vmatprep.subr.bf16.mxu0 0
  %2390 = vmatpush1.bf16.msra.mxu0 %v1478
  %2391 = vmatprep.subr.bf16.mxu0 0
  %2392 = vmatpush2.bf16.msra.mxu0 %v1613
  %2393 = vmatprep.subr.bf16.mxu0 0
  %2394 = vmatpush2.bf16.msra.mxu0 %v1604
  %2395 = vmatprep.subr.bf16.mxu0 0
  %2396 = vmatpush2.bf16.msra.mxu0 %v1595
  %2397 = vmatprep.subr.bf16.mxu0 0
  %2398 = vmatpush2.bf16.msra.mxu0 %v1586
  %2399 = vmatprep.subr.bf16.mxu0 0
  %2400 = vmatpush2.bf16.msra.mxu0 %v1577
  %2401 = vmatprep.subr.bf16.mxu0 0
  %2402 = vmatpush2.bf16.msra.mxu0 %v1568
  %2403 = vmatprep.subr.bf16.mxu0 0
  %2404 = vmatpush2.bf16.msra.mxu0 %v1559
  %2405 = vmatprep.subr.bf16.mxu0 0
  %2406 = vmatpush2.bf16.msra.mxu0 %v1550
  %2407 = vmatprep.mubr.bf16.mxu0 %v417
  %2408 = vmatmul.mubr.bf16.gmra.mxu0 %v416
  %v2409 = vpop.f32.mrf.mxu0
  %v2410 = vadd.f32 %v2361, %v2409
  %v2411 = vpop.f32.mrf.mxu0
  %v2412 = vpop.f32.mrf.mxu0
  %v2413 = vadd.f32 %v2364, %v2412
  %v2414 = vpop.f32.mrf.mxu0
  %2415 = vmatprep.mubr.bf16.mxu0 %v421
  %2416 = vmatmul.mubr.bf16.gmra.mxu0 %v420
  %v2417 = vpop.f32.mrf.mxu0
  %v2418 = vadd.f32 %v2369, %v2417
  %v2419 = vpop.f32.mrf.mxu0
  %v2420 = vpop.f32.mrf.mxu0
  %v2421 = vadd.f32 %v2372, %v2420
  %v2422 = vpop.f32.mrf.mxu0
  %2423 = vdwg.mxu0
  %vm2424 = vcmp.gt.f32.partialorder %v1990, 0.0
  %vm2425 = vcmp.gt.f32.partialorder %v1992, 0.0
  %vm2426 = vcmp.gt.f32.partialorder %v2096, 0.0
  %vm2427 = vcmp.gt.f32.partialorder %v2098, 0.0
  %vm2428 = vcmp.gt.f32.partialorder %v2202, 0.0
  %vm2429 = vcmp.gt.f32.partialorder %v2204, 0.0
  %vm2430 = vcmp.gt.f32.partialorder %v2308, 0.0
  %vm2431 = vcmp.gt.f32.partialorder %v2310, 0.0
  %vm2432 = vcmp.gt.f32.partialorder %v2410, 0.0
  %vm2433 = vcmp.gt.f32.partialorder %v1994, 0.0
  %vm2434 = vcmp.gt.f32.partialorder %v1996, 0.0
  %vm2435 = vcmp.gt.f32.partialorder %v2100, 0.0
  %vm2436 = vcmp.gt.f32.partialorder %v2102, 0.0
  %vm2437 = vcmp.gt.f32.partialorder %v2206, 0.0
  %vm2438 = vcmp.gt.f32.partialorder %v2208, 0.0
  %vm2439 = vcmp.gt.f32.partialorder %v2312, 0.0
  %vm2440 = vcmp.gt.f32.partialorder %v2314, 0.0
  %vm2441 = vcmp.gt.f32.partialorder %v2413, 0.0
  %vm2442 = vcmp.gt.f32.partialorder %v2000, 0.0
  %vm2443 = vcmp.gt.f32.partialorder %v2002, 0.0
  %vm2444 = vcmp.gt.f32.partialorder %v2106, 0.0
  %vm2445 = vcmp.gt.f32.partialorder %v2108, 0.0
  %vm2446 = vcmp.gt.f32.partialorder %v2212, 0.0
  %vm2447 = vcmp.gt.f32.partialorder %v2214, 0.0
  %vm2448 = vcmp.gt.f32.partialorder %v2318, 0.0
  %vm2449 = vcmp.gt.f32.partialorder %v2320, 0.0
  %vm2450 = vcmp.gt.f32.partialorder %v2418, 0.0
  %vm2451 = vcmp.gt.f32.partialorder %v2004, 0.0
  %vm2452 = vcmp.gt.f32.partialorder %v2006, 0.0
  %vm2453 = vcmp.gt.f32.partialorder %v2110, 0.0
  %vm2454 = vcmp.gt.f32.partialorder %v2112, 0.0
  %vm2455 = vcmp.gt.f32.partialorder %v2216, 0.0
  %vm2456 = vcmp.gt.f32.partialorder %v2218, 0.0
  %vm2457 = vcmp.gt.f32.partialorder %v2322, 0.0
  %vm2458 = vcmp.gt.f32.partialorder %v2324, 0.0
  %vm2459 = vcmp.gt.f32.partialorder %v2421, 0.0
  %v2460 = vmin.f32 %v1990, 0.0
  %v2461 = vmin.f32 %v1992, 0.0
  %v2462 = vmin.f32 %v2096, 0.0
  %v2463 = vmin.f32 %v2098, 0.0
  %v2464 = vmin.f32 %v2202, 0.0
  %v2465 = vmin.f32 %v2204, 0.0
  %v2466 = vmin.f32 %v2308, 0.0
  %v2467 = vmin.f32 %v2310, 0.0
  %v2468 = vmin.f32 %v2410, 0.0
  %v2469 = vmin.f32 %v1994, 0.0
  %v2470 = vmin.f32 %v1996, 0.0
  %v2471 = vmin.f32 %v2100, 0.0
  %v2472 = vmin.f32 %v2102, 0.0
  %v2473 = vmin.f32 %v2206, 0.0
  %v2474 = vmin.f32 %v2208, 0.0
  %v2475 = vmin.f32 %v2312, 0.0
  %v2476 = vmin.f32 %v2314, 0.0
  %v2477 = vmin.f32 %v2413, 0.0
  %v2478 = vmin.f32 %v2000, 0.0
  %v2479 = vmin.f32 %v2002, 0.0
  %v2480 = vmin.f32 %v2106, 0.0
  %v2481 = vmin.f32 %v2108, 0.0
  %v2482 = vmin.f32 %v2212, 0.0
  %v2483 = vmin.f32 %v2214, 0.0
  %v2484 = vmin.f32 %v2318, 0.0
  %v2485 = vmin.f32 %v2320, 0.0
  %v2486 = vmin.f32 %v2418, 0.0
  %v2487 = vmin.f32 %v2004, 0.0
  %v2488 = vmin.f32 %v2006, 0.0
  %v2489 = vmin.f32 %v2110, 0.0
  %v2490 = vmin.f32 %v2112, 0.0
  %v2491 = vmin.f32 %v2216, 0.0
  %v2492 = vmin.f32 %v2218, 0.0
  %v2493 = vmin.f32 %v2322, 0.0
  %v2494 = vmin.f32 %v2324, 0.0
  %v2495 = vmin.f32 %v2421, 0.0
  %v2496 = vmul.f32 %v2460, 1.442695
  %v2497 = vpow.pop %v2496
  %v2498 = vmul.f32 %v2461, 1.442695
  %v2499 = vpow.pop %v2498
  %v2500 = vmul.f32 %v2462, 1.442695
  %v2501 = vpow.pop %v2500
  %v2502 = vmul.f32 %v2463, 1.442695
  %v2503 = vpow.pop %v2502
  %v2504 = vmul.f32 %v2464, 1.442695
  %v2505 = vpow.pop %v2504
  %v2506 = vmul.f32 %v2465, 1.442695
  %v2507 = vpow.pop %v2506
  %v2508 = vmul.f32 %v2466, 1.442695
  %v2509 = vpow.pop %v2508
  %v2510 = vmul.f32 %v2467, 1.442695
  %v2511 = vpow.pop %v2510
  %v2512 = vmul.f32 %v2468, 1.442695
  %v2513 = vpow.pop %v2512
  %v2514 = vmul.f32 %v2469, 1.442695
  %v2515 = vpow.pop %v2514
  %v2516 = vmul.f32 %v2470, 1.442695
  %v2517 = vpow.pop %v2516
  %v2518 = vmul.f32 %v2471, 1.442695
  %v2519 = vpow.pop %v2518
  %v2520 = vmul.f32 %v2472, 1.442695
  %v2521 = vpow.pop %v2520
  %v2522 = vmul.f32 %v2473, 1.442695
  %v2523 = vpow.pop %v2522
  %v2524 = vmul.f32 %v2474, 1.442695
  %v2525 = vpow.pop %v2524
  %v2526 = vmul.f32 %v2475, 1.442695
  %v2527 = vpow.pop %v2526
  %v2528 = vmul.f32 %v2476, 1.442695
  %v2529 = vpow.pop %v2528
  %v2530 = vmul.f32 %v2477, 1.442695
  %v2531 = vpow.pop %v2530
  %v2532 = vmul.f32 %v2478, 1.442695
  %v2533 = vpow.pop %v2532
  %v2534 = vmul.f32 %v2479, 1.442695
  %v2535 = vpow.pop %v2534
  %v2536 = vmul.f32 %v2480, 1.442695
  %v2537 = vpow.pop %v2536
  %v2538 = vmul.f32 %v2481, 1.442695
  %v2539 = vpow.pop %v2538
  %v2540 = vmul.f32 %v2482, 1.442695
  %v2541 = vpow.pop %v2540
  %v2542 = vmul.f32 %v2483, 1.442695
  %v2543 = vpow.pop %v2542
  %v2544 = vmul.f32 %v2484, 1.442695
  %v2545 = vpow.pop %v2544
  %v2546 = vmul.f32 %v2485, 1.442695
  %v2547 = vpow.pop %v2546
  %v2548 = vmul.f32 %v2486, 1.442695
  %v2549 = vpow.pop %v2548
  %v2550 = vmul.f32 %v2487, 1.442695
  %v2551 = vpow.pop %v2550
  %v2552 = vmul.f32 %v2488, 1.442695
  %v2553 = vpow.pop %v2552
  %v2554 = vmul.f32 %v2489, 1.442695
  %v2555 = vpow.pop %v2554
  %v2556 = vmul.f32 %v2490, 1.442695
  %v2557 = vpow.pop %v2556
  %v2558 = vmul.f32 %v2491, 1.442695
  %v2559 = vpow.pop %v2558
  %v2560 = vmul.f32 %v2492, 1.442695
  %v2561 = vpow.pop %v2560
  %v2562 = vmul.f32 %v2493, 1.442695
  %v2563 = vpow.pop %v2562
  %v2564 = vmul.f32 %v2494, 1.442695
  %v2565 = vpow.pop %v2564
  %v2566 = vmul.f32 %v2495, 1.442695
  %v2567 = vpow.pop %v2566
  %v2568 = vsub.f32 %v2497, 1.0
  %v2569 = vsub.f32 %v2499, 1.0
  %v2570 = vsub.f32 %v2501, 1.0
  %v2571 = vsub.f32 %v2503, 1.0
  %v2572 = vsub.f32 %v2505, 1.0
  %v2573 = vsub.f32 %v2507, 1.0
  %v2574 = vsub.f32 %v2509, 1.0
  %v2575 = vsub.f32 %v2511, 1.0
  %v2576 = vsub.f32 %v2513, 1.0
  %v2577 = vsub.f32 %v2515, 1.0
  %v2578 = vsub.f32 %v2517, 1.0
  %v2579 = vsub.f32 %v2519, 1.0
  %v2580 = vsub.f32 %v2521, 1.0
  %v2581 = vsub.f32 %v2523, 1.0
  %v2582 = vsub.f32 %v2525, 1.0
  %v2583 = vsub.f32 %v2527, 1.0
  %v2584 = vsub.f32 %v2529, 1.0
  %v2585 = vsub.f32 %v2531, 1.0
  %v2586 = vsub.f32 %v2533, 1.0
  %v2587 = vsub.f32 %v2535, 1.0
  %v2588 = vsub.f32 %v2537, 1.0
  %v2589 = vsub.f32 %v2539, 1.0
  %v2590 = vsub.f32 %v2541, 1.0
  %v2591 = vsub.f32 %v2543, 1.0
  %v2592 = vsub.f32 %v2545, 1.0
  %v2593 = vsub.f32 %v2547, 1.0
  %v2594 = vsub.f32 %v2549, 1.0
  %v2595 = vsub.f32 %v2551, 1.0
  %v2596 = vsub.f32 %v2553, 1.0
  %v2597 = vsub.f32 %v2555, 1.0
  %v2598 = vsub.f32 %v2557, 1.0
  %v2599 = vsub.f32 %v2559, 1.0
  %v2600 = vsub.f32 %v2561, 1.0
  %v2601 = vsub.f32 %v2563, 1.0
  %v2602 = vsub.f32 %v2565, 1.0
  %v2603 = vsub.f32 %v2567, 1.0
  %v2604 = vsel %vm2424, %v1990, %v2568
  %v2605 = vsel %vm2425, %v1992, %v2569
  %v2606 = vsel %vm2426, %v2096, %v2570
  %v2607 = vsel %vm2427, %v2098, %v2571
  %v2608 = vsel %vm2428, %v2202, %v2572
  %v2609 = vsel %vm2429, %v2204, %v2573
  %v2610 = vsel %vm2430, %v2308, %v2574
  %v2611 = vsel %vm2431, %v2310, %v2575
  %v2612 = vsel %vm2432, %v2410, %v2576
  %v2613 = vsel %vm2433, %v1994, %v2577
  %v2614 = vsel %vm2434, %v1996, %v2578
  %v2615 = vsel %vm2435, %v2100, %v2579
  %v2616 = vsel %vm2436, %v2102, %v2580
  %v2617 = vsel %vm2437, %v2206, %v2581
  %v2618 = vsel %vm2438, %v2208, %v2582
  %v2619 = vsel %vm2439, %v2312, %v2583
  %v2620 = vsel %vm2440, %v2314, %v2584
  %v2621 = vsel %vm2441, %v2413, %v2585
  %v2622 = vsel %vm2442, %v2000, %v2586
  %v2623 = vsel %vm2443, %v2002, %v2587
  %v2624 = vsel %vm2444, %v2106, %v2588
  %v2625 = vsel %vm2445, %v2108, %v2589
  %v2626 = vsel %vm2446, %v2212, %v2590
  %v2627 = vsel %vm2447, %v2214, %v2591
  %v2628 = vsel %vm2448, %v2318, %v2592
  %v2629 = vsel %vm2449, %v2320, %v2593
  %v2630 = vsel %vm2450, %v2418, %v2594
  %v2631 = vsel %vm2451, %v2004, %v2595
  %v2632 = vsel %vm2452, %v2006, %v2596
  %v2633 = vsel %vm2453, %v2110, %v2597
  %v2634 = vsel %vm2454, %v2112, %v2598
  %v2635 = vsel %vm2455, %v2216, %v2599
  %v2636 = vsel %vm2456, %v2218, %v2600
  %v2637 = vsel %vm2457, %v2322, %v2601
  %v2638 = vsel %vm2458, %v2324, %v2602
  %v2639 = vsel %vm2459, %v2421, %v2603
  %v2640 = vpack.c.bf16 %v2613, %v2604
  %v2641 = vpack.c.bf16 %v2614, %v2605
  %v2642 = vpack.c.bf16 %v2615, %v2606
  %v2643 = vpack.c.bf16 %v2616, %v2607
  %v2644 = vpack.c.bf16 %v2617, %v2608
  %v2645 = vpack.c.bf16 %v2618, %v2609
  %v2646 = vpack.c.bf16 %v2619, %v2610
  %v2647 = vpack.c.bf16 %v2620, %v2611
  %v2648 = vpack.c.bf16 %v2621, %v2612
  %v2649 = vpack.c.bf16 %v2631, %v2622
  %v2650 = vpack.c.bf16 %v2632, %v2623
  %v2651 = vpack.c.bf16 %v2633, %v2624
  %v2652 = vpack.c.bf16 %v2634, %v2625
  %v2653 = vpack.c.bf16 %v2635, %v2626
  %v2654 = vpack.c.bf16 %v2636, %v2627
  %v2655 = vpack.c.bf16 %v2637, %v2628
  %v2656 = vpack.c.bf16 %v2638, %v2629
  %v2657 = vpack.c.bf16 %v2639, %v2630
  %v2658 = vld [vmem:[%s3] sm:$0xff]
  %v2659 = vld [vmem:[%s3 + $0x8] sm:$0xf]
  %v2660 = vld [vmem:[%s3 + $0xc] sm:$0xff]
  %v2661 = vld [vmem:[%s3 + $0x14] sm:$0xf]
  %v2662 = vld [vmem:[%s3 + $0x18] sm:$0xff]
  %v2663 = vld [vmem:[%s3 + $0x20] sm:$0xf]
  %v2664 = vld [vmem:[%s3 + $0x24] sm:$0xff]
  %v2665 = vld [vmem:[%s3 + $0x2c] sm:$0xf]
  %v2666 = vld [vmem:[%s3 + $0x30] sm:$0xff]
  %v2667 = vld [vmem:[%s3 + $0x38] sm:$0xf]
  %v2668 = vld [vmem:[%s3 + $0x3c] sm:$0xff]
  %v2669 = vld [vmem:[%s3 + $0x44] sm:$0xf]
  %v2670 = vld [vmem:[%s3 + $0x48] sm:$0xff]
  %v2671 = vld [vmem:[%s3 + $0x50] sm:$0xf]
  %v2672 = vld [vmem:[%s3 + $0x54] sm:$0xff]
  %v2673 = vld [vmem:[%s3 + $0x5c] sm:$0xf]
  %v2674 = vld [vmem:[%s3 + $0x60] sm:$0xff]
  %v2675 = vld [vmem:[%s3 + $0x68] sm:$0xf]
  %v2676 = vld [vmem:[%s3 + $0x6c] sm:$0xff]
  %v2677 = vld [vmem:[%s3 + $0x74] sm:$0xf]
  %v2678 = vld [vmem:[%s3 + $0x78] sm:$0xff]
  %v2679 = vld [vmem:[%s3 + $0x80] sm:$0xf]
  %v2680 = vld [vmem:[%s3 + $0x84] sm:$0xff]
  %v2681 = vld [vmem:[%s3 + $0x8c] sm:$0xf]
  %v2682 = vld [vmem:[%s3 + $0x90] sm:$0xff]
  %v2683 = vld [vmem:[%s3 + $0x98] sm:$0xf]
  %v2684 = vld [vmem:[%s3 + $0x9c] sm:$0xff]
  %v2685 = vld [vmem:[%s3 + $0xa4] sm:$0xf]
  %v2686 = vld [vmem:[%s3 + $0xa8] sm:$0xff]
  %v2687 = vld [vmem:[%s3 + $0xb0] sm:$0xf]
  %v2688 = vld [vmem:[%s3 + $0xb4] sm:$0xff]
  %v2689 = vld [vmem:[%s3 + $0xbc] sm:$0xf]
  %v2690 = vld [vmem:[%s3 + $0xc0] sm:$0xff]
  %v2691 = vld [vmem:[%s3 + $0xc8] sm:$0xf]
  %v2692 = vld [vmem:[%s3 + $0xcc] sm:$0xff]
  %v2693 = vld [vmem:[%s3 + $0xd4] sm:$0xf]
  %v2694 = vld [vmem:[%s3 + $0xd8] sm:$0xff]
  %v2695 = vld [vmem:[%s3 + $0xe0] sm:$0xf]
  %v2696 = vld [vmem:[%s3 + $0xe4] sm:$0xff]
  %v2697 = vld [vmem:[%s3 + $0xec] sm:$0xf]
  %v2698 = vld [vmem:[%s3 + $0xf0] sm:$0xff]
  %v2699 = vld [vmem:[%s3 + $0xf8] sm:$0xf]
  %v2700 = vld [vmem:[%s3 + $0xfc] sm:$0xff]
  %v2701 = vld [vmem:[%s3 + $0x104] sm:$0xf]
  %v2702 = vld [vmem:[%s3 + $0x108] sm:$0xff]
  %v2703 = vld [vmem:[%s3 + $0x110] sm:$0xf]
  %v2704 = vld [vmem:[%s3 + $0x114] sm:$0xff]
  %v2705 = vld [vmem:[%s3 + $0x11c] sm:$0xf]
  %v2706 = vld [vmem:[%s3 + $0x120] sm:$0xff]
  %v2707 = vld [vmem:[%s3 + $0x128] sm:$0xf]
  %v2708 = vld [vmem:[%s3 + $0x12c] sm:$0xff]
  %v2709 = vld [vmem:[%s3 + $0x134] sm:$0xf]
  %v2710 = vld [vmem:[%s3 + $0x138] sm:$0xff]
  %v2711 = vld [vmem:[%s3 + $0x140] sm:$0xf]
  %v2712 = vld [vmem:[%s3 + $0x144] sm:$0xff]
  %v2713 = vld [vmem:[%s3 + $0x14c] sm:$0xf]
  %v2714 = vld [vmem:[%s3 + $0x150] sm:$0xff]
  %v2715 = vld [vmem:[%s3 + $0x158] sm:$0xf]
  %v2716 = vld [vmem:[%s3 + $0x15c] sm:$0xff]
  %v2717 = vld [vmem:[%s3 + $0x164] sm:$0xf]
  %v2718 = vld [vmem:[%s3 + $0x168] sm:$0xff]
  %v2719 = vld [vmem:[%s3 + $0x170] sm:$0xf]
  %v2720 = vld [vmem:[%s3 + $0x174] sm:$0xff]
  %v2721 = vld [vmem:[%s3 + $0x17c] sm:$0xf]
  %v2722 = vld [vmem:[%s3 + $0x180] sm:$0xff]
  %v2723 = vld [vmem:[%s3 + $0x188] sm:$0xf]
  %v2724 = vld [vmem:[%s3 + $0x18c] sm:$0xff]
  %v2725 = vld [vmem:[%s3 + $0x194] sm:$0xf]
  %v2726 = vld [vmem:[%s3 + $0x198] sm:$0xff]
  %v2727 = vld [vmem:[%s3 + $0x1a0] sm:$0xf]
  %v2728 = vld [vmem:[%s3 + $0x1a4] sm:$0xff]
  %v2729 = vld [vmem:[%s3 + $0x1ac] sm:$0xf]
  %v2730 = vld [vmem:[%s3 + $0x1b0] sm:$0xff]
  %v2731 = vld [vmem:[%s3 + $0x1b8] sm:$0xf]
  %v2732 = vld [vmem:[%s3 + $0x1bc] sm:$0xff]
  %v2733 = vld [vmem:[%s3 + $0x1c4] sm:$0xf]
  %v2734 = vld [vmem:[%s3 + $0x1c8] sm:$0xff]
  %v2735 = vld [vmem:[%s3 + $0x1d0] sm:$0xf]
  %v2736 = vld [vmem:[%s3 + $0x1d4] sm:$0xff]
  %v2737 = vld [vmem:[%s3 + $0x1dc] sm:$0xf]
  %v2738 = vld [vmem:[%s3 + $0x1e0] sm:$0xff]
  %v2739 = vld [vmem:[%s3 + $0x1e8] sm:$0xf]
  %v2740 = vld [vmem:[%s3 + $0x1ec] sm:$0xff]
  %v2741 = vld [vmem:[%s3 + $0x1f4] sm:$0xf]
  %v2742 = vld [vmem:[%s3 + $0x1f8] sm:$0xff]
  %v2743 = vld [vmem:[%s3 + $0x200] sm:$0xf]
  %v2744 = vld [vmem:[%s3 + $0x204] sm:$0xff]
  %v2745 = vld [vmem:[%s3 + $0x20c] sm:$0xf]
  %v2746 = vld [vmem:[%s3 + $0x210] sm:$0xff]
  %v2747 = vld [vmem:[%s3 + $0x218] sm:$0xf]
  %v2748 = vld [vmem:[%s3 + $0x21c] sm:$0xff]
  %v2749 = vld [vmem:[%s3 + $0x224] sm:$0xf]
  %v2750 = vld [vmem:[%s3 + $0x228] sm:$0xff]
  %v2751 = vld [vmem:[%s3 + $0x230] sm:$0xf]
  %v2752 = vld [vmem:[%s3 + $0x234] sm:$0xff]
  %v2753 = vld [vmem:[%s3 + $0x23c] sm:$0xf]
  %v2754 = vld [vmem:[%s3 + $0x240] sm:$0xff]
  %v2755 = vld [vmem:[%s3 + $0x248] sm:$0xf]
  %v2756 = vld [vmem:[%s3 + $0x24c] sm:$0xff]
  %v2757 = vld [vmem:[%s3 + $0x254] sm:$0xf]
  %v2758 = vld [vmem:[%s3 + $0x258] sm:$0xff]
  %v2759 = vld [vmem:[%s3 + $0x260] sm:$0xf]
  %v2760 = vld [vmem:[%s3 + $0x264] sm:$0xff]
  %v2761 = vld [vmem:[%s3 + $0x26c] sm:$0xf]
  %v2762 = vld [vmem:[%s3 + $0x270] sm:$0xff]
  %v2763 = vld [vmem:[%s3 + $0x278] sm:$0xf]
  %v2764 = vld [vmem:[%s3 + $0x27c] sm:$0xff]
  %v2765 = vld [vmem:[%s3 + $0x284] sm:$0xf]
  %v2766 = vld [vmem:[%s3 + $0x288] sm:$0xff]
  %v2767 = vld [vmem:[%s3 + $0x290] sm:$0xf]
  %v2768 = vld [vmem:[%s3 + $0x294] sm:$0xff]
  %v2769 = vld [vmem:[%s3 + $0x29c] sm:$0xf]
  %v2770 = vld [vmem:[%s3 + $0x2a0] sm:$0xff]
  %v2771 = vld [vmem:[%s3 + $0x2a8] sm:$0xf]
  %v2772 = vld [vmem:[%s3 + $0x2ac] sm:$0xff]
  %v2773 = vld [vmem:[%s3 + $0x2b4] sm:$0xf]
  %v2774 = vld [vmem:[%s3 + $0x2b8] sm:$0xff]
  %v2775 = vld [vmem:[%s3 + $0x2c0] sm:$0xf]
  %v2776 = vld [vmem:[%s3 + $0x2c4] sm:$0xff]
  %v2777 = vld [vmem:[%s3 + $0x2cc] sm:$0xf]
  %v2778 = vld [vmem:[%s3 + $0x2d0] sm:$0xff]
  %v2779 = vld [vmem:[%s3 + $0x2d8] sm:$0xf]
  %v2780 = vld [vmem:[%s3 + $0x2dc] sm:$0xff]
  %v2781 = vld [vmem:[%s3 + $0x2e4] sm:$0xf]
  %v2782 = vld [vmem:[%s3 + $0x2e8] sm:$0xff]
  %v2783 = vld [vmem:[%s3 + $0x2f0] sm:$0xf]
  %v2784 = vld [vmem:[%s3 + $0x2f4] sm:$0xff]
  %v2785 = vld [vmem:[%s3 + $0x2fc] sm:$0xf]
  %v2786 = vld [vmem:[%s3 + $0x300] sm:$0xff]
  %v2787 = vld [vmem:[%s3 + $0x308] sm:$0xf]
  %v2788 = vld [vmem:[%s3 + $0x30c] sm:$0xff]
  %v2789 = vld [vmem:[%s3 + $0x314] sm:$0xf]
  %v2790 = vld [vmem:[%s3 + $0x318] sm:$0xff]
  %v2791 = vld [vmem:[%s3 + $0x320] sm:$0xf]
  %v2792 = vld [vmem:[%s3 + $0x324] sm:$0xff]
  %v2793 = vld [vmem:[%s3 + $0x32c] sm:$0xf]
  %v2794 = vld [vmem:[%s3 + $0x330] sm:$0xff]
  %v2795 = vld [vmem:[%s3 + $0x338] sm:$0xf]
  %v2796 = vld [vmem:[%s3 + $0x33c] sm:$0xff]
  %v2797 = vld [vmem:[%s3 + $0x344] sm:$0xf]
  %v2798 = vld [vmem:[%s3 + $0x348] sm:$0xff]
  %v2799 = vld [vmem:[%s3 + $0x350] sm:$0xf]
  %v2800 = vld [vmem:[%s3 + $0x354] sm:$0xff]
  %v2801 = vld [vmem:[%s3 + $0x35c] sm:$0xf]
  %v2802 = vld [vmem:[%s3 + $0x360] sm:$0xff]
  %v2803 = vld [vmem:[%s3 + $0x368] sm:$0xf]
  %v2804 = vld [vmem:[%s3 + $0x36c] sm:$0xff]
  %v2805 = vld [vmem:[%s3 + $0x374] sm:$0xf]
  %v2806 = vld [vmem:[%s3 + $0x378] sm:$0xff]
  %v2807 = vld [vmem:[%s3 + $0x380] sm:$0xf]
  %v2808 = vld [vmem:[%s3 + $0x384] sm:$0xff]
  %v2809 = vld [vmem:[%s3 + $0x38c] sm:$0xf]
  %v2810 = vld [vmem:[%s3 + $0x390] sm:$0xff]
  %v2811 = vld [vmem:[%s3 + $0x398] sm:$0xf]
  %v2812 = vld [vmem:[%s3 + $0x39c] sm:$0xff]
  %v2813 = vld [vmem:[%s3 + $0x3a4] sm:$0xf]
  %v2814 = vld [vmem:[%s3 + $0x3a8] sm:$0xff]
  %v2815 = vld [vmem:[%s3 + $0x3b0] sm:$0xf]
  %v2816 = vld [vmem:[%s3 + $0x3b4] sm:$0xff]
  %v2817 = vld [vmem:[%s3 + $0x3bc] sm:$0xf]
  %v2818 = vld [vmem:[%s3 + $0x3c0] sm:$0xff]
  %v2819 = vld [vmem:[%s3 + $0x3c8] sm:$0xf]
  %v2820 = vld [vmem:[%s3 + $0x3cc] sm:$0xff]
  %v2821 = vld [vmem:[%s3 + $0x3d4] sm:$0xf]
  %v2822 = vld [vmem:[%s3 + $0x3d8] sm:$0xff]
  %v2823 = vld [vmem:[%s3 + $0x3e0] sm:$0xf]
  %v2824 = vld [vmem:[%s3 + $0x3e4] sm:$0xff]
  %v2825 = vld [vmem:[%s3 + $0x3ec] sm:$0xf]
  %v2826 = vld [vmem:[%s3 + $0x3f0] sm:$0xff]
  %v2827 = vld [vmem:[%s3 + $0x3f8] sm:$0xf]
  %v2828 = vld [vmem:[%s3 + $0x3fc] sm:$0xff]
  %v2829 = vld [vmem:[%s3 + $0x404] sm:$0xf]
  %v2830 = vld [vmem:[%s3 + $0x408] sm:$0xff]
  %v2831 = vld [vmem:[%s3 + $0x410] sm:$0xf]
  %v2832 = vld [vmem:[%s3 + $0x414] sm:$0xff]
  %v2833 = vld [vmem:[%s3 + $0x41c] sm:$0xf]
  %v2834 = vld [vmem:[%s3 + $0x420] sm:$0xff]
  %v2835 = vld [vmem:[%s3 + $0x428] sm:$0xf]
  %v2836 = vld [vmem:[%s3 + $0x42c] sm:$0xff]
  %v2837 = vld [vmem:[%s3 + $0x434] sm:$0xf]
  %v2838 = vld [vmem:[%s3 + $0x438] sm:$0xff]
  %v2839 = vld [vmem:[%s3 + $0x440] sm:$0xf]
  %v2840 = vld [vmem:[%s3 + $0x444] sm:$0xff]
  %v2841 = vld [vmem:[%s3 + $0x44c] sm:$0xf]
  %v2842 = vld [vmem:[%s3 + $0x450] sm:$0xff]
  %v2843 = vld [vmem:[%s3 + $0x458] sm:$0xf]
  %v2844 = vld [vmem:[%s3 + $0x45c] sm:$0xff]
  %v2845 = vld [vmem:[%s3 + $0x464] sm:$0xf]
  %v2846 = vld [vmem:[%s3 + $0x468] sm:$0xff]
  %v2847 = vld [vmem:[%s3 + $0x470] sm:$0xf]
  %v2848 = vld [vmem:[%s3 + $0x474] sm:$0xff]
  %v2849 = vld [vmem:[%s3 + $0x47c] sm:$0xf]
  %v2850 = vld [vmem:[%s3 + $0x480] sm:$0xff]
  %v2851 = vld [vmem:[%s3 + $0x488] sm:$0xf]
  %v2852 = vld [vmem:[%s3 + $0x48c] sm:$0xff]
  %v2853 = vld [vmem:[%s3 + $0x494] sm:$0xf]
  %v2854 = vld [vmem:[%s3 + $0x498] sm:$0xff]
  %v2855 = vld [vmem:[%s3 + $0x4a0] sm:$0xf]
  %v2856 = vld [vmem:[%s3 + $0x4a4] sm:$0xff]
  %v2857 = vld [vmem:[%s3 + $0x4ac] sm:$0xf]
  %v2858 = vld [vmem:[%s3 + $0x4b0] sm:$0xff]
  %v2859 = vld [vmem:[%s3 + $0x4b8] sm:$0xf]
  %v2860 = vld [vmem:[%s3 + $0x4bc] sm:$0xff]
  %v2861 = vld [vmem:[%s3 + $0x4c4] sm:$0xf]
  %v2862 = vld [vmem:[%s3 + $0x4c8] sm:$0xff]
  %v2863 = vld [vmem:[%s3 + $0x4d0] sm:$0xf]
  %v2864 = vld [vmem:[%s3 + $0x4d4] sm:$0xff]
  %v2865 = vld [vmem:[%s3 + $0x4dc] sm:$0xf]
  %v2866 = vld [vmem:[%s3 + $0x4e0] sm:$0xff]
  %v2867 = vld [vmem:[%s3 + $0x4e8] sm:$0xf]
  %v2868 = vld [vmem:[%s3 + $0x4ec] sm:$0xff]
  %v2869 = vld [vmem:[%s3 + $0x4f4] sm:$0xf]
  %v2870 = vld [vmem:[%s3 + $0x4f8] sm:$0xff]
  %v2871 = vld [vmem:[%s3 + $0x500] sm:$0xf]
  %v2872 = vld [vmem:[%s3 + $0x504] sm:$0xff]
  %v2873 = vld [vmem:[%s3 + $0x50c] sm:$0xf]
  %v2874 = vld [vmem:[%s3 + $0x510] sm:$0xff]
  %v2875 = vld [vmem:[%s3 + $0x518] sm:$0xf]
  %v2876 = vld [vmem:[%s3 + $0x51c] sm:$0xff]
  %v2877 = vld [vmem:[%s3 + $0x524] sm:$0xf]
  %v2878 = vld [vmem:[%s3 + $0x528] sm:$0xff]
  %v2879 = vld [vmem:[%s3 + $0x530] sm:$0xf]
  %v2880 = vld [vmem:[%s3 + $0x534] sm:$0xff]
  %v2881 = vld [vmem:[%s3 + $0x53c] sm:$0xf]
  %v2882 = vld [vmem:[%s3 + $0x540] sm:$0xff]
  %v2883 = vld [vmem:[%s3 + $0x548] sm:$0xf]
  %v2884 = vld [vmem:[%s3 + $0x54c] sm:$0xff]
  %v2885 = vld [vmem:[%s3 + $0x554] sm:$0xf]
  %v2886 = vld [vmem:[%s3 + $0x558] sm:$0xff]
  %v2887 = vld [vmem:[%s3 + $0x560] sm:$0xf]
  %v2888 = vld [vmem:[%s3 + $0x564] sm:$0xff]
  %v2889 = vld [vmem:[%s3 + $0x56c] sm:$0xf]
  %v2890 = vld [vmem:[%s3 + $0x570] sm:$0xff]
  %v2891 = vld [vmem:[%s3 + $0x578] sm:$0xf]
  %v2892 = vld [vmem:[%s3 + $0x57c] sm:$0xff]
  %v2893 = vld [vmem:[%s3 + $0x584] sm:$0xf]
  %v2894 = vld [vmem:[%s3 + $0x588] sm:$0xff]
  %v2895 = vld [vmem:[%s3 + $0x590] sm:$0xf]
  %v2896 = vld [vmem:[%s3 + $0x594] sm:$0xff]
  %v2897 = vld [vmem:[%s3 + $0x59c] sm:$0xf]
  %v2898 = vld [vmem:[%s3 + $0x5a0] sm:$0xff]
  %v2899 = vld [vmem:[%s3 + $0x5a8] sm:$0xf]
  %v2900 = vld [vmem:[%s3 + $0x5ac] sm:$0xff]
  %v2901 = vld [vmem:[%s3 + $0x5b4] sm:$0xf]
  %v2902 = vld [vmem:[%s3 + $0x5b8] sm:$0xff]
  %v2903 = vld [vmem:[%s3 + $0x5c0] sm:$0xf]
  %v2904 = vld [vmem:[%s3 + $0x5c4] sm:$0xff]
  %v2905 = vld [vmem:[%s3 + $0x5cc] sm:$0xf]
  %v2906 = vld [vmem:[%s3 + $0x5d0] sm:$0xff]
  %v2907 = vld [vmem:[%s3 + $0x5d8] sm:$0xf]
  %v2908 = vld [vmem:[%s3 + $0x5dc] sm:$0xff]
  %v2909 = vld [vmem:[%s3 + $0x5e4] sm:$0xf]
  %v2910 = vld [vmem:[%s3 + $0x5e8] sm:$0xff]
  %v2911 = vld [vmem:[%s3 + $0x5f0] sm:$0xf]
  %v2912 = vld [vmem:[%s3 + $0x5f4] sm:$0xff]
  %v2913 = vld [vmem:[%s3 + $0x5fc] sm:$0xf]
  %v2914 = vld [vmem:[%s3 + $0x600] sm:$0xff]
  %v2915 = vld [vmem:[%s3 + $0x608] sm:$0xf]
  %v2916 = vld [vmem:[%s3 + $0x60c] sm:$0xff]
  %v2917 = vld [vmem:[%s3 + $0x614] sm:$0xf]
  %v2918 = vld [vmem:[%s3 + $0x618] sm:$0xff]
  %v2919 = vld [vmem:[%s3 + $0x620] sm:$0xf]
  %v2920 = vld [vmem:[%s3 + $0x624] sm:$0xff]
  %v2921 = vld [vmem:[%s3 + $0x62c] sm:$0xf]
  %v2922 = vld [vmem:[%s3 + $0x630] sm:$0xff]
  %v2923 = vld [vmem:[%s3 + $0x638] sm:$0xf]
  %v2924 = vld [vmem:[%s3 + $0x63c] sm:$0xff]
  %v2925 = vld [vmem:[%s3 + $0x644] sm:$0xf]
  %v2926 = vld [vmem:[%s3 + $0x648] sm:$0xff]
  %v2927 = vld [vmem:[%s3 + $0x650] sm:$0xf]
  %v2928 = vld [vmem:[%s3 + $0x654] sm:$0xff]
  %v2929 = vld [vmem:[%s3 + $0x65c] sm:$0xf]
  %v2930 = vld [vmem:[%s3 + $0x660] sm:$0xff]
  %v2931 = vld [vmem:[%s3 + $0x668] sm:$0xf]
  %v2932 = vld [vmem:[%s3 + $0x66c] sm:$0xff]
  %v2933 = vld [vmem:[%s3 + $0x674] sm:$0xf]
  %v2934 = vld [vmem:[%s3 + $0x678] sm:$0xff]
  %v2935 = vld [vmem:[%s3 + $0x680] sm:$0xf]
  %v2936 = vld [vmem:[%s3 + $0x684] sm:$0xff]
  %v2937 = vld [vmem:[%s3 + $0x68c] sm:$0xf]
  %v2938 = vld [vmem:[%s3 + $0x690] sm:$0x33]
  %v2939 = vld [vmem:[%s3 + $0x698] sm:$0x3]
  %v3222 = vunpack.c.l.b16 %v2658
  %v3223 = vunpack.c.h.b16 %v2658
  %v3224 = vunpack.c.l.b16 %v2659
  %v3225 = vunpack.c.l.b16 %v2660
  %v3226 = vunpack.c.h.b16 %v2660
  %v3227 = vunpack.c.l.b16 %v2661
  %v3228 = vunpack.c.l.b16 %v2662
  %v3229 = vunpack.c.h.b16 %v2662
  %v3230 = vunpack.c.l.b16 %v2663
  %v3231 = vunpack.c.l.b16 %v2664
  %v3232 = vunpack.c.h.b16 %v2664
  %v3233 = vunpack.c.l.b16 %v2665
  %v3234 = vunpack.c.l.b16 %v2666
  %v3235 = vunpack.c.h.b16 %v2666
  %v3236 = vunpack.c.l.b16 %v2667
  %v3237 = vunpack.c.l.b16 %v2668
  %v3238 = vunpack.c.h.b16 %v2668
  %v3239 = vunpack.c.l.b16 %v2669
  %v3240 = vunpack.c.l.b16 %v2670
  %v3241 = vunpack.c.h.b16 %v2670
  %v3242 = vunpack.c.l.b16 %v2671
  %v3243 = vunpack.c.l.b16 %v2672
  %v3244 = vunpack.c.h.b16 %v2672
  %v3245 = vunpack.c.l.b16 %v2673
  %v3246 = vunpack.c.l.b16 %v2674
  %v3247 = vunpack.c.h.b16 %v2674
  %v3248 = vunpack.c.l.b16 %v2675
  %v3249 = vunpack.c.l.b16 %v2676
  %v3250 = vunpack.c.h.b16 %v2676
  %v3251 = vunpack.c.l.b16 %v2677
  %v3252 = vunpack.c.l.b16 %v2678
  %v3253 = vunpack.c.h.b16 %v2678
  %v3254 = vunpack.c.l.b16 %v2679
  %v3255 = vunpack.c.l.b16 %v2680
  %v3256 = vunpack.c.h.b16 %v2680
  %v3257 = vunpack.c.l.b16 %v2681
  %v3258 = vunpack.c.l.b16 %v2682
  %v3259 = vunpack.c.h.b16 %v2682
  %v3260 = vunpack.c.l.b16 %v2683
  %v3261 = vunpack.c.l.b16 %v2684
  %v3262 = vunpack.c.h.b16 %v2684
  %v3263 = vunpack.c.l.b16 %v2685
  %v3264 = vunpack.c.l.b16 %v2686
  %v3265 = vunpack.c.h.b16 %v2686
  %v3266 = vunpack.c.l.b16 %v2687
  %v3267 = vunpack.c.l.b16 %v2688
  %v3268 = vunpack.c.h.b16 %v2688
  %v3269 = vunpack.c.l.b16 %v2689
  %v3270 = vunpack.c.l.b16 %v2690
  %v3271 = vunpack.c.h.b16 %v2690
  %v3272 = vunpack.c.l.b16 %v2691
  %v3273 = vunpack.c.l.b16 %v2692
  %v3274 = vunpack.c.h.b16 %v2692
  %v3275 = vunpack.c.l.b16 %v2693
  %v3276 = vunpack.c.l.b16 %v2694
  %v3277 = vunpack.c.h.b16 %v2694
  %v3278 = vunpack.c.l.b16 %v2695
  %v3279 = vunpack.c.l.b16 %v2696
  %v3280 = vunpack.c.h.b16 %v2696
  %v3281 = vunpack.c.l.b16 %v2697
  %v3282 = vunpack.c.l.b16 %v2698
  %v3283 = vunpack.c.h.b16 %v2698
  %v3284 = vunpack.c.l.b16 %v2699
  %v3285 = vunpack.c.l.b16 %v2700
  %v3286 = vunpack.c.h.b16 %v2700
  %v3287 = vunpack.c.l.b16 %v2701
  %v3288 = vunpack.c.l.b16 %v2702
  %v3289 = vunpack.c.h.b16 %v2702
  %v3290 = vunpack.c.l.b16 %v2703
  %v3291 = vunpack.c.l.b16 %v2704
  %v3292 = vunpack.c.h.b16 %v2704
  %v3293 = vunpack.c.l.b16 %v2705
  %v3294 = vunpack.c.l.b16 %v2706
  %v3295 = vunpack.c.h.b16 %v2706
  %v3296 = vunpack.c.l.b16 %v2707
  %v3297 = vunpack.c.l.b16 %v2708
  %v3298 = vunpack.c.h.b16 %v2708
  %v3299 = vunpack.c.l.b16 %v2709
  %v3300 = vunpack.c.l.b16 %v2710
  %v3301 = vunpack.c.h.b16 %v2710
  %v3302 = vunpack.c.l.b16 %v2711
  %v3303 = vunpack.c.l.b16 %v2712
  %v3304 = vunpack.c.h.b16 %v2712
  %v3305 = vunpack.c.l.b16 %v2713
  %v3306 = vunpack.c.l.b16 %v2714
  %v3307 = vunpack.c.h.b16 %v2714
  %v3308 = vunpack.c.l.b16 %v2715
  %v3309 = vunpack.c.l.b16 %v2716
  %v3310 = vunpack.c.h.b16 %v2716
  %v3311 = vunpack.c.l.b16 %v2717
  %v3312 = vunpack.c.l.b16 %v2718
  %v3313 = vunpack.c.h.b16 %v2718
  %v3314 = vunpack.c.l.b16 %v2719
  %v3315 = vunpack.c.l.b16 %v2720
  %v3316 = vunpack.c.h.b16 %v2720
  %v3317 = vunpack.c.l.b16 %v2721
  %v3318 = vunpack.c.l.b16 %v2722
  %v3319 = vunpack.c.h.b16 %v2722
  %v3320 = vunpack.c.l.b16 %v2723
  %v3321 = vunpack.c.l.b16 %v2724
  %v3322 = vunpack.c.h.b16 %v2724
  %v3323 = vunpack.c.l.b16 %v2725
  %v3324 = vunpack.c.l.b16 %v2726
  %v3325 = vunpack.c.h.b16 %v2726
  %v3326 = vunpack.c.l.b16 %v2727
  %v3327 = vunpack.c.l.b16 %v2728
  %v3328 = vunpack.c.h.b16 %v2728
  %v3329 = vunpack.c.l.b16 %v2729
  %v3330 = vunpack.c.l.b16 %v2730
  %v3331 = vunpack.c.h.b16 %v2730
  %v3332 = vunpack.c.l.b16 %v2731
  %v3333 = vunpack.c.l.b16 %v2732
  %v3334 = vunpack.c.h.b16 %v2732
  %v3335 = vunpack.c.l.b16 %v2733
  %v3336 = vunpack.c.l.b16 %v2734
  %v3337 = vunpack.c.h.b16 %v2734
  %v3338 = vunpack.c.l.b16 %v2735
  %v3339 = vunpack.c.l.b16 %v2736
  %v3340 = vunpack.c.h.b16 %v2736
  %v3341 = vunpack.c.l.b16 %v2737
  %v3342 = vunpack.c.l.b16 %v2738
  %v3343 = vunpack.c.h.b16 %v2738
  %v3344 = vunpack.c.l.b16 %v2739
  %v3345 = vunpack.c.l.b16 %v2740
  %v3346 = vunpack.c.h.b16 %v2740
  %v3347 = vunpack.c.l.b16 %v2741
  %v3348 = vunpack.c.l.b16 %v2742
  %v3349 = vunpack.c.h.b16 %v2742
  %v3350 = vunpack.c.l.b16 %v2743
  %v3351 = vunpack.c.l.b16 %v2744
  %v3352 = vunpack.c.h.b16 %v2744
  %v3353 = vunpack.c.l.b16 %v2745
  %v3354 = vunpack.c.l.b16 %v2746
  %v3355 = vunpack.c.h.b16 %v2746
  %v3356 = vunpack.c.l.b16 %v2747
  %v3357 = vunpack.c.l.b16 %v2748
  %v3358 = vunpack.c.h.b16 %v2748
  %v3359 = vunpack.c.l.b16 %v2749
  %v3360 = vunpack.c.l.b16 %v2750
  %v3361 = vunpack.c.h.b16 %v2750
  %v3362 = vunpack.c.l.b16 %v2751
  %v3363 = vunpack.c.l.b16 %v2752
  %v3364 = vunpack.c.h.b16 %v2752
  %v3365 = vunpack.c.l.b16 %v2753
  %v3366 = vunpack.c.l.b16 %v2754
  %v3367 = vunpack.c.h.b16 %v2754
  %v3368 = vunpack.c.l.b16 %v2755
  %v3369 = vunpack.c.l.b16 %v2756
  %v3370 = vunpack.c.h.b16 %v2756
  %v3371 = vunpack.c.l.b16 %v2757
  %v3372 = vunpack.c.l.b16 %v2758
  %v3373 = vunpack.c.h.b16 %v2758
  %v3374 = vunpack.c.l.b16 %v2759
  %v3375 = vunpack.c.l.b16 %v2760
  %v3376 = vunpack.c.h.b16 %v2760
  %v3377 = vunpack.c.l.b16 %v2761
  %v3378 = vunpack.c.l.b16 %v2762
  %v3379 = vunpack.c.h.b16 %v2762
  %v3380 = vunpack.c.l.b16 %v2763
  %v3381 = vunpack.c.l.b16 %v2764
  %v3382 = vunpack.c.h.b16 %v2764
  %v3383 = vunpack.c.l.b16 %v2765
  %v3384 = vunpack.c.l.b16 %v2766
  %v3385 = vunpack.c.h.b16 %v2766
  %v3386 = vunpack.c.l.b16 %v2767
  %v3387 = vunpack.c.l.b16 %v2768
  %v3388 = vunpack.c.h.b16 %v2768
  %v3389 = vunpack.c.l.b16 %v2769
  %v3390 = vunpack.c.l.b16 %v2770
  %v3391 = vunpack.c.h.b16 %v2770
  %v3392 = vunpack.c.l.b16 %v2771
  %v3393 = vunpack.c.l.b16 %v2772
  %v3394 = vunpack.c.h.b16 %v2772
  %v3395 = vunpack.c.l.b16 %v2773
  %v3396 = vunpack.c.l.b16 %v2774
  %v3397 = vunpack.c.h.b16 %v2774
  %v3398 = vunpack.c.l.b16 %v2775
  %v3399 = vunpack.c.l.b16 %v2776
  %v3400 = vunpack.c.h.b16 %v2776
  %v3401 = vunpack.c.l.b16 %v2777
  %v3402 = vunpack.c.l.b16 %v2778
  %v3403 = vunpack.c.h.b16 %v2778
  %v3404 = vunpack.c.l.b16 %v2779
  %v3405 = vunpack.c.l.b16 %v2780
  %v3406 = vunpack.c.h.b16 %v2780
  %v3407 = vunpack.c.l.b16 %v2781
  %v3408 = vunpack.c.l.b16 %v2782
  %v3409 = vunpack.c.h.b16 %v2782
  %v3410 = vunpack.c.l.b16 %v2783
  %v3411 = vunpack.c.l.b16 %v2784
  %v3412 = vunpack.c.h.b16 %v2784
  %v3413 = vunpack.c.l.b16 %v2785
  %v3414 = vunpack.c.l.b16 %v2786
  %v3415 = vunpack.c.h.b16 %v2786
  %v3416 = vunpack.c.l.b16 %v2787
  %v3417 = vunpack.c.l.b16 %v2788
  %v3418 = vunpack.c.h.b16 %v2788
  %v3419 = vunpack.c.l.b16 %v2789
  %v3420 = vunpack.c.l.b16 %v2790
  %v3421 = vunpack.c.h.b16 %v2790
  %v3422 = vunpack.c.l.b16 %v2791
  %v3423 = vunpack.c.l.b16 %v2792
  %v3424 = vunpack.c.h.b16 %v2792
  %v3425 = vunpack.c.l.b16 %v2793
  %v3426 = vunpack.c.l.b16 %v2794
  %v3427 = vunpack.c.h.b16 %v2794
  %v3428 = vunpack.c.l.b16 %v2795
  %v3429 = vunpack.c.l.b16 %v2796
  %v3430 = vunpack.c.h.b16 %v2796
  %v3431 = vunpack.c.l.b16 %v2797
  %v3432 = vunpack.c.l.b16 %v2798
  %v3433 = vunpack.c.h.b16 %v2798
  %v3434 = vunpack.c.l.b16 %v2799
  %v3435 = vunpack.c.l.b16 %v2800
  %v3436 = vunpack.c.h.b16 %v2800
  %v3437 = vunpack.c.l.b16 %v2801
  %v3438 = vunpack.c.l.b16 %v2802
  %v3439 = vunpack.c.h.b16 %v2802
  %v3440 = vunpack.c.l.b16 %v2803
  %v3441 = vunpack.c.l.b16 %v2804
  %v3442 = vunpack.c.h.b16 %v2804
  %v3443 = vunpack.c.l.b16 %v2805
  %v3444 = vunpack.c.l.b16 %v2806
  %v3445 = vunpack.c.h.b16 %v2806
  %v3446 = vunpack.c.l.b16 %v2807
  %v3447 = vunpack.c.l.b16 %v2808
  %v3448 = vunpack.c.h.b16 %v2808
  %v3449 = vunpack.c.l.b16 %v2809
  %v3450 = vunpack.c.l.b16 %v2810
  %v3451 = vunpack.c.h.b16 %v2810
  %v3452 = vunpack.c.l.b16 %v2811
  %v3453 = vunpack.c.l.b16 %v2812
  %v3454 = vunpack.c.h.b16 %v2812
  %v3455 = vunpack.c.l.b16 %v2813
  %v3456 = vunpack.c.l.b16 %v2814
  %v3457 = vunpack.c.h.b16 %v2814
  %v3458 = vunpack.c.l.b16 %v2815
  %v3459 = vunpack.c.l.b16 %v2816
  %v3460 = vunpack.c.h.b16 %v2816
  %v3461 = vunpack.c.l.b16 %v2817
  %v3462 = vunpack.c.l.b16 %v2818
  %v3463 = vunpack.c.h.b16 %v2818
  %v3464 = vunpack.c.l.b16 %v2819
  %v3465 = vunpack.c.l.b16 %v2820
  %v3466 = vunpack.c.h.b16 %v2820
  %v3467 = vunpack.c.l.b16 %v2821
  %v3468 = vunpack.c.l.b16 %v2822
  %v3469 = vunpack.c.h.b16 %v2822
  %v3470 = vunpack.c.l.b16 %v2823
  %v3471 = vunpack.c.l.b16 %v2824
  %v3472 = vunpack.c.h.b16 %v2824
  %v3473 = vunpack.c.l.b16 %v2825
  %v3474 = vunpack.c.l.b16 %v2826
  %v3475 = vunpack.c.h.b16 %v2826
  %v3476 = vunpack.c.l.b16 %v2827
  %v3477 = vunpack.c.l.b16 %v2828
  %v3478 = vunpack.c.h.b16 %v2828
  %v3479 = vunpack.c.l.b16 %v2829
  %v3480 = vunpack.c.l.b16 %v2830
  %v3481 = vunpack.c.h.b16 %v2830
  %v3482 = vunpack.c.l.b16 %v2831
  %v3483 = vunpack.c.l.b16 %v2832
  %v3484 = vunpack.c.h.b16 %v2832
  %v3485 = vunpack.c.l.b16 %v2833
  %v3486 = vunpack.c.l.b16 %v2834
  %v3487 = vunpack.c.h.b16 %v2834
  %v3488 = vunpack.c.l.b16 %v2835
  %v3489 = vunpack.c.l.b16 %v2836
  %v3490 = vunpack.c.h.b16 %v2836
  %v3491 = vunpack.c.l.b16 %v2837
  %v3492 = vunpack.c.l.b16 %v2838
  %v3493 = vunpack.c.h.b16 %v2838
  %v3494 = vunpack.c.l.b16 %v2839
  %v3495 = vunpack.c.l.b16 %v2840
  %v3496 = vunpack.c.h.b16 %v2840
  %v3497 = vunpack.c.l.b16 %v2841
  %v3498 = vunpack.c.l.b16 %v2842
  %v3499 = vunpack.c.h.b16 %v2842
  %v3500 = vunpack.c.l.b16 %v2843
  %v3501 = vunpack.c.l.b16 %v2844
  %v3502 = vunpack.c.h.b16 %v2844
  %v3503 = vunpack.c.l.b16 %v2845
  %v3504 = vunpack.c.l.b16 %v2846
  %v3505 = vunpack.c.h.b16 %v2846
  %v3506 = vunpack.c.l.b16 %v2847
  %v3507 = vunpack.c.l.b16 %v2848
  %v3508 = vunpack.c.h.b16 %v2848
  %v3509 = vunpack.c.l.b16 %v2849
  %v3510 = vunpack.c.l.b16 %v2850
  %v3511 = vunpack.c.h.b16 %v2850
  %v3512 = vunpack.c.l.b16 %v2851
  %v3513 = vunpack.c.l.b16 %v2852
  %v3514 = vunpack.c.h.b16 %v2852
  %v3515 = vunpack.c.l.b16 %v2853
  %v3516 = vunpack.c.l.b16 %v2854
  %v3517 = vunpack.c.h.b16 %v2854
  %v3518 = vunpack.c.l.b16 %v2855
  %v3519 = vunpack.c.l.b16 %v2856
  %v3520 = vunpack.c.h.b16 %v2856
  %v3521 = vunpack.c.l.b16 %v2857
  %v3522 = vunpack.c.l.b16 %v2858
  %v3523 = vunpack.c.h.b16 %v2858
  %v3524 = vunpack.c.l.b16 %v2859
  %v3525 = vunpack.c.l.b16 %v2860
  %v3526 = vunpack.c.h.b16 %v2860
  %v3527 = vunpack.c.l.b16 %v2861
  %v3528 = vunpack.c.l.b16 %v2862
  %v3529 = vunpack.c.h.b16 %v2862
  %v3530 = vunpack.c.l.b16 %v2863
  %v3531 = vunpack.c.l.b16 %v2864
  %v3532 = vunpack.c.h.b16 %v2864
  %v3533 = vunpack.c.l.b16 %v2865
  %v3534 = vunpack.c.l.b16 %v2866
  %v3535 = vunpack.c.h.b16 %v2866
  %v3536 = vunpack.c.l.b16 %v2867
  %v3537 = vunpack.c.l.b16 %v2868
  %v3538 = vunpack.c.h.b16 %v2868
  %v3539 = vunpack.c.l.b16 %v2869
  %v3540 = vunpack.c.l.b16 %v2870
  %v3541 = vunpack.c.h.b16 %v2870
  %v3542 = vunpack.c.l.b16 %v2871
  %v3543 = vunpack.c.l.b16 %v2872
  %v3544 = vunpack.c.h.b16 %v2872
  %v3545 = vunpack.c.l.b16 %v2873
  %v3546 = vunpack.c.l.b16 %v2874
  %v3547 = vunpack.c.h.b16 %v2874
  %v3548 = vunpack.c.l.b16 %v2875
  %v3549 = vunpack.c.l.b16 %v2876
  %v3550 = vunpack.c.h.b16 %v2876
  %v3551 = vunpack.c.l.b16 %v2877
  %v3552 = vunpack.c.l.b16 %v2878
  %v3553 = vunpack.c.h.b16 %v2878
  %v3554 = vunpack.c.l.b16 %v2879
  %v3555 = vunpack.c.l.b16 %v2880
  %v3556 = vunpack.c.h.b16 %v2880
  %v3557 = vunpack.c.l.b16 %v2881
  %v3558 = vunpack.c.l.b16 %v2882
  %v3559 = vunpack.c.h.b16 %v2882
  %v3560 = vunpack.c.l.b16 %v2883
  %v3561 = vunpack.c.l.b16 %v2884
  %v3562 = vunpack.c.h.b16 %v2884
  %v3563 = vunpack.c.l.b16 %v2885
  %v3564 = vunpack.c.l.b16 %v2886
  %v3565 = vunpack.c.h.b16 %v2886
  %v3566 = vunpack.c.l.b16 %v2887
  %v3567 = vunpack.c.l.b16 %v2888
  %v3568 = vunpack.c.h.b16 %v2888
  %v3569 = vunpack.c.l.b16 %v2889
  %v3570 = vunpack.c.l.b16 %v2890
  %v3571 = vunpack.c.h.b16 %v2890
  %v3572 = vunpack.c.l.b16 %v2891
  %v3573 = vunpack.c.l.b16 %v2892
  %v3574 = vunpack.c.h.b16 %v2892
  %v3575 = vunpack.c.l.b16 %v2893
  %v3576 = vunpack.c.l.b16 %v2894
  %v3577 = vunpack.c.h.b16 %v2894
  %v3578 = vunpack.c.l.b16 %v2895
  %v3579 = vunpack.c.l.b16 %v2896
  %v3580 = vunpack.c.h.b16 %v2896
  %v3581 = vunpack.c.l.b16 %v2897
  %v3582 = vunpack.c.l.b16 %v2898
  %v3583 = vunpack.c.h.b16 %v2898
  %v3584 = vunpack.c.l.b16 %v2899
  %v3585 = vunpack.c.l.b16 %v2900
  %v3586 = vunpack.c.h.b16 %v2900
  %v3587 = vunpack.c.l.b16 %v2901
  %v3588 = vunpack.c.l.b16 %v2902
  %v3589 = vunpack.c.h.b16 %v2902
  %v3590 = vunpack.c.l.b16 %v2903
  %v3591 = vunpack.c.l.b16 %v2904
  %v3592 = vunpack.c.h.b16 %v2904
  %v3593 = vunpack.c.l.b16 %v2905
  %v3594 = vunpack.c.l.b16 %v2906
  %v3595 = vunpack.c.h.b16 %v2906
  %v3596 = vunpack.c.l.b16 %v2907
  %v3597 = vunpack.c.l.b16 %v2908
  %v3598 = vunpack.c.h.b16 %v2908
  %v3599 = vunpack.c.l.b16 %v2909
  %v3600 = vunpack.c.l.b16 %v2910
  %v3601 = vunpack.c.h.b16 %v2910
  %v3602 = vunpack.c.l.b16 %v2911
  %v3603 = vunpack.c.l.b16 %v2912
  %v3604 = vunpack.c.h.b16 %v2912
  %v3605 = vunpack.c.l.b16 %v2913
  %v3606 = vunpack.c.l.b16 %v2914
  %v3607 = vunpack.c.h.b16 %v2914
  %v3608 = vunpack.c.l.b16 %v2915
  %v3609 = vunpack.c.l.b16 %v2916
  %v3610 = vunpack.c.h.b16 %v2916
  %v3611 = vunpack.c.l.b16 %v2917
  %v3612 = vunpack.c.l.b16 %v2918
  %v3613 = vunpack.c.h.b16 %v2918
  %v3614 = vunpack.c.l.b16 %v2919
  %v3615 = vunpack.c.l.b16 %v2920
  %v3616 = vunpack.c.h.b16 %v2920
  %v3617 = vunpack.c.l.b16 %v2921
  %v3618 = vunpack.c.l.b16 %v2922
  %v3619 = vunpack.c.h.b16 %v2922
  %v3620 = vunpack.c.l.b16 %v2923
  %v3621 = vunpack.c.l.b16 %v2924
  %v3622 = vunpack.c.h.b16 %v2924
  %v3623 = vunpack.c.l.b16 %v2925
  %v3624 = vunpack.c.l.b16 %v2926
  %v3625 = vunpack.c.h.b16 %v2926
  %v3626 = vunpack.c.l.b16 %v2927
  %v3627 = vunpack.c.l.b16 %v2928
  %v3628 = vunpack.c.h.b16 %v2928
  %v3629 = vunpack.c.l.b16 %v2929
  %v3630 = vunpack.c.l.b16 %v2930
  %v3631 = vunpack.c.h.b16 %v2930
  %v3632 = vunpack.c.l.b16 %v2931
  %v3633 = vunpack.c.l.b16 %v2932
  %v3634 = vunpack.c.h.b16 %v2932
  %v3635 = vunpack.c.l.b16 %v2933
  %v3636 = vunpack.c.l.b16 %v2934
  %v3637 = vunpack.c.h.b16 %v2934
  %v3638 = vunpack.c.l.b16 %v2935
  %v3639 = vunpack.c.l.b16 %v2936
  %v3640 = vunpack.c.h.b16 %v2936
  %v3641 = vunpack.c.l.b16 %v2937
  %v3642 = vunpack.c.l.b16 %v2938
  %v3643 = vunpack.c.h.b16 %v2938
  %v3644 = vunpack.c.l.b16 %v2939
  %v3645 = vpack.c.b16 %v3225, %v3222
  %v3646 = vpack.c.b16 %v3226, %v3223
  %v3647 = vpack.c.b16 %v3227, %v3224
  %v3648 = vpack.c.b16 %v3231, %v3228
  %v3649 = vpack.c.b16 %v3232, %v3229
  %v3650 = vpack.c.b16 %v3233, %v3230
  %v3651 = vpack.c.b16 %v3237, %v3234
  %v3652 = vpack.c.b16 %v3238, %v3235
  %v3653 = vpack.c.b16 %v3239, %v3236
  %v3654 = vpack.c.b16 %v3243, %v3240
  %v3655 = vpack.c.b16 %v3244, %v3241
  %v3656 = vpack.c.b16 %v3245, %v3242
  %v3657 = vpack.c.b16 %v3249, %v3246
  %v3658 = vpack.c.b16 %v3250, %v3247
  %v3659 = vpack.c.b16 %v3251, %v3248
  %v3660 = vpack.c.b16 %v3255, %v3252
  %v3661 = vpack.c.b16 %v3256, %v3253
  %v3662 = vpack.c.b16 %v3257, %v3254
  %v3663 = vpack.c.b16 %v3261, %v3258
  %v3664 = vpack.c.b16 %v3262, %v3259
  %v3665 = vpack.c.b16 %v3263, %v3260
  %v3666 = vpack.c.b16 %v3267, %v3264
  %v3667 = vpack.c.b16 %v3268, %v3265
  %v3668 = vpack.c.b16 %v3269, %v3266
  %v3669 = vpack.c.b16 %v3273, %v3270
  %v3670 = vpack.c.b16 %v3274, %v3271
  %v3671 = vpack.c.b16 %v3275, %v3272
  %v3672 = vpack.c.b16 %v3279, %v3276
  %v3673 = vpack.c.b16 %v3280, %v3277
  %v3674 = vpack.c.b16 %v3281, %v3278
  %v3675 = vpack.c.b16 %v3285, %v3282
  %v3676 = vpack.c.b16 %v3286, %v3283
  %v3677 = vpack.c.b16 %v3287, %v3284
  %v3678 = vpack.c.b16 %v3291, %v3288
  %v3679 = vpack.c.b16 %v3292, %v3289
  %v3680 = vpack.c.b16 %v3293, %v3290
  %v3681 = vpack.c.b16 %v3297, %v3294
  %v3682 = vpack.c.b16 %v3298, %v3295
  %v3683 = vpack.c.b16 %v3299, %v3296
  %v3684 = vpack.c.b16 %v3303, %v3300
  %v3685 = vpack.c.b16 %v3304, %v3301
  %v3686 = vpack.c.b16 %v3305, %v3302
  %v3687 = vpack.c.b16 %v3309, %v3306
  %v3688 = vpack.c.b16 %v3310, %v3307
  %v3689 = vpack.c.b16 %v3311, %v3308
  %v3690 = vpack.c.b16 %v3315, %v3312
  %v3691 = vpack.c.b16 %v3316, %v3313
  %v3692 = vpack.c.b16 %v3317, %v3314
  %v3693 = vpack.c.b16 %v3321, %v3318
  %v3694 = vpack.c.b16 %v3322, %v3319
  %v3695 = vpack.c.b16 %v3323, %v3320
  %v3696 = vpack.c.b16 %v3327, %v3324
  %v3697 = vpack.c.b16 %v3328, %v3325
  %v3698 = vpack.c.b16 %v3329, %v3326
  %v3699 = vpack.c.b16 %v3333, %v3330
  %v3700 = vpack.c.b16 %v3334, %v3331
  %v3701 = vpack.c.b16 %v3335, %v3332
  %v3702 = vpack.c.b16 %v3339, %v3336
  %v3703 = vpack.c.b16 %v3340, %v3337
  %v3704 = vpack.c.b16 %v3341, %v3338
  %v3705 = vpack.c.b16 %v3345, %v3342
  %v3706 = vpack.c.b16 %v3346, %v3343
  %v3707 = vpack.c.b16 %v3347, %v3344
  %v3708 = vpack.c.b16 %v3351, %v3348
  %v3709 = vpack.c.b16 %v3352, %v3349
  %v3710 = vpack.c.b16 %v3353, %v3350
  %v3711 = vpack.c.b16 %v3357, %v3354
  %v3712 = vpack.c.b16 %v3358, %v3355
  %v3713 = vpack.c.b16 %v3359, %v3356
  %v3714 = vpack.c.b16 %v3363, %v3360
  %v3715 = vpack.c.b16 %v3364, %v3361
  %v3716 = vpack.c.b16 %v3365, %v3362
  %v3717 = vpack.c.b16 %v3369, %v3366
  %v3718 = vpack.c.b16 %v3370, %v3367
  %v3719 = vpack.c.b16 %v3371, %v3368
  %v3720 = vpack.c.b16 %v3375, %v3372
  %v3721 = vpack.c.b16 %v3376, %v3373
  %v3722 = vpack.c.b16 %v3377, %v3374
  %v3723 = vpack.c.b16 %v3381, %v3378
  %v3724 = vpack.c.b16 %v3382, %v3379
  %v3725 = vpack.c.b16 %v3383, %v3380
  %v3726 = vpack.c.b16 %v3387, %v3384
  %v3727 = vpack.c.b16 %v3388, %v3385
  %v3728 = vpack.c.b16 %v3389, %v3386
  %v3729 = vpack.c.b16 %v3393, %v3390
  %v3730 = vpack.c.b16 %v3394, %v3391
  %v3731 = vpack.c.b16 %v3395, %v3392
  %v3732 = vpack.c.b16 %v3399, %v3396
  %v3733 = vpack.c.b16 %v3400, %v3397
  %v3734 = vpack.c.b16 %v3401, %v3398
  %v3735 = vpack.c.b16 %v3405, %v3402
  %v3736 = vpack.c.b16 %v3406, %v3403
  %v3737 = vpack.c.b16 %v3407, %v3404
  %v3738 = vpack.c.b16 %v3411, %v3408
  %v3739 = vpack.c.b16 %v3412, %v3409
  %v3740 = vpack.c.b16 %v3413, %v3410
  %v3741 = vpack.c.b16 %v3417, %v3414
  %v3742 = vpack.c.b16 %v3418, %v3415
  %v3743 = vpack.c.b16 %v3419, %v3416
  %v3744 = vpack.c.b16 %v3423, %v3420
  %v3745 = vpack.c.b16 %v3424, %v3421
  %v3746 = vpack.c.b16 %v3425, %v3422
  %v3747 = vpack.c.b16 %v3429, %v3426
  %v3748 = vpack.c.b16 %v3430, %v3427
  %v3749 = vpack.c.b16 %v3431, %v3428
  %v3750 = vpack.c.b16 %v3435, %v3432
  %v3751 = vpack.c.b16 %v3436, %v3433
  %v3752 = vpack.c.b16 %v3437, %v3434
  %v3753 = vpack.c.b16 %v3441, %v3438
  %v3754 = vpack.c.b16 %v3442, %v3439
  %v3755 = vpack.c.b16 %v3443, %v3440
  %v3756 = vpack.c.b16 %v3447, %v3444
  %v3757 = vpack.c.b16 %v3448, %v3445
  %v3758 = vpack.c.b16 %v3449, %v3446
  %v3759 = vpack.c.b16 %v3453, %v3450
  %v3760 = vpack.c.b16 %v3454, %v3451
  %v3761 = vpack.c.b16 %v3455, %v3452
  %v3762 = vpack.c.b16 %v3459, %v3456
  %v3763 = vpack.c.b16 %v3460, %v3457
  %v3764 = vpack.c.b16 %v3461, %v3458
  %v3765 = vpack.c.b16 %v3465, %v3462
  %v3766 = vpack.c.b16 %v3466, %v3463
  %v3767 = vpack.c.b16 %v3467, %v3464
  %v3768 = vpack.c.b16 %v3471, %v3468
  %v3769 = vpack.c.b16 %v3472, %v3469
  %v3770 = vpack.c.b16 %v3473, %v3470
  %v3771 = vpack.c.b16 %v3477, %v3474
  %v3772 = vpack.c.b16 %v3478, %v3475
  %v3773 = vpack.c.b16 %v3479, %v3476
  %v3774 = vpack.c.b16 %v3483, %v3480
  %v3775 = vpack.c.b16 %v3484, %v3481
  %v3776 = vpack.c.b16 %v3485, %v3482
  %v3777 = vpack.c.b16 %v3489, %v3486
  %v3778 = vpack.c.b16 %v3490, %v3487
  %v3779 = vpack.c.b16 %v3491, %v3488
  %v3780 = vpack.c.b16 %v3495, %v3492
  %v3781 = vpack.c.b16 %v3496, %v3493
  %v3782 = vpack.c.b16 %v3497, %v3494
  %v3783 = vpack.c.b16 %v3501, %v3498
  %v3784 = vpack.c.b16 %v3502, %v3499
  %v3785 = vpack.c.b16 %v3503, %v3500
  %v3786 = vpack.c.b16 %v3507, %v3504
  %v3787 = vpack.c.b16 %v3508, %v3505
  %v3788 = vpack.c.b16 %v3509, %v3506
  %v3789 = vpack.c.b16 %v3513, %v3510
  %v3790 = vpack.c.b16 %v3514, %v3511
  %v3791 = vpack.c.b16 %v3515, %v3512
  %v3792 = vpack.c.b16 %v3519, %v3516
  %v3793 = vpack.c.b16 %v3520, %v3517
  %v3794 = vpack.c.b16 %v3521, %v3518
  %v3795 = vpack.c.b16 %v3525, %v3522
  %v3796 = vpack.c.b16 %v3526, %v3523
  %v3797 = vpack.c.b16 %v3527, %v3524
  %v3798 = vpack.c.b16 %v3531, %v3528
  %v3799 = vpack.c.b16 %v3532, %v3529
  %v3800 = vpack.c.b16 %v3533, %v3530
  %v3801 = vpack.c.b16 %v3537, %v3534
  %v3802 = vpack.c.b16 %v3538, %v3535
  %v3803 = vpack.c.b16 %v3539, %v3536
  %v3804 = vpack.c.b16 %v3543, %v3540
  %v3805 = vpack.c.b16 %v3544, %v3541
  %v3806 = vpack.c.b16 %v3545, %v3542
  %v3807 = vpack.c.b16 %v3549, %v3546
  %v3808 = vpack.c.b16 %v3550, %v3547
  %v3809 = vpack.c.b16 %v3551, %v3548
  %v3810 = vpack.c.b16 %v3555, %v3552
  %v3811 = vpack.c.b16 %v3556, %v3553
  %v3812 = vpack.c.b16 %v3557, %v3554
  %v3813 = vpack.c.b16 %v3561, %v3558
  %v3814 = vpack.c.b16 %v3562, %v3559
  %v3815 = vpack.c.b16 %v3563, %v3560
  %v3816 = vpack.c.b16 %v3567, %v3564
  %v3817 = vpack.c.b16 %v3568, %v3565
  %v3818 = vpack.c.b16 %v3569, %v3566
  %v3819 = vpack.c.b16 %v3573, %v3570
  %v3820 = vpack.c.b16 %v3574, %v3571
  %v3821 = vpack.c.b16 %v3575, %v3572
  %v3822 = vpack.c.b16 %v3579, %v3576
  %v3823 = vpack.c.b16 %v3580, %v3577
  %v3824 = vpack.c.b16 %v3581, %v3578
  %v3825 = vpack.c.b16 %v3585, %v3582
  %v3826 = vpack.c.b16 %v3586, %v3583
  %v3827 = vpack.c.b16 %v3587, %v3584
  %v3828 = vpack.c.b16 %v3591, %v3588
  %v3829 = vpack.c.b16 %v3592, %v3589
  %v3830 = vpack.c.b16 %v3593, %v3590
  %v3831 = vpack.c.b16 %v3597, %v3594
  %v3832 = vpack.c.b16 %v3598, %v3595
  %v3833 = vpack.c.b16 %v3599, %v3596
  %v3834 = vpack.c.b16 %v3603, %v3600
  %v3835 = vpack.c.b16 %v3604, %v3601
  %v3836 = vpack.c.b16 %v3605, %v3602
  %v3837 = vpack.c.b16 %v3609, %v3606
  %v3838 = vpack.c.b16 %v3610, %v3607
  %v3839 = vpack.c.b16 %v3611, %v3608
  %v3840 = vpack.c.b16 %v3615, %v3612
  %v3841 = vpack.c.b16 %v3616, %v3613
  %v3842 = vpack.c.b16 %v3617, %v3614
  %v3843 = vpack.c.b16 %v3621, %v3618
  %v3844 = vpack.c.b16 %v3622, %v3619
  %v3845 = vpack.c.b16 %v3623, %v3620
  %v3846 = vpack.c.b16 %v3627, %v3624
  %v3847 = vpack.c.b16 %v3628, %v3625
  %v3848 = vpack.c.b16 %v3629, %v3626
  %v3849 = vpack.c.b16 %v3633, %v3630
  %v3850 = vpack.c.b16 %v3634, %v3631
  %v3851 = vpack.c.b16 %v3635, %v3632
  %v3852 = vpack.c.b16 %v3639, %v3636
  %v3853 = vpack.c.b16 %v3640, %v3637
  %v3854 = vpack.c.b16 %v3641, %v3638
  %v3855 = vpack.c.b16 %v3642, %v3642
  %v3856 = vpack.c.b16 %v3643, %v3643
  %v3857 = vpack.c.b16 %v3644, %v3644
  %vm4068 = vcmask 818176
  %v4070 = vsel %vm4068, %v2648, 0
  %v4073 = vsel %vm4068, %v2657, 0
  %vm4075 = vcmask 1041408
  %v4077 = vsel %vm4075, %v3855, 0
  %v4080 = vsel %vm4075, %v3856, 0
  %v4083 = vsel %vm4075, %v3857, 0
  %4085 = vmatprep.subr.bf16.mxu0 %v3667
  %4086 = vmatpush1.bf16.msra.mxu0 %v3666
  %4087 = vmatprep.subr.bf16.mxu0 %v3664
  %4088 = vmatpush1.bf16.msra.mxu0 %v3663
  %4089 = vmatprep.subr.bf16.mxu0 %v3661
  %4090 = vmatpush1.bf16.msra.mxu0 %v3660
  %4091 = vmatprep.subr.bf16.mxu0 %v3658
  %4092 = vmatpush1.bf16.msra.mxu0 %v3657
  %4093 = vmatprep.subr.bf16.mxu0 %v3655
  %4094 = vmatpush1.bf16.msra.mxu0 %v3654
  %4095 = vmatprep.subr.bf16.mxu0 %v3652
  %4096 = vmatpush1.bf16.msra.mxu0 %v3651
  %4097 = vmatprep.subr.bf16.mxu0 %v3649
  %4098 = vmatpush1.bf16.msra.mxu0 %v3648
  %4099 = vmatprep.subr.bf16.mxu0 %v3646
  %4100 = vmatpush1.bf16.msra.mxu0 %v3645
  %4101 = vmatprep.subr.bf16.mxu0 %v3691
  %4102 = vmatpush2.bf16.msra.mxu0 %v3690
  %4103 = vmatprep.subr.bf16.mxu0 %v3688
  %4104 = vmatpush2.bf16.msra.mxu0 %v3687
  %4105 = vmatprep.subr.bf16.mxu0 %v3685
  %4106 = vmatpush2.bf16.msra.mxu0 %v3684
  %4107 = vmatprep.subr.bf16.mxu0 %v3682
  %4108 = vmatpush2.bf16.msra.mxu0 %v3681
  %4109 = vmatprep.subr.bf16.mxu0 %v3679
  %4110 = vmatpush2.bf16.msra.mxu0 %v3678
  %4111 = vmatprep.subr.bf16.mxu0 %v3676
  %4112 = vmatpush2.bf16.msra.mxu0 %v3675
  %4113 = vmatprep.subr.bf16.mxu0 %v3673
  %4114 = vmatpush2.bf16.msra.mxu0 %v3672
  %4115 = vmatprep.subr.bf16.mxu0 %v3670
  %4116 = vmatpush2.bf16.msra.mxu0 %v3669
  %4117 = vmatprep.mubr.bf16.mxu0 %v2641
  %4118 = vmatmul.mubr.bf16.gmra.mxu0 %v2640
  %v4119 = vpop.f32.mrf.mxu0
  %v4120 = vadd.f32 0.0, %v4119
  %v4121 = vpop.f32.mrf.mxu0
  %v4122 = vadd.f32 0.0, %v4121
  %v4123 = vpop.f32.mrf.mxu0
  %v4124 = vadd.f32 0.0, %v4123
  %v4125 = vpop.f32.mrf.mxu0
  %v4126 = vadd.f32 0.0, %v4125
  %4127 = vmatprep.mubr.bf16.mxu0 %v2650
  %4128 = vmatmul.mubr.bf16.gmra.mxu0 %v2649
  %v4129 = vpop.f32.mrf.mxu0
  %v4130 = vadd.f32 0.0, %v4129
  %v4131 = vpop.f32.mrf.mxu0
  %v4132 = vadd.f32 0.0, %v4131
  %v4133 = vpop.f32.mrf.mxu0
  %v4134 = vadd.f32 0.0, %v4133
  %v4135 = vpop.f32.mrf.mxu0
  %v4136 = vadd.f32 0.0, %v4135
  %4137 = vdwg.mxu0
  %4138 = vmatprep.subr.bf16.mxu0 %v3715
  %4139 = vmatpush1.bf16.msra.mxu0 %v3714
  %4140 = vmatprep.subr.bf16.mxu0 %v3712
  %4141 = vmatpush1.bf16.msra.mxu0 %v3711
  %4142 = vmatprep.subr.bf16.mxu0 %v3709
  %4143 = vmatpush1.bf16.msra.mxu0 %v3708
  %4144 = vmatprep.subr.bf16.mxu0 %v3706
  %4145 = vmatpush1.bf16.msra.mxu0 %v3705
  %4146 = vmatprep.subr.bf16.mxu0 %v3703
  %4147 = vmatpush1.bf16.msra.mxu0 %v3702
  %4148 = vmatprep.subr.bf16.mxu0 %v3700
  %4149 = vmatpush1.bf16.msra.mxu0 %v3699
  %4150 = vmatprep.subr.bf16.mxu0 %v3697
  %4151 = vmatpush1.bf16.msra.mxu0 %v3696
  %4152 = vmatprep.subr.bf16.mxu0 %v3694
  %4153 = vmatpush1.bf16.msra.mxu0 %v3693
  %4154 = vmatprep.subr.bf16.mxu0 %v3739
  %4155 = vmatpush2.bf16.msra.mxu0 %v3738
  %4156 = vmatprep.subr.bf16.mxu0 %v3736
  %4157 = vmatpush2.bf16.msra.mxu0 %v3735
  %4158 = vmatprep.subr.bf16.mxu0 %v3733
  %4159 = vmatpush2.bf16.msra.mxu0 %v3732
  %4160 = vmatprep.subr.bf16.mxu0 %v3730
  %4161 = vmatpush2.bf16.msra.mxu0 %v3729
  %4162 = vmatprep.subr.bf16.mxu0 %v3727
  %4163 = vmatpush2.bf16.msra.mxu0 %v3726
  %4164 = vmatprep.subr.bf16.mxu0 %v3724
  %4165 = vmatpush2.bf16.msra.mxu0 %v3723
  %4166 = vmatprep.subr.bf16.mxu0 %v3721
  %4167 = vmatpush2.bf16.msra.mxu0 %v3720
  %4168 = vmatprep.subr.bf16.mxu0 %v3718
  %4169 = vmatpush2.bf16.msra.mxu0 %v3717
  %4170 = vmatprep.mubr.bf16.mxu0 %v2643
  %4171 = vmatmul.mubr.bf16.gmra.mxu0 %v2642
  %v4172 = vpop.f32.mrf.mxu0
  %v4173 = vadd.f32 %v4120, %v4172
  %v4174 = vpop.f32.mrf.mxu0
  %v4175 = vadd.f32 %v4122, %v4174
  %v4176 = vpop.f32.mrf.mxu0
  %v4177 = vadd.f32 %v4124, %v4176
  %v4178 = vpop.f32.mrf.mxu0
  %v4179 = vadd.f32 %v4126, %v4178
  %4180 = vmatprep.mubr.bf16.mxu0 %v2652
  %4181 = vmatmul.mubr.bf16.gmra.mxu0 %v2651
  %v4182 = vpop.f32.mrf.mxu0
  %v4183 = vadd.f32 %v4130, %v4182
  %v4184 = vpop.f32.mrf.mxu0
  %v4185 = vadd.f32 %v4132, %v4184
  %v4186 = vpop.f32.mrf.mxu0
  %v4187 = vadd.f32 %v4134, %v4186
  %v4188 = vpop.f32.mrf.mxu0
  %v4189 = vadd.f32 %v4136, %v4188
  %4190 = vdwg.mxu0
  %4191 = vmatprep.subr.bf16.mxu0 %v3763
  %4192 = vmatpush1.bf16.msra.mxu0 %v3762
  %4193 = vmatprep.subr.bf16.mxu0 %v3760
  %4194 = vmatpush1.bf16.msra.mxu0 %v3759
  %4195 = vmatprep.subr.bf16.mxu0 %v3757
  %4196 = vmatpush1.bf16.msra.mxu0 %v3756
  %4197 = vmatprep.subr.bf16.mxu0 %v3754
  %4198 = vmatpush1.bf16.msra.mxu0 %v3753
  %4199 = vmatprep.subr.bf16.mxu0 %v3751
  %4200 = vmatpush1.bf16.msra.mxu0 %v3750
  %4201 = vmatprep.subr.bf16.mxu0 %v3748
  %4202 = vmatpush1.bf16.msra.mxu0 %v3747
  %4203 = vmatprep.subr.bf16.mxu0 %v3745
  %4204 = vmatpush1.bf16.msra.mxu0 %v3744
  %4205 = vmatprep.subr.bf16.mxu0 %v3742
  %4206 = vmatpush1.bf16.msra.mxu0 %v3741
  %4207 = vmatprep.subr.bf16.mxu0 %v3787
  %4208 = vmatpush2.bf16.msra.mxu0 %v3786
  %4209 = vmatprep.subr.bf16.mxu0 %v3784
  %4210 = vmatpush2.bf16.msra.mxu0 %v3783
  %4211 = vmatprep.subr.bf16.mxu0 %v3781
  %4212 = vmatpush2.bf16.msra.mxu0 %v3780
  %4213 = vmatprep.subr.bf16.mxu0 %v3778
  %4214 = vmatpush2.bf16.msra.mxu0 %v3777
  %4215 = vmatprep.subr.bf16.mxu0 %v3775
  %4216 = vmatpush2.bf16.msra.mxu0 %v3774
  %4217 = vmatprep.subr.bf16.mxu0 %v3772
  %4218 = vmatpush2.bf16.msra.mxu0 %v3771
  %4219 = vmatprep.subr.bf16.mxu0 %v3769
  %4220 = vmatpush2.bf16.msra.mxu0 %v3768
  %4221 = vmatprep.subr.bf16.mxu0 %v3766
  %4222 = vmatpush2.bf16.msra.mxu0 %v3765
  %4223 = vmatprep.mubr.bf16.mxu0 %v2645
  %4224 = vmatmul.mubr.bf16.gmra.mxu0 %v2644
  %v4225 = vpop.f32.mrf.mxu0
  %v4226 = vadd.f32 %v4173, %v4225
  %v4227 = vpop.f32.mrf.mxu0
  %v4228 = vadd.f32 %v4175, %v4227
  %v4229 = vpop.f32.mrf.mxu0
  %v4230 = vadd.f32 %v4177, %v4229
  %v4231 = vpop.f32.mrf.mxu0
  %v4232 = vadd.f32 %v4179, %v4231
  %4233 = vmatprep.mubr.bf16.mxu0 %v2654
  %4234 = vmatmul.mubr.bf16.gmra.mxu0 %v2653
  %v4235 = vpop.f32.mrf.mxu0
  %v4236 = vadd.f32 %v4183, %v4235
  %v4237 = vpop.f32.mrf.mxu0
  %v4238 = vadd.f32 %v4185, %v4237
  %v4239 = vpop.f32.mrf.mxu0
  %v4240 = vadd.f32 %v4187, %v4239
  %v4241 = vpop.f32.mrf.mxu0
  %v4242 = vadd.f32 %v4189, %v4241
  %4243 = vdwg.mxu0
  %4244 = vmatprep.subr.bf16.mxu0 %v3811
  %4245 = vmatpush1.bf16.msra.mxu0 %v3810
  %4246 = vmatprep.subr.bf16.mxu0 %v3808
  %4247 = vmatpush1.bf16.msra.mxu0 %v3807
  %4248 = vmatprep.subr.bf16.mxu0 %v3805
  %4249 = vmatpush1.bf16.msra.mxu0 %v3804
  %4250 = vmatprep.subr.bf16.mxu0 %v3802
  %4251 = vmatpush1.bf16.msra.mxu0 %v3801
  %4252 = vmatprep.subr.bf16.mxu0 %v3799
  %4253 = vmatpush1.bf16.msra.mxu0 %v3798
  %4254 = vmatprep.subr.bf16.mxu0 %v3796
  %4255 = vmatpush1.bf16.msra.mxu0 %v3795
  %4256 = vmatprep.subr.bf16.mxu0 %v3793
  %4257 = vmatpush1.bf16.msra.mxu0 %v3792
  %4258 = vmatprep.subr.bf16.mxu0 %v3790
  %4259 = vmatpush1.bf16.msra.mxu0 %v3789
  %4260 = vmatprep.subr.bf16.mxu0 %v3835
  %4261 = vmatpush2.bf16.msra.mxu0 %v3834
  %4262 = vmatprep.subr.bf16.mxu0 %v3832
  %4263 = vmatpush2.bf16.msra.mxu0 %v3831
  %4264 = vmatprep.subr.bf16.mxu0 %v3829
  %4265 = vmatpush2.bf16.msra.mxu0 %v3828
  %4266 = vmatprep.subr.bf16.mxu0 %v3826
  %4267 = vmatpush2.bf16.msra.mxu0 %v3825
  %4268 = vmatprep.subr.bf16.mxu0 %v3823
  %4269 = vmatpush2.bf16.msra.mxu0 %v3822
  %4270 = vmatprep.subr.bf16.mxu0 %v3820
  %4271 = vmatpush2.bf16.msra.mxu0 %v3819
  %4272 = vmatprep.subr.bf16.mxu0 %v3817
  %4273 = vmatpush2.bf16.msra.mxu0 %v3816
  %4274 = vmatprep.subr.bf16.mxu0 %v3814
  %4275 = vmatpush2.bf16.msra.mxu0 %v3813
  %4276 = vmatprep.mubr.bf16.mxu0 %v2647
  %4277 = vmatmul.mubr.bf16.gmra.mxu0 %v2646
  %v4278 = vpop.f32.mrf.mxu0
  %v4279 = vadd.f32 %v4226, %v4278
  %v4280 = vpop.f32.mrf.mxu0
  %v4281 = vadd.f32 %v4228, %v4280
  %v4282 = vpop.f32.mrf.mxu0
  %v4283 = vadd.f32 %v4230, %v4282
  %v4284 = vpop.f32.mrf.mxu0
  %v4285 = vadd.f32 %v4232, %v4284
  %4286 = vmatprep.mubr.bf16.mxu0 %v2656
  %4287 = vmatmul.mubr.bf16.gmra.mxu0 %v2655
  %v4288 = vpop.f32.mrf.mxu0
  %v4289 = vadd.f32 %v4236, %v4288
  %v4290 = vpop.f32.mrf.mxu0
  %v4291 = vadd.f32 %v4238, %v4290
  %v4292 = vpop.f32.mrf.mxu0
  %v4293 = vadd.f32 %v4240, %v4292
  %v4294 = vpop.f32.mrf.mxu0
  %v4295 = vadd.f32 %v4242, %v4294
  %4296 = vdwg.mxu0
  %4297 = vmatprep.subr.bf16.mxu0 0
  %4298 = vmatpush1.bf16.msra.mxu0 0
  %4299 = vmatprep.subr.bf16.mxu0 %v4080
  %4300 = vmatpush1.bf16.msra.mxu0 %v4077
  %4301 = vmatprep.subr.bf16.mxu0 %v3853
  %4302 = vmatpush1.bf16.msra.mxu0 %v3852
  %4303 = vmatprep.subr.bf16.mxu0 %v3850
  %4304 = vmatpush1.bf16.msra.mxu0 %v3849
  %4305 = vmatprep.subr.bf16.mxu0 %v3847
  %4306 = vmatpush1.bf16.msra.mxu0 %v3846
  %4307 = vmatprep.subr.bf16.mxu0 %v3844
  %4308 = vmatpush1.bf16.msra.mxu0 %v3843
  %4309 = vmatprep.subr.bf16.mxu0 %v3841
  %4310 = vmatpush1.bf16.msra.mxu0 %v3840
  %4311 = vmatprep.subr.bf16.mxu0 %v3838
  %4312 = vmatpush1.bf16.msra.mxu0 %v3837
  %4313 = vmatprep.subr.bf16.mxu0 0
  %4314 = vmatpush2.bf16.msra.mxu0 0
  %4315 = vmatprep.subr.bf16.mxu0 0
  %4316 = vmatpush2.bf16.msra.mxu0 0
  %4317 = vmatprep.subr.bf16.mxu0 0
  %4318 = vmatpush2.bf16.msra.mxu0 0
  %4319 = vmatprep.subr.bf16.mxu0 0
  %4320 = vmatpush2.bf16.msra.mxu0 0
  %4321 = vmatprep.subr.bf16.mxu0 0
  %4322 = vmatpush2.bf16.msra.mxu0 0
  %4323 = vmatprep.subr.bf16.mxu0 0
  %4324 = vmatpush2.bf16.msra.mxu0 0
  %4325 = vmatprep.subr.bf16.mxu0 0
  %4326 = vmatpush2.bf16.msra.mxu0 0
  %4327 = vmatprep.subr.bf16.mxu0 0
  %4328 = vmatpush2.bf16.msra.mxu0 0
  %4329 = vmatprep.mubr.bf16.mxu0 0
  %4330 = vmatmul.mubr.bf16.gmra.mxu0 %v4070
  %v4331 = vpop.f32.mrf.mxu0
  %v4332 = vadd.f32 %v4279, %v4331
  %v4333 = vpop.f32.mrf.mxu0
  %v4334 = vadd.f32 %v4281, %v4333
  %v4335 = vpop.f32.mrf.mxu0
  %v4336 = vadd.f32 %v4283, %v4335
  %v4337 = vpop.f32.mrf.mxu0
  %v4338 = vadd.f32 %v4285, %v4337
  %4339 = vmatprep.mubr.bf16.mxu0 0
  %4340 = vmatmul.mubr.bf16.gmra.mxu0 %v4073
  %v4341 = vpop.f32.mrf.mxu0
  %v4342 = vadd.f32 %v4289, %v4341
  %v4343 = vpop.f32.mrf.mxu0
  %v4344 = vadd.f32 %v4291, %v4343
  %v4345 = vpop.f32.mrf.mxu0
  %v4346 = vadd.f32 %v4293, %v4345
  %v4347 = vpop.f32.mrf.mxu0
  %v4348 = vadd.f32 %v4295, %v4347
  %4349 = vdwg.mxu0
  %4350 = vmatprep.subr.bf16.mxu0 0
  %4351 = vmatpush1.bf16.msra.mxu0 %v3668
  %4352 = vmatprep.subr.bf16.mxu0 0
  %4353 = vmatpush1.bf16.msra.mxu0 %v3665
  %4354 = vmatprep.subr.bf16.mxu0 0
  %4355 = vmatpush1.bf16.msra.mxu0 %v3662
  %4356 = vmatprep.subr.bf16.mxu0 0
  %4357 = vmatpush1.bf16.msra.mxu0 %v3659
  %4358 = vmatprep.subr.bf16.mxu0 0
  %4359 = vmatpush1.bf16.msra.mxu0 %v3656
  %4360 = vmatprep.subr.bf16.mxu0 0
  %4361 = vmatpush1.bf16.msra.mxu0 %v3653
  %4362 = vmatprep.subr.bf16.mxu0 0
  %4363 = vmatpush1.bf16.msra.mxu0 %v3650
  %4364 = vmatprep.subr.bf16.mxu0 0
  %4365 = vmatpush1.bf16.msra.mxu0 %v3647
  %4366 = vmatprep.subr.bf16.mxu0 0
  %4367 = vmatpush2.bf16.msra.mxu0 %v3692
  %4368 = vmatprep.subr.bf16.mxu0 0
  %4369 = vmatpush2.bf16.msra.mxu0 %v3689
  %4370 = vmatprep.subr.bf16.mxu0 0
  %4371 = vmatpush2.bf16.msra.mxu0 %v3686
  %4372 = vmatprep.subr.bf16.mxu0 0
  %4373 = vmatpush2.bf16.msra.mxu0 %v3683
  %4374 = vmatprep.subr.bf16.mxu0 0
  %4375 = vmatpush2.bf16.msra.mxu0 %v3680
  %4376 = vmatprep.subr.bf16.mxu0 0
  %4377 = vmatpush2.bf16.msra.mxu0 %v3677
  %4378 = vmatprep.subr.bf16.mxu0 0
  %4379 = vmatpush2.bf16.msra.mxu0 %v3674
  %4380 = vmatprep.subr.bf16.mxu0 0
  %4381 = vmatpush2.bf16.msra.mxu0 %v3671
  %4382 = vmatprep.mubr.bf16.mxu0 %v2641
  %4383 = vmatmul.mubr.bf16.gmra.mxu0 %v2640
  %v4384 = vpop.f32.mrf.mxu0
  %v4385 = vadd.f32 0.0, %v4384
  %v4386 = vpop.f32.mrf.mxu0
  %v4387 = vpop.f32.mrf.mxu0
  %v4388 = vadd.f32 0.0, %v4387
  %v4389 = vpop.f32.mrf.mxu0
  %4390 = vmatprep.mubr.bf16.mxu0 %v2650
  %4391 = vmatmul.mubr.bf16.gmra.mxu0 %v2649
  %v4392 = vpop.f32.mrf.mxu0
  %v4393 = vadd.f32 0.0, %v4392
  %v4394 = vpop.f32.mrf.mxu0
  %v4395 = vpop.f32.mrf.mxu0
  %v4396 = vadd.f32 0.0, %v4395
  %v4397 = vpop.f32.mrf.mxu0
  %4398 = vdwg.mxu0
  %4399 = vmatprep.subr.bf16.mxu0 0
  %4400 = vmatpush1.bf16.msra.mxu0 %v3716
  %4401 = vmatprep.subr.bf16.mxu0 0
  %4402 = vmatpush1.bf16.msra.mxu0 %v3713
  %4403 = vmatprep.subr.bf16.mxu0 0
  %4404 = vmatpush1.bf16.msra.mxu0 %v3710
  %4405 = vmatprep.subr.bf16.mxu0 0
  %4406 = vmatpush1.bf16.msra.mxu0 %v3707
  %4407 = vmatprep.subr.bf16.mxu0 0
  %4408 = vmatpush1.bf16.msra.mxu0 %v3704
  %4409 = vmatprep.subr.bf16.mxu0 0
  %4410 = vmatpush1.bf16.msra.mxu0 %v3701
  %4411 = vmatprep.subr.bf16.mxu0 0
  %4412 = vmatpush1.bf16.msra.mxu0 %v3698
  %4413 = vmatprep.subr.bf16.mxu0 0
  %4414 = vmatpush1.bf16.msra.mxu0 %v3695
  %4415 = vmatprep.subr.bf16.mxu0 0
  %4416 = vmatpush2.bf16.msra.mxu0 %v3740
  %4417 = vmatprep.subr.bf16.mxu0 0
  %4418 = vmatpush2.bf16.msra.mxu0 %v3737
  %4419 = vmatprep.subr.bf16.mxu0 0
  %4420 = vmatpush2.bf16.msra.mxu0 %v3734
  %4421 = vmatprep.subr.bf16.mxu0 0
  %4422 = vmatpush2.bf16.msra.mxu0 %v3731
  %4423 = vmatprep.subr.bf16.mxu0 0
  %4424 = vmatpush2.bf16.msra.mxu0 %v3728
  %4425 = vmatprep.subr.bf16.mxu0 0
  %4426 = vmatpush2.bf16.msra.mxu0 %v3725
  %4427 = vmatprep.subr.bf16.mxu0 0
  %4428 = vmatpush2.bf16.msra.mxu0 %v3722
  %4429 = vmatprep.subr.bf16.mxu0 0
  %4430 = vmatpush2.bf16.msra.mxu0 %v3719
  %4431 = vmatprep.mubr.bf16.mxu0 %v2643
  %4432 = vmatmul.mubr.bf16.gmra.mxu0 %v2642
  %v4433 = vpop.f32.mrf.mxu0
  %v4434 = vadd.f32 %v4385, %v4433
  %v4435 = vpop.f32.mrf.mxu0
  %v4436 = vpop.f32.mrf.mxu0
  %v4437 = vadd.f32 %v4388, %v4436
  %v4438 = vpop.f32.mrf.mxu0
  %4439 = vmatprep.mubr.bf16.mxu0 %v2652
  %4440 = vmatmul.mubr.bf16.gmra.mxu0 %v2651
  %v4441 = vpop.f32.mrf.mxu0
  %v4442 = vadd.f32 %v4393, %v4441
  %v4443 = vpop.f32.mrf.mxu0
  %v4444 = vpop.f32.mrf.mxu0
  %v4445 = vadd.f32 %v4396, %v4444
  %v4446 = vpop.f32.mrf.mxu0
  %4447 = vdwg.mxu0
  %4448 = vmatprep.subr.bf16.mxu0 0
  %4449 = vmatpush1.bf16.msra.mxu0 %v3764
  %4450 = vmatprep.subr.bf16.mxu0 0
  %4451 = vmatpush1.bf16.msra.mxu0 %v3761
  %4452 = vmatprep.subr.bf16.mxu0 0
  %4453 = vmatpush1.bf16.msra.mxu0 %v3758
  %4454 = vmatprep.subr.bf16.mxu0 0
  %4455 = vmatpush1.bf16.msra.mxu0 %v3755
  %4456 = vmatprep.subr.bf16.mxu0 0
  %4457 = vmatpush1.bf16.msra.mxu0 %v3752
  %4458 = vmatprep.subr.bf16.mxu0 0
  %4459 = vmatpush1.bf16.msra.mxu0 %v3749
  %4460 = vmatprep.subr.bf16.mxu0 0
  %4461 = vmatpush1.bf16.msra.mxu0 %v3746
  %4462 = vmatprep.subr.bf16.mxu0 0
  %4463 = vmatpush1.bf16.msra.mxu0 %v3743
  %4464 = vmatprep.subr.bf16.mxu0 0
  %4465 = vmatpush2.bf16.msra.mxu0 %v3788
  %4466 = vmatprep.subr.bf16.mxu0 0
  %4467 = vmatpush2.bf16.msra.mxu0 %v3785
  %4468 = vmatprep.subr.bf16.mxu0 0
  %4469 = vmatpush2.bf16.msra.mxu0 %v3782
  %4470 = vmatprep.subr.bf16.mxu0 0
  %4471 = vmatpush2.bf16.msra.mxu0 %v3779
  %4472 = vmatprep.subr.bf16.mxu0 0
  %4473 = vmatpush2.bf16.msra.mxu0 %v3776
  %4474 = vmatprep.subr.bf16.mxu0 0
  %4475 = vmatpush2.bf16.msra.mxu0 %v3773
  %4476 = vmatprep.subr.bf16.mxu0 0
  %4477 = vmatpush2.bf16.msra.mxu0 %v3770
  %4478 = vmatprep.subr.bf16.mxu0 0
  %4479 = vmatpush2.bf16.msra.mxu0 %v3767
  %4480 = vmatprep.mubr.bf16.mxu0 %v2645
  %4481 = vmatmul.mubr.bf16.gmra.mxu0 %v2644
  %v4482 = vpop.f32.mrf.mxu0
  %v4483 = vadd.f32 %v4434, %v4482
  %v4484 = vpop.f32.mrf.mxu0
  %v4485 = vpop.f32.mrf.mxu0
  %v4486 = vadd.f32 %v4437, %v4485
  %v4487 = vpop.f32.mrf.mxu0
  %4488 = vmatprep.mubr.bf16.mxu0 %v2654
  %4489 = vmatmul.mubr.bf16.gmra.mxu0 %v2653
  %v4490 = vpop.f32.mrf.mxu0
  %v4491 = vadd.f32 %v4442, %v4490
  %v4492 = vpop.f32.mrf.mxu0
  %v4493 = vpop.f32.mrf.mxu0
  %v4494 = vadd.f32 %v4445, %v4493
  %v4495 = vpop.f32.mrf.mxu0
  %4496 = vdwg.mxu0
  %4497 = vmatprep.subr.bf16.mxu0 0
  %4498 = vmatpush1.bf16.msra.mxu0 %v3812
  %4499 = vmatprep.subr.bf16.mxu0 0
  %4500 = vmatpush1.bf16.msra.mxu0 %v3809
  %4501 = vmatprep.subr.bf16.mxu0 0
  %4502 = vmatpush1.bf16.msra.mxu0 %v3806
  %4503 = vmatprep.subr.bf16.mxu0 0
  %4504 = vmatpush1.bf16.msra.mxu0 %v3803
  %4505 = vmatprep.subr.bf16.mxu0 0
  %4506 = vmatpush1.bf16.msra.mxu0 %v3800
  %4507 = vmatprep.subr.bf16.mxu0 0
  %4508 = vmatpush1.bf16.msra.mxu0 %v3797
  %4509 = vmatprep.subr.bf16.mxu0 0
  %4510 = vmatpush1.bf16.msra.mxu0 %v3794
  %4511 = vmatprep.subr.bf16.mxu0 0
  %4512 = vmatpush1.bf16.msra.mxu0 %v3791
  %4513 = vmatprep.subr.bf16.mxu0 0
  %4514 = vmatpush2.bf16.msra.mxu0 %v3836
  %4515 = vmatprep.subr.bf16.mxu0 0
  %4516 = vmatpush2.bf16.msra.mxu0 %v3833
  %4517 = vmatprep.subr.bf16.mxu0 0
  %4518 = vmatpush2.bf16.msra.mxu0 %v3830
  %4519 = vmatprep.subr.bf16.mxu0 0
  %4520 = vmatpush2.bf16.msra.mxu0 %v3827
  %4521 = vmatprep.subr.bf16.mxu0 0
  %4522 = vmatpush2.bf16.msra.mxu0 %v3824
  %4523 = vmatprep.subr.bf16.mxu0 0
  %4524 = vmatpush2.bf16.msra.mxu0 %v3821
  %4525 = vmatprep.subr.bf16.mxu0 0
  %4526 = vmatpush2.bf16.msra.mxu0 %v3818
  %4527 = vmatprep.subr.bf16.mxu0 0
  %4528 = vmatpush2.bf16.msra.mxu0 %v3815
  %4529 = vmatprep.mubr.bf16.mxu0 %v2647
  %4530 = vmatmul.mubr.bf16.gmra.mxu0 %v2646
  %v4531 = vpop.f32.mrf.mxu0
  %v4532 = vadd.f32 %v4483, %v4531
  %v4533 = vpop.f32.mrf.mxu0
  %v4534 = vpop.f32.mrf.mxu0
  %v4535 = vadd.f32 %v4486, %v4534
  %v4536 = vpop.f32.mrf.mxu0
  %4537 = vmatprep.mubr.bf16.mxu0 %v2656
  %4538 = vmatmul.mubr.bf16.gmra.mxu0 %v2655
  %v4539 = vpop.f32.mrf.mxu0
  %v4540 = vadd.f32 %v4491, %v4539
  %v4541 = vpop.f32.mrf.mxu0
  %v4542 = vpop.f32.mrf.mxu0
  %v4543 = vadd.f32 %v4494, %v4542
  %v4544 = vpop.f32.mrf.mxu0
  %4545 = vdwg.mxu0
  %4546 = vmatprep.subr.bf16.mxu0 0
  %4547 = vmatpush1.bf16.msra.mxu0 0
  %4548 = vmatprep.subr.bf16.mxu0 0
  %4549 = vmatpush1.bf16.msra.mxu0 %v4083
  %4550 = vmatprep.subr.bf16.mxu0 0
  %4551 = vmatpush1.bf16.msra.mxu0 %v3854
  %4552 = vmatprep.subr.bf16.mxu0 0
  %4553 = vmatpush1.bf16.msra.mxu0 %v3851
  %4554 = vmatprep.subr.bf16.mxu0 0
  %4555 = vmatpush1.bf16.msra.mxu0 %v3848
  %4556 = vmatprep.subr.bf16.mxu0 0
  %4557 = vmatpush1.bf16.msra.mxu0 %v3845
  %4558 = vmatprep.subr.bf16.mxu0 0
  %4559 = vmatpush1.bf16.msra.mxu0 %v3842
  %4560 = vmatprep.subr.bf16.mxu0 0
  %4561 = vmatpush1.bf16.msra.mxu0 %v3839
  %4562 = vmatprep.subr.bf16.mxu0 0
  %4563 = vmatpush2.bf16.msra.mxu0 0
  %4564 = vmatprep.subr.bf16.mxu0 0
  %4565 = vmatpush2.bf16.msra.mxu0 0
  %4566 = vmatprep.subr.bf16.mxu0 0
  %4567 = vmatpush2.bf16.msra.mxu0 0
  %4568 = vmatprep.subr.bf16.mxu0 0
  %4569 = vmatpush2.bf16.msra.mxu0 0
  %4570 = vmatprep.subr.bf16.mxu0 0
  %4571 = vmatpush2.bf16.msra.mxu0 0
  %4572 = vmatprep.subr.bf16.mxu0 0
  %4573 = vmatpush2.bf16.msra.mxu0 0
  %4574 = vmatprep.subr.bf16.mxu0 0
  %4575 = vmatpush2.bf16.msra.mxu0 0
  %4576 = vmatprep.subr.bf16.mxu0 0
  %4577 = vmatpush2.bf16.msra.mxu0 0
  %4578 = vmatprep.mubr.bf16.mxu0 0
  %4579 = vmatmul.mubr.bf16.gmra.mxu0 %v4070
  %v4580 = vpop.f32.mrf.mxu0
  %v4581 = vadd.f32 %v4532, %v4580
  %v4582 = vpop.f32.mrf.mxu0
  %v4583 = vpop.f32.mrf.mxu0
  %v4584 = vadd.f32 %v4535, %v4583
  %v4585 = vpop.f32.mrf.mxu0
  %4586 = vmatprep.mubr.bf16.mxu0 0
  %4587 = vmatmul.mubr.bf16.gmra.mxu0 %v4073
  %v4588 = vpop.f32.mrf.mxu0
  %v4589 = vadd.f32 %v4540, %v4588
  %v4590 = vpop.f32.mrf.mxu0
  %v4591 = vpop.f32.mrf.mxu0
  %v4592 = vadd.f32 %v4543, %v4591
  %v4593 = vpop.f32.mrf.mxu0
  %4594 = vdwg.mxu0
  %4596 = vset.pattern.permute.xlu0 0
  %4597 = vperm.xlu0 %4596, %v38
  %v4598 = vpop.permute.xlu0 %4597
  %4601 = vset.pattern.permute.xlu0 0
  %4602 = vperm.xlu0 %4601, %v39
  %v4603 = vpop.permute.xlu0 %4602
  %4606 = vset.pattern.permute.xlu0 0
  %4607 = vperm.xlu0 %4606, %v40
  %v4608 = vpop.permute.xlu0 %4607
  %4611 = vset.pattern.permute.xlu0 0
  %4612 = vperm.xlu0 %4611, %v41
  %v4613 = vpop.permute.xlu0 %4612
  %v4615 = vmul.f32 %v4598, %v4332
  %v4616 = vmul.f32 %v4598, %v4334
  %v4617 = vmul.f32 %v4598, %v4581
  %v4618 = vmul.f32 %v4603, %v4336
  %v4619 = vmul.f32 %v4603, %v4338
  %v4620 = vmul.f32 %v4603, %v4584
  %v4621 = vmul.f32 %v4608, %v4342
  %v4622 = vmul.f32 %v4608, %v4344
  %v4623 = vmul.f32 %v4608, %v4589
  %v4624 = vmul.f32 %v4613, %v4346
  %v4625 = vmul.f32 %v4613, %v4348
  %v4626 = vmul.f32 %v4613, %v4592
  %4627 = vset.pattern.permute.xlu0 1
  %4628 = vperm.xlu0 %4627, %v38
  %v4629 = vpop.permute.xlu0 %4628
  %4631 = vset.pattern.permute.xlu0 1
  %4632 = vperm.xlu0 %4631, %v39
  %v4633 = vpop.permute.xlu0 %4632
  %4635 = vset.pattern.permute.xlu0 1
  %4636 = vperm.xlu0 %4635, %v40
  %v4637 = vpop.permute.xlu0 %4636
  %4639 = vset.pattern.permute.xlu0 1
  %4640 = vperm.xlu0 %4639, %v41
  %v4641 = vpop.permute.xlu0 %4640
  %v4643 = vmul.f32 %v4629, %v4332
  %v4644 = vmul.f32 %v4629, %v4334
  %v4645 = vmul.f32 %v4629, %v4581
  %v4646 = vmul.f32 %v4633, %v4336
  %v4647 = vmul.f32 %v4633, %v4338
  %v4648 = vmul.f32 %v4633, %v4584
  %v4649 = vmul.f32 %v4637, %v4342
  %v4650 = vmul.f32 %v4637, %v4344
  %v4651 = vmul.f32 %v4637, %v4589
  %v4652 = vmul.f32 %v4641, %v4346
  %v4653 = vmul.f32 %v4641, %v4348
  %v4654 = vmul.f32 %v4641, %v4592
  %4667 = vrot.lane.b32.xlu0 %v4643, 127
  %v4668 = vpop.permute.xlu0 %4667
  %4669 = vrot.lane.b32.xlu0 %v4644, 127
  %v4670 = vpop.permute.xlu0 %4669
  %4671 = vrot.lane.b32.xlu0 %v4645, 127
  %v4672 = vpop.permute.xlu0 %4671
  %4673 = vrot.lane.b32.xlu0 %v4646, 127
  %v4674 = vpop.permute.xlu0 %4673
  %4675 = vrot.lane.b32.xlu0 %v4647, 127
  %v4676 = vpop.permute.xlu0 %4675
  %4677 = vrot.lane.b32.xlu0 %v4648, 127
  %v4678 = vpop.permute.xlu0 %4677
  %4679 = vrot.lane.b32.xlu0 %v4649, 127
  %v4680 = vpop.permute.xlu0 %4679
  %4681 = vrot.lane.b32.xlu0 %v4650, 127
  %v4682 = vpop.permute.xlu0 %4681
  %4683 = vrot.lane.b32.xlu0 %v4651, 127
  %v4684 = vpop.permute.xlu0 %4683
  %4685 = vrot.lane.b32.xlu0 %v4652, 127
  %v4686 = vpop.permute.xlu0 %4685
  %4687 = vrot.lane.b32.xlu0 %v4653, 127
  %v4688 = vpop.permute.xlu0 %4687
  %4689 = vrot.lane.b32.xlu0 %v4654, 127
  %v4690 = vpop.permute.xlu0 %4689
  %vm4691 = vcmask 1039360
  %v4692 = vsel %vm4691, %v4668, %v4670
  %v4693 = vsel %vm4691, %v4670, %v4672
  %v4694 = vsel %vm4691, %v4674, %v4676
  %v4695 = vsel %vm4691, %v4676, %v4678
  %v4696 = vsel %vm4691, %v4680, %v4682
  %v4697 = vsel %vm4691, %v4682, %v4684
  %v4698 = vsel %vm4691, %v4686, %v4688
  %v4699 = vsel %vm4691, %v4688, %v4690
  %v4712 = vadd.f32 %v4615, %v4692
  %v4713 = vadd.f32 %v4616, %v4693
  %v4714 = vadd.f32 %v4617, %v4672
  %v4715 = vadd.f32 %v4618, %v4694
  %v4716 = vadd.f32 %v4619, %v4695
  %v4717 = vadd.f32 %v4620, %v4678
  %v4718 = vadd.f32 %v4621, %v4696
  %v4719 = vadd.f32 %v4622, %v4697
  %v4720 = vadd.f32 %v4623, %v4684
  %v4721 = vadd.f32 %v4624, %v4698
  %v4722 = vadd.f32 %v4625, %v4699
  %v4723 = vadd.f32 %v4626, %v4690
  %4724 = vset.pattern.permute.xlu0 2
  %4725 = vperm.xlu0 %4724, %v38
  %v4726 = vpop.permute.xlu0 %4725
  %4728 = vset.pattern.permute.xlu0 2
  %4729 = vperm.xlu0 %4728, %v39
  %v4730 = vpop.permute.xlu0 %4729
  %4732 = vset.pattern.permute.xlu0 2
  %4733 = vperm.xlu0 %4732, %v40
  %v4734 = vpop.permute.xlu0 %4733
  %4736 = vset.pattern.permute.xlu0 2
  %4737 = vperm.xlu0 %4736, %v41
  %v4738 = vpop.permute.xlu0 %4737
  %v4740 = vmul.f32 %v4726, %v4332
  %v4741 = vmul.f32 %v4726, %v4334
  %v4742 = vmul.f32 %v4726, %v4581
  %v4743 = vmul.f32 %v4730, %v4336
  %v4744 = vmul.f32 %v4730, %v4338
  %v4745 = vmul.f32 %v4730, %v4584
  %v4746 = vmul.f32 %v4734, %v4342
  %v4747 = vmul.f32 %v4734, %v4344
  %v4748 = vmul.f32 %v4734, %v4589
  %v4749 = vmul.f32 %v4738, %v4346
  %v4750 = vmul.f32 %v4738, %v4348
  %v4751 = vmul.f32 %v4738, %v4592
  %4764 = vrot.lane.b32.xlu0 %v4740, 126
  %v4765 = vpop.permute.xlu0 %4764
  %4766 = vrot.lane.b32.xlu0 %v4741, 126
  %v4767 = vpop.permute.xlu0 %4766
  %4768 = vrot.lane.b32.xlu0 %v4742, 126
  %v4769 = vpop.permute.xlu0 %4768
  %4770 = vrot.lane.b32.xlu0 %v4743, 126
  %v4771 = vpop.permute.xlu0 %4770
  %4772 = vrot.lane.b32.xlu0 %v4744, 126
  %v4773 = vpop.permute.xlu0 %4772
  %4774 = vrot.lane.b32.xlu0 %v4745, 126
  %v4775 = vpop.permute.xlu0 %4774
  %4776 = vrot.lane.b32.xlu0 %v4746, 126
  %v4777 = vpop.permute.xlu0 %4776
  %4778 = vrot.lane.b32.xlu0 %v4747, 126
  %v4779 = vpop.permute.xlu0 %4778
  %4780 = vrot.lane.b32.xlu0 %v4748, 126
  %v4781 = vpop.permute.xlu0 %4780
  %4782 = vrot.lane.b32.xlu0 %v4749, 126
  %v4783 = vpop.permute.xlu0 %4782
  %4784 = vrot.lane.b32.xlu0 %v4750, 126
  %v4785 = vpop.permute.xlu0 %4784
  %4786 = vrot.lane.b32.xlu0 %v4751, 126
  %v4787 = vpop.permute.xlu0 %4786
  %vm4788 = vcmask 1031168
  %v4789 = vsel %vm4788, %v4765, %v4767
  %v4790 = vsel %vm4788, %v4767, %v4769
  %v4791 = vsel %vm4788, %v4771, %v4773
  %v4792 = vsel %vm4788, %v4773, %v4775
  %v4793 = vsel %vm4788, %v4777, %v4779
  %v4794 = vsel %vm4788, %v4779, %v4781
  %v4795 = vsel %vm4788, %v4783, %v4785
  %v4796 = vsel %vm4788, %v4785, %v4787
  %v4809 = vadd.f32 %v4712, %v4789
  %v4810 = vadd.f32 %v4713, %v4790
  %v4811 = vadd.f32 %v4714, %v4769
  %v4812 = vadd.f32 %v4715, %v4791
  %v4813 = vadd.f32 %v4716, %v4792
  %v4814 = vadd.f32 %v4717, %v4775
  %v4815 = vadd.f32 %v4718, %v4793
  %v4816 = vadd.f32 %v4719, %v4794
  %v4817 = vadd.f32 %v4720, %v4781
  %v4818 = vadd.f32 %v4721, %v4795
  %v4819 = vadd.f32 %v4722, %v4796
  %v4820 = vadd.f32 %v4723, %v4787
  %4821 = vset.pattern.permute.xlu0 3
  %4822 = vperm.xlu0 %4821, %v38
  %v4823 = vpop.permute.xlu0 %4822
  %4825 = vset.pattern.permute.xlu0 3
  %4826 = vperm.xlu0 %4825, %v39
  %v4827 = vpop.permute.xlu0 %4826
  %4829 = vset.pattern.permute.xlu0 3
  %4830 = vperm.xlu0 %4829, %v40
  %v4831 = vpop.permute.xlu0 %4830
  %4833 = vset.pattern.permute.xlu0 3
  %4834 = vperm.xlu0 %4833, %v41
  %v4835 = vpop.permute.xlu0 %4834
  %v4837 = vmul.f32 %v4823, %v4332
  %v4838 = vmul.f32 %v4823, %v4334
  %v4839 = vmul.f32 %v4823, %v4581
  %v4840 = vmul.f32 %v4827, %v4336
  %v4841 = vmul.f32 %v4827, %v4338
  %v4842 = vmul.f32 %v4827, %v4584
  %v4843 = vmul.f32 %v4831, %v4342
  %v4844 = vmul.f32 %v4831, %v4344
  %v4845 = vmul.f32 %v4831, %v4589
  %v4846 = vmul.f32 %v4835, %v4346
  %v4847 = vmul.f32 %v4835, %v4348
  %v4848 = vmul.f32 %v4835, %v4592
  %4861 = vrot.lane.b32.xlu0 %v4837, 125
  %v4862 = vpop.permute.xlu0 %4861
  %4863 = vrot.lane.b32.xlu0 %v4838, 125
  %v4864 = vpop.permute.xlu0 %4863
  %4865 = vrot.lane.b32.xlu0 %v4839, 125
  %v4866 = vpop.permute.xlu0 %4865
  %4867 = vrot.lane.b32.xlu0 %v4840, 125
  %v4868 = vpop.permute.xlu0 %4867
  %4869 = vrot.lane.b32.xlu0 %v4841, 125
  %v4870 = vpop.permute.xlu0 %4869
  %4871 = vrot.lane.b32.xlu0 %v4842, 125
  %v4872 = vpop.permute.xlu0 %4871
  %4873 = vrot.lane.b32.xlu0 %v4843, 125
  %v4874 = vpop.permute.xlu0 %4873
  %4875 = vrot.lane.b32.xlu0 %v4844, 125
  %v4876 = vpop.permute.xlu0 %4875
  %4877 = vrot.lane.b32.xlu0 %v4845, 125
  %v4878 = vpop.permute.xlu0 %4877
  %4879 = vrot.lane.b32.xlu0 %v4846, 125
  %v4880 = vpop.permute.xlu0 %4879
  %4881 = vrot.lane.b32.xlu0 %v4847, 125
  %v4882 = vpop.permute.xlu0 %4881
  %4883 = vrot.lane.b32.xlu0 %v4848, 125
  %v4884 = vpop.permute.xlu0 %4883
  %vm4885 = vcmask 1022976
  %v4886 = vsel %vm4885, %v4862, %v4864
  %v4887 = vsel %vm4885, %v4864, %v4866
  %v4888 = vsel %vm4885, %v4868, %v4870
  %v4889 = vsel %vm4885, %v4870, %v4872
  %v4890 = vsel %vm4885, %v4874, %v4876
  %v4891 = vsel %vm4885, %v4876, %v4878
  %v4892 = vsel %vm4885, %v4880, %v4882
  %v4893 = vsel %vm4885, %v4882, %v4884
  %v4906 = vadd.f32 %v4809, %v4886
  %v4907 = vadd.f32 %v4810, %v4887
  %v4908 = vadd.f32 %v4811, %v4866
  %v4909 = vadd.f32 %v4812, %v4888
  %v4910 = vadd.f32 %v4813, %v4889
  %v4911 = vadd.f32 %v4814, %v4872
  %v4912 = vadd.f32 %v4815, %v4890
  %v4913 = vadd.f32 %v4816, %v4891
  %v4914 = vadd.f32 %v4817, %v4878
  %v4915 = vadd.f32 %v4818, %v4892
  %v4916 = vadd.f32 %v4819, %v4893
  %v4917 = vadd.f32 %v4820, %v4884
  %4918 = vset.pattern.permute.xlu0 4
  %4919 = vperm.xlu0 %4918, %v38
  %v4920 = vpop.permute.xlu0 %4919
  %4922 = vset.pattern.permute.xlu0 4
  %4923 = vperm.xlu0 %4922, %v39
  %v4924 = vpop.permute.xlu0 %4923
  %4926 = vset.pattern.permute.xlu0 4
  %4927 = vperm.xlu0 %4926, %v40
  %v4928 = vpop.permute.xlu0 %4927
  %4930 = vset.pattern.permute.xlu0 4
  %4931 = vperm.xlu0 %4930, %v41
  %v4932 = vpop.permute.xlu0 %4931
  %v4934 = vmul.f32 %v4920, %v4332
  %v4935 = vmul.f32 %v4920, %v4334
  %v4936 = vmul.f32 %v4920, %v4581
  %v4937 = vmul.f32 %v4924, %v4336
  %v4938 = vmul.f32 %v4924, %v4338
  %v4939 = vmul.f32 %v4924, %v4584
  %v4940 = vmul.f32 %v4928, %v4342
  %v4941 = vmul.f32 %v4928, %v4344
  %v4942 = vmul.f32 %v4928, %v4589
  %v4943 = vmul.f32 %v4932, %v4346
  %v4944 = vmul.f32 %v4932, %v4348
  %v4945 = vmul.f32 %v4932, %v4592
  %4958 = vrot.lane.b32.xlu0 %v4934, 124
  %v4959 = vpop.permute.xlu0 %4958
  %4960 = vrot.lane.b32.xlu0 %v4935, 124
  %v4961 = vpop.permute.xlu0 %4960
  %4962 = vrot.lane.b32.xlu0 %v4936, 124
  %v4963 = vpop.permute.xlu0 %4962
  %4964 = vrot.lane.b32.xlu0 %v4937, 124
  %v4965 = vpop.permute.xlu0 %4964
  %4966 = vrot.lane.b32.xlu0 %v4938, 124
  %v4967 = vpop.permute.xlu0 %4966
  %4968 = vrot.lane.b32.xlu0 %v4939, 124
  %v4969 = vpop.permute.xlu0 %4968
  %4970 = vrot.lane.b32.xlu0 %v4940, 124
  %v4971 = vpop.permute.xlu0 %4970
  %4972 = vrot.lane.b32.xlu0 %v4941, 124
  %v4973 = vpop.permute.xlu0 %4972
  %4974 = vrot.lane.b32.xlu0 %v4942, 124
  %v4975 = vpop.permute.xlu0 %4974
  %4976 = vrot.lane.b32.xlu0 %v4943, 124
  %v4977 = vpop.permute.xlu0 %4976
  %4978 = vrot.lane.b32.xlu0 %v4944, 124
  %v4979 = vpop.permute.xlu0 %4978
  %4980 = vrot.lane.b32.xlu0 %v4945, 124
  %v4981 = vpop.permute.xlu0 %4980
  %vm4982 = vcmask 1014784
  %v4983 = vsel %vm4982, %v4959, %v4961
  %v4984 = vsel %vm4982, %v4961, %v4963
  %v4985 = vsel %vm4982, %v4965, %v4967
  %v4986 = vsel %vm4982, %v4967, %v4969
  %v4987 = vsel %vm4982, %v4971, %v4973
  %v4988 = vsel %vm4982, %v4973, %v4975
  %v4989 = vsel %vm4982, %v4977, %v4979
  %v4990 = vsel %vm4982, %v4979, %v4981
  %v5003 = vadd.f32 %v4906, %v4983
  %v5004 = vadd.f32 %v4907, %v4984
  %v5005 = vadd.f32 %v4908, %v4963
  %v5006 = vadd.f32 %v4909, %v4985
  %v5007 = vadd.f32 %v4910, %v4986
  %v5008 = vadd.f32 %v4911, %v4969
  %v5009 = vadd.f32 %v4912, %v4987
  %v5010 = vadd.f32 %v4913, %v4988
  %v5011 = vadd.f32 %v4914, %v4975
  %v5012 = vadd.f32 %v4915, %v4989
  %v5013 = vadd.f32 %v4916, %v4990
  %v5014 = vadd.f32 %v4917, %v4981
  %5015 = vset.pattern.permute.xlu0 5
  %5016 = vperm.xlu0 %5015, %v38
  %v5017 = vpop.permute.xlu0 %5016
  %5019 = vset.pattern.permute.xlu0 5
  %5020 = vperm.xlu0 %5019, %v39
  %v5021 = vpop.permute.xlu0 %5020
  %5023 = vset.pattern.permute.xlu0 5
  %5024 = vperm.xlu0 %5023, %v40
  %v5025 = vpop.permute.xlu0 %5024
  %5027 = vset.pattern.permute.xlu0 5
  %5028 = vperm.xlu0 %5027, %v41
  %v5029 = vpop.permute.xlu0 %5028
  %v5031 = vmul.f32 %v5017, %v4332
  %v5032 = vmul.f32 %v5017, %v4334
  %v5033 = vmul.f32 %v5017, %v4581
  %v5034 = vmul.f32 %v5021, %v4336
  %v5035 = vmul.f32 %v5021, %v4338
  %v5036 = vmul.f32 %v5021, %v4584
  %v5037 = vmul.f32 %v5025, %v4342
  %v5038 = vmul.f32 %v5025, %v4344
  %v5039 = vmul.f32 %v5025, %v4589
  %v5040 = vmul.f32 %v5029, %v4346
  %v5041 = vmul.f32 %v5029, %v4348
  %v5042 = vmul.f32 %v5029, %v4592
  %5055 = vrot.lane.b32.xlu0 %v5031, 123
  %v5056 = vpop.permute.xlu0 %5055
  %5057 = vrot.lane.b32.xlu0 %v5032, 123
  %v5058 = vpop.permute.xlu0 %5057
  %5059 = vrot.lane.b32.xlu0 %v5033, 123
  %v5060 = vpop.permute.xlu0 %5059
  %5061 = vrot.lane.b32.xlu0 %v5034, 123
  %v5062 = vpop.permute.xlu0 %5061
  %5063 = vrot.lane.b32.xlu0 %v5035, 123
  %v5064 = vpop.permute.xlu0 %5063
  %5065 = vrot.lane.b32.xlu0 %v5036, 123
  %v5066 = vpop.permute.xlu0 %5065
  %5067 = vrot.lane.b32.xlu0 %v5037, 123
  %v5068 = vpop.permute.xlu0 %5067
  %5069 = vrot.lane.b32.xlu0 %v5038, 123
  %v5070 = vpop.permute.xlu0 %5069
  %5071 = vrot.lane.b32.xlu0 %v5039, 123
  %v5072 = vpop.permute.xlu0 %5071
  %5073 = vrot.lane.b32.xlu0 %v5040, 123
  %v5074 = vpop.permute.xlu0 %5073
  %5075 = vrot.lane.b32.xlu0 %v5041, 123
  %v5076 = vpop.permute.xlu0 %5075
  %5077 = vrot.lane.b32.xlu0 %v5042, 123
  %v5078 = vpop.permute.xlu0 %5077
  %vm5079 = vcmask 1006592
  %v5080 = vsel %vm5079, %v5056, %v5058
  %v5081 = vsel %vm5079, %v5058, %v5060
  %v5082 = vsel %vm5079, %v5062, %v5064
  %v5083 = vsel %vm5079, %v5064, %v5066
  %v5084 = vsel %vm5079, %v5068, %v5070
  %v5085 = vsel %vm5079, %v5070, %v5072
  %v5086 = vsel %vm5079, %v5074, %v5076
  %v5087 = vsel %vm5079, %v5076, %v5078
  %v5100 = vadd.f32 %v5003, %v5080
  %v5101 = vadd.f32 %v5004, %v5081
  %v5102 = vadd.f32 %v5005, %v5060
  %v5103 = vadd.f32 %v5006, %v5082
  %v5104 = vadd.f32 %v5007, %v5083
  %v5105 = vadd.f32 %v5008, %v5066
  %v5106 = vadd.f32 %v5009, %v5084
  %v5107 = vadd.f32 %v5010, %v5085
  %v5108 = vadd.f32 %v5011, %v5072
  %v5109 = vadd.f32 %v5012, %v5086
  %v5110 = vadd.f32 %v5013, %v5087
  %v5111 = vadd.f32 %v5014, %v5078
  %5112 = vset.pattern.permute.xlu0 6
  %5113 = vperm.xlu0 %5112, %v38
  %v5114 = vpop.permute.xlu0 %5113
  %5116 = vset.pattern.permute.xlu0 6
  %5117 = vperm.xlu0 %5116, %v39
  %v5118 = vpop.permute.xlu0 %5117
  %5120 = vset.pattern.permute.xlu0 6
  %5121 = vperm.xlu0 %5120, %v40
  %v5122 = vpop.permute.xlu0 %5121
  %5124 = vset.pattern.permute.xlu0 6
  %5125 = vperm.xlu0 %5124, %v41
  %v5126 = vpop.permute.xlu0 %5125
  %v5128 = vmul.f32 %v5114, %v4332
  %v5129 = vmul.f32 %v5114, %v4334
  %v5130 = vmul.f32 %v5114, %v4581
  %v5131 = vmul.f32 %v5118, %v4336
  %v5132 = vmul.f32 %v5118, %v4338
  %v5133 = vmul.f32 %v5118, %v4584
  %v5134 = vmul.f32 %v5122, %v4342
  %v5135 = vmul.f32 %v5122, %v4344
  %v5136 = vmul.f32 %v5122, %v4589
  %v5137 = vmul.f32 %v5126, %v4346
  %v5138 = vmul.f32 %v5126, %v4348
  %v5139 = vmul.f32 %v5126, %v4592
  %5152 = vrot.lane.b32.xlu0 %v5128, 122
  %v5153 = vpop.permute.xlu0 %5152
  %5154 = vrot.lane.b32.xlu0 %v5129, 122
  %v5155 = vpop.permute.xlu0 %5154
  %5156 = vrot.lane.b32.xlu0 %v5130, 122
  %v5157 = vpop.permute.xlu0 %5156
  %5158 = vrot.lane.b32.xlu0 %v5131, 122
  %v5159 = vpop.permute.xlu0 %5158
  %5160 = vrot.lane.b32.xlu0 %v5132, 122
  %v5161 = vpop.permute.xlu0 %5160
  %5162 = vrot.lane.b32.xlu0 %v5133, 122
  %v5163 = vpop.permute.xlu0 %5162
  %5164 = vrot.lane.b32.xlu0 %v5134, 122
  %v5165 = vpop.permute.xlu0 %5164
  %5166 = vrot.lane.b32.xlu0 %v5135, 122
  %v5167 = vpop.permute.xlu0 %5166
  %5168 = vrot.lane.b32.xlu0 %v5136, 122
  %v5169 = vpop.permute.xlu0 %5168
  %5170 = vrot.lane.b32.xlu0 %v5137, 122
  %v5171 = vpop.permute.xlu0 %5170
  %5172 = vrot.lane.b32.xlu0 %v5138, 122
  %v5173 = vpop.permute.xlu0 %5172
  %5174 = vrot.lane.b32.xlu0 %v5139, 122
  %v5175 = vpop.permute.xlu0 %5174
  %vm5176 = vcmask 998400
  %v5177 = vsel %vm5176, %v5153, %v5155
  %v5178 = vsel %vm5176, %v5155, %v5157
  %v5179 = vsel %vm5176, %v5159, %v5161
  %v5180 = vsel %vm5176, %v5161, %v5163
  %v5181 = vsel %vm5176, %v5165, %v5167
  %v5182 = vsel %vm5176, %v5167, %v5169
  %v5183 = vsel %vm5176, %v5171, %v5173
  %v5184 = vsel %vm5176, %v5173, %v5175
  %v5197 = vadd.f32 %v5100, %v5177
  %v5198 = vadd.f32 %v5101, %v5178
  %v5199 = vadd.f32 %v5102, %v5157
  %v5200 = vadd.f32 %v5103, %v5179
  %v5201 = vadd.f32 %v5104, %v5180
  %v5202 = vadd.f32 %v5105, %v5163
  %v5203 = vadd.f32 %v5106, %v5181
  %v5204 = vadd.f32 %v5107, %v5182
  %v5205 = vadd.f32 %v5108, %v5169
  %v5206 = vadd.f32 %v5109, %v5183
  %v5207 = vadd.f32 %v5110, %v5184
  %v5208 = vadd.f32 %v5111, %v5175
  %5209 = vset.pattern.permute.xlu0 7
  %5210 = vperm.xlu0 %5209, %v38
  %v5211 = vpop.permute.xlu0 %5210
  %5213 = vset.pattern.permute.xlu0 7
  %5214 = vperm.xlu0 %5213, %v39
  %v5215 = vpop.permute.xlu0 %5214
  %5217 = vset.pattern.permute.xlu0 7
  %5218 = vperm.xlu0 %5217, %v40
  %v5219 = vpop.permute.xlu0 %5218
  %5221 = vset.pattern.permute.xlu0 7
  %5222 = vperm.xlu0 %5221, %v41
  %v5223 = vpop.permute.xlu0 %5222
  %v5225 = vmul.f32 %v5211, %v4332
  %v5226 = vmul.f32 %v5211, %v4334
  %v5227 = vmul.f32 %v5211, %v4581
  %v5228 = vmul.f32 %v5215, %v4336
  %v5229 = vmul.f32 %v5215, %v4338
  %v5230 = vmul.f32 %v5215, %v4584
  %v5231 = vmul.f32 %v5219, %v4342
  %v5232 = vmul.f32 %v5219, %v4344
  %v5233 = vmul.f32 %v5219, %v4589
  %v5234 = vmul.f32 %v5223, %v4346
  %v5235 = vmul.f32 %v5223, %v4348
  %v5236 = vmul.f32 %v5223, %v4592
  %5249 = vrot.lane.b32.xlu0 %v5225, 121
  %v5250 = vpop.permute.xlu0 %5249
  %5251 = vrot.lane.b32.xlu0 %v5226, 121
  %v5252 = vpop.permute.xlu0 %5251
  %5253 = vrot.lane.b32.xlu0 %v5227, 121
  %v5254 = vpop.permute.xlu0 %5253
  %5255 = vrot.lane.b32.xlu0 %v5228, 121
  %v5256 = vpop.permute.xlu0 %5255
  %5257 = vrot.lane.b32.xlu0 %v5229, 121
  %v5258 = vpop.permute.xlu0 %5257
  %5259 = vrot.lane.b32.xlu0 %v5230, 121
  %v5260 = vpop.permute.xlu0 %5259
  %5261 = vrot.lane.b32.xlu0 %v5231, 121
  %v5262 = vpop.permute.xlu0 %5261
  %5263 = vrot.lane.b32.xlu0 %v5232, 121
  %v5264 = vpop.permute.xlu0 %5263
  %5265 = vrot.lane.b32.xlu0 %v5233, 121
  %v5266 = vpop.permute.xlu0 %5265
  %5267 = vrot.lane.b32.xlu0 %v5234, 121
  %v5268 = vpop.permute.xlu0 %5267
  %5269 = vrot.lane.b32.xlu0 %v5235, 121
  %v5270 = vpop.permute.xlu0 %5269
  %5271 = vrot.lane.b32.xlu0 %v5236, 121
  %v5272 = vpop.permute.xlu0 %5271
  %vm5273 = vcmask 990208
  %v5274 = vsel %vm5273, %v5250, %v5252
  %v5275 = vsel %vm5273, %v5252, %v5254
  %v5276 = vsel %vm5273, %v5256, %v5258
  %v5277 = vsel %vm5273, %v5258, %v5260
  %v5278 = vsel %vm5273, %v5262, %v5264
  %v5279 = vsel %vm5273, %v5264, %v5266
  %v5280 = vsel %vm5273, %v5268, %v5270
  %v5281 = vsel %vm5273, %v5270, %v5272
  %v5294 = vadd.f32 %v5197, %v5274
  %v5295 = vadd.f32 %v5198, %v5275
  %v5296 = vadd.f32 %v5199, %v5254
  %v5297 = vadd.f32 %v5200, %v5276
  %v5298 = vadd.f32 %v5201, %v5277
  %v5299 = vadd.f32 %v5202, %v5260
  %v5300 = vadd.f32 %v5203, %v5278
  %v5301 = vadd.f32 %v5204, %v5279
  %v5302 = vadd.f32 %v5205, %v5266
  %v5303 = vadd.f32 %v5206, %v5280
  %v5304 = vadd.f32 %v5207, %v5281
  %v5305 = vadd.f32 %v5208, %v5272
  %5306 = vset.pattern.permute.xlu0 8
  %5307 = vperm.xlu0 %5306, %v38
  %v5308 = vpop.permute.xlu0 %5307
  %5310 = vset.pattern.permute.xlu0 8
  %5311 = vperm.xlu0 %5310, %v39
  %v5312 = vpop.permute.xlu0 %5311
  %5314 = vset.pattern.permute.xlu0 8
  %5315 = vperm.xlu0 %5314, %v40
  %v5316 = vpop.permute.xlu0 %5315
  %5318 = vset.pattern.permute.xlu0 8
  %5319 = vperm.xlu0 %5318, %v41
  %v5320 = vpop.permute.xlu0 %5319
  %v5322 = vmul.f32 %v5308, %v4332
  %v5323 = vmul.f32 %v5308, %v4334
  %v5324 = vmul.f32 %v5308, %v4581
  %v5325 = vmul.f32 %v5312, %v4336
  %v5326 = vmul.f32 %v5312, %v4338
  %v5327 = vmul.f32 %v5312, %v4584
  %v5328 = vmul.f32 %v5316, %v4342
  %v5329 = vmul.f32 %v5316, %v4344
  %v5330 = vmul.f32 %v5316, %v4589
  %v5331 = vmul.f32 %v5320, %v4346
  %v5332 = vmul.f32 %v5320, %v4348
  %v5333 = vmul.f32 %v5320, %v4592
  %5346 = vrot.lane.b32.xlu0 %v5322, 120
  %v5347 = vpop.permute.xlu0 %5346
  %5348 = vrot.lane.b32.xlu0 %v5323, 120
  %v5349 = vpop.permute.xlu0 %5348
  %5350 = vrot.lane.b32.xlu0 %v5324, 120
  %v5351 = vpop.permute.xlu0 %5350
  %5352 = vrot.lane.b32.xlu0 %v5325, 120
  %v5353 = vpop.permute.xlu0 %5352
  %5354 = vrot.lane.b32.xlu0 %v5326, 120
  %v5355 = vpop.permute.xlu0 %5354
  %5356 = vrot.lane.b32.xlu0 %v5327, 120
  %v5357 = vpop.permute.xlu0 %5356
  %5358 = vrot.lane.b32.xlu0 %v5328, 120
  %v5359 = vpop.permute.xlu0 %5358
  %5360 = vrot.lane.b32.xlu0 %v5329, 120
  %v5361 = vpop.permute.xlu0 %5360
  %5362 = vrot.lane.b32.xlu0 %v5330, 120
  %v5363 = vpop.permute.xlu0 %5362
  %5364 = vrot.lane.b32.xlu0 %v5331, 120
  %v5365 = vpop.permute.xlu0 %5364
  %5366 = vrot.lane.b32.xlu0 %v5332, 120
  %v5367 = vpop.permute.xlu0 %5366
  %5368 = vrot.lane.b32.xlu0 %v5333, 120
  %v5369 = vpop.permute.xlu0 %5368
  %vm5370 = vcmask 982016
  %v5371 = vsel %vm5370, %v5347, %v5349
  %v5372 = vsel %vm5370, %v5349, %v5351
  %v5373 = vsel %vm5370, %v5353, %v5355
  %v5374 = vsel %vm5370, %v5355, %v5357
  %v5375 = vsel %vm5370, %v5359, %v5361
  %v5376 = vsel %vm5370, %v5361, %v5363
  %v5377 = vsel %vm5370, %v5365, %v5367
  %v5378 = vsel %vm5370, %v5367, %v5369
  %v5391 = vadd.f32 %v5294, %v5371
  %v5392 = vadd.f32 %v5295, %v5372
  %v5393 = vadd.f32 %v5296, %v5351
  %v5394 = vadd.f32 %v5297, %v5373
  %v5395 = vadd.f32 %v5298, %v5374
  %v5396 = vadd.f32 %v5299, %v5357
  %v5397 = vadd.f32 %v5300, %v5375
  %v5398 = vadd.f32 %v5301, %v5376
  %v5399 = vadd.f32 %v5302, %v5363
  %v5400 = vadd.f32 %v5303, %v5377
  %v5401 = vadd.f32 %v5304, %v5378
  %v5402 = vadd.f32 %v5305, %v5369
  %5403 = vset.pattern.permute.xlu0 9
  %5404 = vperm.xlu0 %5403, %v38
  %v5405 = vpop.permute.xlu0 %5404
  %5407 = vset.pattern.permute.xlu0 9
  %5408 = vperm.xlu0 %5407, %v39
  %v5409 = vpop.permute.xlu0 %5408
  %5411 = vset.pattern.permute.xlu0 9
  %5412 = vperm.xlu0 %5411, %v40
  %v5413 = vpop.permute.xlu0 %5412
  %5415 = vset.pattern.permute.xlu0 9
  %5416 = vperm.xlu0 %5415, %v41
  %v5417 = vpop.permute.xlu0 %5416
  %v5419 = vmul.f32 %v5405, %v4332
  %v5420 = vmul.f32 %v5405, %v4334
  %v5421 = vmul.f32 %v5405, %v4581
  %v5422 = vmul.f32 %v5409, %v4336
  %v5423 = vmul.f32 %v5409, %v4338
  %v5424 = vmul.f32 %v5409, %v4584
  %v5425 = vmul.f32 %v5413, %v4342
  %v5426 = vmul.f32 %v5413, %v4344
  %v5427 = vmul.f32 %v5413, %v4589
  %v5428 = vmul.f32 %v5417, %v4346
  %v5429 = vmul.f32 %v5417, %v4348
  %v5430 = vmul.f32 %v5417, %v4592
  %5443 = vrot.lane.b32.xlu0 %v5419, 119
  %v5444 = vpop.permute.xlu0 %5443
  %5445 = vrot.lane.b32.xlu0 %v5420, 119
  %v5446 = vpop.permute.xlu0 %5445
  %5447 = vrot.lane.b32.xlu0 %v5421, 119
  %v5448 = vpop.permute.xlu0 %5447
  %5449 = vrot.lane.b32.xlu0 %v5422, 119
  %v5450 = vpop.permute.xlu0 %5449
  %5451 = vrot.lane.b32.xlu0 %v5423, 119
  %v5452 = vpop.permute.xlu0 %5451
  %5453 = vrot.lane.b32.xlu0 %v5424, 119
  %v5454 = vpop.permute.xlu0 %5453
  %5455 = vrot.lane.b32.xlu0 %v5425, 119
  %v5456 = vpop.permute.xlu0 %5455
  %5457 = vrot.lane.b32.xlu0 %v5426, 119
  %v5458 = vpop.permute.xlu0 %5457
  %5459 = vrot.lane.b32.xlu0 %v5427, 119
  %v5460 = vpop.permute.xlu0 %5459
  %5461 = vrot.lane.b32.xlu0 %v5428, 119
  %v5462 = vpop.permute.xlu0 %5461
  %5463 = vrot.lane.b32.xlu0 %v5429, 119
  %v5464 = vpop.permute.xlu0 %5463
  %5465 = vrot.lane.b32.xlu0 %v5430, 119
  %v5466 = vpop.permute.xlu0 %5465
  %vm5467 = vcmask 973824
  %v5468 = vsel %vm5467, %v5444, %v5446
  %v5469 = vsel %vm5467, %v5446, %v5448
  %v5470 = vsel %vm5467, %v5450, %v5452
  %v5471 = vsel %vm5467, %v5452, %v5454
  %v5472 = vsel %vm5467, %v5456, %v5458
  %v5473 = vsel %vm5467, %v5458, %v5460
  %v5474 = vsel %vm5467, %v5462, %v5464
  %v5475 = vsel %vm5467, %v5464, %v5466
  %v5488 = vadd.f32 %v5391, %v5468
  %v5489 = vadd.f32 %v5392, %v5469
  %v5490 = vadd.f32 %v5393, %v5448
  %v5491 = vadd.f32 %v5394, %v5470
  %v5492 = vadd.f32 %v5395, %v5471
  %v5493 = vadd.f32 %v5396, %v5454
  %v5494 = vadd.f32 %v5397, %v5472
  %v5495 = vadd.f32 %v5398, %v5473
  %v5496 = vadd.f32 %v5399, %v5460
  %v5497 = vadd.f32 %v5400, %v5474
  %v5498 = vadd.f32 %v5401, %v5475
  %v5499 = vadd.f32 %v5402, %v5466
  %5500 = vset.pattern.permute.xlu0 10
  %5501 = vperm.xlu0 %5500, %v38
  %v5502 = vpop.permute.xlu0 %5501
  %5504 = vset.pattern.permute.xlu0 10
  %5505 = vperm.xlu0 %5504, %v39
  %v5506 = vpop.permute.xlu0 %5505
  %5508 = vset.pattern.permute.xlu0 10
  %5509 = vperm.xlu0 %5508, %v40
  %v5510 = vpop.permute.xlu0 %5509
  %5512 = vset.pattern.permute.xlu0 10
  %5513 = vperm.xlu0 %5512, %v41
  %v5514 = vpop.permute.xlu0 %5513
  %v5516 = vmul.f32 %v5502, %v4332
  %v5517 = vmul.f32 %v5502, %v4334
  %v5518 = vmul.f32 %v5502, %v4581
  %v5519 = vmul.f32 %v5506, %v4336
  %v5520 = vmul.f32 %v5506, %v4338
  %v5521 = vmul.f32 %v5506, %v4584
  %v5522 = vmul.f32 %v5510, %v4342
  %v5523 = vmul.f32 %v5510, %v4344
  %v5524 = vmul.f32 %v5510, %v4589
  %v5525 = vmul.f32 %v5514, %v4346
  %v5526 = vmul.f32 %v5514, %v4348
  %v5527 = vmul.f32 %v5514, %v4592
  %5540 = vrot.lane.b32.xlu0 %v5516, 118
  %v5541 = vpop.permute.xlu0 %5540
  %5542 = vrot.lane.b32.xlu0 %v5517, 118
  %v5543 = vpop.permute.xlu0 %5542
  %5544 = vrot.lane.b32.xlu0 %v5518, 118
  %v5545 = vpop.permute.xlu0 %5544
  %5546 = vrot.lane.b32.xlu0 %v5519, 118
  %v5547 = vpop.permute.xlu0 %5546
  %5548 = vrot.lane.b32.xlu0 %v5520, 118
  %v5549 = vpop.permute.xlu0 %5548
  %5550 = vrot.lane.b32.xlu0 %v5521, 118
  %v5551 = vpop.permute.xlu0 %5550
  %5552 = vrot.lane.b32.xlu0 %v5522, 118
  %v5553 = vpop.permute.xlu0 %5552
  %5554 = vrot.lane.b32.xlu0 %v5523, 118
  %v5555 = vpop.permute.xlu0 %5554
  %5556 = vrot.lane.b32.xlu0 %v5524, 118
  %v5557 = vpop.permute.xlu0 %5556
  %5558 = vrot.lane.b32.xlu0 %v5525, 118
  %v5559 = vpop.permute.xlu0 %5558
  %5560 = vrot.lane.b32.xlu0 %v5526, 118
  %v5561 = vpop.permute.xlu0 %5560
  %5562 = vrot.lane.b32.xlu0 %v5527, 118
  %v5563 = vpop.permute.xlu0 %5562
  %vm5564 = vcmask 965632
  %v5565 = vsel %vm5564, %v5541, %v5543
  %v5566 = vsel %vm5564, %v5543, %v5545
  %v5567 = vsel %vm5564, %v5547, %v5549
  %v5568 = vsel %vm5564, %v5549, %v5551
  %v5569 = vsel %vm5564, %v5553, %v5555
  %v5570 = vsel %vm5564, %v5555, %v5557
  %v5571 = vsel %vm5564, %v5559, %v5561
  %v5572 = vsel %vm5564, %v5561, %v5563
  %v5585 = vadd.f32 %v5488, %v5565
  %v5586 = vadd.f32 %v5489, %v5566
  %v5587 = vadd.f32 %v5490, %v5545
  %v5588 = vadd.f32 %v5491, %v5567
  %v5589 = vadd.f32 %v5492, %v5568
  %v5590 = vadd.f32 %v5493, %v5551
  %v5591 = vadd.f32 %v5494, %v5569
  %v5592 = vadd.f32 %v5495, %v5570
  %v5593 = vadd.f32 %v5496, %v5557
  %v5594 = vadd.f32 %v5497, %v5571
  %v5595 = vadd.f32 %v5498, %v5572
  %v5596 = vadd.f32 %v5499, %v5563
  %5597 = vset.pattern.permute.xlu0 11
  %5598 = vperm.xlu0 %5597, %v38
  %v5599 = vpop.permute.xlu0 %5598
  %5601 = vset.pattern.permute.xlu0 11
  %5602 = vperm.xlu0 %5601, %v39
  %v5603 = vpop.permute.xlu0 %5602
  %5605 = vset.pattern.permute.xlu0 11
  %5606 = vperm.xlu0 %5605, %v40
  %v5607 = vpop.permute.xlu0 %5606
  %5609 = vset.pattern.permute.xlu0 11
  %5610 = vperm.xlu0 %5609, %v41
  %v5611 = vpop.permute.xlu0 %5610
  %v5613 = vmul.f32 %v5599, %v4332
  %v5614 = vmul.f32 %v5599, %v4334
  %v5615 = vmul.f32 %v5599, %v4581
  %v5616 = vmul.f32 %v5603, %v4336
  %v5617 = vmul.f32 %v5603, %v4338
  %v5618 = vmul.f32 %v5603, %v4584
  %v5619 = vmul.f32 %v5607, %v4342
  %v5620 = vmul.f32 %v5607, %v4344
  %v5621 = vmul.f32 %v5607, %v4589
  %v5622 = vmul.f32 %v5611, %v4346
  %v5623 = vmul.f32 %v5611, %v4348
  %v5624 = vmul.f32 %v5611, %v4592
  %5637 = vrot.lane.b32.xlu0 %v5613, 117
  %v5638 = vpop.permute.xlu0 %5637
  %5639 = vrot.lane.b32.xlu0 %v5614, 117
  %v5640 = vpop.permute.xlu0 %5639
  %5641 = vrot.lane.b32.xlu0 %v5615, 117
  %v5642 = vpop.permute.xlu0 %5641
  %5643 = vrot.lane.b32.xlu0 %v5616, 117
  %v5644 = vpop.permute.xlu0 %5643
  %5645 = vrot.lane.b32.xlu0 %v5617, 117
  %v5646 = vpop.permute.xlu0 %5645
  %5647 = vrot.lane.b32.xlu0 %v5618, 117
  %v5648 = vpop.permute.xlu0 %5647
  %5649 = vrot.lane.b32.xlu0 %v5619, 117
  %v5650 = vpop.permute.xlu0 %5649
  %5651 = vrot.lane.b32.xlu0 %v5620, 117
  %v5652 = vpop.permute.xlu0 %5651
  %5653 = vrot.lane.b32.xlu0 %v5621, 117
  %v5654 = vpop.permute.xlu0 %5653
  %5655 = vrot.lane.b32.xlu0 %v5622, 117
  %v5656 = vpop.permute.xlu0 %5655
  %5657 = vrot.lane.b32.xlu0 %v5623, 117
  %v5658 = vpop.permute.xlu0 %5657
  %5659 = vrot.lane.b32.xlu0 %v5624, 117
  %v5660 = vpop.permute.xlu0 %5659
  %vm5661 = vcmask 957440
  %v5662 = vsel %vm5661, %v5638, %v5640
  %v5663 = vsel %vm5661, %v5640, %v5642
  %v5664 = vsel %vm5661, %v5644, %v5646
  %v5665 = vsel %vm5661, %v5646, %v5648
  %v5666 = vsel %vm5661, %v5650, %v5652
  %v5667 = vsel %vm5661, %v5652, %v5654
  %v5668 = vsel %vm5661, %v5656, %v5658
  %v5669 = vsel %vm5661, %v5658, %v5660
  %v5682 = vadd.f32 %v5585, %v5662
  %v5683 = vadd.f32 %v5586, %v5663
  %v5684 = vadd.f32 %v5587, %v5642
  %v5685 = vadd.f32 %v5588, %v5664
  %v5686 = vadd.f32 %v5589, %v5665
  %v5687 = vadd.f32 %v5590, %v5648
  %v5688 = vadd.f32 %v5591, %v5666
  %v5689 = vadd.f32 %v5592, %v5667
  %v5690 = vadd.f32 %v5593, %v5654
  %v5691 = vadd.f32 %v5594, %v5668
  %v5692 = vadd.f32 %v5595, %v5669
  %v5693 = vadd.f32 %v5596, %v5660
  %5694 = vset.pattern.permute.xlu0 12
  %5695 = vperm.xlu0 %5694, %v38
  %v5696 = vpop.permute.xlu0 %5695
  %5698 = vset.pattern.permute.xlu0 12
  %5699 = vperm.xlu0 %5698, %v39
  %v5700 = vpop.permute.xlu0 %5699
  %5702 = vset.pattern.permute.xlu0 12
  %5703 = vperm.xlu0 %5702, %v40
  %v5704 = vpop.permute.xlu0 %5703
  %5706 = vset.pattern.permute.xlu0 12
  %5707 = vperm.xlu0 %5706, %v41
  %v5708 = vpop.permute.xlu0 %5707
  %v5710 = vmul.f32 %v5696, %v4332
  %v5711 = vmul.f32 %v5696, %v4334
  %v5712 = vmul.f32 %v5696, %v4581
  %v5713 = vmul.f32 %v5700, %v4336
  %v5714 = vmul.f32 %v5700, %v4338
  %v5715 = vmul.f32 %v5700, %v4584
  %v5716 = vmul.f32 %v5704, %v4342
  %v5717 = vmul.f32 %v5704, %v4344
  %v5718 = vmul.f32 %v5704, %v4589
  %v5719 = vmul.f32 %v5708, %v4346
  %v5720 = vmul.f32 %v5708, %v4348
  %v5721 = vmul.f32 %v5708, %v4592
  %5734 = vrot.lane.b32.xlu0 %v5710, 116
  %v5735 = vpop.permute.xlu0 %5734
  %5736 = vrot.lane.b32.xlu0 %v5711, 116
  %v5737 = vpop.permute.xlu0 %5736
  %5738 = vrot.lane.b32.xlu0 %v5712, 116
  %v5739 = vpop.permute.xlu0 %5738
  %5740 = vrot.lane.b32.xlu0 %v5713, 116
  %v5741 = vpop.permute.xlu0 %5740
  %5742 = vrot.lane.b32.xlu0 %v5714, 116
  %v5743 = vpop.permute.xlu0 %5742
  %5744 = vrot.lane.b32.xlu0 %v5715, 116
  %v5745 = vpop.permute.xlu0 %5744
  %5746 = vrot.lane.b32.xlu0 %v5716, 116
  %v5747 = vpop.permute.xlu0 %5746
  %5748 = vrot.lane.b32.xlu0 %v5717, 116
  %v5749 = vpop.permute.xlu0 %5748
  %5750 = vrot.lane.b32.xlu0 %v5718, 116
  %v5751 = vpop.permute.xlu0 %5750
  %5752 = vrot.lane.b32.xlu0 %v5719, 116
  %v5753 = vpop.permute.xlu0 %5752
  %5754 = vrot.lane.b32.xlu0 %v5720, 116
  %v5755 = vpop.permute.xlu0 %5754
  %5756 = vrot.lane.b32.xlu0 %v5721, 116
  %v5757 = vpop.permute.xlu0 %5756
  %vm5758 = vcmask 949248
  %v5759 = vsel %vm5758, %v5735, %v5737
  %v5760 = vsel %vm5758, %v5737, %v5739
  %v5761 = vsel %vm5758, %v5741, %v5743
  %v5762 = vsel %vm5758, %v5743, %v5745
  %v5763 = vsel %vm5758, %v5747, %v5749
  %v5764 = vsel %vm5758, %v5749, %v5751
  %v5765 = vsel %vm5758, %v5753, %v5755
  %v5766 = vsel %vm5758, %v5755, %v5757
  %v5779 = vadd.f32 %v5682, %v5759
  %v5780 = vadd.f32 %v5683, %v5760
  %v5781 = vadd.f32 %v5684, %v5739
  %v5782 = vadd.f32 %v5685, %v5761
  %v5783 = vadd.f32 %v5686, %v5762
  %v5784 = vadd.f32 %v5687, %v5745
  %v5785 = vadd.f32 %v5688, %v5763
  %v5786 = vadd.f32 %v5689, %v5764
  %v5787 = vadd.f32 %v5690, %v5751
  %v5788 = vadd.f32 %v5691, %v5765
  %v5789 = vadd.f32 %v5692, %v5766
  %v5790 = vadd.f32 %v5693, %v5757
  %5791 = vset.pattern.permute.xlu0 13
  %5792 = vperm.xlu0 %5791, %v38
  %v5793 = vpop.permute.xlu0 %5792
  %5795 = vset.pattern.permute.xlu0 13
  %5796 = vperm.xlu0 %5795, %v39
  %v5797 = vpop.permute.xlu0 %5796
  %5799 = vset.pattern.permute.xlu0 13
  %5800 = vperm.xlu0 %5799, %v40
  %v5801 = vpop.permute.xlu0 %5800
  %5803 = vset.pattern.permute.xlu0 13
  %5804 = vperm.xlu0 %5803, %v41
  %v5805 = vpop.permute.xlu0 %5804
  %v5807 = vmul.f32 %v5793, %v4332
  %v5808 = vmul.f32 %v5793, %v4334
  %v5809 = vmul.f32 %v5793, %v4581
  %v5810 = vmul.f32 %v5797, %v4336
  %v5811 = vmul.f32 %v5797, %v4338
  %v5812 = vmul.f32 %v5797, %v4584
  %v5813 = vmul.f32 %v5801, %v4342
  %v5814 = vmul.f32 %v5801, %v4344
  %v5815 = vmul.f32 %v5801, %v4589
  %v5816 = vmul.f32 %v5805, %v4346
  %v5817 = vmul.f32 %v5805, %v4348
  %v5818 = vmul.f32 %v5805, %v4592
  %5831 = vrot.lane.b32.xlu0 %v5807, 115
  %v5832 = vpop.permute.xlu0 %5831
  %5833 = vrot.lane.b32.xlu0 %v5808, 115
  %v5834 = vpop.permute.xlu0 %5833
  %5835 = vrot.lane.b32.xlu0 %v5809, 115
  %v5836 = vpop.permute.xlu0 %5835
  %5837 = vrot.lane.b32.xlu0 %v5810, 115
  %v5838 = vpop.permute.xlu0 %5837
  %5839 = vrot.lane.b32.xlu0 %v5811, 115
  %v5840 = vpop.permute.xlu0 %5839
  %5841 = vrot.lane.b32.xlu0 %v5812, 115
  %v5842 = vpop.permute.xlu0 %5841
  %5843 = vrot.lane.b32.xlu0 %v5813, 115
  %v5844 = vpop.permute.xlu0 %5843
  %5845 = vrot.lane.b32.xlu0 %v5814, 115
  %v5846 = vpop.permute.xlu0 %5845
  %5847 = vrot.lane.b32.xlu0 %v5815, 115
  %v5848 = vpop.permute.xlu0 %5847
  %5849 = vrot.lane.b32.xlu0 %v5816, 115
  %v5850 = vpop.permute.xlu0 %5849
  %5851 = vrot.lane.b32.xlu0 %v5817, 115
  %v5852 = vpop.permute.xlu0 %5851
  %5853 = vrot.lane.b32.xlu0 %v5818, 115
  %v5854 = vpop.permute.xlu0 %5853
  %vm5855 = vcmask 941056
  %v5856 = vsel %vm5855, %v5832, %v5834
  %v5857 = vsel %vm5855, %v5834, %v5836
  %v5858 = vsel %vm5855, %v5838, %v5840
  %v5859 = vsel %vm5855, %v5840, %v5842
  %v5860 = vsel %vm5855, %v5844, %v5846
  %v5861 = vsel %vm5855, %v5846, %v5848
  %v5862 = vsel %vm5855, %v5850, %v5852
  %v5863 = vsel %vm5855, %v5852, %v5854
  %v5876 = vadd.f32 %v5779, %v5856
  %v5877 = vadd.f32 %v5780, %v5857
  %v5878 = vadd.f32 %v5781, %v5836
  %v5879 = vadd.f32 %v5782, %v5858
  %v5880 = vadd.f32 %v5783, %v5859
  %v5881 = vadd.f32 %v5784, %v5842
  %v5882 = vadd.f32 %v5785, %v5860
  %v5883 = vadd.f32 %v5786, %v5861
  %v5884 = vadd.f32 %v5787, %v5848
  %v5885 = vadd.f32 %v5788, %v5862
  %v5886 = vadd.f32 %v5789, %v5863
  %v5887 = vadd.f32 %v5790, %v5854
  %5888 = vset.pattern.permute.xlu0 14
  %5889 = vperm.xlu0 %5888, %v38
  %v5890 = vpop.permute.xlu0 %5889
  %5892 = vset.pattern.permute.xlu0 14
  %5893 = vperm.xlu0 %5892, %v39
  %v5894 = vpop.permute.xlu0 %5893
  %5896 = vset.pattern.permute.xlu0 14
  %5897 = vperm.xlu0 %5896, %v40
  %v5898 = vpop.permute.xlu0 %5897
  %5900 = vset.pattern.permute.xlu0 14
  %5901 = vperm.xlu0 %5900, %v41
  %v5902 = vpop.permute.xlu0 %5901
  %v5904 = vmul.f32 %v5890, %v4332
  %v5905 = vmul.f32 %v5890, %v4334
  %v5906 = vmul.f32 %v5890, %v4581
  %v5907 = vmul.f32 %v5894, %v4336
  %v5908 = vmul.f32 %v5894, %v4338
  %v5909 = vmul.f32 %v5894, %v4584
  %v5910 = vmul.f32 %v5898, %v4342
  %v5911 = vmul.f32 %v5898, %v4344
  %v5912 = vmul.f32 %v5898, %v4589
  %v5913 = vmul.f32 %v5902, %v4346
  %v5914 = vmul.f32 %v5902, %v4348
  %v5915 = vmul.f32 %v5902, %v4592
  %5928 = vrot.lane.b32.xlu0 %v5904, 114
  %v5929 = vpop.permute.xlu0 %5928
  %5930 = vrot.lane.b32.xlu0 %v5905, 114
  %v5931 = vpop.permute.xlu0 %5930
  %5932 = vrot.lane.b32.xlu0 %v5906, 114
  %v5933 = vpop.permute.xlu0 %5932
  %5934 = vrot.lane.b32.xlu0 %v5907, 114
  %v5935 = vpop.permute.xlu0 %5934
  %5936 = vrot.lane.b32.xlu0 %v5908, 114
  %v5937 = vpop.permute.xlu0 %5936
  %5938 = vrot.lane.b32.xlu0 %v5909, 114
  %v5939 = vpop.permute.xlu0 %5938
  %5940 = vrot.lane.b32.xlu0 %v5910, 114
  %v5941 = vpop.permute.xlu0 %5940
  %5942 = vrot.lane.b32.xlu0 %v5911, 114
  %v5943 = vpop.permute.xlu0 %5942
  %5944 = vrot.lane.b32.xlu0 %v5912, 114
  %v5945 = vpop.permute.xlu0 %5944
  %5946 = vrot.lane.b32.xlu0 %v5913, 114
  %v5947 = vpop.permute.xlu0 %5946
  %5948 = vrot.lane.b32.xlu0 %v5914, 114
  %v5949 = vpop.permute.xlu0 %5948
  %5950 = vrot.lane.b32.xlu0 %v5915, 114
  %v5951 = vpop.permute.xlu0 %5950
  %vm5952 = vcmask 932864
  %v5953 = vsel %vm5952, %v5929, %v5931
  %v5954 = vsel %vm5952, %v5931, %v5933
  %v5955 = vsel %vm5952, %v5935, %v5937
  %v5956 = vsel %vm5952, %v5937, %v5939
  %v5957 = vsel %vm5952, %v5941, %v5943
  %v5958 = vsel %vm5952, %v5943, %v5945
  %v5959 = vsel %vm5952, %v5947, %v5949
  %v5960 = vsel %vm5952, %v5949, %v5951
  %v5973 = vadd.f32 %v5876, %v5953
  %v5974 = vadd.f32 %v5877, %v5954
  %v5975 = vadd.f32 %v5878, %v5933
  %v5976 = vadd.f32 %v5879, %v5955
  %v5977 = vadd.f32 %v5880, %v5956
  %v5978 = vadd.f32 %v5881, %v5939
  %v5979 = vadd.f32 %v5882, %v5957
  %v5980 = vadd.f32 %v5883, %v5958
  %v5981 = vadd.f32 %v5884, %v5945
  %v5982 = vadd.f32 %v5885, %v5959
  %v5983 = vadd.f32 %v5886, %v5960
  %v5984 = vadd.f32 %v5887, %v5951
  %5985 = vset.pattern.permute.xlu0 15
  %5986 = vperm.xlu0 %5985, %v38
  %v5987 = vpop.permute.xlu0 %5986
  %5989 = vset.pattern.permute.xlu0 15
  %5990 = vperm.xlu0 %5989, %v39
  %v5991 = vpop.permute.xlu0 %5990
  %5993 = vset.pattern.permute.xlu0 15
  %5994 = vperm.xlu0 %5993, %v40
  %v5995 = vpop.permute.xlu0 %5994
  %5997 = vset.pattern.permute.xlu0 15
  %5998 = vperm.xlu0 %5997, %v41
  %v5999 = vpop.permute.xlu0 %5998
  %v6001 = vmul.f32 %v5987, %v4332
  %v6002 = vmul.f32 %v5987, %v4334
  %v6003 = vmul.f32 %v5987, %v4581
  %v6004 = vmul.f32 %v5991, %v4336
  %v6005 = vmul.f32 %v5991, %v4338
  %v6006 = vmul.f32 %v5991, %v4584
  %v6007 = vmul.f32 %v5995, %v4342
  %v6008 = vmul.f32 %v5995, %v4344
  %v6009 = vmul.f32 %v5995, %v4589
  %v6010 = vmul.f32 %v5999, %v4346
  %v6011 = vmul.f32 %v5999, %v4348
  %v6012 = vmul.f32 %v5999, %v4592
  %6025 = vrot.lane.b32.xlu0 %v6001, 113
  %v6026 = vpop.permute.xlu0 %6025
  %6027 = vrot.lane.b32.xlu0 %v6002, 113
  %v6028 = vpop.permute.xlu0 %6027
  %6029 = vrot.lane.b32.xlu0 %v6003, 113
  %v6030 = vpop.permute.xlu0 %6029
  %6031 = vrot.lane.b32.xlu0 %v6004, 113
  %v6032 = vpop.permute.xlu0 %6031
  %6033 = vrot.lane.b32.xlu0 %v6005, 113
  %v6034 = vpop.permute.xlu0 %6033
  %6035 = vrot.lane.b32.xlu0 %v6006, 113
  %v6036 = vpop.permute.xlu0 %6035
  %6037 = vrot.lane.b32.xlu0 %v6007, 113
  %v6038 = vpop.permute.xlu0 %6037
  %6039 = vrot.lane.b32.xlu0 %v6008, 113
  %v6040 = vpop.permute.xlu0 %6039
  %6041 = vrot.lane.b32.xlu0 %v6009, 113
  %v6042 = vpop.permute.xlu0 %6041
  %6043 = vrot.lane.b32.xlu0 %v6010, 113
  %v6044 = vpop.permute.xlu0 %6043
  %6045 = vrot.lane.b32.xlu0 %v6011, 113
  %v6046 = vpop.permute.xlu0 %6045
  %6047 = vrot.lane.b32.xlu0 %v6012, 113
  %v6048 = vpop.permute.xlu0 %6047
  %vm6049 = vcmask 924672
  %v6050 = vsel %vm6049, %v6026, %v6028
  %v6051 = vsel %vm6049, %v6028, %v6030
  %v6052 = vsel %vm6049, %v6032, %v6034
  %v6053 = vsel %vm6049, %v6034, %v6036
  %v6054 = vsel %vm6049, %v6038, %v6040
  %v6055 = vsel %vm6049, %v6040, %v6042
  %v6056 = vsel %vm6049, %v6044, %v6046
  %v6057 = vsel %vm6049, %v6046, %v6048
  %v6070 = vadd.f32 %v5973, %v6050
  %v6071 = vadd.f32 %v5974, %v6051
  %v6072 = vadd.f32 %v5975, %v6030
  %v6073 = vadd.f32 %v5976, %v6052
  %v6074 = vadd.f32 %v5977, %v6053
  %v6075 = vadd.f32 %v5978, %v6036
  %v6076 = vadd.f32 %v5979, %v6054
  %v6077 = vadd.f32 %v5980, %v6055
  %v6078 = vadd.f32 %v5981, %v6042
  %v6079 = vadd.f32 %v5982, %v6056
  %v6080 = vadd.f32 %v5983, %v6057
  %v6081 = vadd.f32 %v5984, %v6048
  %v6082 = vld [vmem:[%s6] sm:$0xff]
  %v6083 = vld [vmem:[%s6 + $0x8] sm:$0xff]
  %v6084 = vld [vmem:[%s6 + $0x10] sm:$0xff]
  %v6085 = vld [vmem:[%s6 + $0x18] sm:$0xff]
  %6087 = vset.pattern.permute.xlu0 0
  %6088 = vperm.xlu0 %6087, %v6082
  %v6089 = vpop.permute.xlu0 %6088
  %6092 = vset.pattern.permute.xlu0 0
  %6093 = vperm.xlu0 %6092, %v6083
  %v6094 = vpop.permute.xlu0 %6093
  %6097 = vset.pattern.permute.xlu0 0
  %6098 = vperm.xlu0 %6097, %v6084
  %v6099 = vpop.permute.xlu0 %6098
  %6102 = vset.pattern.permute.xlu0 0
  %6103 = vperm.xlu0 %6102, %v6085
  %v6104 = vpop.permute.xlu0 %6103
  %vm6106 = vcmask 261120
  %v6108 = vsel %vm6106, %v42, 0
  %v6111 = vsel %vm6106, %v43, 0
  %v6114 = vsel %vm6106, %v44, 0
  %v6117 = vsel %vm6106, %v45, 0
  %6119 = vmatprep.subr.mxu0 0.0
  %6120 = vmatpush1.msra.mxu0 0.0
  %6121 = vmatprep.subr.mxu0 0.0
  %6122 = vmatpush1.msra.mxu0 0.0
  %6123 = vmatprep.subr.mxu0 0.0
  %6124 = vmatpush1.msra.mxu0 0.0
  %6125 = vmatprep.subr.mxu0 0.0
  %6126 = vmatpush1.msra.mxu0 0.0
  %6127 = vmatprep.subr.mxu0 0.0
  %6128 = vmatpush1.msra.mxu0 0.0
  %6129 = vmatprep.subr.mxu0 0.0
  %6130 = vmatpush1.msra.mxu0 0.0
  %6131 = vmatprep.subr.mxu0 0.0
  %6132 = vmatpush1.msra.mxu0 0.0
  %6133 = vmatprep.subr.mxu0 0.0
  %6134 = vmatpush1.msra.mxu0 0.0
  %6135 = vmatprep.subr.mxu0 0.0
  %6136 = vmatpush1.msra.mxu0 0.0
  %6137 = vmatprep.subr.mxu0 0.0
  %6138 = vmatpush1.msra.mxu0 0.0
  %6139 = vmatprep.subr.mxu0 0.0
  %6140 = vmatpush1.msra.mxu0 0.0
  %6141 = vmatprep.subr.mxu0 0.0
  %6142 = vmatpush1.msra.mxu0 0.0
  %6143 = vmatprep.subr.mxu0 %v6080
  %6144 = vmatpush1.msra.mxu0 %v6079
  %6145 = vmatprep.subr.mxu0 %v6077
  %6146 = vmatpush1.msra.mxu0 %v6076
  %6147 = vmatprep.subr.mxu0 %v6074
  %6148 = vmatpush1.msra.mxu0 %v6073
  %6149 = vmatprep.subr.mxu0 %v6071
  %6150 = vmatpush1.msra.mxu0 %v6070
  %6151 = vmatprep.subr.mxu0 0.0
  %6152 = vmatpush2.msra.mxu0 0.0
  %6153 = vmatprep.subr.mxu0 0.0
  %6154 = vmatpush2.msra.mxu0 0.0
  %6155 = vmatprep.subr.mxu0 0.0
  %6156 = vmatpush2.msra.mxu0 0.0
  %6157 = vmatprep.subr.mxu0 0.0
  %6158 = vmatpush2.msra.mxu0 0.0
  %6159 = vmatprep.subr.mxu0 0.0
  %6160 = vmatpush2.msra.mxu0 0.0
  %6161 = vmatprep.subr.mxu0 0.0
  %6162 = vmatpush2.msra.mxu0 0.0
  %6163 = vmatprep.subr.mxu0 0.0
  %6164 = vmatpush2.msra.mxu0 0.0
  %6165 = vmatprep.subr.mxu0 0.0
  %6166 = vmatpush2.msra.mxu0 0.0
  %6167 = vmatprep.subr.mxu0 0.0
  %6168 = vmatpush2.msra.mxu0 0.0
  %6169 = vmatprep.subr.mxu0 0.0
  %6170 = vmatpush2.msra.mxu0 0.0
  %6171 = vmatprep.subr.mxu0 0.0
  %6172 = vmatpush2.msra.mxu0 0.0
  %6173 = vmatprep.subr.mxu0 0.0
  %6174 = vmatpush2.msra.mxu0 0.0
  %6175 = vmatprep.subr.mxu0 0.0
  %6176 = vmatpush2.msra.mxu0 0.0
  %6177 = vmatprep.subr.mxu0 0.0
  %6178 = vmatpush2.msra.mxu0 0.0
  %6179 = vmatprep.subr.mxu0 0.0
  %6180 = vmatpush2.msra.mxu0 0.0
  %6181 = vmatprep.subr.mxu0 0.0
  %6182 = vmatpush2.msra.mxu0 0.0
  %6183 = vmatprep.mubr.f32.mxu0 0.0
  %6184 = vmatmul.mubr.f32.gmra.mxu0 %v6108
  %v6185 = vpop.f32.mrf.mxu0
  %v6186 = vadd.f32 %v6089, %v6185
  %v6187 = vpop.f32.mrf.mxu0
  %v6188 = vadd.f32 %v6089, %v6187
  %6189 = vmatprep.mubr.f32.mxu0 0.0
  %6190 = vmatmul.mubr.f32.gmra.mxu0 %v6111
  %v6191 = vpop.f32.mrf.mxu0
  %v6192 = vadd.f32 %v6094, %v6191
  %v6193 = vpop.f32.mrf.mxu0
  %v6194 = vadd.f32 %v6094, %v6193
  %6195 = vmatprep.mubr.f32.mxu0 0.0
  %6196 = vmatmul.mubr.f32.gmra.mxu0 %v6114
  %v6197 = vpop.f32.mrf.mxu0
  %v6198 = vadd.f32 %v6099, %v6197
  %v6199 = vpop.f32.mrf.mxu0
  %v6200 = vadd.f32 %v6099, %v6199
  %6201 = vmatprep.mubr.f32.mxu0 0.0
  %6202 = vmatmul.mubr.f32.gmra.mxu0 %v6117
  %v6203 = vpop.f32.mrf.mxu0
  %v6204 = vadd.f32 %v6104, %v6203
  %v6205 = vpop.f32.mrf.mxu0
  %v6206 = vadd.f32 %v6104, %v6205
  %6207 = vdwg.mxu0
  %6208 = vmatprep.subr.mxu0 0.0
  %6209 = vmatpush1.msra.mxu0 0.0
  %6210 = vmatprep.subr.mxu0 0.0
  %6211 = vmatpush1.msra.mxu0 0.0
  %6212 = vmatprep.subr.mxu0 0.0
  %6213 = vmatpush1.msra.mxu0 0.0
  %6214 = vmatprep.subr.mxu0 0.0
  %6215 = vmatpush1.msra.mxu0 0.0
  %6216 = vmatprep.subr.mxu0 0.0
  %6217 = vmatpush1.msra.mxu0 0.0
  %6218 = vmatprep.subr.mxu0 0.0
  %6219 = vmatpush1.msra.mxu0 0.0
  %6220 = vmatprep.subr.mxu0 0.0
  %6221 = vmatpush1.msra.mxu0 0.0
  %6222 = vmatprep.subr.mxu0 0.0
  %6223 = vmatpush1.msra.mxu0 0.0
  %6224 = vmatprep.subr.mxu0 0.0
  %6225 = vmatpush1.msra.mxu0 0.0
  %6226 = vmatprep.subr.mxu0 0.0
  %6227 = vmatpush1.msra.mxu0 0.0
  %6228 = vmatprep.subr.mxu0 0.0
  %6229 = vmatpush1.msra.mxu0 0.0
  %6230 = vmatprep.subr.mxu0 0.0
  %6231 = vmatpush1.msra.mxu0 0.0
  %6232 = vmatprep.subr.mxu0 0.0
  %6233 = vmatpush1.msra.mxu0 %v6081
  %6234 = vmatprep.subr.mxu0 0.0
  %6235 = vmatpush1.msra.mxu0 %v6078
  %6236 = vmatprep.subr.mxu0 0.0
  %6237 = vmatpush1.msra.mxu0 %v6075
  %6238 = vmatprep.subr.mxu0 0.0
  %6239 = vmatpush1.msra.mxu0 %v6072
  %6240 = vmatprep.subr.mxu0 0.0
  %6241 = vmatpush2.msra.mxu0 0.0
  %6242 = vmatprep.subr.mxu0 0.0
  %6243 = vmatpush2.msra.mxu0 0.0
  %6244 = vmatprep.subr.mxu0 0.0
  %6245 = vmatpush2.msra.mxu0 0.0
  %6246 = vmatprep.subr.mxu0 0.0
  %6247 = vmatpush2.msra.mxu0 0.0
  %6248 = vmatprep.subr.mxu0 0.0
  %6249 = vmatpush2.msra.mxu0 0.0
  %6250 = vmatprep.subr.mxu0 0.0
  %6251 = vmatpush2.msra.mxu0 0.0
  %6252 = vmatprep.subr.mxu0 0.0
  %6253 = vmatpush2.msra.mxu0 0.0
  %6254 = vmatprep.subr.mxu0 0.0
  %6255 = vmatpush2.msra.mxu0 0.0
  %6256 = vmatprep.subr.mxu0 0.0
  %6257 = vmatpush2.msra.mxu0 0.0
  %6258 = vmatprep.subr.mxu0 0.0
  %6259 = vmatpush2.msra.mxu0 0.0
  %6260 = vmatprep.subr.mxu0 0.0
  %6261 = vmatpush2.msra.mxu0 0.0
  %6262 = vmatprep.subr.mxu0 0.0
  %6263 = vmatpush2.msra.mxu0 0.0
  %6264 = vmatprep.subr.mxu0 0.0
  %6265 = vmatpush2.msra.mxu0 0.0
  %6266 = vmatprep.subr.mxu0 0.0
  %6267 = vmatpush2.msra.mxu0 0.0
  %6268 = vmatprep.subr.mxu0 0.0
  %6269 = vmatpush2.msra.mxu0 0.0
  %6270 = vmatprep.subr.mxu0 0.0
  %6271 = vmatpush2.msra.mxu0 0.0
  %6272 = vmatprep.mubr.f32.mxu0 0.0
  %6273 = vmatmul.mubr.f32.gmra.mxu0 %v6108
  %v6274 = vpop.f32.mrf.mxu0
  %v6275 = vadd.f32 %v6089, %v6274
  %v6276 = vpop.f32.mrf.mxu0
  %6277 = vmatprep.mubr.f32.mxu0 0.0
  %6278 = vmatmul.mubr.f32.gmra.mxu0 %v6111
  %v6279 = vpop.f32.mrf.mxu0
  %v6280 = vadd.f32 %v6094, %v6279
  %v6281 = vpop.f32.mrf.mxu0
  %6282 = vmatprep.mubr.f32.mxu0 0.0
  %6283 = vmatmul.mubr.f32.gmra.mxu0 %v6114
  %v6284 = vpop.f32.mrf.mxu0
  %v6285 = vadd.f32 %v6099, %v6284
  %v6286 = vpop.f32.mrf.mxu0
  %6287 = vmatprep.mubr.f32.mxu0 0.0
  %6288 = vmatmul.mubr.f32.gmra.mxu0 %v6117
  %v6289 = vpop.f32.mrf.mxu0
  %v6290 = vadd.f32 %v6104, %v6289
  %v6291 = vpop.f32.mrf.mxu0
  %6292 = vdwg.mxu0
  %vm6293 = vcmp.gt.f32.partialorder %v6186, 0.0
  %vm6294 = vcmp.gt.f32.partialorder %v6188, 0.0
  %vm6295 = vcmp.gt.f32.partialorder %v6275, 0.0
  %vm6296 = vcmp.gt.f32.partialorder %v6192, 0.0
  %vm6297 = vcmp.gt.f32.partialorder %v6194, 0.0
  %vm6298 = vcmp.gt.f32.partialorder %v6280, 0.0
  %vm6299 = vcmp.gt.f32.partialorder %v6198, 0.0
  %vm6300 = vcmp.gt.f32.partialorder %v6200, 0.0
  %vm6301 = vcmp.gt.f32.partialorder %v6285, 0.0
  %vm6302 = vcmp.gt.f32.partialorder %v6204, 0.0
  %vm6303 = vcmp.gt.f32.partialorder %v6206, 0.0
  %vm6304 = vcmp.gt.f32.partialorder %v6290, 0.0
  %v6305 = vmin.f32 %v6186, 0.0
  %v6306 = vmin.f32 %v6188, 0.0
  %v6307 = vmin.f32 %v6275, 0.0
  %v6308 = vmin.f32 %v6192, 0.0
  %v6309 = vmin.f32 %v6194, 0.0
  %v6310 = vmin.f32 %v6280, 0.0
  %v6311 = vmin.f32 %v6198, 0.0
  %v6312 = vmin.f32 %v6200, 0.0
  %v6313 = vmin.f32 %v6285, 0.0
  %v6314 = vmin.f32 %v6204, 0.0
  %v6315 = vmin.f32 %v6206, 0.0
  %v6316 = vmin.f32 %v6290, 0.0
  %v6317 = vmul.f32 %v6305, 1.442695
  %v6318 = vpow.pop %v6317
  %v6319 = vmul.f32 %v6306, 1.442695
  %v6320 = vpow.pop %v6319
  %v6321 = vmul.f32 %v6307, 1.442695
  %v6322 = vpow.pop %v6321
  %v6323 = vmul.f32 %v6308, 1.442695
  %v6324 = vpow.pop %v6323
  %v6325 = vmul.f32 %v6309, 1.442695
  %v6326 = vpow.pop %v6325
  %v6327 = vmul.f32 %v6310, 1.442695
  %v6328 = vpow.pop %v6327
  %v6329 = vmul.f32 %v6311, 1.442695
  %v6330 = vpow.pop %v6329
  %v6331 = vmul.f32 %v6312, 1.442695
  %v6332 = vpow.pop %v6331
  %v6333 = vmul.f32 %v6313, 1.442695
  %v6334 = vpow.pop %v6333
  %v6335 = vmul.f32 %v6314, 1.442695
  %v6336 = vpow.pop %v6335
  %v6337 = vmul.f32 %v6315, 1.442695
  %v6338 = vpow.pop %v6337
  %v6339 = vmul.f32 %v6316, 1.442695
  %v6340 = vpow.pop %v6339
  %v6341 = vsub.f32 %v6318, 1.0
  %v6342 = vsub.f32 %v6320, 1.0
  %v6343 = vsub.f32 %v6322, 1.0
  %v6344 = vsub.f32 %v6324, 1.0
  %v6345 = vsub.f32 %v6326, 1.0
  %v6346 = vsub.f32 %v6328, 1.0
  %v6347 = vsub.f32 %v6330, 1.0
  %v6348 = vsub.f32 %v6332, 1.0
  %v6349 = vsub.f32 %v6334, 1.0
  %v6350 = vsub.f32 %v6336, 1.0
  %v6351 = vsub.f32 %v6338, 1.0
  %v6352 = vsub.f32 %v6340, 1.0
  %v6353 = vsel %vm6293, %v6186, %v6341
  %v6354 = vsel %vm6294, %v6188, %v6342
  %v6355 = vsel %vm6295, %v6275, %v6343
  %v6356 = vsel %vm6296, %v6192, %v6344
  %v6357 = vsel %vm6297, %v6194, %v6345
  %v6358 = vsel %vm6298, %v6280, %v6346
  %v6359 = vsel %vm6299, %v6198, %v6347
  %v6360 = vsel %vm6300, %v6200, %v6348
  %v6361 = vsel %vm6301, %v6285, %v6349
  %v6362 = vsel %vm6302, %v6204, %v6350
  %v6363 = vsel %vm6303, %v6206, %v6351
  %v6364 = vsel %vm6304, %v6290, %v6352
  %v6365 = vpack.c.bf16 %v6356, %v6353
  %v6366 = vpack.c.bf16 %v6357, %v6354
  %v6367 = vpack.c.bf16 %v6358, %v6355
  %v6368 = vpack.c.bf16 %v6362, %v6359
  %v6369 = vpack.c.bf16 %v6363, %v6360
  %v6370 = vpack.c.bf16 %v6364, %v6361
  %v6371 = vld [vmem:[%s7] sm:$0xf]
  %v6372 = vld [vmem:[%s7 + $0x4] sm:$0xf]
  %v6373 = vld [vmem:[%s7 + $0x8] sm:$0xf]
  %v6374 = vld [vmem:[%s7 + $0xc] sm:$0xf]
  %v6375 = vld [vmem:[%s7 + $0x10] sm:$0xf]
  %v6376 = vld [vmem:[%s7 + $0x14] sm:$0xf]
  %v6377 = vld [vmem:[%s7 + $0x18] sm:$0xf]
  %v6378 = vld [vmem:[%s7 + $0x1c] sm:$0xf]
  %v6379 = vld [vmem:[%s7 + $0x20] sm:$0xf]
  %v6380 = vld [vmem:[%s7 + $0x24] sm:$0xf]
  %v6381 = vld [vmem:[%s7 + $0x28] sm:$0xf]
  %v6382 = vld [vmem:[%s7 + $0x2c] sm:$0xf]
  %v6383 = vld [vmem:[%s7 + $0x30] sm:$0xf]
  %v6384 = vld [vmem:[%s7 + $0x34] sm:$0xf]
  %v6385 = vld [vmem:[%s7 + $0x38] sm:$0xf]
  %v6386 = vld [vmem:[%s7 + $0x3c] sm:$0xf]
  %v6387 = vld [vmem:[%s7 + $0x40] sm:$0xf]
  %v6388 = vld [vmem:[%s7 + $0x44] sm:$0xf]
  %v6389 = vld [vmem:[%s7 + $0x48] sm:$0xf]
  %v6390 = vld [vmem:[%s7 + $0x4c] sm:$0xf]
  %v6391 = vld [vmem:[%s7 + $0x50] sm:$0xf]
  %v6392 = vld [vmem:[%s7 + $0x54] sm:$0xf]
  %v6393 = vld [vmem:[%s7 + $0x58] sm:$0xf]
  %v6394 = vld [vmem:[%s7 + $0x5c] sm:$0xf]
  %v6395 = vld [vmem:[%s7 + $0x60] sm:$0xf]
  %v6396 = vld [vmem:[%s7 + $0x64] sm:$0xf]
  %v6397 = vld [vmem:[%s7 + $0x68] sm:$0xf]
  %v6398 = vld [vmem:[%s7 + $0x6c] sm:$0xf]
  %v6399 = vld [vmem:[%s7 + $0x70] sm:$0xf]
  %v6400 = vld [vmem:[%s7 + $0x74] sm:$0xf]
  %v6401 = vld [vmem:[%s7 + $0x78] sm:$0xf]
  %v6402 = vld [vmem:[%s7 + $0x7c] sm:$0xf]
  %v6403 = vld [vmem:[%s7 + $0x80] sm:$0xf]
  %v6437 = vunpack.c.l.b16 %v6371
  %v6438 = vunpack.c.l.b16 %v6372
  %v6439 = vunpack.c.l.b16 %v6373
  %v6440 = vunpack.c.l.b16 %v6374
  %v6441 = vunpack.c.l.b16 %v6375
  %v6442 = vunpack.c.l.b16 %v6376
  %v6443 = vunpack.c.l.b16 %v6377
  %v6444 = vunpack.c.l.b16 %v6378
  %v6445 = vunpack.c.l.b16 %v6379
  %v6446 = vunpack.c.l.b16 %v6380
  %v6447 = vunpack.c.l.b16 %v6381
  %v6448 = vunpack.c.l.b16 %v6382
  %v6449 = vunpack.c.l.b16 %v6383
  %v6450 = vunpack.c.l.b16 %v6384
  %v6451 = vunpack.c.l.b16 %v6385
  %v6452 = vunpack.c.l.b16 %v6386
  %v6453 = vunpack.c.l.b16 %v6387
  %v6454 = vunpack.c.l.b16 %v6388
  %v6455 = vunpack.c.l.b16 %v6389
  %v6456 = vunpack.c.l.b16 %v6390
  %v6457 = vunpack.c.l.b16 %v6391
  %v6458 = vunpack.c.l.b16 %v6392
  %v6459 = vunpack.c.l.b16 %v6393
  %v6460 = vunpack.c.l.b16 %v6394
  %v6461 = vunpack.c.l.b16 %v6395
  %v6462 = vunpack.c.l.b16 %v6396
  %v6463 = vunpack.c.l.b16 %v6397
  %v6464 = vunpack.c.l.b16 %v6398
  %v6465 = vunpack.c.l.b16 %v6399
  %v6466 = vunpack.c.l.b16 %v6400
  %v6467 = vunpack.c.l.b16 %v6401
  %v6468 = vunpack.c.l.b16 %v6402
  %v6469 = vunpack.c.l.b16 %v6403
  %v6470 = vpack.c.b16 %v6438, %v6437
  %v6471 = vpack.c.b16 %v6440, %v6439
  %v6472 = vpack.c.b16 %v6442, %v6441
  %v6473 = vpack.c.b16 %v6444, %v6443
  %v6474 = vpack.c.b16 %v6446, %v6445
  %v6475 = vpack.c.b16 %v6448, %v6447
  %v6476 = vpack.c.b16 %v6450, %v6449
  %v6477 = vpack.c.b16 %v6452, %v6451
  %v6478 = vpack.c.b16 %v6454, %v6453
  %v6479 = vpack.c.b16 %v6456, %v6455
  %v6480 = vpack.c.b16 %v6458, %v6457
  %v6481 = vpack.c.b16 %v6460, %v6459
  %v6482 = vpack.c.b16 %v6462, %v6461
  %v6483 = vpack.c.b16 %v6464, %v6463
  %v6484 = vpack.c.b16 %v6466, %v6465
  %v6485 = vpack.c.b16 %v6468, %v6467
  %v6486 = vpack.c.b16 %v6469, %v6469
  %vm6503 = vcmask 64512
  %v6505 = vsel %vm6503, %v6367, 0
  %v6508 = vsel %vm6503, %v6370, 0
  %vm6510 = vcmask 1043456
  %v6512 = vsel %vm6510, %v6486, 0
  %6514 = vmatprep.subr.bf16.mxu0 0
  %6515 = vmatpush1.bf16.msra.mxu0 %v6477
  %6516 = vmatprep.subr.bf16.mxu0 0
  %6517 = vmatpush1.bf16.msra.mxu0 %v6476
  %6518 = vmatprep.subr.bf16.mxu0 0
  %6519 = vmatpush1.bf16.msra.mxu0 %v6475
  %6520 = vmatprep.subr.bf16.mxu0 0
  %6521 = vmatpush1.bf16.msra.mxu0 %v6474
  %6522 = vmatprep.subr.bf16.mxu0 0
  %6523 = vmatpush1.bf16.msra.mxu0 %v6473
  %6524 = vmatprep.subr.bf16.mxu0 0
  %6525 = vmatpush1.bf16.msra.mxu0 %v6472
  %6526 = vmatprep.subr.bf16.mxu0 0
  %6527 = vmatpush1.bf16.msra.mxu0 %v6471
  %6528 = vmatprep.subr.bf16.mxu0 0
  %6529 = vmatpush1.bf16.msra.mxu0 %v6470
  %6530 = vmatprep.subr.bf16.mxu0 0
  %6531 = vmatpush2.bf16.msra.mxu0 %v6485
  %6532 = vmatprep.subr.bf16.mxu0 0
  %6533 = vmatpush2.bf16.msra.mxu0 %v6484
  %6534 = vmatprep.subr.bf16.mxu0 0
  %6535 = vmatpush2.bf16.msra.mxu0 %v6483
  %6536 = vmatprep.subr.bf16.mxu0 0
  %6537 = vmatpush2.bf16.msra.mxu0 %v6482
  %6538 = vmatprep.subr.bf16.mxu0 0
  %6539 = vmatpush2.bf16.msra.mxu0 %v6481
  %6540 = vmatprep.subr.bf16.mxu0 0
  %6541 = vmatpush2.bf16.msra.mxu0 %v6480
  %6542 = vmatprep.subr.bf16.mxu0 0
  %6543 = vmatpush2.bf16.msra.mxu0 %v6479
  %6544 = vmatprep.subr.bf16.mxu0 0
  %6545 = vmatpush2.bf16.msra.mxu0 %v6478
  %6546 = vmatprep.mubr.bf16.mxu0 %v6366
  %6547 = vmatmul.mubr.bf16.gmra.mxu0 %v6365
  %v6548 = vpop.f32.mrf.mxu0
  %v6549 = vadd.f32 0.0, %v6548
  %v6550 = vpop.f32.mrf.mxu0
  %v6551 = vpop.f32.mrf.mxu0
  %v6552 = vadd.f32 0.0, %v6551
  %v6553 = vpop.f32.mrf.mxu0
  %6554 = vmatprep.mubr.bf16.mxu0 %v6369
  %6555 = vmatmul.mubr.bf16.gmra.mxu0 %v6368
  %v6556 = vpop.f32.mrf.mxu0
  %v6557 = vadd.f32 0.0, %v6556
  %v6558 = vpop.f32.mrf.mxu0
  %v6559 = vpop.f32.mrf.mxu0
  %v6560 = vadd.f32 0.0, %v6559
  %v6561 = vpop.f32.mrf.mxu0
  %6562 = vdwg.mxu0
  %6563 = vmatprep.subr.bf16.mxu0 0
  %6564 = vmatpush1.bf16.msra.mxu0 0
  %6565 = vmatprep.subr.bf16.mxu0 0
  %6566 = vmatpush1.bf16.msra.mxu0 0
  %6567 = vmatprep.subr.bf16.mxu0 0
  %6568 = vmatpush1.bf16.msra.mxu0 0
  %6569 = vmatprep.subr.bf16.mxu0 0
  %6570 = vmatpush1.bf16.msra.mxu0 0
  %6571 = vmatprep.subr.bf16.mxu0 0
  %6572 = vmatpush1.bf16.msra.mxu0 0
  %6573 = vmatprep.subr.bf16.mxu0 0
  %6574 = vmatpush1.bf16.msra.mxu0 0
  %6575 = vmatprep.subr.bf16.mxu0 0
  %6576 = vmatpush1.bf16.msra.mxu0 0
  %6577 = vmatprep.subr.bf16.mxu0 0
  %6578 = vmatpush1.bf16.msra.mxu0 %v6512
  %6579 = vmatprep.subr.bf16.mxu0 0
  %6580 = vmatpush2.bf16.msra.mxu0 0
  %6581 = vmatprep.subr.bf16.mxu0 0
  %6582 = vmatpush2.bf16.msra.mxu0 0
  %6583 = vmatprep.subr.bf16.mxu0 0
  %6584 = vmatpush2.bf16.msra.mxu0 0
  %6585 = vmatprep.subr.bf16.mxu0 0
  %6586 = vmatpush2.bf16.msra.mxu0 0
  %6587 = vmatprep.subr.bf16.mxu0 0
  %6588 = vmatpush2.bf16.msra.mxu0 0
  %6589 = vmatprep.subr.bf16.mxu0 0
  %6590 = vmatpush2.bf16.msra.mxu0 0
  %6591 = vmatprep.subr.bf16.mxu0 0
  %6592 = vmatpush2.bf16.msra.mxu0 0
  %6593 = vmatprep.subr.bf16.mxu0 0
  %6594 = vmatpush2.bf16.msra.mxu0 0
  %6595 = vmatprep.mubr.bf16.mxu0 0
  %6596 = vmatmul.mubr.bf16.gmra.mxu0 %v6505
  %v6597 = vpop.f32.mrf.mxu0
  %v6598 = vadd.f32 %v6549, %v6597
  %v6599 = vpop.f32.mrf.mxu0
  %v6600 = vpop.f32.mrf.mxu0
  %v6601 = vadd.f32 %v6552, %v6600
  %v6602 = vpop.f32.mrf.mxu0
  %6603 = vmatprep.mubr.bf16.mxu0 0
  %6604 = vmatmul.mubr.bf16.gmra.mxu0 %v6508
  %v6605 = vpop.f32.mrf.mxu0
  %v6606 = vadd.f32 %v6557, %v6605
  %v6607 = vpop.f32.mrf.mxu0
  %v6608 = vpop.f32.mrf.mxu0
  %v6609 = vadd.f32 %v6560, %v6608
  %v6610 = vpop.f32.mrf.mxu0
  %6611 = vdwg.mxu0
  %vm6612 = vcmask 269312
  %6613 = vst.msk [vmem:[%s8] sm:$0xff] %vm6612, %v6598
  %6614 = vst.msk [vmem:[%s8 + $0x8] sm:$0xff] %vm6612, %v6601
  %6615 = vst.msk [vmem:[%s8 + $0x10] sm:$0xff] %vm6612, %v6606
  %6616 = vst.msk [vmem:[%s8 + $0x18] sm:$0xff] %vm6612, %v6609
  %s6617 = scalar_lea.vmem %s0, 2304
  %v6618 = vld [vmem:[%s6617] sm:$0xff]
  %v6619 = vld [vmem:[%s6617 + $0x8] sm:$0xff]
  %v6620 = vld [vmem:[%s6617 + $0x10] sm:$0xff]
  %v6621 = vld [vmem:[%s6617 + $0x18] sm:$0xff]
  %v6622 = vld [vmem:[%s6617 + $0x20] sm:$0xf]
  %v6623 = vld [vmem:[%s6617 + $0x24] sm:$0xff]
  %v6624 = vld [vmem:[%s6617 + $0x2c] sm:$0xff]
  %v6625 = vld [vmem:[%s6617 + $0x34] sm:$0xff]
  %v6626 = vld [vmem:[%s6617 + $0x3c] sm:$0xff]
  %v6627 = vld [vmem:[%s6617 + $0x44] sm:$0xf]
  %v6628 = vld [vmem:[%s6617 + $0x48] sm:$0xff]
  %v6629 = vld [vmem:[%s6617 + $0x50] sm:$0xff]
  %v6630 = vld [vmem:[%s6617 + $0x58] sm:$0xff]
  %v6631 = vld [vmem:[%s6617 + $0x60] sm:$0xff]
  %v6632 = vld [vmem:[%s6617 + $0x68] sm:$0xf]
  %v6633 = vld [vmem:[%s6617 + $0x6c] sm:$0xff]
  %v6634 = vld [vmem:[%s6617 + $0x74] sm:$0xff]
  %v6635 = vld [vmem:[%s6617 + $0x7c] sm:$0xff]
  %v6636 = vld [vmem:[%s6617 + $0x84] sm:$0xff]
  %v6637 = vld [vmem:[%s6617 + $0x8c] sm:$0xf]
  %v6638 = vld [vmem:[%s6617 + $0x90] sm:$0xff]
  %v6639 = vld [vmem:[%s6617 + $0x98] sm:$0xff]
  %v6640 = vld [vmem:[%s6617 + $0xa0] sm:$0xff]
  %v6641 = vld [vmem:[%s6617 + $0xa8] sm:$0xff]
  %v6642 = vld [vmem:[%s6617 + $0xb0] sm:$0xf]
  %v6643 = vld [vmem:[%s6617 + $0xb4] sm:$0xff]
  %v6644 = vld [vmem:[%s6617 + $0xbc] sm:$0xff]
  %v6645 = vld [vmem:[%s6617 + $0xc4] sm:$0xff]
  %v6646 = vld [vmem:[%s6617 + $0xcc] sm:$0xff]
  %v6647 = vld [vmem:[%s6617 + $0xd4] sm:$0xf]
  %v6648 = vld [vmem:[%s6617 + $0xd8] sm:$0xff]
  %v6649 = vld [vmem:[%s6617 + $0xe0] sm:$0xff]
  %v6650 = vld [vmem:[%s6617 + $0xe8] sm:$0xff]
  %v6651 = vld [vmem:[%s6617 + $0xf0] sm:$0xff]
  %v6652 = vld [vmem:[%s6617 + $0xf8] sm:$0xf]
  %v6653 = vld [vmem:[%s6617 + $0xfc] sm:$0xff]
  %v6654 = vld [vmem:[%s6617 + $0x104] sm:$0xff]
  %v6655 = vld [vmem:[%s6617 + $0x10c] sm:$0xff]
  %v6656 = vld [vmem:[%s6617 + $0x114] sm:$0xff]
  %v6657 = vld [vmem:[%s6617 + $0x11c] sm:$0xf]
  %v6658 = vld [vmem:[%s6617 + $0x120] sm:$0xff]
  %v6659 = vld [vmem:[%s6617 + $0x128] sm:$0xff]
  %v6660 = vld [vmem:[%s6617 + $0x130] sm:$0xff]
  %v6661 = vld [vmem:[%s6617 + $0x138] sm:$0xff]
  %v6662 = vld [vmem:[%s6617 + $0x140] sm:$0xf]
  %v6663 = vld [vmem:[%s6617 + $0x144] sm:$0xff]
  %v6664 = vld [vmem:[%s6617 + $0x14c] sm:$0xff]
  %v6665 = vld [vmem:[%s6617 + $0x154] sm:$0xff]
  %v6666 = vld [vmem:[%s6617 + $0x15c] sm:$0xff]
  %v6667 = vld [vmem:[%s6617 + $0x164] sm:$0xf]
  %v6668 = vld [vmem:[%s6617 + $0x168] sm:$0xff]
  %v6669 = vld [vmem:[%s6617 + $0x170] sm:$0xff]
  %v6670 = vld [vmem:[%s6617 + $0x178] sm:$0xff]
  %v6671 = vld [vmem:[%s6617 + $0x180] sm:$0xff]
  %v6672 = vld [vmem:[%s6617 + $0x188] sm:$0xf]
  %v6673 = vld [vmem:[%s6617 + $0x18c] sm:$0xff]
  %v6674 = vld [vmem:[%s6617 + $0x194] sm:$0xff]
  %v6675 = vld [vmem:[%s6617 + $0x19c] sm:$0xff]
  %v6676 = vld [vmem:[%s6617 + $0x1a4] sm:$0xff]
  %v6677 = vld [vmem:[%s6617 + $0x1ac] sm:$0xf]
  %v6678 = vld [vmem:[%s6617 + $0x1b0] sm:$0xff]
  %v6679 = vld [vmem:[%s6617 + $0x1b8] sm:$0xff]
  %v6680 = vld [vmem:[%s6617 + $0x1c0] sm:$0xff]
  %v6681 = vld [vmem:[%s6617 + $0x1c8] sm:$0xff]
  %v6682 = vld [vmem:[%s6617 + $0x1d0] sm:$0xf]
  %v6683 = vld [vmem:[%s6617 + $0x1d4] sm:$0xff]
  %v6684 = vld [vmem:[%s6617 + $0x1dc] sm:$0xff]
  %v6685 = vld [vmem:[%s6617 + $0x1e4] sm:$0xff]
  %v6686 = vld [vmem:[%s6617 + $0x1ec] sm:$0xff]
  %v6687 = vld [vmem:[%s6617 + $0x1f4] sm:$0xf]
  %v6688 = vld [vmem:[%s6617 + $0x1f8] sm:$0xff]
  %v6689 = vld [vmem:[%s6617 + $0x200] sm:$0xff]
  %v6690 = vld [vmem:[%s6617 + $0x208] sm:$0xff]
  %v6691 = vld [vmem:[%s6617 + $0x210] sm:$0xff]
  %v6692 = vld [vmem:[%s6617 + $0x218] sm:$0xf]
  %v6693 = vld [vmem:[%s6617 + $0x21c] sm:$0xff]
  %v6694 = vld [vmem:[%s6617 + $0x224] sm:$0xff]
  %v6695 = vld [vmem:[%s6617 + $0x22c] sm:$0xff]
  %v6696 = vld [vmem:[%s6617 + $0x234] sm:$0xff]
  %v6697 = vld [vmem:[%s6617 + $0x23c] sm:$0xf]
  %v6698 = vld [vmem:[%s6617 + $0x240] sm:$0xff]
  %v6699 = vld [vmem:[%s6617 + $0x248] sm:$0xff]
  %v6700 = vld [vmem:[%s6617 + $0x250] sm:$0xff]
  %v6701 = vld [vmem:[%s6617 + $0x258] sm:$0xff]
  %v6702 = vld [vmem:[%s6617 + $0x260] sm:$0xf]
  %v6703 = vld [vmem:[%s6617 + $0x264] sm:$0xff]
  %v6704 = vld [vmem:[%s6617 + $0x26c] sm:$0xff]
  %v6705 = vld [vmem:[%s6617 + $0x274] sm:$0xff]
  %v6706 = vld [vmem:[%s6617 + $0x27c] sm:$0xff]
  %v6707 = vld [vmem:[%s6617 + $0x284] sm:$0xf]
  %v6708 = vld [vmem:[%s6617 + $0x288] sm:$0xff]
  %v6709 = vld [vmem:[%s6617 + $0x290] sm:$0xff]
  %v6710 = vld [vmem:[%s6617 + $0x298] sm:$0xff]
  %v6711 = vld [vmem:[%s6617 + $0x2a0] sm:$0xff]
  %v6712 = vld [vmem:[%s6617 + $0x2a8] sm:$0xf]
  %v6713 = vld [vmem:[%s6617 + $0x2ac] sm:$0xff]
  %v6714 = vld [vmem:[%s6617 + $0x2b4] sm:$0xff]
  %v6715 = vld [vmem:[%s6617 + $0x2bc] sm:$0xff]
  %v6716 = vld [vmem:[%s6617 + $0x2c4] sm:$0xff]
  %v6717 = vld [vmem:[%s6617 + $0x2cc] sm:$0xf]
  %v6718 = vld [vmem:[%s6617 + $0x2d0] sm:$0xff]
  %v6719 = vld [vmem:[%s6617 + $0x2d8] sm:$0xff]
  %v6720 = vld [vmem:[%s6617 + $0x2e0] sm:$0xff]
  %v6721 = vld [vmem:[%s6617 + $0x2e8] sm:$0xff]
  %v6722 = vld [vmem:[%s6617 + $0x2f0] sm:$0xf]
  %v6723 = vld [vmem:[%s6617 + $0x2f4] sm:$0xff]
  %v6724 = vld [vmem:[%s6617 + $0x2fc] sm:$0xff]
  %v6725 = vld [vmem:[%s6617 + $0x304] sm:$0xff]
  %v6726 = vld [vmem:[%s6617 + $0x30c] sm:$0xff]
  %v6727 = vld [vmem:[%s6617 + $0x314] sm:$0xf]
  %v6728 = vld [vmem:[%s6617 + $0x318] sm:$0xff]
  %v6729 = vld [vmem:[%s6617 + $0x320] sm:$0xff]
  %v6730 = vld [vmem:[%s6617 + $0x328] sm:$0xff]
  %v6731 = vld [vmem:[%s6617 + $0x330] sm:$0xff]
  %v6732 = vld [vmem:[%s6617 + $0x338] sm:$0xf]
  %v6733 = vld [vmem:[%s6617 + $0x33c] sm:$0xff]
  %v6734 = vld [vmem:[%s6617 + $0x344] sm:$0xff]
  %v6735 = vld [vmem:[%s6617 + $0x34c] sm:$0xff]
  %v6736 = vld [vmem:[%s6617 + $0x354] sm:$0xff]
  %v6737 = vld [vmem:[%s6617 + $0x35c] sm:$0xf]
  %v6738 = vld [vmem:[%s6617 + $0x360] sm:$0xff]
  %v6739 = vld [vmem:[%s6617 + $0x368] sm:$0xff]
  %v6740 = vld [vmem:[%s6617 + $0x370] sm:$0xff]
  %v6741 = vld [vmem:[%s6617 + $0x378] sm:$0xff]
  %v6742 = vld [vmem:[%s6617 + $0x380] sm:$0xf]
  %v6743 = vld [vmem:[%s6617 + $0x384] sm:$0xff]
  %v6744 = vld [vmem:[%s6617 + $0x38c] sm:$0xff]
  %v6745 = vld [vmem:[%s6617 + $0x394] sm:$0xff]
  %v6746 = vld [vmem:[%s6617 + $0x39c] sm:$0xff]
  %v6747 = vld [vmem:[%s6617 + $0x3a4] sm:$0xf]
  %v6748 = vld [vmem:[%s6617 + $0x3a8] sm:$0xff]
  %v6749 = vld [vmem:[%s6617 + $0x3b0] sm:$0xff]
  %v6750 = vld [vmem:[%s6617 + $0x3b8] sm:$0xff]
  %v6751 = vld [vmem:[%s6617 + $0x3c0] sm:$0xff]
  %v6752 = vld [vmem:[%s6617 + $0x3c8] sm:$0xf]
  %v6753 = vld [vmem:[%s6617 + $0x3cc] sm:$0xff]
  %v6754 = vld [vmem:[%s6617 + $0x3d4] sm:$0xff]
  %v6755 = vld [vmem:[%s6617 + $0x3dc] sm:$0xff]
  %v6756 = vld [vmem:[%s6617 + $0x3e4] sm:$0xff]
  %v6757 = vld [vmem:[%s6617 + $0x3ec] sm:$0xf]
  %v6758 = vld [vmem:[%s6617 + $0x3f0] sm:$0xff]
  %v6759 = vld [vmem:[%s6617 + $0x3f8] sm:$0xff]
  %v6760 = vld [vmem:[%s6617 + $0x400] sm:$0xff]
  %v6761 = vld [vmem:[%s6617 + $0x408] sm:$0xff]
  %v6762 = vld [vmem:[%s6617 + $0x410] sm:$0xf]
  %v6763 = vld [vmem:[%s6617 + $0x414] sm:$0xff]
  %v6764 = vld [vmem:[%s6617 + $0x41c] sm:$0xff]
  %v6765 = vld [vmem:[%s6617 + $0x424] sm:$0xff]
  %v6766 = vld [vmem:[%s6617 + $0x42c] sm:$0xff]
  %v6767 = vld [vmem:[%s6617 + $0x434] sm:$0xf]
  %v6768 = vld [vmem:[%s6617 + $0x438] sm:$0xff]
  %v6769 = vld [vmem:[%s6617 + $0x440] sm:$0xff]
  %v6770 = vld [vmem:[%s6617 + $0x448] sm:$0xff]
  %v6771 = vld [vmem:[%s6617 + $0x450] sm:$0xff]
  %v6772 = vld [vmem:[%s6617 + $0x458] sm:$0xf]
  %v6773 = vld [vmem:[%s6617 + $0x45c] sm:$0xff]
  %v6774 = vld [vmem:[%s6617 + $0x464] sm:$0xff]
  %v6775 = vld [vmem:[%s6617 + $0x46c] sm:$0xff]
  %v6776 = vld [vmem:[%s6617 + $0x474] sm:$0xff]
  %v6777 = vld [vmem:[%s6617 + $0x47c] sm:$0xf]
  %v6778 = vld [vmem:[%s6617 + $0x480] sm:$0xff]
  %v6779 = vld [vmem:[%s6617 + $0x488] sm:$0xff]
  %v6780 = vld [vmem:[%s6617 + $0x490] sm:$0xff]
  %v6781 = vld [vmem:[%s6617 + $0x498] sm:$0xff]
  %v6782 = vld [vmem:[%s6617 + $0x4a0] sm:$0xf]
  %v6783 = vld [vmem:[%s6617 + $0x4a4] sm:$0xff]
  %v6784 = vld [vmem:[%s6617 + $0x4ac] sm:$0xff]
  %v6785 = vld [vmem:[%s6617 + $0x4b4] sm:$0xff]
  %v6786 = vld [vmem:[%s6617 + $0x4bc] sm:$0xff]
  %v6787 = vld [vmem:[%s6617 + $0x4c4] sm:$0xf]
  %v6788 = vld [vmem:[%s6617 + $0x4c8] sm:$0xff]
  %v6789 = vld [vmem:[%s6617 + $0x4d0] sm:$0xff]
  %v6790 = vld [vmem:[%s6617 + $0x4d8] sm:$0xff]
  %v6791 = vld [vmem:[%s6617 + $0x4e0] sm:$0xff]
  %v6792 = vld [vmem:[%s6617 + $0x4e8] sm:$0xf]
  %v6793 = vld [vmem:[%s6617 + $0x4ec] sm:$0xff]
  %v6794 = vld [vmem:[%s6617 + $0x4f4] sm:$0xff]
  %v6795 = vld [vmem:[%s6617 + $0x4fc] sm:$0xff]
  %v6796 = vld [vmem:[%s6617 + $0x504] sm:$0xff]
  %v6797 = vld [vmem:[%s6617 + $0x50c] sm:$0xf]
  %v6798 = vld [vmem:[%s6617 + $0x510] sm:$0xff]
  %v6799 = vld [vmem:[%s6617 + $0x518] sm:$0xff]
  %v6800 = vld [vmem:[%s6617 + $0x520] sm:$0xff]
  %v6801 = vld [vmem:[%s6617 + $0x528] sm:$0xff]
  %v6802 = vld [vmem:[%s6617 + $0x530] sm:$0xf]
  %v6803 = vld [vmem:[%s6617 + $0x534] sm:$0xff]
  %v6804 = vld [vmem:[%s6617 + $0x53c] sm:$0xff]
  %v6805 = vld [vmem:[%s6617 + $0x544] sm:$0xff]
  %v6806 = vld [vmem:[%s6617 + $0x54c] sm:$0xff]
  %v6807 = vld [vmem:[%s6617 + $0x554] sm:$0xf]
  %v6808 = vld [vmem:[%s6617 + $0x558] sm:$0xff]
  %v6809 = vld [vmem:[%s6617 + $0x560] sm:$0xff]
  %v6810 = vld [vmem:[%s6617 + $0x568] sm:$0xff]
  %v6811 = vld [vmem:[%s6617 + $0x570] sm:$0xff]
  %v6812 = vld [vmem:[%s6617 + $0x578] sm:$0xf]
  %v6813 = vld [vmem:[%s6617 + $0x57c] sm:$0xff]
  %v6814 = vld [vmem:[%s6617 + $0x584] sm:$0xff]
  %v6815 = vld [vmem:[%s6617 + $0x58c] sm:$0xff]
  %v6816 = vld [vmem:[%s6617 + $0x594] sm:$0xff]
  %v6817 = vld [vmem:[%s6617 + $0x59c] sm:$0xf]
  %v6818 = vld [vmem:[%s6617 + $0x5a0] sm:$0xff]
  %v6819 = vld [vmem:[%s6617 + $0x5a8] sm:$0xff]
  %v6820 = vld [vmem:[%s6617 + $0x5b0] sm:$0xff]
  %v6821 = vld [vmem:[%s6617 + $0x5b8] sm:$0xff]
  %v6822 = vld [vmem:[%s6617 + $0x5c0] sm:$0xf]
  %v6823 = vld [vmem:[%s6617 + $0x5c4] sm:$0xff]
  %v6824 = vld [vmem:[%s6617 + $0x5cc] sm:$0xff]
  %v6825 = vld [vmem:[%s6617 + $0x5d4] sm:$0xff]
  %v6826 = vld [vmem:[%s6617 + $0x5dc] sm:$0xff]
  %v6827 = vld [vmem:[%s6617 + $0x5e4] sm:$0xf]
  %v6828 = vld [vmem:[%s6617 + $0x5e8] sm:$0xff]
  %v6829 = vld [vmem:[%s6617 + $0x5f0] sm:$0xff]
  %v6830 = vld [vmem:[%s6617 + $0x5f8] sm:$0xff]
  %v6831 = vld [vmem:[%s6617 + $0x600] sm:$0xff]
  %v6832 = vld [vmem:[%s6617 + $0x608] sm:$0xf]
  %v6833 = vld [vmem:[%s6617 + $0x60c] sm:$0xff]
  %v6834 = vld [vmem:[%s6617 + $0x614] sm:$0xff]
  %v6835 = vld [vmem:[%s6617 + $0x61c] sm:$0xff]
  %v6836 = vld [vmem:[%s6617 + $0x624] sm:$0xff]
  %v6837 = vld [vmem:[%s6617 + $0x62c] sm:$0xf]
  %v6838 = vld [vmem:[%s6617 + $0x630] sm:$0xff]
  %v6839 = vld [vmem:[%s6617 + $0x638] sm:$0xff]
  %v6840 = vld [vmem:[%s6617 + $0x640] sm:$0xff]
  %v6841 = vld [vmem:[%s6617 + $0x648] sm:$0xff]
  %v6842 = vld [vmem:[%s6617 + $0x650] sm:$0xf]
  %v6843 = vld [vmem:[%s6617 + $0x654] sm:$0xff]
  %v6844 = vld [vmem:[%s6617 + $0x65c] sm:$0xff]
  %v6845 = vld [vmem:[%s6617 + $0x664] sm:$0xff]
  %v6846 = vld [vmem:[%s6617 + $0x66c] sm:$0xff]
  %v6847 = vld [vmem:[%s6617 + $0x674] sm:$0xf]
  %v6848 = vld [vmem:[%s6617 + $0x678] sm:$0xff]
  %v6849 = vld [vmem:[%s6617 + $0x680] sm:$0xff]
  %v6850 = vld [vmem:[%s6617 + $0x688] sm:$0xff]
  %v6851 = vld [vmem:[%s6617 + $0x690] sm:$0xff]
  %v6852 = vld [vmem:[%s6617 + $0x698] sm:$0xf]
  %v6853 = vld [vmem:[%s6617 + $0x69c] sm:$0xff]
  %v6854 = vld [vmem:[%s6617 + $0x6a4] sm:$0xff]
  %v6855 = vld [vmem:[%s6617 + $0x6ac] sm:$0xff]
  %v6856 = vld [vmem:[%s6617 + $0x6b4] sm:$0xff]
  %v6857 = vld [vmem:[%s6617 + $0x6bc] sm:$0xf]
  %v6858 = vld [vmem:[%s6617 + $0x6c0] sm:$0xff]
  %v6859 = vld [vmem:[%s6617 + $0x6c8] sm:$0xff]
  %v6860 = vld [vmem:[%s6617 + $0x6d0] sm:$0xff]
  %v6861 = vld [vmem:[%s6617 + $0x6d8] sm:$0xff]
  %v6862 = vld [vmem:[%s6617 + $0x6e0] sm:$0xf]
  %v6863 = vld [vmem:[%s6617 + $0x6e4] sm:$0xff]
  %v6864 = vld [vmem:[%s6617 + $0x6ec] sm:$0xff]
  %v6865 = vld [vmem:[%s6617 + $0x6f4] sm:$0xff]
  %v6866 = vld [vmem:[%s6617 + $0x6fc] sm:$0xff]
  %v6867 = vld [vmem:[%s6617 + $0x704] sm:$0xf]
  %v6868 = vld [vmem:[%s6617 + $0x708] sm:$0xff]
  %v6869 = vld [vmem:[%s6617 + $0x710] sm:$0xff]
  %v6870 = vld [vmem:[%s6617 + $0x718] sm:$0xff]
  %v6871 = vld [vmem:[%s6617 + $0x720] sm:$0xff]
  %v6872 = vld [vmem:[%s6617 + $0x728] sm:$0xf]
  %v6873 = vld [vmem:[%s6617 + $0x72c] sm:$0xff]
  %v6874 = vld [vmem:[%s6617 + $0x734] sm:$0xff]
  %v6875 = vld [vmem:[%s6617 + $0x73c] sm:$0xff]
  %v6876 = vld [vmem:[%s6617 + $0x744] sm:$0xff]
  %v6877 = vld [vmem:[%s6617 + $0x74c] sm:$0xf]
  %v6878 = vld [vmem:[%s6617 + $0x750] sm:$0xff]
  %v6879 = vld [vmem:[%s6617 + $0x758] sm:$0xff]
  %v6880 = vld [vmem:[%s6617 + $0x760] sm:$0xff]
  %v6881 = vld [vmem:[%s6617 + $0x768] sm:$0xff]
  %v6882 = vld [vmem:[%s6617 + $0x770] sm:$0xf]
  %v6883 = vld [vmem:[%s6617 + $0x774] sm:$0xff]
  %v6884 = vld [vmem:[%s6617 + $0x77c] sm:$0xff]
  %v6885 = vld [vmem:[%s6617 + $0x784] sm:$0xff]
  %v6886 = vld [vmem:[%s6617 + $0x78c] sm:$0xff]
  %v6887 = vld [vmem:[%s6617 + $0x794] sm:$0xf]
  %v6888 = vld [vmem:[%s6617 + $0x798] sm:$0xff]
  %v6889 = vld [vmem:[%s6617 + $0x7a0] sm:$0xff]
  %v6890 = vld [vmem:[%s6617 + $0x7a8] sm:$0xff]
  %v6891 = vld [vmem:[%s6617 + $0x7b0] sm:$0xff]
  %v6892 = vld [vmem:[%s6617 + $0x7b8] sm:$0xf]
  %v6893 = vld [vmem:[%s6617 + $0x7bc] sm:$0xff]
  %v6894 = vld [vmem:[%s6617 + $0x7c4] sm:$0xff]
  %v6895 = vld [vmem:[%s6617 + $0x7cc] sm:$0xff]
  %v6896 = vld [vmem:[%s6617 + $0x7d4] sm:$0xff]
  %v6897 = vld [vmem:[%s6617 + $0x7dc] sm:$0xf]
  %v6898 = vld [vmem:[%s6617 + $0x7e0] sm:$0xff]
  %v6899 = vld [vmem:[%s6617 + $0x7e8] sm:$0xff]
  %v6900 = vld [vmem:[%s6617 + $0x7f0] sm:$0xff]
  %v6901 = vld [vmem:[%s6617 + $0x7f8] sm:$0xff]
  %v6902 = vld [vmem:[%s6617 + $0x800] sm:$0xf]
  %v6903 = vld [vmem:[%s6617 + $0x804] sm:$0xff]
  %v6904 = vld [vmem:[%s6617 + $0x80c] sm:$0xff]
  %v6905 = vld [vmem:[%s6617 + $0x814] sm:$0xff]
  %v6906 = vld [vmem:[%s6617 + $0x81c] sm:$0xff]
  %v6907 = vld [vmem:[%s6617 + $0x824] sm:$0xf]
  %v6908 = vld [vmem:[%s6617 + $0x828] sm:$0xff]
  %v6909 = vld [vmem:[%s6617 + $0x830] sm:$0xff]
  %v6910 = vld [vmem:[%s6617 + $0x838] sm:$0xff]
  %v6911 = vld [vmem:[%s6617 + $0x840] sm:$0xff]
  %v6912 = vld [vmem:[%s6617 + $0x848] sm:$0xf]
  %v6913 = vld [vmem:[%s6617 + $0x84c] sm:$0xff]
  %v6914 = vld [vmem:[%s6617 + $0x854] sm:$0xff]
  %v6915 = vld [vmem:[%s6617 + $0x85c] sm:$0xff]
  %v6916 = vld [vmem:[%s6617 + $0x864] sm:$0xff]
  %v6917 = vld [vmem:[%s6617 + $0x86c] sm:$0xf]
  %v6918 = vld [vmem:[%s6617 + $0x870] sm:$0xff]
  %v6919 = vld [vmem:[%s6617 + $0x878] sm:$0xff]
  %v6920 = vld [vmem:[%s6617 + $0x880] sm:$0xff]
  %v6921 = vld [vmem:[%s6617 + $0x888] sm:$0xff]
  %v6922 = vld [vmem:[%s6617 + $0x890] sm:$0xf]
  %v6923 = vld [vmem:[%s6617 + $0x894] sm:$0xff]
  %v6924 = vld [vmem:[%s6617 + $0x89c] sm:$0xff]
  %v6925 = vld [vmem:[%s6617 + $0x8a4] sm:$0xff]
  %v6926 = vld [vmem:[%s6617 + $0x8ac] sm:$0xff]
  %v6927 = vld [vmem:[%s6617 + $0x8b4] sm:$0xf]
  %v6928 = vld [vmem:[%s6617 + $0x8b8] sm:$0xff]
  %v6929 = vld [vmem:[%s6617 + $0x8c0] sm:$0xff]
  %v6930 = vld [vmem:[%s6617 + $0x8c8] sm:$0xff]
  %v6931 = vld [vmem:[%s6617 + $0x8d0] sm:$0xff]
  %v6932 = vld [vmem:[%s6617 + $0x8d8] sm:$0xf]
  %v6933 = vld [vmem:[%s6617 + $0x8dc] sm:$0xff]
  %v6934 = vld [vmem:[%s6617 + $0x8e4] sm:$0xff]
  %v6935 = vld [vmem:[%s6617 + $0x8ec] sm:$0xff]
  %v6936 = vld [vmem:[%s6617 + $0x8f4] sm:$0xff]
  %v6937 = vld [vmem:[%s6617 + $0x8fc] sm:$0xf]
  %v6938 = vld [vmem:[%s2] sm:$0xff]
  %v6939 = vld [vmem:[%s2 + $0x8] sm:$0xff]
  %v6940 = vld [vmem:[%s2 + $0x10] sm:$0xff]
  %v6941 = vld [vmem:[%s2 + $0x18] sm:$0xff]
  %6943 = vset.pattern.permute.xlu0 0
  %6944 = vperm.xlu0 %6943, %v6938
  %v6945 = vpop.permute.xlu0 %6944
  %6948 = vset.pattern.permute.xlu0 0
  %6949 = vperm.xlu0 %6948, %v6939
  %v6950 = vpop.permute.xlu0 %6949
  %6953 = vset.pattern.permute.xlu0 0
  %6954 = vperm.xlu0 %6953, %v6940
  %v6955 = vpop.permute.xlu0 %6954
  %6958 = vset.pattern.permute.xlu0 0
  %6959 = vperm.xlu0 %6958, %v6941
  %v6960 = vpop.permute.xlu0 %6959
  %v7282 = vunpack.c.l.b16 %v6618
  %v7283 = vunpack.c.h.b16 %v6618
  %v7284 = vunpack.c.l.b16 %v6619
  %v7285 = vunpack.c.h.b16 %v6619
  %v7286 = vunpack.c.l.b16 %v6620
  %v7287 = vunpack.c.h.b16 %v6620
  %v7288 = vunpack.c.l.b16 %v6621
  %v7289 = vunpack.c.h.b16 %v6621
  %v7290 = vunpack.c.l.b16 %v6622
  %v7291 = vunpack.c.l.b16 %v6623
  %v7292 = vunpack.c.h.b16 %v6623
  %v7293 = vunpack.c.l.b16 %v6624
  %v7294 = vunpack.c.h.b16 %v6624
  %v7295 = vunpack.c.l.b16 %v6625
  %v7296 = vunpack.c.h.b16 %v6625
  %v7297 = vunpack.c.l.b16 %v6626
  %v7298 = vunpack.c.h.b16 %v6626
  %v7299 = vunpack.c.l.b16 %v6627
  %v7300 = vunpack.c.l.b16 %v6628
  %v7301 = vunpack.c.h.b16 %v6628
  %v7302 = vunpack.c.l.b16 %v6629
  %v7303 = vunpack.c.h.b16 %v6629
  %v7304 = vunpack.c.l.b16 %v6630
  %v7305 = vunpack.c.h.b16 %v6630
  %v7306 = vunpack.c.l.b16 %v6631
  %v7307 = vunpack.c.h.b16 %v6631
  %v7308 = vunpack.c.l.b16 %v6632
  %v7309 = vunpack.c.l.b16 %v6633
  %v7310 = vunpack.c.h.b16 %v6633
  %v7311 = vunpack.c.l.b16 %v6634
  %v7312 = vunpack.c.h.b16 %v6634
  %v7313 = vunpack.c.l.b16 %v6635
  %v7314 = vunpack.c.h.b16 %v6635
  %v7315 = vunpack.c.l.b16 %v6636
  %v7316 = vunpack.c.h.b16 %v6636
  %v7317 = vunpack.c.l.b16 %v6637
  %v7318 = vunpack.c.l.b16 %v6638
  %v7319 = vunpack.c.h.b16 %v6638
  %v7320 = vunpack.c.l.b16 %v6639
  %v7321 = vunpack.c.h.b16 %v6639
  %v7322 = vunpack.c.l.b16 %v6640
  %v7323 = vunpack.c.h.b16 %v6640
  %v7324 = vunpack.c.l.b16 %v6641
  %v7325 = vunpack.c.h.b16 %v6641
  %v7326 = vunpack.c.l.b16 %v6642
  %v7327 = vunpack.c.l.b16 %v6643
  %v7328 = vunpack.c.h.b16 %v6643
  %v7329 = vunpack.c.l.b16 %v6644
  %v7330 = vunpack.c.h.b16 %v6644
  %v7331 = vunpack.c.l.b16 %v6645
  %v7332 = vunpack.c.h.b16 %v6645
  %v7333 = vunpack.c.l.b16 %v6646
  %v7334 = vunpack.c.h.b16 %v6646
  %v7335 = vunpack.c.l.b16 %v6647
  %v7336 = vunpack.c.l.b16 %v6648
  %v7337 = vunpack.c.h.b16 %v6648
  %v7338 = vunpack.c.l.b16 %v6649
  %v7339 = vunpack.c.h.b16 %v6649
  %v7340 = vunpack.c.l.b16 %v6650
  %v7341 = vunpack.c.h.b16 %v6650
  %v7342 = vunpack.c.l.b16 %v6651
  %v7343 = vunpack.c.h.b16 %v6651
  %v7344 = vunpack.c.l.b16 %v6652
  %v7345 = vunpack.c.l.b16 %v6653
  %v7346 = vunpack.c.h.b16 %v6653
  %v7347 = vunpack.c.l.b16 %v6654
  %v7348 = vunpack.c.h.b16 %v6654
  %v7349 = vunpack.c.l.b16 %v6655
  %v7350 = vunpack.c.h.b16 %v6655
  %v7351 = vunpack.c.l.b16 %v6656
  %v7352 = vunpack.c.h.b16 %v6656
  %v7353 = vunpack.c.l.b16 %v6657
  %v7354 = vunpack.c.l.b16 %v6658
  %v7355 = vunpack.c.h.b16 %v6658
  %v7356 = vunpack.c.l.b16 %v6659
  %v7357 = vunpack.c.h.b16 %v6659
  %v7358 = vunpack.c.l.b16 %v6660
  %v7359 = vunpack.c.h.b16 %v6660
  %v7360 = vunpack.c.l.b16 %v6661
  %v7361 = vunpack.c.h.b16 %v6661
  %v7362 = vunpack.c.l.b16 %v6662
  %v7363 = vunpack.c.l.b16 %v6663
  %v7364 = vunpack.c.h.b16 %v6663
  %v7365 = vunpack.c.l.b16 %v6664
  %v7366 = vunpack.c.h.b16 %v6664
  %v7367 = vunpack.c.l.b16 %v6665
  %v7368 = vunpack.c.h.b16 %v6665
  %v7369 = vunpack.c.l.b16 %v6666
  %v7370 = vunpack.c.h.b16 %v6666
  %v7371 = vunpack.c.l.b16 %v6667
  %v7372 = vunpack.c.l.b16 %v6668
  %v7373 = vunpack.c.h.b16 %v6668
  %v7374 = vunpack.c.l.b16 %v6669
  %v7375 = vunpack.c.h.b16 %v6669
  %v7376 = vunpack.c.l.b16 %v6670
  %v7377 = vunpack.c.h.b16 %v6670
  %v7378 = vunpack.c.l.b16 %v6671
  %v7379 = vunpack.c.h.b16 %v6671
  %v7380 = vunpack.c.l.b16 %v6672
  %v7381 = vunpack.c.l.b16 %v6673
  %v7382 = vunpack.c.h.b16 %v6673
  %v7383 = vunpack.c.l.b16 %v6674
  %v7384 = vunpack.c.h.b16 %v6674
  %v7385 = vunpack.c.l.b16 %v6675
  %v7386 = vunpack.c.h.b16 %v6675
  %v7387 = vunpack.c.l.b16 %v6676
  %v7388 = vunpack.c.h.b16 %v6676
  %v7389 = vunpack.c.l.b16 %v6677
  %v7390 = vunpack.c.l.b16 %v6678
  %v7391 = vunpack.c.h.b16 %v6678
  %v7392 = vunpack.c.l.b16 %v6679
  %v7393 = vunpack.c.h.b16 %v6679
  %v7394 = vunpack.c.l.b16 %v6680
  %v7395 = vunpack.c.h.b16 %v6680
  %v7396 = vunpack.c.l.b16 %v6681
  %v7397 = vunpack.c.h.b16 %v6681
  %v7398 = vunpack.c.l.b16 %v6682
  %v7399 = vunpack.c.l.b16 %v6683
  %v7400 = vunpack.c.h.b16 %v6683
  %v7401 = vunpack.c.l.b16 %v6684
  %v7402 = vunpack.c.h.b16 %v6684
  %v7403 = vunpack.c.l.b16 %v6685
  %v7404 = vunpack.c.h.b16 %v6685
  %v7405 = vunpack.c.l.b16 %v6686
  %v7406 = vunpack.c.h.b16 %v6686
  %v7407 = vunpack.c.l.b16 %v6687
  %v7408 = vunpack.c.l.b16 %v6688
  %v7409 = vunpack.c.h.b16 %v6688
  %v7410 = vunpack.c.l.b16 %v6689
  %v7411 = vunpack.c.h.b16 %v6689
  %v7412 = vunpack.c.l.b16 %v6690
  %v7413 = vunpack.c.h.b16 %v6690
  %v7414 = vunpack.c.l.b16 %v6691
  %v7415 = vunpack.c.h.b16 %v6691
  %v7416 = vunpack.c.l.b16 %v6692
  %v7417 = vunpack.c.l.b16 %v6693
  %v7418 = vunpack.c.h.b16 %v6693
  %v7419 = vunpack.c.l.b16 %v6694
  %v7420 = vunpack.c.h.b16 %v6694
  %v7421 = vunpack.c.l.b16 %v6695
  %v7422 = vunpack.c.h.b16 %v6695
  %v7423 = vunpack.c.l.b16 %v6696
  %v7424 = vunpack.c.h.b16 %v6696
  %v7425 = vunpack.c.l.b16 %v6697
  %v7426 = vunpack.c.l.b16 %v6698
  %v7427 = vunpack.c.h.b16 %v6698
  %v7428 = vunpack.c.l.b16 %v6699
  %v7429 = vunpack.c.h.b16 %v6699
  %v7430 = vunpack.c.l.b16 %v6700
  %v7431 = vunpack.c.h.b16 %v6700
  %v7432 = vunpack.c.l.b16 %v6701
  %v7433 = vunpack.c.h.b16 %v6701
  %v7434 = vunpack.c.l.b16 %v6702
  %v7435 = vunpack.c.l.b16 %v6703
  %v7436 = vunpack.c.h.b16 %v6703
  %v7437 = vunpack.c.l.b16 %v6704
  %v7438 = vunpack.c.h.b16 %v6704
  %v7439 = vunpack.c.l.b16 %v6705
  %v7440 = vunpack.c.h.b16 %v6705
  %v7441 = vunpack.c.l.b16 %v6706
  %v7442 = vunpack.c.h.b16 %v6706
  %v7443 = vunpack.c.l.b16 %v6707
  %v7444 = vunpack.c.l.b16 %v6708
  %v7445 = vunpack.c.h.b16 %v6708
  %v7446 = vunpack.c.l.b16 %v6709
  %v7447 = vunpack.c.h.b16 %v6709
  %v7448 = vunpack.c.l.b16 %v6710
  %v7449 = vunpack.c.h.b16 %v6710
  %v7450 = vunpack.c.l.b16 %v6711
  %v7451 = vunpack.c.h.b16 %v6711
  %v7452 = vunpack.c.l.b16 %v6712
  %v7453 = vunpack.c.l.b16 %v6713
  %v7454 = vunpack.c.h.b16 %v6713
  %v7455 = vunpack.c.l.b16 %v6714
  %v7456 = vunpack.c.h.b16 %v6714
  %v7457 = vunpack.c.l.b16 %v6715
  %v7458 = vunpack.c.h.b16 %v6715
  %v7459 = vunpack.c.l.b16 %v6716
  %v7460 = vunpack.c.h.b16 %v6716
  %v7461 = vunpack.c.l.b16 %v6717
  %v7462 = vunpack.c.l.b16 %v6718
  %v7463 = vunpack.c.h.b16 %v6718
  %v7464 = vunpack.c.l.b16 %v6719
  %v7465 = vunpack.c.h.b16 %v6719
  %v7466 = vunpack.c.l.b16 %v6720
  %v7467 = vunpack.c.h.b16 %v6720
  %v7468 = vunpack.c.l.b16 %v6721
  %v7469 = vunpack.c.h.b16 %v6721
  %v7470 = vunpack.c.l.b16 %v6722
  %v7471 = vunpack.c.l.b16 %v6723
  %v7472 = vunpack.c.h.b16 %v6723
  %v7473 = vunpack.c.l.b16 %v6724
  %v7474 = vunpack.c.h.b16 %v6724
  %v7475 = vunpack.c.l.b16 %v6725
  %v7476 = vunpack.c.h.b16 %v6725
  %v7477 = vunpack.c.l.b16 %v6726
  %v7478 = vunpack.c.h.b16 %v6726
  %v7479 = vunpack.c.l.b16 %v6727
  %v7480 = vunpack.c.l.b16 %v6728
  %v7481 = vunpack.c.h.b16 %v6728
  %v7482 = vunpack.c.l.b16 %v6729
  %v7483 = vunpack.c.h.b16 %v6729
  %v7484 = vunpack.c.l.b16 %v6730
  %v7485 = vunpack.c.h.b16 %v6730
  %v7486 = vunpack.c.l.b16 %v6731
  %v7487 = vunpack.c.h.b16 %v6731
  %v7488 = vunpack.c.l.b16 %v6732
  %v7489 = vunpack.c.l.b16 %v6733
  %v7490 = vunpack.c.h.b16 %v6733
  %v7491 = vunpack.c.l.b16 %v6734
  %v7492 = vunpack.c.h.b16 %v6734
  %v7493 = vunpack.c.l.b16 %v6735
  %v7494 = vunpack.c.h.b16 %v6735
  %v7495 = vunpack.c.l.b16 %v6736
  %v7496 = vunpack.c.h.b16 %v6736
  %v7497 = vunpack.c.l.b16 %v6737
  %v7498 = vunpack.c.l.b16 %v6738
  %v7499 = vunpack.c.h.b16 %v6738
  %v7500 = vunpack.c.l.b16 %v6739
  %v7501 = vunpack.c.h.b16 %v6739
  %v7502 = vunpack.c.l.b16 %v6740
  %v7503 = vunpack.c.h.b16 %v6740
  %v7504 = vunpack.c.l.b16 %v6741
  %v7505 = vunpack.c.h.b16 %v6741
  %v7506 = vunpack.c.l.b16 %v6742
  %v7507 = vunpack.c.l.b16 %v6743
  %v7508 = vunpack.c.h.b16 %v6743
  %v7509 = vunpack.c.l.b16 %v6744
  %v7510 = vunpack.c.h.b16 %v6744
  %v7511 = vunpack.c.l.b16 %v6745
  %v7512 = vunpack.c.h.b16 %v6745
  %v7513 = vunpack.c.l.b16 %v6746
  %v7514 = vunpack.c.h.b16 %v6746
  %v7515 = vunpack.c.l.b16 %v6747
  %v7516 = vunpack.c.l.b16 %v6748
  %v7517 = vunpack.c.h.b16 %v6748
  %v7518 = vunpack.c.l.b16 %v6749
  %v7519 = vunpack.c.h.b16 %v6749
  %v7520 = vunpack.c.l.b16 %v6750
  %v7521 = vunpack.c.h.b16 %v6750
  %v7522 = vunpack.c.l.b16 %v6751
  %v7523 = vunpack.c.h.b16 %v6751
  %v7524 = vunpack.c.l.b16 %v6752
  %v7525 = vunpack.c.l.b16 %v6753
  %v7526 = vunpack.c.h.b16 %v6753
  %v7527 = vunpack.c.l.b16 %v6754
  %v7528 = vunpack.c.h.b16 %v6754
  %v7529 = vunpack.c.l.b16 %v6755
  %v7530 = vunpack.c.h.b16 %v6755
  %v7531 = vunpack.c.l.b16 %v6756
  %v7532 = vunpack.c.h.b16 %v6756
  %v7533 = vunpack.c.l.b16 %v6757
  %v7534 = vunpack.c.l.b16 %v6758
  %v7535 = vunpack.c.h.b16 %v6758
  %v7536 = vunpack.c.l.b16 %v6759
  %v7537 = vunpack.c.h.b16 %v6759
  %v7538 = vunpack.c.l.b16 %v6760
  %v7539 = vunpack.c.h.b16 %v6760
  %v7540 = vunpack.c.l.b16 %v6761
  %v7541 = vunpack.c.h.b16 %v6761
  %v7542 = vunpack.c.l.b16 %v6762
  %v7543 = vunpack.c.l.b16 %v6763
  %v7544 = vunpack.c.h.b16 %v6763
  %v7545 = vunpack.c.l.b16 %v6764
  %v7546 = vunpack.c.h.b16 %v6764
  %v7547 = vunpack.c.l.b16 %v6765
  %v7548 = vunpack.c.h.b16 %v6765
  %v7549 = vunpack.c.l.b16 %v6766
  %v7550 = vunpack.c.h.b16 %v6766
  %v7551 = vunpack.c.l.b16 %v6767
  %v7552 = vunpack.c.l.b16 %v6768
  %v7553 = vunpack.c.h.b16 %v6768
  %v7554 = vunpack.c.l.b16 %v6769
  %v7555 = vunpack.c.h.b16 %v6769
  %v7556 = vunpack.c.l.b16 %v6770
  %v7557 = vunpack.c.h.b16 %v6770
  %v7558 = vunpack.c.l.b16 %v6771
  %v7559 = vunpack.c.h.b16 %v6771
  %v7560 = vunpack.c.l.b16 %v6772
  %v7561 = vunpack.c.l.b16 %v6773
  %v7562 = vunpack.c.h.b16 %v6773
  %v7563 = vunpack.c.l.b16 %v6774
  %v7564 = vunpack.c.h.b16 %v6774
  %v7565 = vunpack.c.l.b16 %v6775
  %v7566 = vunpack.c.h.b16 %v6775
  %v7567 = vunpack.c.l.b16 %v6776
  %v7568 = vunpack.c.h.b16 %v6776
  %v7569 = vunpack.c.l.b16 %v6777
  %v7570 = vunpack.c.l.b16 %v6778
  %v7571 = vunpack.c.h.b16 %v6778
  %v7572 = vunpack.c.l.b16 %v6779
  %v7573 = vunpack.c.h.b16 %v6779
  %v7574 = vunpack.c.l.b16 %v6780
  %v7575 = vunpack.c.h.b16 %v6780
  %v7576 = vunpack.c.l.b16 %v6781
  %v7577 = vunpack.c.h.b16 %v6781
  %v7578 = vunpack.c.l.b16 %v6782
  %v7579 = vunpack.c.l.b16 %v6783
  %v7580 = vunpack.c.h.b16 %v6783
  %v7581 = vunpack.c.l.b16 %v6784
  %v7582 = vunpack.c.h.b16 %v6784
  %v7583 = vunpack.c.l.b16 %v6785
  %v7584 = vunpack.c.h.b16 %v6785
  %v7585 = vunpack.c.l.b16 %v6786
  %v7586 = vunpack.c.h.b16 %v6786
  %v7587 = vunpack.c.l.b16 %v6787
  %v7588 = vunpack.c.l.b16 %v6788
  %v7589 = vunpack.c.h.b16 %v6788
  %v7590 = vunpack.c.l.b16 %v6789
  %v7591 = vunpack.c.h.b16 %v6789
  %v7592 = vunpack.c.l.b16 %v6790
  %v7593 = vunpack.c.h.b16 %v6790
  %v7594 = vunpack.c.l.b16 %v6791
  %v7595 = vunpack.c.h.b16 %v6791
  %v7596 = vunpack.c.l.b16 %v6792
  %v7597 = vunpack.c.l.b16 %v6793
  %v7598 = vunpack.c.h.b16 %v6793
  %v7599 = vunpack.c.l.b16 %v6794
  %v7600 = vunpack.c.h.b16 %v6794
  %v7601 = vunpack.c.l.b16 %v6795
  %v7602 = vunpack.c.h.b16 %v6795
  %v7603 = vunpack.c.l.b16 %v6796
  %v7604 = vunpack.c.h.b16 %v6796
  %v7605 = vunpack.c.l.b16 %v6797
  %v7606 = vunpack.c.l.b16 %v6798
  %v7607 = vunpack.c.h.b16 %v6798
  %v7608 = vunpack.c.l.b16 %v6799
  %v7609 = vunpack.c.h.b16 %v6799
  %v7610 = vunpack.c.l.b16 %v6800
  %v7611 = vunpack.c.h.b16 %v6800
  %v7612 = vunpack.c.l.b16 %v6801
  %v7613 = vunpack.c.h.b16 %v6801
  %v7614 = vunpack.c.l.b16 %v6802
  %v7615 = vunpack.c.l.b16 %v6803
  %v7616 = vunpack.c.h.b16 %v6803
  %v7617 = vunpack.c.l.b16 %v6804
  %v7618 = vunpack.c.h.b16 %v6804
  %v7619 = vunpack.c.l.b16 %v6805
  %v7620 = vunpack.c.h.b16 %v6805
  %v7621 = vunpack.c.l.b16 %v6806
  %v7622 = vunpack.c.h.b16 %v6806
  %v7623 = vunpack.c.l.b16 %v6807
  %v7624 = vunpack.c.l.b16 %v6808
  %v7625 = vunpack.c.h.b16 %v6808
  %v7626 = vunpack.c.l.b16 %v6809
  %v7627 = vunpack.c.h.b16 %v6809
  %v7628 = vunpack.c.l.b16 %v6810
  %v7629 = vunpack.c.h.b16 %v6810
  %v7630 = vunpack.c.l.b16 %v6811
  %v7631 = vunpack.c.h.b16 %v6811
  %v7632 = vunpack.c.l.b16 %v6812
  %v7633 = vunpack.c.l.b16 %v6813
  %v7634 = vunpack.c.h.b16 %v6813
  %v7635 = vunpack.c.l.b16 %v6814
  %v7636 = vunpack.c.h.b16 %v6814
  %v7637 = vunpack.c.l.b16 %v6815
  %v7638 = vunpack.c.h.b16 %v6815
  %v7639 = vunpack.c.l.b16 %v6816
  %v7640 = vunpack.c.h.b16 %v6816
  %v7641 = vunpack.c.l.b16 %v6817
  %v7642 = vunpack.c.l.b16 %v6818
  %v7643 = vunpack.c.h.b16 %v6818
  %v7644 = vunpack.c.l.b16 %v6819
  %v7645 = vunpack.c.h.b16 %v6819
  %v7646 = vunpack.c.l.b16 %v6820
  %v7647 = vunpack.c.h.b16 %v6820
  %v7648 = vunpack.c.l.b16 %v6821
  %v7649 = vunpack.c.h.b16 %v6821
  %v7650 = vunpack.c.l.b16 %v6822
  %v7651 = vunpack.c.l.b16 %v6823
  %v7652 = vunpack.c.h.b16 %v6823
  %v7653 = vunpack.c.l.b16 %v6824
  %v7654 = vunpack.c.h.b16 %v6824
  %v7655 = vunpack.c.l.b16 %v6825
  %v7656 = vunpack.c.h.b16 %v6825
  %v7657 = vunpack.c.l.b16 %v6826
  %v7658 = vunpack.c.h.b16 %v6826
  %v7659 = vunpack.c.l.b16 %v6827
  %v7660 = vunpack.c.l.b16 %v6828
  %v7661 = vunpack.c.h.b16 %v6828
  %v7662 = vunpack.c.l.b16 %v6829
  %v7663 = vunpack.c.h.b16 %v6829
  %v7664 = vunpack.c.l.b16 %v6830
  %v7665 = vunpack.c.h.b16 %v6830
  %v7666 = vunpack.c.l.b16 %v6831
  %v7667 = vunpack.c.h.b16 %v6831
  %v7668 = vunpack.c.l.b16 %v6832
  %v7669 = vunpack.c.l.b16 %v6833
  %v7670 = vunpack.c.h.b16 %v6833
  %v7671 = vunpack.c.l.b16 %v6834
  %v7672 = vunpack.c.h.b16 %v6834
  %v7673 = vunpack.c.l.b16 %v6835
  %v7674 = vunpack.c.h.b16 %v6835
  %v7675 = vunpack.c.l.b16 %v6836
  %v7676 = vunpack.c.h.b16 %v6836
  %v7677 = vunpack.c.l.b16 %v6837
  %v7678 = vunpack.c.l.b16 %v6838
  %v7679 = vunpack.c.h.b16 %v6838
  %v7680 = vunpack.c.l.b16 %v6839
  %v7681 = vunpack.c.h.b16 %v6839
  %v7682 = vunpack.c.l.b16 %v6840
  %v7683 = vunpack.c.h.b16 %v6840
  %v7684 = vunpack.c.l.b16 %v6841
  %v7685 = vunpack.c.h.b16 %v6841
  %v7686 = vunpack.c.l.b16 %v6842
  %v7687 = vunpack.c.l.b16 %v6843
  %v7688 = vunpack.c.h.b16 %v6843
  %v7689 = vunpack.c.l.b16 %v6844
  %v7690 = vunpack.c.h.b16 %v6844
  %v7691 = vunpack.c.l.b16 %v6845
  %v7692 = vunpack.c.h.b16 %v6845
  %v7693 = vunpack.c.l.b16 %v6846
  %v7694 = vunpack.c.h.b16 %v6846
  %v7695 = vunpack.c.l.b16 %v6847
  %v7696 = vunpack.c.l.b16 %v6848
  %v7697 = vunpack.c.h.b16 %v6848
  %v7698 = vunpack.c.l.b16 %v6849
  %v7699 = vunpack.c.h.b16 %v6849
  %v7700 = vunpack.c.l.b16 %v6850
  %v7701 = vunpack.c.h.b16 %v6850
  %v7702 = vunpack.c.l.b16 %v6851
  %v7703 = vunpack.c.h.b16 %v6851
  %v7704 = vunpack.c.l.b16 %v6852
  %v7705 = vunpack.c.l.b16 %v6853
  %v7706 = vunpack.c.h.b16 %v6853
  %v7707 = vunpack.c.l.b16 %v6854
  %v7708 = vunpack.c.h.b16 %v6854
  %v7709 = vunpack.c.l.b16 %v6855
  %v7710 = vunpack.c.h.b16 %v6855
  %v7711 = vunpack.c.l.b16 %v6856
  %v7712 = vunpack.c.h.b16 %v6856
  %v7713 = vunpack.c.l.b16 %v6857
  %v7714 = vunpack.c.l.b16 %v6858
  %v7715 = vunpack.c.h.b16 %v6858
  %v7716 = vunpack.c.l.b16 %v6859
  %v7717 = vunpack.c.h.b16 %v6859
  %v7718 = vunpack.c.l.b16 %v6860
  %v7719 = vunpack.c.h.b16 %v6860
  %v7720 = vunpack.c.l.b16 %v6861
  %v7721 = vunpack.c.h.b16 %v6861
  %v7722 = vunpack.c.l.b16 %v6862
  %v7723 = vunpack.c.l.b16 %v6863
  %v7724 = vunpack.c.h.b16 %v6863
  %v7725 = vunpack.c.l.b16 %v6864
  %v7726 = vunpack.c.h.b16 %v6864
  %v7727 = vunpack.c.l.b16 %v6865
  %v7728 = vunpack.c.h.b16 %v6865
  %v7729 = vunpack.c.l.b16 %v6866
  %v7730 = vunpack.c.h.b16 %v6866
  %v7731 = vunpack.c.l.b16 %v6867
  %v7732 = vunpack.c.l.b16 %v6868
  %v7733 = vunpack.c.h.b16 %v6868
  %v7734 = vunpack.c.l.b16 %v6869
  %v7735 = vunpack.c.h.b16 %v6869
  %v7736 = vunpack.c.l.b16 %v6870
  %v7737 = vunpack.c.h.b16 %v6870
  %v7738 = vunpack.c.l.b16 %v6871
  %v7739 = vunpack.c.h.b16 %v6871
  %v7740 = vunpack.c.l.b16 %v6872
  %v7741 = vunpack.c.l.b16 %v6873
  %v7742 = vunpack.c.h.b16 %v6873
  %v7743 = vunpack.c.l.b16 %v6874
  %v7744 = vunpack.c.h.b16 %v6874
  %v7745 = vunpack.c.l.b16 %v6875
  %v7746 = vunpack.c.h.b16 %v6875
  %v7747 = vunpack.c.l.b16 %v6876
  %v7748 = vunpack.c.h.b16 %v6876
  %v7749 = vunpack.c.l.b16 %v6877
  %v7750 = vunpack.c.l.b16 %v6878
  %v7751 = vunpack.c.h.b16 %v6878
  %v7752 = vunpack.c.l.b16 %v6879
  %v7753 = vunpack.c.h.b16 %v6879
  %v7754 = vunpack.c.l.b16 %v6880
  %v7755 = vunpack.c.h.b16 %v6880
  %v7756 = vunpack.c.l.b16 %v6881
  %v7757 = vunpack.c.h.b16 %v6881
  %v7758 = vunpack.c.l.b16 %v6882
  %v7759 = vunpack.c.l.b16 %v6883
  %v7760 = vunpack.c.h.b16 %v6883
  %v7761 = vunpack.c.l.b16 %v6884
  %v7762 = vunpack.c.h.b16 %v6884
  %v7763 = vunpack.c.l.b16 %v6885
  %v7764 = vunpack.c.h.b16 %v6885
  %v7765 = vunpack.c.l.b16 %v6886
  %v7766 = vunpack.c.h.b16 %v6886
  %v7767 = vunpack.c.l.b16 %v6887
  %v7768 = vunpack.c.l.b16 %v6888
  %v7769 = vunpack.c.h.b16 %v6888
  %v7770 = vunpack.c.l.b16 %v6889
  %v7771 = vunpack.c.h.b16 %v6889
  %v7772 = vunpack.c.l.b16 %v6890
  %v7773 = vunpack.c.h.b16 %v6890
  %v7774 = vunpack.c.l.b16 %v6891
  %v7775 = vunpack.c.h.b16 %v6891
  %v7776 = vunpack.c.l.b16 %v6892
  %v7777 = vunpack.c.l.b16 %v6893
  %v7778 = vunpack.c.h.b16 %v6893
  %v7779 = vunpack.c.l.b16 %v6894
  %v7780 = vunpack.c.h.b16 %v6894
  %v7781 = vunpack.c.l.b16 %v6895
  %v7782 = vunpack.c.h.b16 %v6895
  %v7783 = vunpack.c.l.b16 %v6896
  %v7784 = vunpack.c.h.b16 %v6896
  %v7785 = vunpack.c.l.b16 %v6897
  %v7786 = vunpack.c.l.b16 %v6898
  %v7787 = vunpack.c.h.b16 %v6898
  %v7788 = vunpack.c.l.b16 %v6899
  %v7789 = vunpack.c.h.b16 %v6899
  %v7790 = vunpack.c.l.b16 %v6900
  %v7791 = vunpack.c.h.b16 %v6900
  %v7792 = vunpack.c.l.b16 %v6901
  %v7793 = vunpack.c.h.b16 %v6901
  %v7794 = vunpack.c.l.b16 %v6902
  %v7795 = vunpack.c.l.b16 %v6903
  %v7796 = vunpack.c.h.b16 %v6903
  %v7797 = vunpack.c.l.b16 %v6904
  %v7798 = vunpack.c.h.b16 %v6904
  %v7799 = vunpack.c.l.b16 %v6905
  %v7800 = vunpack.c.h.b16 %v6905
  %v7801 = vunpack.c.l.b16 %v6906
  %v7802 = vunpack.c.h.b16 %v6906
  %v7803 = vunpack.c.l.b16 %v6907
  %v7804 = vunpack.c.l.b16 %v6908
  %v7805 = vunpack.c.h.b16 %v6908
  %v7806 = vunpack.c.l.b16 %v6909
  %v7807 = vunpack.c.h.b16 %v6909
  %v7808 = vunpack.c.l.b16 %v6910
  %v7809 = vunpack.c.h.b16 %v6910
  %v7810 = vunpack.c.l.b16 %v6911
  %v7811 = vunpack.c.h.b16 %v6911
  %v7812 = vunpack.c.l.b16 %v6912
  %v7813 = vunpack.c.l.b16 %v6913
  %v7814 = vunpack.c.h.b16 %v6913
  %v7815 = vunpack.c.l.b16 %v6914
  %v7816 = vunpack.c.h.b16 %v6914
  %v7817 = vunpack.c.l.b16 %v6915
  %v7818 = vunpack.c.h.b16 %v6915
  %v7819 = vunpack.c.l.b16 %v6916
  %v7820 = vunpack.c.h.b16 %v6916
  %v7821 = vunpack.c.l.b16 %v6917
  %v7822 = vunpack.c.l.b16 %v6918
  %v7823 = vunpack.c.h.b16 %v6918
  %v7824 = vunpack.c.l.b16 %v6919
  %v7825 = vunpack.c.h.b16 %v6919
  %v7826 = vunpack.c.l.b16 %v6920
  %v7827 = vunpack.c.h.b16 %v6920
  %v7828 = vunpack.c.l.b16 %v6921
  %v7829 = vunpack.c.h.b16 %v6921
  %v7830 = vunpack.c.l.b16 %v6922
  %v7831 = vunpack.c.l.b16 %v6923
  %v7832 = vunpack.c.h.b16 %v6923
  %v7833 = vunpack.c.l.b16 %v6924
  %v7834 = vunpack.c.h.b16 %v6924
  %v7835 = vunpack.c.l.b16 %v6925
  %v7836 = vunpack.c.h.b16 %v6925
  %v7837 = vunpack.c.l.b16 %v6926
  %v7838 = vunpack.c.h.b16 %v6926
  %v7839 = vunpack.c.l.b16 %v6927
  %v7840 = vunpack.c.l.b16 %v6928
  %v7841 = vunpack.c.h.b16 %v6928
  %v7842 = vunpack.c.l.b16 %v6929
  %v7843 = vunpack.c.h.b16 %v6929
  %v7844 = vunpack.c.l.b16 %v6930
  %v7845 = vunpack.c.h.b16 %v6930
  %v7846 = vunpack.c.l.b16 %v6931
  %v7847 = vunpack.c.h.b16 %v6931
  %v7848 = vunpack.c.l.b16 %v6932
  %v7849 = vunpack.c.l.b16 %v6933
  %v7850 = vunpack.c.h.b16 %v6933
  %v7851 = vunpack.c.l.b16 %v6934
  %v7852 = vunpack.c.h.b16 %v6934
  %v7853 = vunpack.c.l.b16 %v6935
  %v7854 = vunpack.c.h.b16 %v6935
  %v7855 = vunpack.c.l.b16 %v6936
  %v7856 = vunpack.c.h.b16 %v6936
  %v7857 = vunpack.c.l.b16 %v6937
  %v7858 = vpack.c.b16 %v7291, %v7282
  %v7859 = vpack.c.b16 %v7292, %v7283
  %v7860 = vpack.c.b16 %v7293, %v7284
  %v7861 = vpack.c.b16 %v7294, %v7285
  %v7862 = vpack.c.b16 %v7295, %v7286
  %v7863 = vpack.c.b16 %v7296, %v7287
  %v7864 = vpack.c.b16 %v7297, %v7288
  %v7865 = vpack.c.b16 %v7298, %v7289
  %v7866 = vpack.c.b16 %v7299, %v7290
  %v7867 = vpack.c.b16 %v7309, %v7300
  %v7868 = vpack.c.b16 %v7310, %v7301
  %v7869 = vpack.c.b16 %v7311, %v7302
  %v7870 = vpack.c.b16 %v7312, %v7303
  %v7871 = vpack.c.b16 %v7313, %v7304
  %v7872 = vpack.c.b16 %v7314, %v7305
  %v7873 = vpack.c.b16 %v7315, %v7306
  %v7874 = vpack.c.b16 %v7316, %v7307
  %v7875 = vpack.c.b16 %v7317, %v7308
  %v7876 = vpack.c.b16 %v7327, %v7318
  %v7877 = vpack.c.b16 %v7328, %v7319
  %v7878 = vpack.c.b16 %v7329, %v7320
  %v7879 = vpack.c.b16 %v7330, %v7321
  %v7880 = vpack.c.b16 %v7331, %v7322
  %v7881 = vpack.c.b16 %v7332, %v7323
  %v7882 = vpack.c.b16 %v7333, %v7324
  %v7883 = vpack.c.b16 %v7334, %v7325
  %v7884 = vpack.c.b16 %v7335, %v7326
  %v7885 = vpack.c.b16 %v7345, %v7336
  %v7886 = vpack.c.b16 %v7346, %v7337
  %v7887 = vpack.c.b16 %v7347, %v7338
  %v7888 = vpack.c.b16 %v7348, %v7339
  %v7889 = vpack.c.b16 %v7349, %v7340
  %v7890 = vpack.c.b16 %v7350, %v7341
  %v7891 = vpack.c.b16 %v7351, %v7342
  %v7892 = vpack.c.b16 %v7352, %v7343
  %v7893 = vpack.c.b16 %v7353, %v7344
  %v7894 = vpack.c.b16 %v7363, %v7354
  %v7895 = vpack.c.b16 %v7364, %v7355
  %v7896 = vpack.c.b16 %v7365, %v7356
  %v7897 = vpack.c.b16 %v7366, %v7357
  %v7898 = vpack.c.b16 %v7367, %v7358
  %v7899 = vpack.c.b16 %v7368, %v7359
  %v7900 = vpack.c.b16 %v7369, %v7360
  %v7901 = vpack.c.b16 %v7370, %v7361
  %v7902 = vpack.c.b16 %v7371, %v7362
  %v7903 = vpack.c.b16 %v7381, %v7372
  %v7904 = vpack.c.b16 %v7382, %v7373
  %v7905 = vpack.c.b16 %v7383, %v7374
  %v7906 = vpack.c.b16 %v7384, %v7375
  %v7907 = vpack.c.b16 %v7385, %v7376
  %v7908 = vpack.c.b16 %v7386, %v7377
  %v7909 = vpack.c.b16 %v7387, %v7378
  %v7910 = vpack.c.b16 %v7388, %v7379
  %v7911 = vpack.c.b16 %v7389, %v7380
  %v7912 = vpack.c.b16 %v7399, %v7390
  %v7913 = vpack.c.b16 %v7400, %v7391
  %v7914 = vpack.c.b16 %v7401, %v7392
  %v7915 = vpack.c.b16 %v7402, %v7393
  %v7916 = vpack.c.b16 %v7403, %v7394
  %v7917 = vpack.c.b16 %v7404, %v7395
  %v7918 = vpack.c.b16 %v7405, %v7396
  %v7919 = vpack.c.b16 %v7406, %v7397
  %v7920 = vpack.c.b16 %v7407, %v7398
  %v7921 = vpack.c.b16 %v7417, %v7408
  %v7922 = vpack.c.b16 %v7418, %v7409
  %v7923 = vpack.c.b16 %v7419, %v7410
  %v7924 = vpack.c.b16 %v7420, %v7411
  %v7925 = vpack.c.b16 %v7421, %v7412
  %v7926 = vpack.c.b16 %v7422, %v7413
  %v7927 = vpack.c.b16 %v7423, %v7414
  %v7928 = vpack.c.b16 %v7424, %v7415
  %v7929 = vpack.c.b16 %v7425, %v7416
  %v7930 = vpack.c.b16 %v7435, %v7426
  %v7931 = vpack.c.b16 %v7436, %v7427
  %v7932 = vpack.c.b16 %v7437, %v7428
  %v7933 = vpack.c.b16 %v7438, %v7429
  %v7934 = vpack.c.b16 %v7439, %v7430
  %v7935 = vpack.c.b16 %v7440, %v7431
  %v7936 = vpack.c.b16 %v7441, %v7432
  %v7937 = vpack.c.b16 %v7442, %v7433
  %v7938 = vpack.c.b16 %v7443, %v7434
  %v7939 = vpack.c.b16 %v7453, %v7444
  %v7940 = vpack.c.b16 %v7454, %v7445
  %v7941 = vpack.c.b16 %v7455, %v7446
  %v7942 = vpack.c.b16 %v7456, %v7447
  %v7943 = vpack.c.b16 %v7457, %v7448
  %v7944 = vpack.c.b16 %v7458, %v7449
  %v7945 = vpack.c.b16 %v7459, %v7450
  %v7946 = vpack.c.b16 %v7460, %v7451
  %v7947 = vpack.c.b16 %v7461, %v7452
  %v7948 = vpack.c.b16 %v7471, %v7462
  %v7949 = vpack.c.b16 %v7472, %v7463
  %v7950 = vpack.c.b16 %v7473, %v7464
  %v7951 = vpack.c.b16 %v7474, %v7465
  %v7952 = vpack.c.b16 %v7475, %v7466
  %v7953 = vpack.c.b16 %v7476, %v7467
  %v7954 = vpack.c.b16 %v7477, %v7468
  %v7955 = vpack.c.b16 %v7478, %v7469
  %v7956 = vpack.c.b16 %v7479, %v7470
  %v7957 = vpack.c.b16 %v7489, %v7480
  %v7958 = vpack.c.b16 %v7490, %v7481
  %v7959 = vpack.c.b16 %v7491, %v7482
  %v7960 = vpack.c.b16 %v7492, %v7483
  %v7961 = vpack.c.b16 %v7493, %v7484
  %v7962 = vpack.c.b16 %v7494, %v7485
  %v7963 = vpack.c.b16 %v7495, %v7486
  %v7964 = vpack.c.b16 %v7496, %v7487
  %v7965 = vpack.c.b16 %v7497, %v7488
  %v7966 = vpack.c.b16 %v7507, %v7498
  %v7967 = vpack.c.b16 %v7508, %v7499
  %v7968 = vpack.c.b16 %v7509, %v7500
  %v7969 = vpack.c.b16 %v7510, %v7501
  %v7970 = vpack.c.b16 %v7511, %v7502
  %v7971 = vpack.c.b16 %v7512, %v7503
  %v7972 = vpack.c.b16 %v7513, %v7504
  %v7973 = vpack.c.b16 %v7514, %v7505
  %v7974 = vpack.c.b16 %v7515, %v7506
  %v7975 = vpack.c.b16 %v7525, %v7516
  %v7976 = vpack.c.b16 %v7526, %v7517
  %v7977 = vpack.c.b16 %v7527, %v7518
  %v7978 = vpack.c.b16 %v7528, %v7519
  %v7979 = vpack.c.b16 %v7529, %v7520
  %v7980 = vpack.c.b16 %v7530, %v7521
  %v7981 = vpack.c.b16 %v7531, %v7522
  %v7982 = vpack.c.b16 %v7532, %v7523
  %v7983 = vpack.c.b16 %v7533, %v7524
  %v7984 = vpack.c.b16 %v7543, %v7534
  %v7985 = vpack.c.b16 %v7544, %v7535
  %v7986 = vpack.c.b16 %v7545, %v7536
  %v7987 = vpack.c.b16 %v7546, %v7537
  %v7988 = vpack.c.b16 %v7547, %v7538
  %v7989 = vpack.c.b16 %v7548, %v7539
  %v7990 = vpack.c.b16 %v7549, %v7540
  %v7991 = vpack.c.b16 %v7550, %v7541
  %v7992 = vpack.c.b16 %v7551, %v7542
  %v7993 = vpack.c.b16 %v7561, %v7552
  %v7994 = vpack.c.b16 %v7562, %v7553
  %v7995 = vpack.c.b16 %v7563, %v7554
  %v7996 = vpack.c.b16 %v7564, %v7555
  %v7997 = vpack.c.b16 %v7565, %v7556
  %v7998 = vpack.c.b16 %v7566, %v7557
  %v7999 = vpack.c.b16 %v7567, %v7558
  %v8000 = vpack.c.b16 %v7568, %v7559
  %v8001 = vpack.c.b16 %v7569, %v7560
  %v8002 = vpack.c.b16 %v7579, %v7570
  %v8003 = vpack.c.b16 %v7580, %v7571
  %v8004 = vpack.c.b16 %v7581, %v7572
  %v8005 = vpack.c.b16 %v7582, %v7573
  %v8006 = vpack.c.b16 %v7583, %v7574
  %v8007 = vpack.c.b16 %v7584, %v7575
  %v8008 = vpack.c.b16 %v7585, %v7576
  %v8009 = vpack.c.b16 %v7586, %v7577
  %v8010 = vpack.c.b16 %v7587, %v7578
  %v8011 = vpack.c.b16 %v7597, %v7588
  %v8012 = vpack.c.b16 %v7598, %v7589
  %v8013 = vpack.c.b16 %v7599, %v7590
  %v8014 = vpack.c.b16 %v7600, %v7591
  %v8015 = vpack.c.b16 %v7601, %v7592
  %v8016 = vpack.c.b16 %v7602, %v7593
  %v8017 = vpack.c.b16 %v7603, %v7594
  %v8018 = vpack.c.b16 %v7604, %v7595
  %v8019 = vpack.c.b16 %v7605, %v7596
  %v8020 = vpack.c.b16 %v7615, %v7606
  %v8021 = vpack.c.b16 %v7616, %v7607
  %v8022 = vpack.c.b16 %v7617, %v7608
  %v8023 = vpack.c.b16 %v7618, %v7609
  %v8024 = vpack.c.b16 %v7619, %v7610
  %v8025 = vpack.c.b16 %v7620, %v7611
  %v8026 = vpack.c.b16 %v7621, %v7612
  %v8027 = vpack.c.b16 %v7622, %v7613
  %v8028 = vpack.c.b16 %v7623, %v7614
  %v8029 = vpack.c.b16 %v7633, %v7624
  %v8030 = vpack.c.b16 %v7634, %v7625
  %v8031 = vpack.c.b16 %v7635, %v7626
  %v8032 = vpack.c.b16 %v7636, %v7627
  %v8033 = vpack.c.b16 %v7637, %v7628
  %v8034 = vpack.c.b16 %v7638, %v7629
  %v8035 = vpack.c.b16 %v7639, %v7630
  %v8036 = vpack.c.b16 %v7640, %v7631
  %v8037 = vpack.c.b16 %v7641, %v7632
  %v8038 = vpack.c.b16 %v7651, %v7642
  %v8039 = vpack.c.b16 %v7652, %v7643
  %v8040 = vpack.c.b16 %v7653, %v7644
  %v8041 = vpack.c.b16 %v7654, %v7645
  %v8042 = vpack.c.b16 %v7655, %v7646
  %v8043 = vpack.c.b16 %v7656, %v7647
  %v8044 = vpack.c.b16 %v7657, %v7648
  %v8045 = vpack.c.b16 %v7658, %v7649
  %v8046 = vpack.c.b16 %v7659, %v7650
  %v8047 = vpack.c.b16 %v7669, %v7660
  %v8048 = vpack.c.b16 %v7670, %v7661
  %v8049 = vpack.c.b16 %v7671, %v7662
  %v8050 = vpack.c.b16 %v7672, %v7663
  %v8051 = vpack.c.b16 %v7673, %v7664
  %v8052 = vpack.c.b16 %v7674, %v7665
  %v8053 = vpack.c.b16 %v7675, %v7666
  %v8054 = vpack.c.b16 %v7676, %v7667
  %v8055 = vpack.c.b16 %v7677, %v7668
  %v8056 = vpack.c.b16 %v7687, %v7678
  %v8057 = vpack.c.b16 %v7688, %v7679
  %v8058 = vpack.c.b16 %v7689, %v7680
  %v8059 = vpack.c.b16 %v7690, %v7681
  %v8060 = vpack.c.b16 %v7691, %v7682
  %v8061 = vpack.c.b16 %v7692, %v7683
  %v8062 = vpack.c.b16 %v7693, %v7684
  %v8063 = vpack.c.b16 %v7694, %v7685
  %v8064 = vpack.c.b16 %v7695, %v7686
  %v8065 = vpack.c.b16 %v7705, %v7696
  %v8066 = vpack.c.b16 %v7706, %v7697
  %v8067 = vpack.c.b16 %v7707, %v7698
  %v8068 = vpack.c.b16 %v7708, %v7699
  %v8069 = vpack.c.b16 %v7709, %v7700
  %v8070 = vpack.c.b16 %v7710, %v7701
  %v8071 = vpack.c.b16 %v7711, %v7702
  %v8072 = vpack.c.b16 %v7712, %v7703
  %v8073 = vpack.c.b16 %v7713, %v7704
  %v8074 = vpack.c.b16 %v7723, %v7714
  %v8075 = vpack.c.b16 %v7724, %v7715
  %v8076 = vpack.c.b16 %v7725, %v7716
  %v8077 = vpack.c.b16 %v7726, %v7717
  %v8078 = vpack.c.b16 %v7727, %v7718
  %v8079 = vpack.c.b16 %v7728, %v7719
  %v8080 = vpack.c.b16 %v7729, %v7720
  %v8081 = vpack.c.b16 %v7730, %v7721
  %v8082 = vpack.c.b16 %v7731, %v7722
  %v8083 = vpack.c.b16 %v7741, %v7732
  %v8084 = vpack.c.b16 %v7742, %v7733
  %v8085 = vpack.c.b16 %v7743, %v7734
  %v8086 = vpack.c.b16 %v7744, %v7735
  %v8087 = vpack.c.b16 %v7745, %v7736
  %v8088 = vpack.c.b16 %v7746, %v7737
  %v8089 = vpack.c.b16 %v7747, %v7738
  %v8090 = vpack.c.b16 %v7748, %v7739
  %v8091 = vpack.c.b16 %v7749, %v7740
  %v8092 = vpack.c.b16 %v7759, %v7750
  %v8093 = vpack.c.b16 %v7760, %v7751
  %v8094 = vpack.c.b16 %v7761, %v7752
  %v8095 = vpack.c.b16 %v7762, %v7753
  %v8096 = vpack.c.b16 %v7763, %v7754
  %v8097 = vpack.c.b16 %v7764, %v7755
  %v8098 = vpack.c.b16 %v7765, %v7756
  %v8099 = vpack.c.b16 %v7766, %v7757
  %v8100 = vpack.c.b16 %v7767, %v7758
  %v8101 = vpack.c.b16 %v7777, %v7768
  %v8102 = vpack.c.b16 %v7778, %v7769
  %v8103 = vpack.c.b16 %v7779, %v7770
  %v8104 = vpack.c.b16 %v7780, %v7771
  %v8105 = vpack.c.b16 %v7781, %v7772
  %v8106 = vpack.c.b16 %v7782, %v7773
  %v8107 = vpack.c.b16 %v7783, %v7774
  %v8108 = vpack.c.b16 %v7784, %v7775
  %v8109 = vpack.c.b16 %v7785, %v7776
  %v8110 = vpack.c.b16 %v7795, %v7786
  %v8111 = vpack.c.b16 %v7796, %v7787
  %v8112 = vpack.c.b16 %v7797, %v7788
  %v8113 = vpack.c.b16 %v7798, %v7789
  %v8114 = vpack.c.b16 %v7799, %v7790
  %v8115 = vpack.c.b16 %v7800, %v7791
  %v8116 = vpack.c.b16 %v7801, %v7792
  %v8117 = vpack.c.b16 %v7802, %v7793
  %v8118 = vpack.c.b16 %v7803, %v7794
  %v8119 = vpack.c.b16 %v7813, %v7804
  %v8120 = vpack.c.b16 %v7814, %v7805
  %v8121 = vpack.c.b16 %v7815, %v7806
  %v8122 = vpack.c.b16 %v7816, %v7807
  %v8123 = vpack.c.b16 %v7817, %v7808
  %v8124 = vpack.c.b16 %v7818, %v7809
  %v8125 = vpack.c.b16 %v7819, %v7810
  %v8126 = vpack.c.b16 %v7820, %v7811
  %v8127 = vpack.c.b16 %v7821, %v7812
  %v8128 = vpack.c.b16 %v7831, %v7822
  %v8129 = vpack.c.b16 %v7832, %v7823
  %v8130 = vpack.c.b16 %v7833, %v7824
  %v8131 = vpack.c.b16 %v7834, %v7825
  %v8132 = vpack.c.b16 %v7835, %v7826
  %v8133 = vpack.c.b16 %v7836, %v7827
  %v8134 = vpack.c.b16 %v7837, %v7828
  %v8135 = vpack.c.b16 %v7838, %v7829
  %v8136 = vpack.c.b16 %v7839, %v7830
  %v8137 = vpack.c.b16 %v7849, %v7840
  %v8138 = vpack.c.b16 %v7850, %v7841
  %v8139 = vpack.c.b16 %v7851, %v7842
  %v8140 = vpack.c.b16 %v7852, %v7843
  %v8141 = vpack.c.b16 %v7853, %v7844
  %v8142 = vpack.c.b16 %v7854, %v7845
  %v8143 = vpack.c.b16 %v7855, %v7846
  %v8144 = vpack.c.b16 %v7856, %v7847
  %v8145 = vpack.c.b16 %v7857, %v7848
  %8434 = vmatprep.subr.bf16.mxu0 %v7922
  %8435 = vmatpush1.bf16.msra.mxu0 %v7921
  %8436 = vmatprep.subr.bf16.mxu0 %v7913
  %8437 = vmatpush1.bf16.msra.mxu0 %v7912
  %8438 = vmatprep.subr.bf16.mxu0 %v7904
  %8439 = vmatpush1.bf16.msra.mxu0 %v7903
  %8440 = vmatprep.subr.bf16.mxu0 %v7895
  %8441 = vmatpush1.bf16.msra.mxu0 %v7894
  %8442 = vmatprep.subr.bf16.mxu0 %v7886
  %8443 = vmatpush1.bf16.msra.mxu0 %v7885
  %8444 = vmatprep.subr.bf16.mxu0 %v7877
  %8445 = vmatpush1.bf16.msra.mxu0 %v7876
  %8446 = vmatprep.subr.bf16.mxu0 %v7868
  %8447 = vmatpush1.bf16.msra.mxu0 %v7867
  %8448 = vmatprep.subr.bf16.mxu0 %v7859
  %8449 = vmatpush1.bf16.msra.mxu0 %v7858
  %8450 = vmatprep.subr.bf16.mxu0 %v7994
  %8451 = vmatpush2.bf16.msra.mxu0 %v7993
  %8452 = vmatprep.subr.bf16.mxu0 %v7985
  %8453 = vmatpush2.bf16.msra.mxu0 %v7984
  %8454 = vmatprep.subr.bf16.mxu0 %v7976
  %8455 = vmatpush2.bf16.msra.mxu0 %v7975
  %8456 = vmatprep.subr.bf16.mxu0 %v7967
  %8457 = vmatpush2.bf16.msra.mxu0 %v7966
  %8458 = vmatprep.subr.bf16.mxu0 %v7958
  %8459 = vmatpush2.bf16.msra.mxu0 %v7957
  %8460 = vmatprep.subr.bf16.mxu0 %v7949
  %8461 = vmatpush2.bf16.msra.mxu0 %v7948
  %8462 = vmatprep.subr.bf16.mxu0 %v7940
  %8463 = vmatpush2.bf16.msra.mxu0 %v7939
  %8464 = vmatprep.subr.bf16.mxu0 %v7931
  %8465 = vmatpush2.bf16.msra.mxu0 %v7930
  %8466 = vmatprep.mubr.bf16.mxu0 %v415
  %8467 = vmatmul.mubr.bf16.gmra.mxu0 %v414
  %v8468 = vpop.f32.mrf.mxu0
  %v8469 = vadd.f32 %v6945, %v8468
  %v8470 = vpop.f32.mrf.mxu0
  %v8471 = vadd.f32 %v6945, %v8470
  %v8472 = vpop.f32.mrf.mxu0
  %v8473 = vadd.f32 %v6950, %v8472
  %v8474 = vpop.f32.mrf.mxu0
  %v8475 = vadd.f32 %v6950, %v8474
  %8476 = vmatprep.mubr.bf16.mxu0 %v419
  %8477 = vmatmul.mubr.bf16.gmra.mxu0 %v418
  %v8478 = vpop.f32.mrf.mxu0
  %v8479 = vadd.f32 %v6955, %v8478
  %v8480 = vpop.f32.mrf.mxu0
  %v8481 = vadd.f32 %v6955, %v8480
  %v8482 = vpop.f32.mrf.mxu0
  %v8483 = vadd.f32 %v6960, %v8482
  %v8484 = vpop.f32.mrf.mxu0
  %v8485 = vadd.f32 %v6960, %v8484
  %8486 = vdwg.mxu0
  %8487 = vmatprep.subr.bf16.mxu0 %v8066
  %8488 = vmatpush1.bf16.msra.mxu0 %v8065
  %8489 = vmatprep.subr.bf16.mxu0 %v8057
  %8490 = vmatpush1.bf16.msra.mxu0 %v8056
  %8491 = vmatprep.subr.bf16.mxu0 %v8048
  %8492 = vmatpush1.bf16.msra.mxu0 %v8047
  %8493 = vmatprep.subr.bf16.mxu0 %v8039
  %8494 = vmatpush1.bf16.msra.mxu0 %v8038
  %8495 = vmatprep.subr.bf16.mxu0 %v8030
  %8496 = vmatpush1.bf16.msra.mxu0 %v8029
  %8497 = vmatprep.subr.bf16.mxu0 %v8021
  %8498 = vmatpush1.bf16.msra.mxu0 %v8020
  %8499 = vmatprep.subr.bf16.mxu0 %v8012
  %8500 = vmatpush1.bf16.msra.mxu0 %v8011
  %8501 = vmatprep.subr.bf16.mxu0 %v8003
  %8502 = vmatpush1.bf16.msra.mxu0 %v8002
  %8503 = vmatprep.subr.bf16.mxu0 %v8138
  %8504 = vmatpush2.bf16.msra.mxu0 %v8137
  %8505 = vmatprep.subr.bf16.mxu0 %v8129
  %8506 = vmatpush2.bf16.msra.mxu0 %v8128
  %8507 = vmatprep.subr.bf16.mxu0 %v8120
  %8508 = vmatpush2.bf16.msra.mxu0 %v8119
  %8509 = vmatprep.subr.bf16.mxu0 %v8111
  %8510 = vmatpush2.bf16.msra.mxu0 %v8110
  %8511 = vmatprep.subr.bf16.mxu0 %v8102
  %8512 = vmatpush2.bf16.msra.mxu0 %v8101
  %8513 = vmatprep.subr.bf16.mxu0 %v8093
  %8514 = vmatpush2.bf16.msra.mxu0 %v8092
  %8515 = vmatprep.subr.bf16.mxu0 %v8084
  %8516 = vmatpush2.bf16.msra.mxu0 %v8083
  %8517 = vmatprep.subr.bf16.mxu0 %v8075
  %8518 = vmatpush2.bf16.msra.mxu0 %v8074
  %8519 = vmatprep.mubr.bf16.mxu0 %v417
  %8520 = vmatmul.mubr.bf16.gmra.mxu0 %v416
  %v8521 = vpop.f32.mrf.mxu0
  %v8522 = vadd.f32 %v8469, %v8521
  %v8523 = vpop.f32.mrf.mxu0
  %v8524 = vadd.f32 %v8471, %v8523
  %v8525 = vpop.f32.mrf.mxu0
  %v8526 = vadd.f32 %v8473, %v8525
  %v8527 = vpop.f32.mrf.mxu0
  %v8528 = vadd.f32 %v8475, %v8527
  %8529 = vmatprep.mubr.bf16.mxu0 %v421
  %8530 = vmatmul.mubr.bf16.gmra.mxu0 %v420
  %v8531 = vpop.f32.mrf.mxu0
  %v8532 = vadd.f32 %v8479, %v8531
  %v8533 = vpop.f32.mrf.mxu0
  %v8534 = vadd.f32 %v8481, %v8533
  %v8535 = vpop.f32.mrf.mxu0
  %v8536 = vadd.f32 %v8483, %v8535
  %v8537 = vpop.f32.mrf.mxu0
  %v8538 = vadd.f32 %v8485, %v8537
  %8539 = vdwg.mxu0
  %8540 = vmatprep.subr.bf16.mxu0 %v7924
  %8541 = vmatpush1.bf16.msra.mxu0 %v7923
  %8542 = vmatprep.subr.bf16.mxu0 %v7915
  %8543 = vmatpush1.bf16.msra.mxu0 %v7914
  %8544 = vmatprep.subr.bf16.mxu0 %v7906
  %8545 = vmatpush1.bf16.msra.mxu0 %v7905
  %8546 = vmatprep.subr.bf16.mxu0 %v7897
  %8547 = vmatpush1.bf16.msra.mxu0 %v7896
  %8548 = vmatprep.subr.bf16.mxu0 %v7888
  %8549 = vmatpush1.bf16.msra.mxu0 %v7887
  %8550 = vmatprep.subr.bf16.mxu0 %v7879
  %8551 = vmatpush1.bf16.msra.mxu0 %v7878
  %8552 = vmatprep.subr.bf16.mxu0 %v7870
  %8553 = vmatpush1.bf16.msra.mxu0 %v7869
  %8554 = vmatprep.subr.bf16.mxu0 %v7861
  %8555 = vmatpush1.bf16.msra.mxu0 %v7860
  %8556 = vmatprep.subr.bf16.mxu0 %v7996
  %8557 = vmatpush2.bf16.msra.mxu0 %v7995
  %8558 = vmatprep.subr.bf16.mxu0 %v7987
  %8559 = vmatpush2.bf16.msra.mxu0 %v7986
  %8560 = vmatprep.subr.bf16.mxu0 %v7978
  %8561 = vmatpush2.bf16.msra.mxu0 %v7977
  %8562 = vmatprep.subr.bf16.mxu0 %v7969
  %8563 = vmatpush2.bf16.msra.mxu0 %v7968
  %8564 = vmatprep.subr.bf16.mxu0 %v7960
  %8565 = vmatpush2.bf16.msra.mxu0 %v7959
  %8566 = vmatprep.subr.bf16.mxu0 %v7951
  %8567 = vmatpush2.bf16.msra.mxu0 %v7950
  %8568 = vmatprep.subr.bf16.mxu0 %v7942
  %8569 = vmatpush2.bf16.msra.mxu0 %v7941
  %8570 = vmatprep.subr.bf16.mxu0 %v7933
  %8571 = vmatpush2.bf16.msra.mxu0 %v7932
  %8572 = vmatprep.mubr.bf16.mxu0 %v415
  %8573 = vmatmul.mubr.bf16.gmra.mxu0 %v414
  %v8574 = vpop.f32.mrf.mxu0
  %v8575 = vadd.f32 %v6945, %v8574
  %v8576 = vpop.f32.mrf.mxu0
  %v8577 = vadd.f32 %v6945, %v8576
  %v8578 = vpop.f32.mrf.mxu0
  %v8579 = vadd.f32 %v6950, %v8578
  %v8580 = vpop.f32.mrf.mxu0
  %v8581 = vadd.f32 %v6950, %v8580
  %8582 = vmatprep.mubr.bf16.mxu0 %v419
  %8583 = vmatmul.mubr.bf16.gmra.mxu0 %v418
  %v8584 = vpop.f32.mrf.mxu0
  %v8585 = vadd.f32 %v6955, %v8584
  %v8586 = vpop.f32.mrf.mxu0
  %v8587 = vadd.f32 %v6955, %v8586
  %v8588 = vpop.f32.mrf.mxu0
  %v8589 = vadd.f32 %v6960, %v8588
  %v8590 = vpop.f32.mrf.mxu0
  %v8591 = vadd.f32 %v6960, %v8590
  %8592 = vdwg.mxu0
  %8593 = vmatprep.subr.bf16.mxu0 %v8068
  %8594 = vmatpush1.bf16.msra.mxu0 %v8067
  %8595 = vmatprep.subr.bf16.mxu0 %v8059
  %8596 = vmatpush1.bf16.msra.mxu0 %v8058
  %8597 = vmatprep.subr.bf16.mxu0 %v8050
  %8598 = vmatpush1.bf16.msra.mxu0 %v8049
  %8599 = vmatprep.subr.bf16.mxu0 %v8041
  %8600 = vmatpush1.bf16.msra.mxu0 %v8040
  %8601 = vmatprep.subr.bf16.mxu0 %v8032
  %8602 = vmatpush1.bf16.msra.mxu0 %v8031
  %8603 = vmatprep.subr.bf16.mxu0 %v8023
  %8604 = vmatpush1.bf16.msra.mxu0 %v8022
  %8605 = vmatprep.subr.bf16.mxu0 %v8014
  %8606 = vmatpush1.bf16.msra.mxu0 %v8013
  %8607 = vmatprep.subr.bf16.mxu0 %v8005
  %8608 = vmatpush1.bf16.msra.mxu0 %v8004
  %8609 = vmatprep.subr.bf16.mxu0 %v8140
  %8610 = vmatpush2.bf16.msra.mxu0 %v8139
  %8611 = vmatprep.subr.bf16.mxu0 %v8131
  %8612 = vmatpush2.bf16.msra.mxu0 %v8130
  %8613 = vmatprep.subr.bf16.mxu0 %v8122
  %8614 = vmatpush2.bf16.msra.mxu0 %v8121
  %8615 = vmatprep.subr.bf16.mxu0 %v8113
  %8616 = vmatpush2.bf16.msra.mxu0 %v8112
  %8617 = vmatprep.subr.bf16.mxu0 %v8104
  %8618 = vmatpush2.bf16.msra.mxu0 %v8103
  %8619 = vmatprep.subr.bf16.mxu0 %v8095
  %8620 = vmatpush2.bf16.msra.mxu0 %v8094
  %8621 = vmatprep.subr.bf16.mxu0 %v8086
  %8622 = vmatpush2.bf16.msra.mxu0 %v8085
  %8623 = vmatprep.subr.bf16.mxu0 %v8077
  %8624 = vmatpush2.bf16.msra.mxu0 %v8076
  %8625 = vmatprep.mubr.bf16.mxu0 %v417
  %8626 = vmatmul.mubr.bf16.gmra.mxu0 %v416
  %v8627 = vpop.f32.mrf.mxu0
  %v8628 = vadd.f32 %v8575, %v8627
  %v8629 = vpop.f32.mrf.mxu0
  %v8630 = vadd.f32 %v8577, %v8629
  %v8631 = vpop.f32.mrf.mxu0
  %v8632 = vadd.f32 %v8579, %v8631
  %v8633 = vpop.f32.mrf.mxu0
  %v8634 = vadd.f32 %v8581, %v8633
  %8635 = vmatprep.mubr.bf16.mxu0 %v421
  %8636 = vmatmul.mubr.bf16.gmra.mxu0 %v420
  %v8637 = vpop.f32.mrf.mxu0
  %v8638 = vadd.f32 %v8585, %v8637
  %v8639 = vpop.f32.mrf.mxu0
  %v8640 = vadd.f32 %v8587, %v8639
  %v8641 = vpop.f32.mrf.mxu0
  %v8642 = vadd.f32 %v8589, %v8641
  %v8643 = vpop.f32.mrf.mxu0
  %v8644 = vadd.f32 %v8591, %v8643
  %8645 = vdwg.mxu0
  %8646 = vmatprep.subr.bf16.mxu0 %v7926
  %8647 = vmatpush1.bf16.msra.mxu0 %v7925
  %8648 = vmatprep.subr.bf16.mxu0 %v7917
  %8649 = vmatpush1.bf16.msra.mxu0 %v7916
  %8650 = vmatprep.subr.bf16.mxu0 %v7908
  %8651 = vmatpush1.bf16.msra.mxu0 %v7907
  %8652 = vmatprep.subr.bf16.mxu0 %v7899
  %8653 = vmatpush1.bf16.msra.mxu0 %v7898
  %8654 = vmatprep.subr.bf16.mxu0 %v7890
  %8655 = vmatpush1.bf16.msra.mxu0 %v7889
  %8656 = vmatprep.subr.bf16.mxu0 %v7881
  %8657 = vmatpush1.bf16.msra.mxu0 %v7880
  %8658 = vmatprep.subr.bf16.mxu0 %v7872
  %8659 = vmatpush1.bf16.msra.mxu0 %v7871
  %8660 = vmatprep.subr.bf16.mxu0 %v7863
  %8661 = vmatpush1.bf16.msra.mxu0 %v7862
  %8662 = vmatprep.subr.bf16.mxu0 %v7998
  %8663 = vmatpush2.bf16.msra.mxu0 %v7997
  %8664 = vmatprep.subr.bf16.mxu0 %v7989
  %8665 = vmatpush2.bf16.msra.mxu0 %v7988
  %8666 = vmatprep.subr.bf16.mxu0 %v7980
  %8667 = vmatpush2.bf16.msra.mxu0 %v7979
  %8668 = vmatprep.subr.bf16.mxu0 %v7971
  %8669 = vmatpush2.bf16.msra.mxu0 %v7970
  %8670 = vmatprep.subr.bf16.mxu0 %v7962
  %8671 = vmatpush2.bf16.msra.mxu0 %v7961
  %8672 = vmatprep.subr.bf16.mxu0 %v7953
  %8673 = vmatpush2.bf16.msra.mxu0 %v7952
  %8674 = vmatprep.subr.bf16.mxu0 %v7944
  %8675 = vmatpush2.bf16.msra.mxu0 %v7943
  %8676 = vmatprep.subr.bf16.mxu0 %v7935
  %8677 = vmatpush2.bf16.msra.mxu0 %v7934
  %8678 = vmatprep.mubr.bf16.mxu0 %v415
  %8679 = vmatmul.mubr.bf16.gmra.mxu0 %v414
  %v8680 = vpop.f32.mrf.mxu0
  %v8681 = vadd.f32 %v6945, %v8680
  %v8682 = vpop.f32.mrf.mxu0
  %v8683 = vadd.f32 %v6945, %v8682
  %v8684 = vpop.f32.mrf.mxu0
  %v8685 = vadd.f32 %v6950, %v8684
  %v8686 = vpop.f32.mrf.mxu0
  %v8687 = vadd.f32 %v6950, %v8686
  %8688 = vmatprep.mubr.bf16.mxu0 %v419
  %8689 = vmatmul.mubr.bf16.gmra.mxu0 %v418
  %v8690 = vpop.f32.mrf.mxu0
  %v8691 = vadd.f32 %v6955, %v8690
  %v8692 = vpop.f32.mrf.mxu0
  %v8693 = vadd.f32 %v6955, %v8692
  %v8694 = vpop.f32.mrf.mxu0
  %v8695 = vadd.f32 %v6960, %v8694
  %v8696 = vpop.f32.mrf.mxu0
  %v8697 = vadd.f32 %v6960, %v8696
  %8698 = vdwg.mxu0
  %8699 = vmatprep.subr.bf16.mxu0 %v8070
  %8700 = vmatpush1.bf16.msra.mxu0 %v8069
  %8701 = vmatprep.subr.bf16.mxu0 %v8061
  %8702 = vmatpush1.bf16.msra.mxu0 %v8060
  %8703 = vmatprep.subr.bf16.mxu0 %v8052
  %8704 = vmatpush1.bf16.msra.mxu0 %v8051
  %8705 = vmatprep.subr.bf16.mxu0 %v8043
  %8706 = vmatpush1.bf16.msra.mxu0 %v8042
  %8707 = vmatprep.subr.bf16.mxu0 %v8034
  %8708 = vmatpush1.bf16.msra.mxu0 %v8033
  %8709 = vmatprep.subr.bf16.mxu0 %v8025
  %8710 = vmatpush1.bf16.msra.mxu0 %v8024
  %8711 = vmatprep.subr.bf16.mxu0 %v8016
  %8712 = vmatpush1.bf16.msra.mxu0 %v8015
  %8713 = vmatprep.subr.bf16.mxu0 %v8007
  %8714 = vmatpush1.bf16.msra.mxu0 %v8006
  %8715 = vmatprep.subr.bf16.mxu0 %v8142
  %8716 = vmatpush2.bf16.msra.mxu0 %v8141
  %8717 = vmatprep.subr.bf16.mxu0 %v8133
  %8718 = vmatpush2.bf16.msra.mxu0 %v8132
  %8719 = vmatprep.subr.bf16.mxu0 %v8124
  %8720 = vmatpush2.bf16.msra.mxu0 %v8123
  %8721 = vmatprep.subr.bf16.mxu0 %v8115
  %8722 = vmatpush2.bf16.msra.mxu0 %v8114
  %8723 = vmatprep.subr.bf16.mxu0 %v8106
  %8724 = vmatpush2.bf16.msra.mxu0 %v8105
  %8725 = vmatprep.subr.bf16.mxu0 %v8097
  %8726 = vmatpush2.bf16.msra.mxu0 %v8096
  %8727 = vmatprep.subr.bf16.mxu0 %v8088
  %8728 = vmatpush2.bf16.msra.mxu0 %v8087
  %8729 = vmatprep.subr.bf16.mxu0 %v8079
  %8730 = vmatpush2.bf16.msra.mxu0 %v8078
  %8731 = vmatprep.mubr.bf16.mxu0 %v417
  %8732 = vmatmul.mubr.bf16.gmra.mxu0 %v416
  %v8733 = vpop.f32.mrf.mxu0
  %v8734 = vadd.f32 %v8681, %v8733
  %v8735 = vpop.f32.mrf.mxu0
  %v8736 = vadd.f32 %v8683, %v8735
  %v8737 = vpop.f32.mrf.mxu0
  %v8738 = vadd.f32 %v8685, %v8737
  %v8739 = vpop.f32.mrf.mxu0
  %v8740 = vadd.f32 %v8687, %v8739
  %8741 = vmatprep.mubr.bf16.mxu0 %v421
  %8742 = vmatmul.mubr.bf16.gmra.mxu0 %v420
  %v8743 = vpop.f32.mrf.mxu0
  %v8744 = vadd.f32 %v8691, %v8743
  %v8745 = vpop.f32.mrf.mxu0
  %v8746 = vadd.f32 %v8693, %v8745
  %v8747 = vpop.f32.mrf.mxu0
  %v8748 = vadd.f32 %v8695, %v8747
  %v8749 = vpop.f32.mrf.mxu0
  %v8750 = vadd.f32 %v8697, %v8749
  %8751 = vdwg.mxu0
  %8752 = vmatprep.subr.bf16.mxu0 %v7928
  %8753 = vmatpush1.bf16.msra.mxu0 %v7927
  %8754 = vmatprep.subr.bf16.mxu0 %v7919
  %8755 = vmatpush1.bf16.msra.mxu0 %v7918
  %8756 = vmatprep.subr.bf16.mxu0 %v7910
  %8757 = vmatpush1.bf16.msra.mxu0 %v7909
  %8758 = vmatprep.subr.bf16.mxu0 %v7901
  %8759 = vmatpush1.bf16.msra.mxu0 %v7900
  %8760 = vmatprep.subr.bf16.mxu0 %v7892
  %8761 = vmatpush1.bf16.msra.mxu0 %v7891
  %8762 = vmatprep.subr.bf16.mxu0 %v7883
  %8763 = vmatpush1.bf16.msra.mxu0 %v7882
  %8764 = vmatprep.subr.bf16.mxu0 %v7874
  %8765 = vmatpush1.bf16.msra.mxu0 %v7873
  %8766 = vmatprep.subr.bf16.mxu0 %v7865
  %8767 = vmatpush1.bf16.msra.mxu0 %v7864
  %8768 = vmatprep.subr.bf16.mxu0 %v8000
  %8769 = vmatpush2.bf16.msra.mxu0 %v7999
  %8770 = vmatprep.subr.bf16.mxu0 %v7991
  %8771 = vmatpush2.bf16.msra.mxu0 %v7990
  %8772 = vmatprep.subr.bf16.mxu0 %v7982
  %8773 = vmatpush2.bf16.msra.mxu0 %v7981
  %8774 = vmatprep.subr.bf16.mxu0 %v7973
  %8775 = vmatpush2.bf16.msra.mxu0 %v7972
  %8776 = vmatprep.subr.bf16.mxu0 %v7964
  %8777 = vmatpush2.bf16.msra.mxu0 %v7963
  %8778 = vmatprep.subr.bf16.mxu0 %v7955
  %8779 = vmatpush2.bf16.msra.mxu0 %v7954
  %8780 = vmatprep.subr.bf16.mxu0 %v7946
  %8781 = vmatpush2.bf16.msra.mxu0 %v7945
  %8782 = vmatprep.subr.bf16.mxu0 %v7937
  %8783 = vmatpush2.bf16.msra.mxu0 %v7936
  %8784 = vmatprep.mubr.bf16.mxu0 %v415
  %8785 = vmatmul.mubr.bf16.gmra.mxu0 %v414
  %v8786 = vpop.f32.mrf.mxu0
  %v8787 = vadd.f32 %v6945, %v8786
  %v8788 = vpop.f32.mrf.mxu0
  %v8789 = vadd.f32 %v6945, %v8788
  %v8790 = vpop.f32.mrf.mxu0
  %v8791 = vadd.f32 %v6950, %v8790
  %v8792 = vpop.f32.mrf.mxu0
  %v8793 = vadd.f32 %v6950, %v8792
  %8794 = vmatprep.mubr.bf16.mxu0 %v419
  %8795 = vmatmul.mubr.bf16.gmra.mxu0 %v418
  %v8796 = vpop.f32.mrf.mxu0
  %v8797 = vadd.f32 %v6955, %v8796
  %v8798 = vpop.f32.mrf.mxu0
  %v8799 = vadd.f32 %v6955, %v8798
  %v8800 = vpop.f32.mrf.mxu0
  %v8801 = vadd.f32 %v6960, %v8800
  %v8802 = vpop.f32.mrf.mxu0
  %v8803 = vadd.f32 %v6960, %v8802
  %8804 = vdwg.mxu0
  %8805 = vmatprep.subr.bf16.mxu0 %v8072
  %8806 = vmatpush1.bf16.msra.mxu0 %v8071
  %8807 = vmatprep.subr.bf16.mxu0 %v8063
  %8808 = vmatpush1.bf16.msra.mxu0 %v8062
  %8809 = vmatprep.subr.bf16.mxu0 %v8054
  %8810 = vmatpush1.bf16.msra.mxu0 %v8053
  %8811 = vmatprep.subr.bf16.mxu0 %v8045
  %8812 = vmatpush1.bf16.msra.mxu0 %v8044
  %8813 = vmatprep.subr.bf16.mxu0 %v8036
  %8814 = vmatpush1.bf16.msra.mxu0 %v8035
  %8815 = vmatprep.subr.bf16.mxu0 %v8027
  %8816 = vmatpush1.bf16.msra.mxu0 %v8026
  %8817 = vmatprep.subr.bf16.mxu0 %v8018
  %8818 = vmatpush1.bf16.msra.mxu0 %v8017
  %8819 = vmatprep.subr.bf16.mxu0 %v8009
  %8820 = vmatpush1.bf16.msra.mxu0 %v8008
  %8821 = vmatprep.subr.bf16.mxu0 %v8144
  %8822 = vmatpush2.bf16.msra.mxu0 %v8143
  %8823 = vmatprep.subr.bf16.mxu0 %v8135
  %8824 = vmatpush2.bf16.msra.mxu0 %v8134
  %8825 = vmatprep.subr.bf16.mxu0 %v8126
  %8826 = vmatpush2.bf16.msra.mxu0 %v8125
  %8827 = vmatprep.subr.bf16.mxu0 %v8117
  %8828 = vmatpush2.bf16.msra.mxu0 %v8116
  %8829 = vmatprep.subr.bf16.mxu0 %v8108
  %8830 = vmatpush2.bf16.msra.mxu0 %v8107
  %8831 = vmatprep.subr.bf16.mxu0 %v8099
  %8832 = vmatpush2.bf16.msra.mxu0 %v8098
  %8833 = vmatprep.subr.bf16.mxu0 %v8090
  %8834 = vmatpush2.bf16.msra.mxu0 %v8089
  %8835 = vmatprep.subr.bf16.mxu0 %v8081
  %8836 = vmatpush2.bf16.msra.mxu0 %v8080
  %8837 = vmatprep.mubr.bf16.mxu0 %v417
  %8838 = vmatmul.mubr.bf16.gmra.mxu0 %v416
  %v8839 = vpop.f32.mrf.mxu0
  %v8840 = vadd.f32 %v8787, %v8839
  %v8841 = vpop.f32.mrf.mxu0
  %v8842 = vadd.f32 %v8789, %v8841
  %v8843 = vpop.f32.mrf.mxu0
  %v8844 = vadd.f32 %v8791, %v8843
  %v8845 = vpop.f32.mrf.mxu0
  %v8846 = vadd.f32 %v8793, %v8845
  %8847 = vmatprep.mubr.bf16.mxu0 %v421
  %8848 = vmatmul.mubr.bf16.gmra.mxu0 %v420
  %v8849 = vpop.f32.mrf.mxu0
  %v8850 = vadd.f32 %v8797, %v8849
  %v8851 = vpop.f32.mrf.mxu0
  %v8852 = vadd.f32 %v8799, %v8851
  %v8853 = vpop.f32.mrf.mxu0
  %v8854 = vadd.f32 %v8801, %v8853
  %v8855 = vpop.f32.mrf.mxu0
  %v8856 = vadd.f32 %v8803, %v8855
  %8857 = vdwg.mxu0
  %8858 = vmatprep.subr.bf16.mxu0 0
  %8859 = vmatpush1.bf16.msra.mxu0 %v7929
  %8860 = vmatprep.subr.bf16.mxu0 0
  %8861 = vmatpush1.bf16.msra.mxu0 %v7920
  %8862 = vmatprep.subr.bf16.mxu0 0
  %8863 = vmatpush1.bf16.msra.mxu0 %v7911
  %8864 = vmatprep.subr.bf16.mxu0 0
  %8865 = vmatpush1.bf16.msra.mxu0 %v7902
  %8866 = vmatprep.subr.bf16.mxu0 0
  %8867 = vmatpush1.bf16.msra.mxu0 %v7893
  %8868 = vmatprep.subr.bf16.mxu0 0
  %8869 = vmatpush1.bf16.msra.mxu0 %v7884
  %8870 = vmatprep.subr.bf16.mxu0 0
  %8871 = vmatpush1.bf16.msra.mxu0 %v7875
  %8872 = vmatprep.subr.bf16.mxu0 0
  %8873 = vmatpush1.bf16.msra.mxu0 %v7866
  %8874 = vmatprep.subr.bf16.mxu0 0
  %8875 = vmatpush2.bf16.msra.mxu0 %v8001
  %8876 = vmatprep.subr.bf16.mxu0 0
  %8877 = vmatpush2.bf16.msra.mxu0 %v7992
  %8878 = vmatprep.subr.bf16.mxu0 0
  %8879 = vmatpush2.bf16.msra.mxu0 %v7983
  %8880 = vmatprep.subr.bf16.mxu0 0
  %8881 = vmatpush2.bf16.msra.mxu0 %v7974
  %8882 = vmatprep.subr.bf16.mxu0 0
  %8883 = vmatpush2.bf16.msra.mxu0 %v7965
  %8884 = vmatprep.subr.bf16.mxu0 0
  %8885 = vmatpush2.bf16.msra.mxu0 %v7956
  %8886 = vmatprep.subr.bf16.mxu0 0
  %8887 = vmatpush2.bf16.msra.mxu0 %v7947
  %8888 = vmatprep.subr.bf16.mxu0 0
  %8889 = vmatpush2.bf16.msra.mxu0 %v7938
  %8890 = vmatprep.mubr.bf16.mxu0 %v415
  %8891 = vmatmul.mubr.bf16.gmra.mxu0 %v414
  %v8892 = vpop.f32.mrf.mxu0
  %v8893 = vadd.f32 %v6945, %v8892
  %v8894 = vpop.f32.mrf.mxu0
  %v8895 = vpop.f32.mrf.mxu0
  %v8896 = vadd.f32 %v6950, %v8895
  %v8897 = vpop.f32.mrf.mxu0
  %8898 = vmatprep.mubr.bf16.mxu0 %v419
  %8899 = vmatmul.mubr.bf16.gmra.mxu0 %v418
  %v8900 = vpop.f32.mrf.mxu0
  %v8901 = vadd.f32 %v6955, %v8900
  %v8902 = vpop.f32.mrf.mxu0
  %v8903 = vpop.f32.mrf.mxu0
  %v8904 = vadd.f32 %v6960, %v8903
  %v8905 = vpop.f32.mrf.mxu0
  %8906 = vdwg.mxu0
  %8907 = vmatprep.subr.bf16.mxu0 0
  %8908 = vmatpush1.bf16.msra.mxu0 %v8073
  %8909 = vmatprep.subr.bf16.mxu0 0
  %8910 = vmatpush1.bf16.msra.mxu0 %v8064
  %8911 = vmatprep.subr.bf16.mxu0 0
  %8912 = vmatpush1.bf16.msra.mxu0 %v8055
  %8913 = vmatprep.subr.bf16.mxu0 0
  %8914 = vmatpush1.bf16.msra.mxu0 %v8046
  %8915 = vmatprep.subr.bf16.mxu0 0
  %8916 = vmatpush1.bf16.msra.mxu0 %v8037
  %8917 = vmatprep.subr.bf16.mxu0 0
  %8918 = vmatpush1.bf16.msra.mxu0 %v8028
  %8919 = vmatprep.subr.bf16.mxu0 0
  %8920 = vmatpush1.bf16.msra.mxu0 %v8019
  %8921 = vmatprep.subr.bf16.mxu0 0
  %8922 = vmatpush1.bf16.msra.mxu0 %v8010
  %8923 = vmatprep.subr.bf16.mxu0 0
  %8924 = vmatpush2.bf16.msra.mxu0 %v8145
  %8925 = vmatprep.subr.bf16.mxu0 0
  %8926 = vmatpush2.bf16.msra.mxu0 %v8136
  %8927 = vmatprep.subr.bf16.mxu0 0
  %8928 = vmatpush2.bf16.msra.mxu0 %v8127
  %8929 = vmatprep.subr.bf16.mxu0 0
  %8930 = vmatpush2.bf16.msra.mxu0 %v8118
  %8931 = vmatprep.subr.bf16.mxu0 0
  %8932 = vmatpush2.bf16.msra.mxu0 %v8109
  %8933 = vmatprep.subr.bf16.mxu0 0
  %8934 = vmatpush2.bf16.msra.mxu0 %v8100
  %8935 = vmatprep.subr.bf16.mxu0 0
  %8936 = vmatpush2.bf16.msra.mxu0 %v8091
  %8937 = vmatprep.subr.bf16.mxu0 0
  %8938 = vmatpush2.bf16.msra.mxu0 %v8082
  %8939 = vmatprep.mubr.bf16.mxu0 %v417
  %8940 = vmatmul.mubr.bf16.gmra.mxu0 %v416
  %v8941 = vpop.f32.mrf.mxu0
  %v8942 = vadd.f32 %v8893, %v8941
  %v8943 = vpop.f32.mrf.mxu0
  %v8944 = vpop.f32.mrf.mxu0
  %v8945 = vadd.f32 %v8896, %v8944
  %v8946 = vpop.f32.mrf.mxu0
  %8947 = vmatprep.mubr.bf16.mxu0 %v421
  %8948 = vmatmul.mubr.bf16.gmra.mxu0 %v420
  %v8949 = vpop.f32.mrf.mxu0
  %v8950 = vadd.f32 %v8901, %v8949
  %v8951 = vpop.f32.mrf.mxu0
  %v8952 = vpop.f32.mrf.mxu0
  %v8953 = vadd.f32 %v8904, %v8952
  %v8954 = vpop.f32.mrf.mxu0
  %8955 = vdwg.mxu0
  %vm8956 = vcmp.gt.f32.partialorder %v8522, 0.0
  %vm8957 = vcmp.gt.f32.partialorder %v8524, 0.0
  %vm8958 = vcmp.gt.f32.partialorder %v8628, 0.0
  %vm8959 = vcmp.gt.f32.partialorder %v8630, 0.0
  %vm8960 = vcmp.gt.f32.partialorder %v8734, 0.0
  %vm8961 = vcmp.gt.f32.partialorder %v8736, 0.0
  %vm8962 = vcmp.gt.f32.partialorder %v8840, 0.0
  %vm8963 = vcmp.gt.f32.partialorder %v8842, 0.0
  %vm8964 = vcmp.gt.f32.partialorder %v8942, 0.0
  %vm8965 = vcmp.gt.f32.partialorder %v8526, 0.0
  %vm8966 = vcmp.gt.f32.partialorder %v8528, 0.0
  %vm8967 = vcmp.gt.f32.partialorder %v8632, 0.0
  %vm8968 = vcmp.gt.f32.partialorder %v8634, 0.0
  %vm8969 = vcmp.gt.f32.partialorder %v8738, 0.0
  %vm8970 = vcmp.gt.f32.partialorder %v8740, 0.0
  %vm8971 = vcmp.gt.f32.partialorder %v8844, 0.0
  %vm8972 = vcmp.gt.f32.partialorder %v8846, 0.0
  %vm8973 = vcmp.gt.f32.partialorder %v8945, 0.0
  %vm8974 = vcmp.gt.f32.partialorder %v8532, 0.0
  %vm8975 = vcmp.gt.f32.partialorder %v8534, 0.0
  %vm8976 = vcmp.gt.f32.partialorder %v8638, 0.0
  %vm8977 = vcmp.gt.f32.partialorder %v8640, 0.0
  %vm8978 = vcmp.gt.f32.partialorder %v8744, 0.0
  %vm8979 = vcmp.gt.f32.partialorder %v8746, 0.0
  %vm8980 = vcmp.gt.f32.partialorder %v8850, 0.0
  %vm8981 = vcmp.gt.f32.partialorder %v8852, 0.0
  %vm8982 = vcmp.gt.f32.partialorder %v8950, 0.0
  %vm8983 = vcmp.gt.f32.partialorder %v8536, 0.0
  %vm8984 = vcmp.gt.f32.partialorder %v8538, 0.0
  %vm8985 = vcmp.gt.f32.partialorder %v8642, 0.0
  %vm8986 = vcmp.gt.f32.partialorder %v8644, 0.0
  %vm8987 = vcmp.gt.f32.partialorder %v8748, 0.0
  %vm8988 = vcmp.gt.f32.partialorder %v8750, 0.0
  %vm8989 = vcmp.gt.f32.partialorder %v8854, 0.0
  %vm8990 = vcmp.gt.f32.partialorder %v8856, 0.0
  %vm8991 = vcmp.gt.f32.partialorder %v8953, 0.0
  %v8992 = vmin.f32 %v8522, 0.0
  %v8993 = vmin.f32 %v8524, 0.0
  %v8994 = vmin.f32 %v8628, 0.0
  %v8995 = vmin.f32 %v8630, 0.0
  %v8996 = vmin.f32 %v8734, 0.0
  %v8997 = vmin.f32 %v8736, 0.0
  %v8998 = vmin.f32 %v8840, 0.0
  %v8999 = vmin.f32 %v8842, 0.0
  %v9000 = vmin.f32 %v8942, 0.0
  %v9001 = vmin.f32 %v8526, 0.0
  %v9002 = vmin.f32 %v8528, 0.0
  %v9003 = vmin.f32 %v8632, 0.0
  %v9004 = vmin.f32 %v8634, 0.0
  %v9005 = vmin.f32 %v8738, 0.0
  %v9006 = vmin.f32 %v8740, 0.0
  %v9007 = vmin.f32 %v8844, 0.0
  %v9008 = vmin.f32 %v8846, 0.0
  %v9009 = vmin.f32 %v8945, 0.0
  %v9010 = vmin.f32 %v8532, 0.0
  %v9011 = vmin.f32 %v8534, 0.0
  %v9012 = vmin.f32 %v8638, 0.0
  %v9013 = vmin.f32 %v8640, 0.0
  %v9014 = vmin.f32 %v8744, 0.0
  %v9015 = vmin.f32 %v8746, 0.0
  %v9016 = vmin.f32 %v8850, 0.0
  %v9017 = vmin.f32 %v8852, 0.0
  %v9018 = vmin.f32 %v8950, 0.0
  %v9019 = vmin.f32 %v8536, 0.0
  %v9020 = vmin.f32 %v8538, 0.0
  %v9021 = vmin.f32 %v8642, 0.0
  %v9022 = vmin.f32 %v8644, 0.0
  %v9023 = vmin.f32 %v8748, 0.0
  %v9024 = vmin.f32 %v8750, 0.0
  %v9025 = vmin.f32 %v8854, 0.0
  %v9026 = vmin.f32 %v8856, 0.0
  %v9027 = vmin.f32 %v8953, 0.0
  %v9028 = vmul.f32 %v8992, 1.442695
  %v9029 = vpow.pop %v9028
  %v9030 = vmul.f32 %v8993, 1.442695
  %v9031 = vpow.pop %v9030
  %v9032 = vmul.f32 %v8994, 1.442695
  %v9033 = vpow.pop %v9032
  %v9034 = vmul.f32 %v8995, 1.442695
  %v9035 = vpow.pop %v9034
  %v9036 = vmul.f32 %v8996, 1.442695
  %v9037 = vpow.pop %v9036
  %v9038 = vmul.f32 %v8997, 1.442695
  %v9039 = vpow.pop %v9038
  %v9040 = vmul.f32 %v8998, 1.442695
  %v9041 = vpow.pop %v9040
  %v9042 = vmul.f32 %v8999, 1.442695
  %v9043 = vpow.pop %v9042
  %v9044 = vmul.f32 %v9000, 1.442695
  %v9045 = vpow.pop %v9044
  %v9046 = vmul.f32 %v9001, 1.442695
  %v9047 = vpow.pop %v9046
  %v9048 = vmul.f32 %v9002, 1.442695
  %v9049 = vpow.pop %v9048
  %v9050 = vmul.f32 %v9003, 1.442695
  %v9051 = vpow.pop %v9050
  %v9052 = vmul.f32 %v9004, 1.442695
  %v9053 = vpow.pop %v9052
  %v9054 = vmul.f32 %v9005, 1.442695
  %v9055 = vpow.pop %v9054
  %v9056 = vmul.f32 %v9006, 1.442695
  %v9057 = vpow.pop %v9056
  %v9058 = vmul.f32 %v9007, 1.442695
  %v9059 = vpow.pop %v9058
  %v9060 = vmul.f32 %v9008, 1.442695
  %v9061 = vpow.pop %v9060
  %v9062 = vmul.f32 %v9009, 1.442695
  %v9063 = vpow.pop %v9062
  %v9064 = vmul.f32 %v9010, 1.442695
  %v9065 = vpow.pop %v9064
  %v9066 = vmul.f32 %v9011, 1.442695
  %v9067 = vpow.pop %v9066
  %v9068 = vmul.f32 %v9012, 1.442695
  %v9069 = vpow.pop %v9068
  %v9070 = vmul.f32 %v9013, 1.442695
  %v9071 = vpow.pop %v9070
  %v9072 = vmul.f32 %v9014, 1.442695
  %v9073 = vpow.pop %v9072
  %v9074 = vmul.f32 %v9015, 1.442695
  %v9075 = vpow.pop %v9074
  %v9076 = vmul.f32 %v9016, 1.442695
  %v9077 = vpow.pop %v9076
  %v9078 = vmul.f32 %v9017, 1.442695
  %v9079 = vpow.pop %v9078
  %v9080 = vmul.f32 %v9018, 1.442695
  %v9081 = vpow.pop %v9080
  %v9082 = vmul.f32 %v9019, 1.442695
  %v9083 = vpow.pop %v9082
  %v9084 = vmul.f32 %v9020, 1.442695
  %v9085 = vpow.pop %v9084
  %v9086 = vmul.f32 %v9021, 1.442695
  %v9087 = vpow.pop %v9086
  %v9088 = vmul.f32 %v9022, 1.442695
  %v9089 = vpow.pop %v9088
  %v9090 = vmul.f32 %v9023, 1.442695
  %v9091 = vpow.pop %v9090
  %v9092 = vmul.f32 %v9024, 1.442695
  %v9093 = vpow.pop %v9092
  %v9094 = vmul.f32 %v9025, 1.442695
  %v9095 = vpow.pop %v9094
  %v9096 = vmul.f32 %v9026, 1.442695
  %v9097 = vpow.pop %v9096
  %v9098 = vmul.f32 %v9027, 1.442695
  %v9099 = vpow.pop %v9098
  %v9100 = vsub.f32 %v9029, 1.0
  %v9101 = vsub.f32 %v9031, 1.0
  %v9102 = vsub.f32 %v9033, 1.0
  %v9103 = vsub.f32 %v9035, 1.0
  %v9104 = vsub.f32 %v9037, 1.0
  %v9105 = vsub.f32 %v9039, 1.0
  %v9106 = vsub.f32 %v9041, 1.0
  %v9107 = vsub.f32 %v9043, 1.0
  %v9108 = vsub.f32 %v9045, 1.0
  %v9109 = vsub.f32 %v9047, 1.0
  %v9110 = vsub.f32 %v9049, 1.0
  %v9111 = vsub.f32 %v9051, 1.0
  %v9112 = vsub.f32 %v9053, 1.0
  %v9113 = vsub.f32 %v9055, 1.0
  %v9114 = vsub.f32 %v9057, 1.0
  %v9115 = vsub.f32 %v9059, 1.0
  %v9116 = vsub.f32 %v9061, 1.0
  %v9117 = vsub.f32 %v9063, 1.0
  %v9118 = vsub.f32 %v9065, 1.0
  %v9119 = vsub.f32 %v9067, 1.0
  %v9120 = vsub.f32 %v9069, 1.0
  %v9121 = vsub.f32 %v9071, 1.0
  %v9122 = vsub.f32 %v9073, 1.0
  %v9123 = vsub.f32 %v9075, 1.0
  %v9124 = vsub.f32 %v9077, 1.0
  %v9125 = vsub.f32 %v9079, 1.0
  %v9126 = vsub.f32 %v9081, 1.0
  %v9127 = vsub.f32 %v9083, 1.0
  %v9128 = vsub.f32 %v9085, 1.0
  %v9129 = vsub.f32 %v9087, 1.0
  %v9130 = vsub.f32 %v9089, 1.0
  %v9131 = vsub.f32 %v9091, 1.0
  %v9132 = vsub.f32 %v9093, 1.0
  %v9133 = vsub.f32 %v9095, 1.0
  %v9134 = vsub.f32 %v9097, 1.0
  %v9135 = vsub.f32 %v9099, 1.0
  %v9136 = vsel %vm8956, %v8522, %v9100
  %v9137 = vsel %vm8957, %v8524, %v9101
  %v9138 = vsel %vm8958, %v8628, %v9102
  %v9139 = vsel %vm8959, %v8630, %v9103
  %v9140 = vsel %vm8960, %v8734, %v9104
  %v9141 = vsel %vm8961, %v8736, %v9105
  %v9142 = vsel %vm8962, %v8840, %v9106
  %v9143 = vsel %vm8963, %v8842, %v9107
  %v9144 = vsel %vm8964, %v8942, %v9108
  %v9145 = vsel %vm8965, %v8526, %v9109
  %v9146 = vsel %vm8966, %v8528, %v9110
  %v9147 = vsel %vm8967, %v8632, %v9111
  %v9148 = vsel %vm8968, %v8634, %v9112
  %v9149 = vsel %vm8969, %v8738, %v9113
  %v9150 = vsel %vm8970, %v8740, %v9114
  %v9151 = vsel %vm8971, %v8844, %v9115
  %v9152 = vsel %vm8972, %v8846, %v9116
  %v9153 = vsel %vm8973, %v8945, %v9117
  %v9154 = vsel %vm8974, %v8532, %v9118
  %v9155 = vsel %vm8975, %v8534, %v9119
  %v9156 = vsel %vm8976, %v8638, %v9120
  %v9157 = vsel %vm8977, %v8640, %v9121
  %v9158 = vsel %vm8978, %v8744, %v9122
  %v9159 = vsel %vm8979, %v8746, %v9123
  %v9160 = vsel %vm8980, %v8850, %v9124
  %v9161 = vsel %vm8981, %v8852, %v9125
  %v9162 = vsel %vm8982, %v8950, %v9126
  %v9163 = vsel %vm8983, %v8536, %v9127
  %v9164 = vsel %vm8984, %v8538, %v9128
  %v9165 = vsel %vm8985, %v8642, %v9129
  %v9166 = vsel %vm8986, %v8644, %v9130
  %v9167 = vsel %vm8987, %v8748, %v9131
  %v9168 = vsel %vm8988, %v8750, %v9132
  %v9169 = vsel %vm8989, %v8854, %v9133
  %v9170 = vsel %vm8990, %v8856, %v9134
  %v9171 = vsel %vm8991, %v8953, %v9135
  %v9172 = vpack.c.bf16 %v9145, %v9136
  %v9173 = vpack.c.bf16 %v9146, %v9137
  %v9174 = vpack.c.bf16 %v9147, %v9138
  %v9175 = vpack.c.bf16 %v9148, %v9139
  %v9176 = vpack.c.bf16 %v9149, %v9140
  %v9177 = vpack.c.bf16 %v9150, %v9141
  %v9178 = vpack.c.bf16 %v9151, %v9142
  %v9179 = vpack.c.bf16 %v9152, %v9143
  %v9180 = vpack.c.bf16 %v9153, %v9144
  %v9181 = vpack.c.bf16 %v9163, %v9154
  %v9182 = vpack.c.bf16 %v9164, %v9155
  %v9183 = vpack.c.bf16 %v9165, %v9156
  %v9184 = vpack.c.bf16 %v9166, %v9157
  %v9185 = vpack.c.bf16 %v9167, %v9158
  %v9186 = vpack.c.bf16 %v9168, %v9159
  %v9187 = vpack.c.bf16 %v9169, %v9160
  %v9188 = vpack.c.bf16 %v9170, %v9161
  %v9189 = vpack.c.bf16 %v9171, %v9162
  %v9190 = vld [vmem:[%s3] sm:$0xff]
  %v9191 = vld [vmem:[%s3 + $0x8] sm:$0xf]
  %v9192 = vld [vmem:[%s3 + $0xc] sm:$0xff]
  %v9193 = vld [vmem:[%s3 + $0x14] sm:$0xf]
  %v9194 = vld [vmem:[%s3 + $0x18] sm:$0xff]
  %v9195 = vld [vmem:[%s3 + $0x20] sm:$0xf]
  %v9196 = vld [vmem:[%s3 + $0x24] sm:$0xff]
  %v9197 = vld [vmem:[%s3 + $0x2c] sm:$0xf]
  %v9198 = vld [vmem:[%s3 + $0x30] sm:$0xff]
  %v9199 = vld [vmem:[%s3 + $0x38] sm:$0xf]
  %v9200 = vld [vmem:[%s3 + $0x3c] sm:$0xff]
  %v9201 = vld [vmem:[%s3 + $0x44] sm:$0xf]
  %v9202 = vld [vmem:[%s3 + $0x48] sm:$0xff]
  %v9203 = vld [vmem:[%s3 + $0x50] sm:$0xf]
  %v9204 = vld [vmem:[%s3 + $0x54] sm:$0xff]
  %v9205 = vld [vmem:[%s3 + $0x5c] sm:$0xf]
  %v9206 = vld [vmem:[%s3 + $0x60] sm:$0xff]
  %v9207 = vld [vmem:[%s3 + $0x68] sm:$0xf]
  %v9208 = vld [vmem:[%s3 + $0x6c] sm:$0xff]
  %v9209 = vld [vmem:[%s3 + $0x74] sm:$0xf]
  %v9210 = vld [vmem:[%s3 + $0x78] sm:$0xff]
  %v9211 = vld [vmem:[%s3 + $0x80] sm:$0xf]
  %v9212 = vld [vmem:[%s3 + $0x84] sm:$0xff]
  %v9213 = vld [vmem:[%s3 + $0x8c] sm:$0xf]
  %v9214 = vld [vmem:[%s3 + $0x90] sm:$0xff]
  %v9215 = vld [vmem:[%s3 + $0x98] sm:$0xf]
  %v9216 = vld [vmem:[%s3 + $0x9c] sm:$0xff]
  %v9217 = vld [vmem:[%s3 + $0xa4] sm:$0xf]
  %v9218 = vld [vmem:[%s3 + $0xa8] sm:$0xff]
  %v9219 = vld [vmem:[%s3 + $0xb0] sm:$0xf]
  %v9220 = vld [vmem:[%s3 + $0xb4] sm:$0xff]
  %v9221 = vld [vmem:[%s3 + $0xbc] sm:$0xf]
  %v9222 = vld [vmem:[%s3 + $0xc0] sm:$0xff]
  %v9223 = vld [vmem:[%s3 + $0xc8] sm:$0xf]
  %v9224 = vld [vmem:[%s3 + $0xcc] sm:$0xff]
  %v9225 = vld [vmem:[%s3 + $0xd4] sm:$0xf]
  %v9226 = vld [vmem:[%s3 + $0xd8] sm:$0xff]
  %v9227 = vld [vmem:[%s3 + $0xe0] sm:$0xf]
  %v9228 = vld [vmem:[%s3 + $0xe4] sm:$0xff]
  %v9229 = vld [vmem:[%s3 + $0xec] sm:$0xf]
  %v9230 = vld [vmem:[%s3 + $0xf0] sm:$0xff]
  %v9231 = vld [vmem:[%s3 + $0xf8] sm:$0xf]
  %v9232 = vld [vmem:[%s3 + $0xfc] sm:$0xff]
  %v9233 = vld [vmem:[%s3 + $0x104] sm:$0xf]
  %v9234 = vld [vmem:[%s3 + $0x108] sm:$0xff]
  %v9235 = vld [vmem:[%s3 + $0x110] sm:$0xf]
  %v9236 = vld [vmem:[%s3 + $0x114] sm:$0xff]
  %v9237 = vld [vmem:[%s3 + $0x11c] sm:$0xf]
  %v9238 = vld [vmem:[%s3 + $0x120] sm:$0xff]
  %v9239 = vld [vmem:[%s3 + $0x128] sm:$0xf]
  %v9240 = vld [vmem:[%s3 + $0x12c] sm:$0xff]
  %v9241 = vld [vmem:[%s3 + $0x134] sm:$0xf]
  %v9242 = vld [vmem:[%s3 + $0x138] sm:$0xff]
  %v9243 = vld [vmem:[%s3 + $0x140] sm:$0xf]
  %v9244 = vld [vmem:[%s3 + $0x144] sm:$0xff]
  %v9245 = vld [vmem:[%s3 + $0x14c] sm:$0xf]
  %v9246 = vld [vmem:[%s3 + $0x150] sm:$0xff]
  %v9247 = vld [vmem:[%s3 + $0x158] sm:$0xf]
  %v9248 = vld [vmem:[%s3 + $0x15c] sm:$0xff]
  %v9249 = vld [vmem:[%s3 + $0x164] sm:$0xf]
  %v9250 = vld [vmem:[%s3 + $0x168] sm:$0xff]
  %v9251 = vld [vmem:[%s3 + $0x170] sm:$0xf]
  %v9252 = vld [vmem:[%s3 + $0x174] sm:$0xff]
  %v9253 = vld [vmem:[%s3 + $0x17c] sm:$0xf]
  %v9254 = vld [vmem:[%s3 + $0x180] sm:$0xff]
  %v9255 = vld [vmem:[%s3 + $0x188] sm:$0xf]
  %v9256 = vld [vmem:[%s3 + $0x18c] sm:$0xff]
  %v9257 = vld [vmem:[%s3 + $0x194] sm:$0xf]
  %v9258 = vld [vmem:[%s3 + $0x198] sm:$0xff]
  %v9259 = vld [vmem:[%s3 + $0x1a0] sm:$0xf]
  %v9260 = vld [vmem:[%s3 + $0x1a4] sm:$0xff]
  %v9261 = vld [vmem:[%s3 + $0x1ac] sm:$0xf]
  %v9262 = vld [vmem:[%s3 + $0x1b0] sm:$0xff]
  %v9263 = vld [vmem:[%s3 + $0x1b8] sm:$0xf]
  %v9264 = vld [vmem:[%s3 + $0x1bc] sm:$0xff]
  %v9265 = vld [vmem:[%s3 + $0x1c4] sm:$0xf]
  %v9266 = vld [vmem:[%s3 + $0x1c8] sm:$0xff]
  %v9267 = vld [vmem:[%s3 + $0x1d0] sm:$0xf]
  %v9268 = vld [vmem:[%s3 + $0x1d4] sm:$0xff]
  %v9269 = vld [vmem:[%s3 + $0x1dc] sm:$0xf]
  %v9270 = vld [vmem:[%s3 + $0x1e0] sm:$0xff]
  %v9271 = vld [vmem:[%s3 + $0x1e8] sm:$0xf]
  %v9272 = vld [vmem:[%s3 + $0x1ec] sm:$0xff]
  %v9273 = vld [vmem:[%s3 + $0x1f4] sm:$0xf]
  %v9274 = vld [vmem:[%s3 + $0x1f8] sm:$0xff]
  %v9275 = vld [vmem:[%s3 + $0x200] sm:$0xf]
  %v9276 = vld [vmem:[%s3 + $0x204] sm:$0xff]
  %v9277 = vld [vmem:[%s3 + $0x20c] sm:$0xf]
  %v9278 = vld [vmem:[%s3 + $0x210] sm:$0xff]
  %v9279 = vld [vmem:[%s3 + $0x218] sm:$0xf]
  %v9280 = vld [vmem:[%s3 + $0x21c] sm:$0xff]
  %v9281 = vld [vmem:[%s3 + $0x224] sm:$0xf]
  %v9282 = vld [vmem:[%s3 + $0x228] sm:$0xff]
  %v9283 = vld [vmem:[%s3 + $0x230] sm:$0xf]
  %v9284 = vld [vmem:[%s3 + $0x234] sm:$0xff]
  %v9285 = vld [vmem:[%s3 + $0x23c] sm:$0xf]
  %v9286 = vld [vmem:[%s3 + $0x240] sm:$0xff]
  %v9287 = vld [vmem:[%s3 + $0x248] sm:$0xf]
  %v9288 = vld [vmem:[%s3 + $0x24c] sm:$0xff]
  %v9289 = vld [vmem:[%s3 + $0x254] sm:$0xf]
  %v9290 = vld [vmem:[%s3 + $0x258] sm:$0xff]
  %v9291 = vld [vmem:[%s3 + $0x260] sm:$0xf]
  %v9292 = vld [vmem:[%s3 + $0x264] sm:$0xff]
  %v9293 = vld [vmem:[%s3 + $0x26c] sm:$0xf]
  %v9294 = vld [vmem:[%s3 + $0x270] sm:$0xff]
  %v9295 = vld [vmem:[%s3 + $0x278] sm:$0xf]
  %v9296 = vld [vmem:[%s3 + $0x27c] sm:$0xff]
  %v9297 = vld [vmem:[%s3 + $0x284] sm:$0xf]
  %v9298 = vld [vmem:[%s3 + $0x288] sm:$0xff]
  %v9299 = vld [vmem:[%s3 + $0x290] sm:$0xf]
  %v9300 = vld [vmem:[%s3 + $0x294] sm:$0xff]
  %v9301 = vld [vmem:[%s3 + $0x29c] sm:$0xf]
  %v9302 = vld [vmem:[%s3 + $0x2a0] sm:$0xff]
  %v9303 = vld [vmem:[%s3 + $0x2a8] sm:$0xf]
  %v9304 = vld [vmem:[%s3 + $0x2ac] sm:$0xff]
  %v9305 = vld [vmem:[%s3 + $0x2b4] sm:$0xf]
  %v9306 = vld [vmem:[%s3 + $0x2b8] sm:$0xff]
  %v9307 = vld [vmem:[%s3 + $0x2c0] sm:$0xf]
  %v9308 = vld [vmem:[%s3 + $0x2c4] sm:$0xff]
  %v9309 = vld [vmem:[%s3 + $0x2cc] sm:$0xf]
  %v9310 = vld [vmem:[%s3 + $0x2d0] sm:$0xff]
  %v9311 = vld [vmem:[%s3 + $0x2d8] sm:$0xf]
  %v9312 = vld [vmem:[%s3 + $0x2dc] sm:$0xff]
  %v9313 = vld [vmem:[%s3 + $0x2e4] sm:$0xf]
  %v9314 = vld [vmem:[%s3 + $0x2e8] sm:$0xff]
  %v9315 = vld [vmem:[%s3 + $0x2f0] sm:$0xf]
  %v9316 = vld [vmem:[%s3 + $0x2f4] sm:$0xff]
  %v9317 = vld [vmem:[%s3 + $0x2fc] sm:$0xf]
  %v9318 = vld [vmem:[%s3 + $0x300] sm:$0xff]
  %v9319 = vld [vmem:[%s3 + $0x308] sm:$0xf]
  %v9320 = vld [vmem:[%s3 + $0x30c] sm:$0xff]
  %v9321 = vld [vmem:[%s3 + $0x314] sm:$0xf]
  %v9322 = vld [vmem:[%s3 + $0x318] sm:$0xff]
  %v9323 = vld [vmem:[%s3 + $0x320] sm:$0xf]
  %v9324 = vld [vmem:[%s3 + $0x324] sm:$0xff]
  %v9325 = vld [vmem:[%s3 + $0x32c] sm:$0xf]
  %v9326 = vld [vmem:[%s3 + $0x330] sm:$0xff]
  %v9327 = vld [vmem:[%s3 + $0x338] sm:$0xf]
  %v9328 = vld [vmem:[%s3 + $0x33c] sm:$0xff]
  %v9329 = vld [vmem:[%s3 + $0x344] sm:$0xf]
  %v9330 = vld [vmem:[%s3 + $0x348] sm:$0xff]
  %v9331 = vld [vmem:[%s3 + $0x350] sm:$0xf]
  %v9332 = vld [vmem:[%s3 + $0x354] sm:$0xff]
  %v9333 = vld [vmem:[%s3 + $0x35c] sm:$0xf]
  %v9334 = vld [vmem:[%s3 + $0x360] sm:$0xff]
  %v9335 = vld [vmem:[%s3 + $0x368] sm:$0xf]
  %v9336 = vld [vmem:[%s3 + $0x36c] sm:$0xff]
  %v9337 = vld [vmem:[%s3 + $0x374] sm:$0xf]
  %v9338 = vld [vmem:[%s3 + $0x378] sm:$0xff]
  %v9339 = vld [vmem:[%s3 + $0x380] sm:$0xf]
  %v9340 = vld [vmem:[%s3 + $0x384] sm:$0xff]
  %v9341 = vld [vmem:[%s3 + $0x38c] sm:$0xf]
  %v9342 = vld [vmem:[%s3 + $0x390] sm:$0xff]
  %v9343 = vld [vmem:[%s3 + $0x398] sm:$0xf]
  %v9344 = vld [vmem:[%s3 + $0x39c] sm:$0xff]
  %v9345 = vld [vmem:[%s3 + $0x3a4] sm:$0xf]
  %v9346 = vld [vmem:[%s3 + $0x3a8] sm:$0xff]
  %v9347 = vld [vmem:[%s3 + $0x3b0] sm:$0xf]
  %v9348 = vld [vmem:[%s3 + $0x3b4] sm:$0xff]
  %v9349 = vld [vmem:[%s3 + $0x3bc] sm:$0xf]
  %v9350 = vld [vmem:[%s3 + $0x3c0] sm:$0xff]
  %v9351 = vld [vmem:[%s3 + $0x3c8] sm:$0xf]
  %v9352 = vld [vmem:[%s3 + $0x3cc] sm:$0xff]
  %v9353 = vld [vmem:[%s3 + $0x3d4] sm:$0xf]
  %v9354 = vld [vmem:[%s3 + $0x3d8] sm:$0xff]
  %v9355 = vld [vmem:[%s3 + $0x3e0] sm:$0xf]
  %v9356 = vld [vmem:[%s3 + $0x3e4] sm:$0xff]
  %v9357 = vld [vmem:[%s3 + $0x3ec] sm:$0xf]
  %v9358 = vld [vmem:[%s3 + $0x3f0] sm:$0xff]
  %v9359 = vld [vmem:[%s3 + $0x3f8] sm:$0xf]
  %v9360 = vld [vmem:[%s3 + $0x3fc] sm:$0xff]
  %v9361 = vld [vmem:[%s3 + $0x404] sm:$0xf]
  %v9362 = vld [vmem:[%s3 + $0x408] sm:$0xff]
  %v9363 = vld [vmem:[%s3 + $0x410] sm:$0xf]
  %v9364 = vld [vmem:[%s3 + $0x414] sm:$0xff]
  %v9365 = vld [vmem:[%s3 + $0x41c] sm:$0xf]
  %v9366 = vld [vmem:[%s3 + $0x420] sm:$0xff]
  %v9367 = vld [vmem:[%s3 + $0x428] sm:$0xf]
  %v9368 = vld [vmem:[%s3 + $0x42c] sm:$0xff]
  %v9369 = vld [vmem:[%s3 + $0x434] sm:$0xf]
  %v9370 = vld [vmem:[%s3 + $0x438] sm:$0xff]
  %v9371 = vld [vmem:[%s3 + $0x440] sm:$0xf]
  %v9372 = vld [vmem:[%s3 + $0x444] sm:$0xff]
  %v9373 = vld [vmem:[%s3 + $0x44c] sm:$0xf]
  %v9374 = vld [vmem:[%s3 + $0x450] sm:$0xff]
  %v9375 = vld [vmem:[%s3 + $0x458] sm:$0xf]
  %v9376 = vld [vmem:[%s3 + $0x45c] sm:$0xff]
  %v9377 = vld [vmem:[%s3 + $0x464] sm:$0xf]
  %v9378 = vld [vmem:[%s3 + $0x468] sm:$0xff]
  %v9379 = vld [vmem:[%s3 + $0x470] sm:$0xf]
  %v9380 = vld [vmem:[%s3 + $0x474] sm:$0xff]
  %v9381 = vld [vmem:[%s3 + $0x47c] sm:$0xf]
  %v9382 = vld [vmem:[%s3 + $0x480] sm:$0xff]
  %v9383 = vld [vmem:[%s3 + $0x488] sm:$0xf]
  %v9384 = vld [vmem:[%s3 + $0x48c] sm:$0xff]
  %v9385 = vld [vmem:[%s3 + $0x494] sm:$0xf]
  %v9386 = vld [vmem:[%s3 + $0x498] sm:$0xff]
  %v9387 = vld [vmem:[%s3 + $0x4a0] sm:$0xf]
  %v9388 = vld [vmem:[%s3 + $0x4a4] sm:$0xff]
  %v9389 = vld [vmem:[%s3 + $0x4ac] sm:$0xf]
  %v9390 = vld [vmem:[%s3 + $0x4b0] sm:$0xff]
  %v9391 = vld [vmem:[%s3 + $0x4b8] sm:$0xf]
  %v9392 = vld [vmem:[%s3 + $0x4bc] sm:$0xff]
  %v9393 = vld [vmem:[%s3 + $0x4c4] sm:$0xf]
  %v9394 = vld [vmem:[%s3 + $0x4c8] sm:$0xff]
  %v9395 = vld [vmem:[%s3 + $0x4d0] sm:$0xf]
  %v9396 = vld [vmem:[%s3 + $0x4d4] sm:$0xff]
  %v9397 = vld [vmem:[%s3 + $0x4dc] sm:$0xf]
  %v9398 = vld [vmem:[%s3 + $0x4e0] sm:$0xff]
  %v9399 = vld [vmem:[%s3 + $0x4e8] sm:$0xf]
  %v9400 = vld [vmem:[%s3 + $0x4ec] sm:$0xff]
  %v9401 = vld [vmem:[%s3 + $0x4f4] sm:$0xf]
  %v9402 = vld [vmem:[%s3 + $0x4f8] sm:$0xff]
  %v9403 = vld [vmem:[%s3 + $0x500] sm:$0xf]
  %v9404 = vld [vmem:[%s3 + $0x504] sm:$0xff]
  %v9405 = vld [vmem:[%s3 + $0x50c] sm:$0xf]
  %v9406 = vld [vmem:[%s3 + $0x510] sm:$0xff]
  %v9407 = vld [vmem:[%s3 + $0x518] sm:$0xf]
  %v9408 = vld [vmem:[%s3 + $0x51c] sm:$0xff]
  %v9409 = vld [vmem:[%s3 + $0x524] sm:$0xf]
  %v9410 = vld [vmem:[%s3 + $0x528] sm:$0xff]
  %v9411 = vld [vmem:[%s3 + $0x530] sm:$0xf]
  %v9412 = vld [vmem:[%s3 + $0x534] sm:$0xff]
  %v9413 = vld [vmem:[%s3 + $0x53c] sm:$0xf]
  %v9414 = vld [vmem:[%s3 + $0x540] sm:$0xff]
  %v9415 = vld [vmem:[%s3 + $0x548] sm:$0xf]
  %v9416 = vld [vmem:[%s3 + $0x54c] sm:$0xff]
  %v9417 = vld [vmem:[%s3 + $0x554] sm:$0xf]
  %v9418 = vld [vmem:[%s3 + $0x558] sm:$0xff]
  %v9419 = vld [vmem:[%s3 + $0x560] sm:$0xf]
  %v9420 = vld [vmem:[%s3 + $0x564] sm:$0xff]
  %v9421 = vld [vmem:[%s3 + $0x56c] sm:$0xf]
  %v9422 = vld [vmem:[%s3 + $0x570] sm:$0xff]
  %v9423 = vld [vmem:[%s3 + $0x578] sm:$0xf]
  %v9424 = vld [vmem:[%s3 + $0x57c] sm:$0xff]
  %v9425 = vld [vmem:[%s3 + $0x584] sm:$0xf]
  %v9426 = vld [vmem:[%s3 + $0x588] sm:$0xff]
  %v9427 = vld [vmem:[%s3 + $0x590] sm:$0xf]
  %v9428 = vld [vmem:[%s3 + $0x594] sm:$0xff]
  %v9429 = vld [vmem:[%s3 + $0x59c] sm:$0xf]
  %v9430 = vld [vmem:[%s3 + $0x5a0] sm:$0xff]
  %v9431 = vld [vmem:[%s3 + $0x5a8] sm:$0xf]
  %v9432 = vld [vmem:[%s3 + $0x5ac] sm:$0xff]
  %v9433 = vld [vmem:[%s3 + $0x5b4] sm:$0xf]
  %v9434 = vld [vmem:[%s3 + $0x5b8] sm:$0xff]
  %v9435 = vld [vmem:[%s3 + $0x5c0] sm:$0xf]
  %v9436 = vld [vmem:[%s3 + $0x5c4] sm:$0xff]
  %v9437 = vld [vmem:[%s3 + $0x5cc] sm:$0xf]
  %v9438 = vld [vmem:[%s3 + $0x5d0] sm:$0xff]
  %v9439 = vld [vmem:[%s3 + $0x5d8] sm:$0xf]
  %v9440 = vld [vmem:[%s3 + $0x5dc] sm:$0xff]
  %v9441 = vld [vmem:[%s3 + $0x5e4] sm:$0xf]
  %v9442 = vld [vmem:[%s3 + $0x5e8] sm:$0xff]
  %v9443 = vld [vmem:[%s3 + $0x5f0] sm:$0xf]
  %v9444 = vld [vmem:[%s3 + $0x5f4] sm:$0xff]
  %v9445 = vld [vmem:[%s3 + $0x5fc] sm:$0xf]
  %v9446 = vld [vmem:[%s3 + $0x600] sm:$0xff]
  %v9447 = vld [vmem:[%s3 + $0x608] sm:$0xf]
  %v9448 = vld [vmem:[%s3 + $0x60c] sm:$0xff]
  %v9449 = vld [vmem:[%s3 + $0x614] sm:$0xf]
  %v9450 = vld [vmem:[%s3 + $0x618] sm:$0xff]
  %v9451 = vld [vmem:[%s3 + $0x620] sm:$0xf]
  %v9452 = vld [vmem:[%s3 + $0x624] sm:$0xff]
  %v9453 = vld [vmem:[%s3 + $0x62c] sm:$0xf]
  %v9454 = vld [vmem:[%s3 + $0x630] sm:$0xff]
  %v9455 = vld [vmem:[%s3 + $0x638] sm:$0xf]
  %v9456 = vld [vmem:[%s3 + $0x63c] sm:$0xff]
  %v9457 = vld [vmem:[%s3 + $0x644] sm:$0xf]
  %v9458 = vld [vmem:[%s3 + $0x648] sm:$0xff]
  %v9459 = vld [vmem:[%s3 + $0x650] sm:$0xf]
  %v9460 = vld [vmem:[%s3 + $0x654] sm:$0xff]
  %v9461 = vld [vmem:[%s3 + $0x65c] sm:$0xf]
  %v9462 = vld [vmem:[%s3 + $0x660] sm:$0xff]
  %v9463 = vld [vmem:[%s3 + $0x668] sm:$0xf]
  %v9464 = vld [vmem:[%s3 + $0x66c] sm:$0xff]
  %v9465 = vld [vmem:[%s3 + $0x674] sm:$0xf]
  %v9466 = vld [vmem:[%s3 + $0x678] sm:$0xff]
  %v9467 = vld [vmem:[%s3 + $0x680] sm:$0xf]
  %v9468 = vld [vmem:[%s3 + $0x684] sm:$0xff]
  %v9469 = vld [vmem:[%s3 + $0x68c] sm:$0xf]
  %v9470 = vld [vmem:[%s3 + $0x690] sm:$0x33]
  %v9471 = vld [vmem:[%s3 + $0x698] sm:$0x3]
  %v9754 = vunpack.c.l.b16 %v9190
  %v9755 = vunpack.c.h.b16 %v9190
  %v9756 = vunpack.c.l.b16 %v9191
  %v9757 = vunpack.c.l.b16 %v9192
  %v9758 = vunpack.c.h.b16 %v9192
  %v9759 = vunpack.c.l.b16 %v9193
  %v9760 = vunpack.c.l.b16 %v9194
  %v9761 = vunpack.c.h.b16 %v9194
  %v9762 = vunpack.c.l.b16 %v9195
  %v9763 = vunpack.c.l.b16 %v9196
  %v9764 = vunpack.c.h.b16 %v9196
  %v9765 = vunpack.c.l.b16 %v9197
  %v9766 = vunpack.c.l.b16 %v9198
  %v9767 = vunpack.c.h.b16 %v9198
  %v9768 = vunpack.c.l.b16 %v9199
  %v9769 = vunpack.c.l.b16 %v9200
  %v9770 = vunpack.c.h.b16 %v9200
  %v9771 = vunpack.c.l.b16 %v9201
  %v9772 = vunpack.c.l.b16 %v9202
  %v9773 = vunpack.c.h.b16 %v9202
  %v9774 = vunpack.c.l.b16 %v9203
  %v9775 = vunpack.c.l.b16 %v9204
  %v9776 = vunpack.c.h.b16 %v9204
  %v9777 = vunpack.c.l.b16 %v9205
  %v9778 = vunpack.c.l.b16 %v9206
  %v9779 = vunpack.c.h.b16 %v9206
  %v9780 = vunpack.c.l.b16 %v9207
  %v9781 = vunpack.c.l.b16 %v9208
  %v9782 = vunpack.c.h.b16 %v9208
  %v9783 = vunpack.c.l.b16 %v9209
  %v9784 = vunpack.c.l.b16 %v9210
  %v9785 = vunpack.c.h.b16 %v9210
  %v9786 = vunpack.c.l.b16 %v9211
  %v9787 = vunpack.c.l.b16 %v9212
  %v9788 = vunpack.c.h.b16 %v9212
  %v9789 = vunpack.c.l.b16 %v9213
  %v9790 = vunpack.c.l.b16 %v9214
  %v9791 = vunpack.c.h.b16 %v9214
  %v9792 = vunpack.c.l.b16 %v9215
  %v9793 = vunpack.c.l.b16 %v9216
  %v9794 = vunpack.c.h.b16 %v9216
  %v9795 = vunpack.c.l.b16 %v9217
  %v9796 = vunpack.c.l.b16 %v9218
  %v9797 = vunpack.c.h.b16 %v9218
  %v9798 = vunpack.c.l.b16 %v9219
  %v9799 = vunpack.c.l.b16 %v9220
  %v9800 = vunpack.c.h.b16 %v9220
  %v9801 = vunpack.c.l.b16 %v9221
  %v9802 = vunpack.c.l.b16 %v9222
  %v9803 = vunpack.c.h.b16 %v9222
  %v9804 = vunpack.c.l.b16 %v9223
  %v9805 = vunpack.c.l.b16 %v9224
  %v9806 = vunpack.c.h.b16 %v9224
  %v9807 = vunpack.c.l.b16 %v9225
  %v9808 = vunpack.c.l.b16 %v9226
  %v9809 = vunpack.c.h.b16 %v9226
  %v9810 = vunpack.c.l.b16 %v9227
  %v9811 = vunpack.c.l.b16 %v9228
  %v9812 = vunpack.c.h.b16 %v9228
  %v9813 = vunpack.c.l.b16 %v9229
  %v9814 = vunpack.c.l.b16 %v9230
  %v9815 = vunpack.c.h.b16 %v9230
  %v9816 = vunpack.c.l.b16 %v9231
  %v9817 = vunpack.c.l.b16 %v9232
  %v9818 = vunpack.c.h.b16 %v9232
  %v9819 = vunpack.c.l.b16 %v9233
  %v9820 = vunpack.c.l.b16 %v9234
  %v9821 = vunpack.c.h.b16 %v9234
  %v9822 = vunpack.c.l.b16 %v9235
  %v9823 = vunpack.c.l.b16 %v9236
  %v9824 = vunpack.c.h.b16 %v9236
  %v9825 = vunpack.c.l.b16 %v9237
  %v9826 = vunpack.c.l.b16 %v9238
  %v9827 = vunpack.c.h.b16 %v9238
  %v9828 = vunpack.c.l.b16 %v9239
  %v9829 = vunpack.c.l.b16 %v9240
  %v9830 = vunpack.c.h.b16 %v9240
  %v9831 = vunpack.c.l.b16 %v9241
  %v9832 = vunpack.c.l.b16 %v9242
  %v9833 = vunpack.c.h.b16 %v9242
  %v9834 = vunpack.c.l.b16 %v9243
  %v9835 = vunpack.c.l.b16 %v9244
  %v9836 = vunpack.c.h.b16 %v9244
  %v9837 = vunpack.c.l.b16 %v9245
  %v9838 = vunpack.c.l.b16 %v9246
  %v9839 = vunpack.c.h.b16 %v9246
  %v9840 = vunpack.c.l.b16 %v9247
  %v9841 = vunpack.c.l.b16 %v9248
  %v9842 = vunpack.c.h.b16 %v9248
  %v9843 = vunpack.c.l.b16 %v9249
  %v9844 = vunpack.c.l.b16 %v9250
  %v9845 = vunpack.c.h.b16 %v9250
  %v9846 = vunpack.c.l.b16 %v9251
  %v9847 = vunpack.c.l.b16 %v9252
  %v9848 = vunpack.c.h.b16 %v9252
  %v9849 = vunpack.c.l.b16 %v9253
  %v9850 = vunpack.c.l.b16 %v9254
  %v9851 = vunpack.c.h.b16 %v9254
  %v9852 = vunpack.c.l.b16 %v9255
  %v9853 = vunpack.c.l.b16 %v9256
  %v9854 = vunpack.c.h.b16 %v9256
  %v9855 = vunpack.c.l.b16 %v9257
  %v9856 = vunpack.c.l.b16 %v9258
  %v9857 = vunpack.c.h.b16 %v9258
  %v9858 = vunpack.c.l.b16 %v9259
  %v9859 = vunpack.c.l.b16 %v9260
  %v9860 = vunpack.c.h.b16 %v9260
  %v9861 = vunpack.c.l.b16 %v9261
  %v9862 = vunpack.c.l.b16 %v9262
  %v9863 = vunpack.c.h.b16 %v9262
  %v9864 = vunpack.c.l.b16 %v9263
  %v9865 = vunpack.c.l.b16 %v9264
  %v9866 = vunpack.c.h.b16 %v9264
  %v9867 = vunpack.c.l.b16 %v9265
  %v9868 = vunpack.c.l.b16 %v9266
  %v9869 = vunpack.c.h.b16 %v9266
  %v9870 = vunpack.c.l.b16 %v9267
  %v9871 = vunpack.c.l.b16 %v9268
  %v9872 = vunpack.c.h.b16 %v9268
  %v9873 = vunpack.c.l.b16 %v9269
  %v9874 = vunpack.c.l.b16 %v9270
  %v9875 = vunpack.c.h.b16 %v9270
  %v9876 = vunpack.c.l.b16 %v9271
  %v9877 = vunpack.c.l.b16 %v9272
  %v9878 = vunpack.c.h.b16 %v9272
  %v9879 = vunpack.c.l.b16 %v9273
  %v9880 = vunpack.c.l.b16 %v9274
  %v9881 = vunpack.c.h.b16 %v9274
  %v9882 = vunpack.c.l.b16 %v9275
  %v9883 = vunpack.c.l.b16 %v9276
  %v9884 = vunpack.c.h.b16 %v9276
  %v9885 = vunpack.c.l.b16 %v9277
  %v9886 = vunpack.c.l.b16 %v9278
  %v9887 = vunpack.c.h.b16 %v9278
  %v9888 = vunpack.c.l.b16 %v9279
  %v9889 = vunpack.c.l.b16 %v9280
  %v9890 = vunpack.c.h.b16 %v9280
  %v9891 = vunpack.c.l.b16 %v9281
  %v9892 = vunpack.c.l.b16 %v9282
  %v9893 = vunpack.c.h.b16 %v9282
  %v9894 = vunpack.c.l.b16 %v9283
  %v9895 = vunpack.c.l.b16 %v9284
  %v9896 = vunpack.c.h.b16 %v9284
  %v9897 = vunpack.c.l.b16 %v9285
  %v9898 = vunpack.c.l.b16 %v9286
  %v9899 = vunpack.c.h.b16 %v9286
  %v9900 = vunpack.c.l.b16 %v9287
  %v9901 = vunpack.c.l.b16 %v9288
  %v9902 = vunpack.c.h.b16 %v9288
  %v9903 = vunpack.c.l.b16 %v9289
  %v9904 = vunpack.c.l.b16 %v9290
  %v9905 = vunpack.c.h.b16 %v9290
  %v9906 = vunpack.c.l.b16 %v9291
  %v9907 = vunpack.c.l.b16 %v9292
  %v9908 = vunpack.c.h.b16 %v9292
  %v9909 = vunpack.c.l.b16 %v9293
  %v9910 = vunpack.c.l.b16 %v9294
  %v9911 = vunpack.c.h.b16 %v9294
  %v9912 = vunpack.c.l.b16 %v9295
  %v9913 = vunpack.c.l.b16 %v9296
  %v9914 = vunpack.c.h.b16 %v9296
  %v9915 = vunpack.c.l.b16 %v9297
  %v9916 = vunpack.c.l.b16 %v9298
  %v9917 = vunpack.c.h.b16 %v9298
  %v9918 = vunpack.c.l.b16 %v9299
  %v9919 = vunpack.c.l.b16 %v9300
  %v9920 = vunpack.c.h.b16 %v9300
  %v9921 = vunpack.c.l.b16 %v9301
  %v9922 = vunpack.c.l.b16 %v9302
  %v9923 = vunpack.c.h.b16 %v9302
  %v9924 = vunpack.c.l.b16 %v9303
  %v9925 = vunpack.c.l.b16 %v9304
  %v9926 = vunpack.c.h.b16 %v9304
  %v9927 = vunpack.c.l.b16 %v9305
  %v9928 = vunpack.c.l.b16 %v9306
  %v9929 = vunpack.c.h.b16 %v9306
  %v9930 = vunpack.c.l.b16 %v9307
  %v9931 = vunpack.c.l.b16 %v9308
  %v9932 = vunpack.c.h.b16 %v9308
  %v9933 = vunpack.c.l.b16 %v9309
  %v9934 = vunpack.c.l.b16 %v9310
  %v9935 = vunpack.c.h.b16 %v9310
  %v9936 = vunpack.c.l.b16 %v9311
  %v9937 = vunpack.c.l.b16 %v9312
  %v9938 = vunpack.c.h.b16 %v9312
  %v9939 = vunpack.c.l.b16 %v9313
  %v9940 = vunpack.c.l.b16 %v9314
  %v9941 = vunpack.c.h.b16 %v9314
  %v9942 = vunpack.c.l.b16 %v9315
  %v9943 = vunpack.c.l.b16 %v9316
  %v9944 = vunpack.c.h.b16 %v9316
  %v9945 = vunpack.c.l.b16 %v9317
  %v9946 = vunpack.c.l.b16 %v9318
  %v9947 = vunpack.c.h.b16 %v9318
  %v9948 = vunpack.c.l.b16 %v9319
  %v9949 = vunpack.c.l.b16 %v9320
  %v9950 = vunpack.c.h.b16 %v9320
  %v9951 = vunpack.c.l.b16 %v9321
  %v9952 = vunpack.c.l.b16 %v9322
  %v9953 = vunpack.c.h.b16 %v9322
  %v9954 = vunpack.c.l.b16 %v9323
  %v9955 = vunpack.c.l.b16 %v9324
  %v9956 = vunpack.c.h.b16 %v9324
  %v9957 = vunpack.c.l.b16 %v9325
  %v9958 = vunpack.c.l.b16 %v9326
  %v9959 = vunpack.c.h.b16 %v9326
  %v9960 = vunpack.c.l.b16 %v9327
  %v9961 = vunpack.c.l.b16 %v9328
  %v9962 = vunpack.c.h.b16 %v9328
  %v9963 = vunpack.c.l.b16 %v9329
  %v9964 = vunpack.c.l.b16 %v9330
  %v9965 = vunpack.c.h.b16 %v9330
  %v9966 = vunpack.c.l.b16 %v9331
  %v9967 = vunpack.c.l.b16 %v9332
  %v9968 = vunpack.c.h.b16 %v9332
  %v9969 = vunpack.c.l.b16 %v9333
  %v9970 = vunpack.c.l.b16 %v9334
  %v9971 = vunpack.c.h.b16 %v9334
  %v9972 = vunpack.c.l.b16 %v9335
  %v9973 = vunpack.c.l.b16 %v9336
  %v9974 = vunpack.c.h.b16 %v9336
  %v9975 = vunpack.c.l.b16 %v9337
  %v9976 = vunpack.c.l.b16 %v9338
  %v9977 = vunpack.c.h.b16 %v9338
  %v9978 = vunpack.c.l.b16 %v9339
  %v9979 = vunpack.c.l.b16 %v9340
  %v9980 = vunpack.c.h.b16 %v9340
  %v9981 = vunpack.c.l.b16 %v9341
  %v9982 = vunpack.c.l.b16 %v9342
  %v9983 = vunpack.c.h.b16 %v9342
  %v9984 = vunpack.c.l.b16 %v9343
  %v9985 = vunpack.c.l.b16 %v9344
  %v9986 = vunpack.c.h.b16 %v9344
  %v9987 = vunpack.c.l.b16 %v9345
  %v9988 = vunpack.c.l.b16 %v9346
  %v9989 = vunpack.c.h.b16 %v9346
  %v9990 = vunpack.c.l.b16 %v9347
  %v9991 = vunpack.c.l.b16 %v9348
  %v9992 = vunpack.c.h.b16 %v9348
  %v9993 = vunpack.c.l.b16 %v9349
  %v9994 = vunpack.c.l.b16 %v9350
  %v9995 = vunpack.c.h.b16 %v9350
  %v9996 = vunpack.c.l.b16 %v9351
  %v9997 = vunpack.c.l.b16 %v9352
  %v9998 = vunpack.c.h.b16 %v9352
  %v9999 = vunpack.c.l.b16 %v9353
  %v10000 = vunpack.c.l.b16 %v9354
  %v10001 = vunpack.c.h.b16 %v9354
  %v10002 = vunpack.c.l.b16 %v9355
  %v10003 = vunpack.c.l.b16 %v9356
  %v10004 = vunpack.c.h.b16 %v9356
  %v10005 = vunpack.c.l.b16 %v9357
  %v10006 = vunpack.c.l.b16 %v9358
  %v10007 = vunpack.c.h.b16 %v9358
  %v10008 = vunpack.c.l.b16 %v9359
  %v10009 = vunpack.c.l.b16 %v9360
  %v10010 = vunpack.c.h.b16 %v9360
  %v10011 = vunpack.c.l.b16 %v9361
  %v10012 = vunpack.c.l.b16 %v9362
  %v10013 = vunpack.c.h.b16 %v9362
  %v10014 = vunpack.c.l.b16 %v9363
  %v10015 = vunpack.c.l.b16 %v9364
  %v10016 = vunpack.c.h.b16 %v9364
  %v10017 = vunpack.c.l.b16 %v9365
  %v10018 = vunpack.c.l.b16 %v9366
  %v10019 = vunpack.c.h.b16 %v9366
  %v10020 = vunpack.c.l.b16 %v9367
  %v10021 = vunpack.c.l.b16 %v9368
  %v10022 = vunpack.c.h.b16 %v9368
  %v10023 = vunpack.c.l.b16 %v9369
  %v10024 = vunpack.c.l.b16 %v9370
  %v10025 = vunpack.c.h.b16 %v9370
  %v10026 = vunpack.c.l.b16 %v9371
  %v10027 = vunpack.c.l.b16 %v9372
  %v10028 = vunpack.c.h.b16 %v9372
  %v10029 = vunpack.c.l.b16 %v9373
  %v10030 = vunpack.c.l.b16 %v9374
  %v10031 = vunpack.c.h.b16 %v9374
  %v10032 = vunpack.c.l.b16 %v9375
  %v10033 = vunpack.c.l.b16 %v9376
  %v10034 = vunpack.c.h.b16 %v9376
  %v10035 = vunpack.c.l.b16 %v9377
  %v10036 = vunpack.c.l.b16 %v9378
  %v10037 = vunpack.c.h.b16 %v9378
  %v10038 = vunpack.c.l.b16 %v9379
  %v10039 = vunpack.c.l.b16 %v9380
  %v10040 = vunpack.c.h.b16 %v9380
  %v10041 = vunpack.c.l.b16 %v9381
  %v10042 = vunpack.c.l.b16 %v9382
  %v10043 = vunpack.c.h.b16 %v9382
  %v10044 = vunpack.c.l.b16 %v9383
  %v10045 = vunpack.c.l.b16 %v9384
  %v10046 = vunpack.c.h.b16 %v9384
  %v10047 = vunpack.c.l.b16 %v9385
  %v10048 = vunpack.c.l.b16 %v9386
  %v10049 = vunpack.c.h.b16 %v9386
  %v10050 = vunpack.c.l.b16 %v9387
  %v10051 = vunpack.c.l.b16 %v9388
  %v10052 = vunpack.c.h.b16 %v9388
  %v10053 = vunpack.c.l.b16 %v9389
  %v10054 = vunpack.c.l.b16 %v9390
  %v10055 = vunpack.c.h.b16 %v9390
  %v10056 = vunpack.c.l.b16 %v9391
  %v10057 = vunpack.c.l.b16 %v9392
  %v10058 = vunpack.c.h.b16 %v9392
  %v10059 = vunpack.c.l.b16 %v9393
  %v10060 = vunpack.c.l.b16 %v9394
  %v10061 = vunpack.c.h.b16 %v9394
  %v10062 = vunpack.c.l.b16 %v9395
  %v10063 = vunpack.c.l.b16 %v9396
  %v10064 = vunpack.c.h.b16 %v9396
  %v10065 = vunpack.c.l.b16 %v9397
  %v10066 = vunpack.c.l.b16 %v9398
  %v10067 = vunpack.c.h.b16 %v9398
  %v10068 = vunpack.c.l.b16 %v9399
  %v10069 = vunpack.c.l.b16 %v9400
  %v10070 = vunpack.c.h.b16 %v9400
  %v10071 = vunpack.c.l.b16 %v9401
  %v10072 = vunpack.c.l.b16 %v9402
  %v10073 = vunpack.c.h.b16 %v9402
  %v10074 = vunpack.c.l.b16 %v9403
  %v10075 = vunpack.c.l.b16 %v9404
  %v10076 = vunpack.c.h.b16 %v9404
  %v10077 = vunpack.c.l.b16 %v9405
  %v10078 = vunpack.c.l.b16 %v9406
  %v10079 = vunpack.c.h.b16 %v9406
  %v10080 = vunpack.c.l.b16 %v9407
  %v10081 = vunpack.c.l.b16 %v9408
  %v10082 = vunpack.c.h.b16 %v9408
  %v10083 = vunpack.c.l.b16 %v9409
  %v10084 = vunpack.c.l.b16 %v9410
  %v10085 = vunpack.c.h.b16 %v9410
  %v10086 = vunpack.c.l.b16 %v9411
  %v10087 = vunpack.c.l.b16 %v9412
  %v10088 = vunpack.c.h.b16 %v9412
  %v10089 = vunpack.c.l.b16 %v9413
  %v10090 = vunpack.c.l.b16 %v9414
  %v10091 = vunpack.c.h.b16 %v9414
  %v10092 = vunpack.c.l.b16 %v9415
  %v10093 = vunpack.c.l.b16 %v9416
  %v10094 = vunpack.c.h.b16 %v9416
  %v10095 = vunpack.c.l.b16 %v9417
  %v10096 = vunpack.c.l.b16 %v9418
  %v10097 = vunpack.c.h.b16 %v9418
  %v10098 = vunpack.c.l.b16 %v9419
  %v10099 = vunpack.c.l.b16 %v9420
  %v10100 = vunpack.c.h.b16 %v9420
  %v10101 = vunpack.c.l.b16 %v9421
  %v10102 = vunpack.c.l.b16 %v9422
  %v10103 = vunpack.c.h.b16 %v9422
  %v10104 = vunpack.c.l.b16 %v9423
  %v10105 = vunpack.c.l.b16 %v9424
  %v10106 = vunpack.c.h.b16 %v9424
  %v10107 = vunpack.c.l.b16 %v9425
  %v10108 = vunpack.c.l.b16 %v9426
  %v10109 = vunpack.c.h.b16 %v9426
  %v10110 = vunpack.c.l.b16 %v9427
  %v10111 = vunpack.c.l.b16 %v9428
  %v10112 = vunpack.c.h.b16 %v9428
  %v10113 = vunpack.c.l.b16 %v9429
  %v10114 = vunpack.c.l.b16 %v9430
  %v10115 = vunpack.c.h.b16 %v9430
  %v10116 = vunpack.c.l.b16 %v9431
  %v10117 = vunpack.c.l.b16 %v9432
  %v10118 = vunpack.c.h.b16 %v9432
  %v10119 = vunpack.c.l.b16 %v9433
  %v10120 = vunpack.c.l.b16 %v9434
  %v10121 = vunpack.c.h.b16 %v9434
  %v10122 = vunpack.c.l.b16 %v9435
  %v10123 = vunpack.c.l.b16 %v9436
  %v10124 = vunpack.c.h.b16 %v9436
  %v10125 = vunpack.c.l.b16 %v9437
  %v10126 = vunpack.c.l.b16 %v9438
  %v10127 = vunpack.c.h.b16 %v9438
  %v10128 = vunpack.c.l.b16 %v9439
  %v10129 = vunpack.c.l.b16 %v9440
  %v10130 = vunpack.c.h.b16 %v9440
  %v10131 = vunpack.c.l.b16 %v9441
  %v10132 = vunpack.c.l.b16 %v9442
  %v10133 = vunpack.c.h.b16 %v9442
  %v10134 = vunpack.c.l.b16 %v9443
  %v10135 = vunpack.c.l.b16 %v9444
  %v10136 = vunpack.c.h.b16 %v9444
  %v10137 = vunpack.c.l.b16 %v9445
  %v10138 = vunpack.c.l.b16 %v9446
  %v10139 = vunpack.c.h.b16 %v9446
  %v10140 = vunpack.c.l.b16 %v9447
  %v10141 = vunpack.c.l.b16 %v9448
  %v10142 = vunpack.c.h.b16 %v9448
  %v10143 = vunpack.c.l.b16 %v9449
  %v10144 = vunpack.c.l.b16 %v9450
  %v10145 = vunpack.c.h.b16 %v9450
  %v10146 = vunpack.c.l.b16 %v9451
  %v10147 = vunpack.c.l.b16 %v9452
  %v10148 = vunpack.c.h.b16 %v9452
  %v10149 = vunpack.c.l.b16 %v9453
  %v10150 = vunpack.c.l.b16 %v9454
  %v10151 = vunpack.c.h.b16 %v9454
  %v10152 = vunpack.c.l.b16 %v9455
  %v10153 = vunpack.c.l.b16 %v9456
  %v10154 = vunpack.c.h.b16 %v9456
  %v10155 = vunpack.c.l.b16 %v9457
  %v10156 = vunpack.c.l.b16 %v9458
  %v10157 = vunpack.c.h.b16 %v9458
  %v10158 = vunpack.c.l.b16 %v9459
  %v10159 = vunpack.c.l.b16 %v9460
  %v10160 = vunpack.c.h.b16 %v9460
  %v10161 = vunpack.c.l.b16 %v9461
  %v10162 = vunpack.c.l.b16 %v9462
  %v10163 = vunpack.c.h.b16 %v9462
  %v10164 = vunpack.c.l.b16 %v9463
  %v10165 = vunpack.c.l.b16 %v9464
  %v10166 = vunpack.c.h.b16 %v9464
  %v10167 = vunpack.c.l.b16 %v9465
  %v10168 = vunpack.c.l.b16 %v9466
  %v10169 = vunpack.c.h.b16 %v9466
  %v10170 = vunpack.c.l.b16 %v9467
  %v10171 = vunpack.c.l.b16 %v9468
  %v10172 = vunpack.c.h.b16 %v9468
  %v10173 = vunpack.c.l.b16 %v9469
  %v10174 = vunpack.c.l.b16 %v9470
  %v10175 = vunpack.c.h.b16 %v9470
  %v10176 = vunpack.c.l.b16 %v9471
  %v10177 = vpack.c.b16 %v9757, %v9754
  %v10178 = vpack.c.b16 %v9758, %v9755
  %v10179 = vpack.c.b16 %v9759, %v9756
  %v10180 = vpack.c.b16 %v9763, %v9760
  %v10181 = vpack.c.b16 %v9764, %v9761
  %v10182 = vpack.c.b16 %v9765, %v9762
  %v10183 = vpack.c.b16 %v9769, %v9766
  %v10184 = vpack.c.b16 %v9770, %v9767
  %v10185 = vpack.c.b16 %v9771, %v9768
  %v10186 = vpack.c.b16 %v9775, %v9772
  %v10187 = vpack.c.b16 %v9776, %v9773
  %v10188 = vpack.c.b16 %v9777, %v9774
  %v10189 = vpack.c.b16 %v9781, %v9778
  %v10190 = vpack.c.b16 %v9782, %v9779
  %v10191 = vpack.c.b16 %v9783, %v9780
  %v10192 = vpack.c.b16 %v9787, %v9784
  %v10193 = vpack.c.b16 %v9788, %v9785
  %v10194 = vpack.c.b16 %v9789, %v9786
  %v10195 = vpack.c.b16 %v9793, %v9790
  %v10196 = vpack.c.b16 %v9794, %v9791
  %v10197 = vpack.c.b16 %v9795, %v9792
  %v10198 = vpack.c.b16 %v9799, %v9796
  %v10199 = vpack.c.b16 %v9800, %v9797
  %v10200 = vpack.c.b16 %v9801, %v9798
  %v10201 = vpack.c.b16 %v9805, %v9802
  %v10202 = vpack.c.b16 %v9806, %v9803
  %v10203 = vpack.c.b16 %v9807, %v9804
  %v10204 = vpack.c.b16 %v9811, %v9808
  %v10205 = vpack.c.b16 %v9812, %v9809
  %v10206 = vpack.c.b16 %v9813, %v9810
  %v10207 = vpack.c.b16 %v9817, %v9814
  %v10208 = vpack.c.b16 %v9818, %v9815
  %v10209 = vpack.c.b16 %v9819, %v9816
  %v10210 = vpack.c.b16 %v9823, %v9820
  %v10211 = vpack.c.b16 %v9824, %v9821
  %v10212 = vpack.c.b16 %v9825, %v9822
  %v10213 = vpack.c.b16 %v9829, %v9826
  %v10214 = vpack.c.b16 %v9830, %v9827
  %v10215 = vpack.c.b16 %v9831, %v9828
  %v10216 = vpack.c.b16 %v9835, %v9832
  %v10217 = vpack.c.b16 %v9836, %v9833
  %v10218 = vpack.c.b16 %v9837, %v9834
  %v10219 = vpack.c.b16 %v9841, %v9838
  %v10220 = vpack.c.b16 %v9842, %v9839
  %v10221 = vpack.c.b16 %v9843, %v9840
  %v10222 = vpack.c.b16 %v9847, %v9844
  %v10223 = vpack.c.b16 %v9848, %v9845
  %v10224 = vpack.c.b16 %v9849, %v9846
  %v10225 = vpack.c.b16 %v9853, %v9850
  %v10226 = vpack.c.b16 %v9854, %v9851
  %v10227 = vpack.c.b16 %v9855, %v9852
  %v10228 = vpack.c.b16 %v9859, %v9856
  %v10229 = vpack.c.b16 %v9860, %v9857
  %v10230 = vpack.c.b16 %v9861, %v9858
  %v10231 = vpack.c.b16 %v9865, %v9862
  %v10232 = vpack.c.b16 %v9866, %v9863
  %v10233 = vpack.c.b16 %v9867, %v9864
  %v10234 = vpack.c.b16 %v9871, %v9868
  %v10235 = vpack.c.b16 %v9872, %v9869
  %v10236 = vpack.c.b16 %v9873, %v9870
  %v10237 = vpack.c.b16 %v9877, %v9874
  %v10238 = vpack.c.b16 %v9878, %v9875
  %v10239 = vpack.c.b16 %v9879, %v9876
  %v10240 = vpack.c.b16 %v9883, %v9880
  %v10241 = vpack.c.b16 %v9884, %v9881
  %v10242 = vpack.c.b16 %v9885, %v9882
  %v10243 = vpack.c.b16 %v9889, %v9886
  %v10244 = vpack.c.b16 %v9890, %v9887
  %v10245 = vpack.c.b16 %v9891, %v9888
  %v10246 = vpack.c.b16 %v9895, %v9892
  %v10247 = vpack.c.b16 %v9896, %v9893
  %v10248 = vpack.c.b16 %v9897, %v9894
  %v10249 = vpack.c.b16 %v9901, %v9898
  %v10250 = vpack.c.b16 %v9902, %v9899
  %v10251 = vpack.c.b16 %v9903, %v9900
  %v10252 = vpack.c.b16 %v9907, %v9904
  %v10253 = vpack.c.b16 %v9908, %v9905
  %v10254 = vpack.c.b16 %v9909, %v9906
  %v10255 = vpack.c.b16 %v9913, %v9910
  %v10256 = vpack.c.b16 %v9914, %v9911
  %v10257 = vpack.c.b16 %v9915, %v9912
  %v10258 = vpack.c.b16 %v9919, %v9916
  %v10259 = vpack.c.b16 %v9920, %v9917
  %v10260 = vpack.c.b16 %v9921, %v9918
  %v10261 = vpack.c.b16 %v9925, %v9922
  %v10262 = vpack.c.b16 %v9926, %v9923
  %v10263 = vpack.c.b16 %v9927, %v9924
  %v10264 = vpack.c.b16 %v9931, %v9928
  %v10265 = vpack.c.b16 %v9932, %v9929
  %v10266 = vpack.c.b16 %v9933, %v9930
  %v10267 = vpack.c.b16 %v9937, %v9934
  %v10268 = vpack.c.b16 %v9938, %v9935
  %v10269 = vpack.c.b16 %v9939, %v9936
  %v10270 = vpack.c.b16 %v9943, %v9940
  %v10271 = vpack.c.b16 %v9944, %v9941
  %v10272 = vpack.c.b16 %v9945, %v9942
  %v10273 = vpack.c.b16 %v9949, %v9946
  %v10274 = vpack.c.b16 %v9950, %v9947
  %v10275 = vpack.c.b16 %v9951, %v9948
  %v10276 = vpack.c.b16 %v9955, %v9952
  %v10277 = vpack.c.b16 %v9956, %v9953
  %v10278 = vpack.c.b16 %v9957, %v9954
  %v10279 = vpack.c.b16 %v9961, %v9958
  %v10280 = vpack.c.b16 %v9962, %v9959
  %v10281 = vpack.c.b16 %v9963, %v9960
  %v10282 = vpack.c.b16 %v9967, %v9964
  %v10283 = vpack.c.b16 %v9968, %v9965
  %v10284 = vpack.c.b16 %v9969, %v9966
  %v10285 = vpack.c.b16 %v9973, %v9970
  %v10286 = vpack.c.b16 %v9974, %v9971
  %v10287 = vpack.c.b16 %v9975, %v9972
  %v10288 = vpack.c.b16 %v9979, %v9976
  %v10289 = vpack.c.b16 %v9980, %v9977
  %v10290 = vpack.c.b16 %v9981, %v9978
  %v10291 = vpack.c.b16 %v9985, %v9982
  %v10292 = vpack.c.b16 %v9986, %v9983
  %v10293 = vpack.c.b16 %v9987, %v9984
  %v10294 = vpack.c.b16 %v9991, %v9988
  %v10295 = vpack.c.b16 %v9992, %v9989
  %v10296 = vpack.c.b16 %v9993, %v9990
  %v10297 = vpack.c.b16 %v9997, %v9994
  %v10298 = vpack.c.b16 %v9998, %v9995
  %v10299 = vpack.c.b16 %v9999, %v9996
  %v10300 = vpack.c.b16 %v10003, %v10000
  %v10301 = vpack.c.b16 %v10004, %v10001
  %v10302 = vpack.c.b16 %v10005, %v10002
  %v10303 = vpack.c.b16 %v10009, %v10006
  %v10304 = vpack.c.b16 %v10010, %v10007
  %v10305 = vpack.c.b16 %v10011, %v10008
  %v10306 = vpack.c.b16 %v10015, %v10012
  %v10307 = vpack.c.b16 %v10016, %v10013
  %v10308 = vpack.c.b16 %v10017, %v10014
  %v10309 = vpack.c.b16 %v10021, %v10018
  %v10310 = vpack.c.b16 %v10022, %v10019
  %v10311 = vpack.c.b16 %v10023, %v10020
  %v10312 = vpack.c.b16 %v10027, %v10024
  %v10313 = vpack.c.b16 %v10028, %v10025
  %v10314 = vpack.c.b16 %v10029, %v10026
  %v10315 = vpack.c.b16 %v10033, %v10030
  %v10316 = vpack.c.b16 %v10034, %v10031
  %v10317 = vpack.c.b16 %v10035, %v10032
  %v10318 = vpack.c.b16 %v10039, %v10036
  %v10319 = vpack.c.b16 %v10040, %v10037
  %v10320 = vpack.c.b16 %v10041, %v10038
  %v10321 = vpack.c.b16 %v10045, %v10042
  %v10322 = vpack.c.b16 %v10046, %v10043
  %v10323 = vpack.c.b16 %v10047, %v10044
  %v10324 = vpack.c.b16 %v10051, %v10048
  %v10325 = vpack.c.b16 %v10052, %v10049
  %v10326 = vpack.c.b16 %v10053, %v10050
  %v10327 = vpack.c.b16 %v10057, %v10054
  %v10328 = vpack.c.b16 %v10058, %v10055
  %v10329 = vpack.c.b16 %v10059, %v10056
  %v10330 = vpack.c.b16 %v10063, %v10060
  %v10331 = vpack.c.b16 %v10064, %v10061
  %v10332 = vpack.c.b16 %v10065, %v10062
  %v10333 = vpack.c.b16 %v10069, %v10066
  %v10334 = vpack.c.b16 %v10070, %v10067
  %v10335 = vpack.c.b16 %v10071, %v10068
  %v10336 = vpack.c.b16 %v10075, %v10072
  %v10337 = vpack.c.b16 %v10076, %v10073
  %v10338 = vpack.c.b16 %v10077, %v10074
  %v10339 = vpack.c.b16 %v10081, %v10078
  %v10340 = vpack.c.b16 %v10082, %v10079
  %v10341 = vpack.c.b16 %v10083, %v10080
  %v10342 = vpack.c.b16 %v10087, %v10084
  %v10343 = vpack.c.b16 %v10088, %v10085
  %v10344 = vpack.c.b16 %v10089, %v10086
  %v10345 = vpack.c.b16 %v10093, %v10090
  %v10346 = vpack.c.b16 %v10094, %v10091
  %v10347 = vpack.c.b16 %v10095, %v10092
  %v10348 = vpack.c.b16 %v10099, %v10096
  %v10349 = vpack.c.b16 %v10100, %v10097
  %v10350 = vpack.c.b16 %v10101, %v10098
  %v10351 = vpack.c.b16 %v10105, %v10102
  %v10352 = vpack.c.b16 %v10106, %v10103
  %v10353 = vpack.c.b16 %v10107, %v10104
  %v10354 = vpack.c.b16 %v10111, %v10108
  %v10355 = vpack.c.b16 %v10112, %v10109
  %v10356 = vpack.c.b16 %v10113, %v10110
  %v10357 = vpack.c.b16 %v10117, %v10114
  %v10358 = vpack.c.b16 %v10118, %v10115
  %v10359 = vpack.c.b16 %v10119, %v10116
  %v10360 = vpack.c.b16 %v10123, %v10120
  %v10361 = vpack.c.b16 %v10124, %v10121
  %v10362 = vpack.c.b16 %v10125, %v10122
  %v10363 = vpack.c.b16 %v10129, %v10126
  %v10364 = vpack.c.b16 %v10130, %v10127
  %v10365 = vpack.c.b16 %v10131, %v10128
  %v10366 = vpack.c.b16 %v10135, %v10132
  %v10367 = vpack.c.b16 %v10136, %v10133
  %v10368 = vpack.c.b16 %v10137, %v10134
  %v10369 = vpack.c.b16 %v10141, %v10138
  %v10370 = vpack.c.b16 %v10142, %v10139
  %v10371 = vpack.c.b16 %v10143, %v10140
  %v10372 = vpack.c.b16 %v10147, %v10144
  %v10373 = vpack.c.b16 %v10148, %v10145
  %v10374 = vpack.c.b16 %v10149, %v10146
  %v10375 = vpack.c.b16 %v10153, %v10150
  %v10376 = vpack.c.b16 %v10154, %v10151
  %v10377 = vpack.c.b16 %v10155, %v10152
  %v10378 = vpack.c.b16 %v10159, %v10156
  %v10379 = vpack.c.b16 %v10160, %v10157
  %v10380 = vpack.c.b16 %v10161, %v10158
  %v10381 = vpack.c.b16 %v10165, %v10162
  %v10382 = vpack.c.b16 %v10166, %v10163
  %v10383 = vpack.c.b16 %v10167, %v10164
  %v10384 = vpack.c.b16 %v10171, %v10168
  %v10385 = vpack.c.b16 %v10172, %v10169
  %v10386 = vpack.c.b16 %v10173, %v10170
  %v10387 = vpack.c.b16 %v10174, %v10174
  %v10388 = vpack.c.b16 %v10175, %v10175
  %v10389 = vpack.c.b16 %v10176, %v10176
  %v10601 = vsel %vm4068, %v9180, 0
  %v10604 = vsel %vm4068, %v9189, 0
  %v10607 = vsel %vm4075, %v10387, 0
  %v10610 = vsel %vm4075, %v10388, 0
  %v10613 = vsel %vm4075, %v10389, 0
  %10615 = vmatprep.subr.bf16.mxu0 %v10199
  %10616 = vmatpush1.bf16.msra.mxu0 %v10198
  %10617 = vmatprep.subr.bf16.mxu0 %v10196
  %10618 = vmatpush1.bf16.msra.mxu0 %v10195
  %10619 = vmatprep.subr.bf16.mxu0 %v10193
  %10620 = vmatpush1.bf16.msra.mxu0 %v10192
  %10621 = vmatprep.subr.bf16.mxu0 %v10190
  %10622 = vmatpush1.bf16.msra.mxu0 %v10189
  %10623 = vmatprep.subr.bf16.mxu0 %v10187
  %10624 = vmatpush1.bf16.msra.mxu0 %v10186
  %10625 = vmatprep.subr.bf16.mxu0 %v10184
  %10626 = vmatpush1.bf16.msra.mxu0 %v10183
  %10627 = vmatprep.subr.bf16.mxu0 %v10181
  %10628 = vmatpush1.bf16.msra.mxu0 %v10180
  %10629 = vmatprep.subr.bf16.mxu0 %v10178
  %10630 = vmatpush1.bf16.msra.mxu0 %v10177
  %10631 = vmatprep.subr.bf16.mxu0 %v10223
  %10632 = vmatpush2.bf16.msra.mxu0 %v10222
  %10633 = vmatprep.subr.bf16.mxu0 %v10220
  %10634 = vmatpush2.bf16.msra.mxu0 %v10219
  %10635 = vmatprep.subr.bf16.mxu0 %v10217
  %10636 = vmatpush2.bf16.msra.mxu0 %v10216
  %10637 = vmatprep.subr.bf16.mxu0 %v10214
  %10638 = vmatpush2.bf16.msra.mxu0 %v10213
  %10639 = vmatprep.subr.bf16.mxu0 %v10211
  %10640 = vmatpush2.bf16.msra.mxu0 %v10210
  %10641 = vmatprep.subr.bf16.mxu0 %v10208
  %10642 = vmatpush2.bf16.msra.mxu0 %v10207
  %10643 = vmatprep.subr.bf16.mxu0 %v10205
  %10644 = vmatpush2.bf16.msra.mxu0 %v10204
  %10645 = vmatprep.subr.bf16.mxu0 %v10202
  %10646 = vmatpush2.bf16.msra.mxu0 %v10201
  %10647 = vmatprep.mubr.bf16.mxu0 %v9173
  %10648 = vmatmul.mubr.bf16.gmra.mxu0 %v9172
  %v10649 = vpop.f32.mrf.mxu0
  %v10650 = vadd.f32 0.0, %v10649
  %v10651 = vpop.f32.mrf.mxu0
  %v10652 = vadd.f32 0.0, %v10651
  %v10653 = vpop.f32.mrf.mxu0
  %v10654 = vadd.f32 0.0, %v10653
  %v10655 = vpop.f32.mrf.mxu0
  %v10656 = vadd.f32 0.0, %v10655
  %10657 = vmatprep.mubr.bf16.mxu0 %v9182
  %10658 = vmatmul.mubr.bf16.gmra.mxu0 %v9181
  %v10659 = vpop.f32.mrf.mxu0
  %v10660 = vadd.f32 0.0, %v10659
  %v10661 = vpop.f32.mrf.mxu0
  %v10662 = vadd.f32 0.0, %v10661
  %v10663 = vpop.f32.mrf.mxu0
  %v10664 = vadd.f32 0.0, %v10663
  %v10665 = vpop.f32.mrf.mxu0
  %v10666 = vadd.f32 0.0, %v10665
  %10667 = vdwg.mxu0
  %10668 = vmatprep.subr.bf16.mxu0 %v10247
  %10669 = vmatpush1.bf16.msra.mxu0 %v10246
  %10670 = vmatprep.subr.bf16.mxu0 %v10244
  %10671 = vmatpush1.bf16.msra.mxu0 %v10243
  %10672 = vmatprep.subr.bf16.mxu0 %v10241
  %10673 = vmatpush1.bf16.msra.mxu0 %v10240
  %10674 = vmatprep.subr.bf16.mxu0 %v10238
  %10675 = vmatpush1.bf16.msra.mxu0 %v10237
  %10676 = vmatprep.subr.bf16.mxu0 %v10235
  %10677 = vmatpush1.bf16.msra.mxu0 %v10234
  %10678 = vmatprep.subr.bf16.mxu0 %v10232
  %10679 = vmatpush1.bf16.msra.mxu0 %v10231
  %10680 = vmatprep.subr.bf16.mxu0 %v10229
  %10681 = vmatpush1.bf16.msra.mxu0 %v10228
  %10682 = vmatprep.subr.bf16.mxu0 %v10226
  %10683 = vmatpush1.bf16.msra.mxu0 %v10225
  %10684 = vmatprep.subr.bf16.mxu0 %v10271
  %10685 = vmatpush2.bf16.msra.mxu0 %v10270
  %10686 = vmatprep.subr.bf16.mxu0 %v10268
  %10687 = vmatpush2.bf16.msra.mxu0 %v10267
  %10688 = vmatprep.subr.bf16.mxu0 %v10265
  %10689 = vmatpush2.bf16.msra.mxu0 %v10264
  %10690 = vmatprep.subr.bf16.mxu0 %v10262
  %10691 = vmatpush2.bf16.msra.mxu0 %v10261
  %10692 = vmatprep.subr.bf16.mxu0 %v10259
  %10693 = vmatpush2.bf16.msra.mxu0 %v10258
  %10694 = vmatprep.subr.bf16.mxu0 %v10256
  %10695 = vmatpush2.bf16.msra.mxu0 %v10255
  %10696 = vmatprep.subr.bf16.mxu0 %v10253
  %10697 = vmatpush2.bf16.msra.mxu0 %v10252
  %10698 = vmatprep.subr.bf16.mxu0 %v10250
  %10699 = vmatpush2.bf16.msra.mxu0 %v10249
  %10700 = vmatprep.mubr.bf16.mxu0 %v9175
  %10701 = vmatmul.mubr.bf16.gmra.mxu0 %v9174
  %v10702 = vpop.f32.mrf.mxu0
  %v10703 = vadd.f32 %v10650, %v10702
  %v10704 = vpop.f32.mrf.mxu0
  %v10705 = vadd.f32 %v10652, %v10704
  %v10706 = vpop.f32.mrf.mxu0
  %v10707 = vadd.f32 %v10654, %v10706
  %v10708 = vpop.f32.mrf.mxu0
  %v10709 = vadd.f32 %v10656, %v10708
  %10710 = vmatprep.mubr.bf16.mxu0 %v9184
  %10711 = vmatmul.mubr.bf16.gmra.mxu0 %v9183
  %v10712 = vpop.f32.mrf.mxu0
  %v10713 = vadd.f32 %v10660, %v10712
  %v10714 = vpop.f32.mrf.mxu0
  %v10715 = vadd.f32 %v10662, %v10714
  %v10716 = vpop.f32.mrf.mxu0
  %v10717 = vadd.f32 %v10664, %v10716
  %v10718 = vpop.f32.mrf.mxu0
  %v10719 = vadd.f32 %v10666, %v10718
  %10720 = vdwg.mxu0
  %10721 = vmatprep.subr.bf16.mxu0 %v10295
  %10722 = vmatpush1.bf16.msra.mxu0 %v10294
  %10723 = vmatprep.subr.bf16.mxu0 %v10292
  %10724 = vmatpush1.bf16.msra.mxu0 %v10291
  %10725 = vmatprep.subr.bf16.mxu0 %v10289
  %10726 = vmatpush1.bf16.msra.mxu0 %v10288
  %10727 = vmatprep.subr.bf16.mxu0 %v10286
  %10728 = vmatpush1.bf16.msra.mxu0 %v10285
  %10729 = vmatprep.subr.bf16.mxu0 %v10283
  %10730 = vmatpush1.bf16.msra.mxu0 %v10282
  %10731 = vmatprep.subr.bf16.mxu0 %v10280
  %10732 = vmatpush1.bf16.msra.mxu0 %v10279
  %10733 = vmatprep.subr.bf16.mxu0 %v10277
  %10734 = vmatpush1.bf16.msra.mxu0 %v10276
  %10735 = vmatprep.subr.bf16.mxu0 %v10274
  %10736 = vmatpush1.bf16.msra.mxu0 %v10273
  %10737 = vmatprep.subr.bf16.mxu0 %v10319
  %10738 = vmatpush2.bf16.msra.mxu0 %v10318
  %10739 = vmatprep.subr.bf16.mxu0 %v10316
  %10740 = vmatpush2.bf16.msra.mxu0 %v10315
  %10741 = vmatprep.subr.bf16.mxu0 %v10313
  %10742 = vmatpush2.bf16.msra.mxu0 %v10312
  %10743 = vmatprep.subr.bf16.mxu0 %v10310
  %10744 = vmatpush2.bf16.msra.mxu0 %v10309
  %10745 = vmatprep.subr.bf16.mxu0 %v10307
  %10746 = vmatpush2.bf16.msra.mxu0 %v10306
  %10747 = vmatprep.subr.bf16.mxu0 %v10304
  %10748 = vmatpush2.bf16.msra.mxu0 %v10303
  %10749 = vmatprep.subr.bf16.mxu0 %v10301
  %10750 = vmatpush2.bf16.msra.mxu0 %v10300
  %10751 = vmatprep.subr.bf16.mxu0 %v10298
  %10752 = vmatpush2.bf16.msra.mxu0 %v10297
  %10753 = vmatprep.mubr.bf16.mxu0 %v9177
  %10754 = vmatmul.mubr.bf16.gmra.mxu0 %v9176
  %v10755 = vpop.f32.mrf.mxu0
  %v10756 = vadd.f32 %v10703, %v10755
  %v10757 = vpop.f32.mrf.mxu0
  %v10758 = vadd.f32 %v10705, %v10757
  %v10759 = vpop.f32.mrf.mxu0
  %v10760 = vadd.f32 %v10707, %v10759
  %v10761 = vpop.f32.mrf.mxu0
  %v10762 = vadd.f32 %v10709, %v10761
  %10763 = vmatprep.mubr.bf16.mxu0 %v9186
  %10764 = vmatmul.mubr.bf16.gmra.mxu0 %v9185
  %v10765 = vpop.f32.mrf.mxu0
  %v10766 = vadd.f32 %v10713, %v10765
  %v10767 = vpop.f32.mrf.mxu0
  %v10768 = vadd.f32 %v10715, %v10767
  %v10769 = vpop.f32.mrf.mxu0
  %v10770 = vadd.f32 %v10717, %v10769
  %v10771 = vpop.f32.mrf.mxu0
  %v10772 = vadd.f32 %v10719, %v10771
  %10773 = vdwg.mxu0
  %10774 = vmatprep.subr.bf16.mxu0 %v10343
  %10775 = vmatpush1.bf16.msra.mxu0 %v10342
  %10776 = vmatprep.subr.bf16.mxu0 %v10340
  %10777 = vmatpush1.bf16.msra.mxu0 %v10339
  %10778 = vmatprep.subr.bf16.mxu0 %v10337
  %10779 = vmatpush1.bf16.msra.mxu0 %v10336
  %10780 = vmatprep.subr.bf16.mxu0 %v10334
  %10781 = vmatpush1.bf16.msra.mxu0 %v10333
  %10782 = vmatprep.subr.bf16.mxu0 %v10331
  %10783 = vmatpush1.bf16.msra.mxu0 %v10330
  %10784 = vmatprep.subr.bf16.mxu0 %v10328
  %10785 = vmatpush1.bf16.msra.mxu0 %v10327
  %10786 = vmatprep.subr.bf16.mxu0 %v10325
  %10787 = vmatpush1.bf16.msra.mxu0 %v10324
  %10788 = vmatprep.subr.bf16.mxu0 %v10322
  %10789 = vmatpush1.bf16.msra.mxu0 %v10321
  %10790 = vmatprep.subr.bf16.mxu0 %v10367
  %10791 = vmatpush2.bf16.msra.mxu0 %v10366
  %10792 = vmatprep.subr.bf16.mxu0 %v10364
  %10793 = vmatpush2.bf16.msra.mxu0 %v10363
  %10794 = vmatprep.subr.bf16.mxu0 %v10361
  %10795 = vmatpush2.bf16.msra.mxu0 %v10360
  %10796 = vmatprep.subr.bf16.mxu0 %v10358
  %10797 = vmatpush2.bf16.msra.mxu0 %v10357
  %10798 = vmatprep.subr.bf16.mxu0 %v10355
  %10799 = vmatpush2.bf16.msra.mxu0 %v10354
  %10800 = vmatprep.subr.bf16.mxu0 %v10352
  %10801 = vmatpush2.bf16.msra.mxu0 %v10351
  %10802 = vmatprep.subr.bf16.mxu0 %v10349
  %10803 = vmatpush2.bf16.msra.mxu0 %v10348
  %10804 = vmatprep.subr.bf16.mxu0 %v10346
  %10805 = vmatpush2.bf16.msra.mxu0 %v10345
  %10806 = vmatprep.mubr.bf16.mxu0 %v9179
  %10807 = vmatmul.mubr.bf16.gmra.mxu0 %v9178
  %v10808 = vpop.f32.mrf.mxu0
  %v10809 = vadd.f32 %v10756, %v10808
  %v10810 = vpop.f32.mrf.mxu0
  %v10811 = vadd.f32 %v10758, %v10810
  %v10812 = vpop.f32.mrf.mxu0
  %v10813 = vadd.f32 %v10760, %v10812
  %v10814 = vpop.f32.mrf.mxu0
  %v10815 = vadd.f32 %v10762, %v10814
  %10816 = vmatprep.mubr.bf16.mxu0 %v9188
  %10817 = vmatmul.mubr.bf16.gmra.mxu0 %v9187
  %v10818 = vpop.f32.mrf.mxu0
  %v10819 = vadd.f32 %v10766, %v10818
  %v10820 = vpop.f32.mrf.mxu0
  %v10821 = vadd.f32 %v10768, %v10820
  %v10822 = vpop.f32.mrf.mxu0
  %v10823 = vadd.f32 %v10770, %v10822
  %v10824 = vpop.f32.mrf.mxu0
  %v10825 = vadd.f32 %v10772, %v10824
  %10826 = vdwg.mxu0
  %10827 = vmatprep.subr.bf16.mxu0 0
  %10828 = vmatpush1.bf16.msra.mxu0 0
  %10829 = vmatprep.subr.bf16.mxu0 %v10610
  %10830 = vmatpush1.bf16.msra.mxu0 %v10607
  %10831 = vmatprep.subr.bf16.mxu0 %v10385
  %10832 = vmatpush1.bf16.msra.mxu0 %v10384
  %10833 = vmatprep.subr.bf16.mxu0 %v10382
  %10834 = vmatpush1.bf16.msra.mxu0 %v10381
  %10835 = vmatprep.subr.bf16.mxu0 %v10379
  %10836 = vmatpush1.bf16.msra.mxu0 %v10378
  %10837 = vmatprep.subr.bf16.mxu0 %v10376
  %10838 = vmatpush1.bf16.msra.mxu0 %v10375
  %10839 = vmatprep.subr.bf16.mxu0 %v10373
  %10840 = vmatpush1.bf16.msra.mxu0 %v10372
  %10841 = vmatprep.subr.bf16.mxu0 %v10370
  %10842 = vmatpush1.bf16.msra.mxu0 %v10369
  %10843 = vmatprep.subr.bf16.mxu0 0
  %10844 = vmatpush2.bf16.msra.mxu0 0
  %10845 = vmatprep.subr.bf16.mxu0 0
  %10846 = vmatpush2.bf16.msra.mxu0 0
  %10847 = vmatprep.subr.bf16.mxu0 0
  %10848 = vmatpush2.bf16.msra.mxu0 0
  %10849 = vmatprep.subr.bf16.mxu0 0
  %10850 = vmatpush2.bf16.msra.mxu0 0
  %10851 = vmatprep.subr.bf16.mxu0 0
  %10852 = vmatpush2.bf16.msra.mxu0 0
  %10853 = vmatprep.subr.bf16.mxu0 0
  %10854 = vmatpush2.bf16.msra.mxu0 0
  %10855 = vmatprep.subr.bf16.mxu0 0
  %10856 = vmatpush2.bf16.msra.mxu0 0
  %10857 = vmatprep.subr.bf16.mxu0 0
  %10858 = vmatpush2.bf16.msra.mxu0 0
  %10859 = vmatprep.mubr.bf16.mxu0 0
  %10860 = vmatmul.mubr.bf16.gmra.mxu0 %v10601
  %v10861 = vpop.f32.mrf.mxu0
  %v10862 = vadd.f32 %v10809, %v10861
  %v10863 = vpop.f32.mrf.mxu0
  %v10864 = vadd.f32 %v10811, %v10863
  %v10865 = vpop.f32.mrf.mxu0
  %v10866 = vadd.f32 %v10813, %v10865
  %v10867 = vpop.f32.mrf.mxu0
  %v10868 = vadd.f32 %v10815, %v10867
  %10869 = vmatprep.mubr.bf16.mxu0 0
  %10870 = vmatmul.mubr.bf16.gmra.mxu0 %v10604
  %v10871 = vpop.f32.mrf.mxu0
  %v10872 = vadd.f32 %v10819, %v10871
  %v10873 = vpop.f32.mrf.mxu0
  %v10874 = vadd.f32 %v10821, %v10873
  %v10875 = vpop.f32.mrf.mxu0
  %v10876 = vadd.f32 %v10823, %v10875
  %v10877 = vpop.f32.mrf.mxu0
  %v10878 = vadd.f32 %v10825, %v10877
  %10879 = vdwg.mxu0
  %10880 = vmatprep.subr.bf16.mxu0 0
  %10881 = vmatpush1.bf16.msra.mxu0 %v10200
  %10882 = vmatprep.subr.bf16.mxu0 0
  %10883 = vmatpush1.bf16.msra.mxu0 %v10197
  %10884 = vmatprep.subr.bf16.mxu0 0
  %10885 = vmatpush1.bf16.msra.mxu0 %v10194
  %10886 = vmatprep.subr.bf16.mxu0 0
  %10887 = vmatpush1.bf16.msra.mxu0 %v10191
  %10888 = vmatprep.subr.bf16.mxu0 0
  %10889 = vmatpush1.bf16.msra.mxu0 %v10188
  %10890 = vmatprep.subr.bf16.mxu0 0
  %10891 = vmatpush1.bf16.msra.mxu0 %v10185
  %10892 = vmatprep.subr.bf16.mxu0 0
  %10893 = vmatpush1.bf16.msra.mxu0 %v10182
  %10894 = vmatprep.subr.bf16.mxu0 0
  %10895 = vmatpush1.bf16.msra.mxu0 %v10179
  %10896 = vmatprep.subr.bf16.mxu0 0
  %10897 = vmatpush2.bf16.msra.mxu0 %v10224
  %10898 = vmatprep.subr.bf16.mxu0 0
  %10899 = vmatpush2.bf16.msra.mxu0 %v10221
  %10900 = vmatprep.subr.bf16.mxu0 0
  %10901 = vmatpush2.bf16.msra.mxu0 %v10218
  %10902 = vmatprep.subr.bf16.mxu0 0
  %10903 = vmatpush2.bf16.msra.mxu0 %v10215
  %10904 = vmatprep.subr.bf16.mxu0 0
  %10905 = vmatpush2.bf16.msra.mxu0 %v10212
  %10906 = vmatprep.subr.bf16.mxu0 0
  %10907 = vmatpush2.bf16.msra.mxu0 %v10209
  %10908 = vmatprep.subr.bf16.mxu0 0
  %10909 = vmatpush2.bf16.msra.mxu0 %v10206
  %10910 = vmatprep.subr.bf16.mxu0 0
  %10911 = vmatpush2.bf16.msra.mxu0 %v10203
  %10912 = vmatprep.mubr.bf16.mxu0 %v9173
  %10913 = vmatmul.mubr.bf16.gmra.mxu0 %v9172
  %v10914 = vpop.f32.mrf.mxu0
  %v10915 = vadd.f32 0.0, %v10914
  %v10916 = vpop.f32.mrf.mxu0
  %v10917 = vpop.f32.mrf.mxu0
  %v10918 = vadd.f32 0.0, %v10917
  %v10919 = vpop.f32.mrf.mxu0
  %10920 = vmatprep.mubr.bf16.mxu0 %v9182
  %10921 = vmatmul.mubr.bf16.gmra.mxu0 %v9181
  %v10922 = vpop.f32.mrf.mxu0
  %v10923 = vadd.f32 0.0, %v10922
  %v10924 = vpop.f32.mrf.mxu0
  %v10925 = vpop.f32.mrf.mxu0
  %v10926 = vadd.f32 0.0, %v10925
  %v10927 = vpop.f32.mrf.mxu0
  %10928 = vdwg.mxu0
  %10929 = vmatprep.subr.bf16.mxu0 0
  %10930 = vmatpush1.bf16.msra.mxu0 %v10248
  %10931 = vmatprep.subr.bf16.mxu0 0
  %10932 = vmatpush1.bf16.msra.mxu0 %v10245
  %10933 = vmatprep.subr.bf16.mxu0 0
  %10934 = vmatpush1.bf16.msra.mxu0 %v10242
  %10935 = vmatprep.subr.bf16.mxu0 0
  %10936 = vmatpush1.bf16.msra.mxu0 %v10239
  %10937 = vmatprep.subr.bf16.mxu0 0
  %10938 = vmatpush1.bf16.msra.mxu0 %v10236
  %10939 = vmatprep.subr.bf16.mxu0 0
  %10940 = vmatpush1.bf16.msra.mxu0 %v10233
  %10941 = vmatprep.subr.bf16.mxu0 0
  %10942 = vmatpush1.bf16.msra.mxu0 %v10230
  %10943 = vmatprep.subr.bf16.mxu0 0
  %10944 = vmatpush1.bf16.msra.mxu0 %v10227
  %10945 = vmatprep.subr.bf16.mxu0 0
  %10946 = vmatpush2.bf16.msra.mxu0 %v10272
  %10947 = vmatprep.subr.bf16.mxu0 0
  %10948 = vmatpush2.bf16.msra.mxu0 %v10269
  %10949 = vmatprep.subr.bf16.mxu0 0
  %10950 = vmatpush2.bf16.msra.mxu0 %v10266
  %10951 = vmatprep.subr.bf16.mxu0 0
  %10952 = vmatpush2.bf16.msra.mxu0 %v10263
  %10953 = vmatprep.subr.bf16.mxu0 0
  %10954 = vmatpush2.bf16.msra.mxu0 %v10260
  %10955 = vmatprep.subr.bf16.mxu0 0
  %10956 = vmatpush2.bf16.msra.mxu0 %v10257
  %10957 = vmatprep.subr.bf16.mxu0 0
  %10958 = vmatpush2.bf16.msra.mxu0 %v10254
  %10959 = vmatprep.subr.bf16.mxu0 0
  %10960 = vmatpush2.bf16.msra.mxu0 %v10251
  %10961 = vmatprep.mubr.bf16.mxu0 %v9175
  %10962 = vmatmul.mubr.bf16.gmra.mxu0 %v9174
  %v10963 = vpop.f32.mrf.mxu0
  %v10964 = vadd.f32 %v10915, %v10963
  %v10965 = vpop.f32.mrf.mxu0
  %v10966 = vpop.f32.mrf.mxu0
  %v10967 = vadd.f32 %v10918, %v10966
  %v10968 = vpop.f32.mrf.mxu0
  %10969 = vmatprep.mubr.bf16.mxu0 %v9184
  %10970 = vmatmul.mubr.bf16.gmra.mxu0 %v9183
  %v10971 = vpop.f32.mrf.mxu0
  %v10972 = vadd.f32 %v10923, %v10971
  %v10973 = vpop.f32.mrf.mxu0
  %v10974 = vpop.f32.mrf.mxu0
  %v10975 = vadd.f32 %v10926, %v10974
  %v10976 = vpop.f32.mrf.mxu0
  %10977 = vdwg.mxu0
  %10978 = vmatprep.subr.bf16.mxu0 0
  %10979 = vmatpush1.bf16.msra.mxu0 %v10296
  %10980 = vmatprep.subr.bf16.mxu0 0
  %10981 = vmatpush1.bf16.msra.mxu0 %v10293
  %10982 = vmatprep.subr.bf16.mxu0 0
  %10983 = vmatpush1.bf16.msra.mxu0 %v10290
  %10984 = vmatprep.subr.bf16.mxu0 0
  %10985 = vmatpush1.bf16.msra.mxu0 %v10287
  %10986 = vmatprep.subr.bf16.mxu0 0
  %10987 = vmatpush1.bf16.msra.mxu0 %v10284
  %10988 = vmatprep.subr.bf16.mxu0 0
  %10989 = vmatpush1.bf16.msra.mxu0 %v10281
  %10990 = vmatprep.subr.bf16.mxu0 0
  %10991 = vmatpush1.bf16.msra.mxu0 %v10278
  %10992 = vmatprep.subr.bf16.mxu0 0
  %10993 = vmatpush1.bf16.msra.mxu0 %v10275
  %10994 = vmatprep.subr.bf16.mxu0 0
  %10995 = vmatpush2.bf16.msra.mxu0 %v10320
  %10996 = vmatprep.subr.bf16.mxu0 0
  %10997 = vmatpush2.bf16.msra.mxu0 %v10317
  %10998 = vmatprep.subr.bf16.mxu0 0
  %10999 = vmatpush2.bf16.msra.mxu0 %v10314
  %11000 = vmatprep.subr.bf16.mxu0 0
  %11001 = vmatpush2.bf16.msra.mxu0 %v10311
  %11002 = vmatprep.subr.bf16.mxu0 0
  %11003 = vmatpush2.bf16.msra.mxu0 %v10308
  %11004 = vmatprep.subr.bf16.mxu0 0
  %11005 = vmatpush2.bf16.msra.mxu0 %v10305
  %11006 = vmatprep.subr.bf16.mxu0 0
  %11007 = vmatpush2.bf16.msra.mxu0 %v10302
  %11008 = vmatprep.subr.bf16.mxu0 0
  %11009 = vmatpush2.bf16.msra.mxu0 %v10299
  %11010 = vmatprep.mubr.bf16.mxu0 %v9177
  %11011 = vmatmul.mubr.bf16.gmra.mxu0 %v9176
  %v11012 = vpop.f32.mrf.mxu0
  %v11013 = vadd.f32 %v10964, %v11012
  %v11014 = vpop.f32.mrf.mxu0
  %v11015 = vpop.f32.mrf.mxu0
  %v11016 = vadd.f32 %v10967, %v11015
  %v11017 = vpop.f32.mrf.mxu0
  %11018 = vmatprep.mubr.bf16.mxu0 %v9186
  %11019 = vmatmul.mubr.bf16.gmra.mxu0 %v9185
  %v11020 = vpop.f32.mrf.mxu0
  %v11021 = vadd.f32 %v10972, %v11020
  %v11022 = vpop.f32.mrf.mxu0
  %v11023 = vpop.f32.mrf.mxu0
  %v11024 = vadd.f32 %v10975, %v11023
  %v11025 = vpop.f32.mrf.mxu0
  %11026 = vdwg.mxu0
  %11027 = vmatprep.subr.bf16.mxu0 0
  %11028 = vmatpush1.bf16.msra.mxu0 %v10344
  %11029 = vmatprep.subr.bf16.mxu0 0
  %11030 = vmatpush1.bf16.msra.mxu0 %v10341
  %11031 = vmatprep.subr.bf16.mxu0 0
  %11032 = vmatpush1.bf16.msra.mxu0 %v10338
  %11033 = vmatprep.subr.bf16.mxu0 0
  %11034 = vmatpush1.bf16.msra.mxu0 %v10335
  %11035 = vmatprep.subr.bf16.mxu0 0
  %11036 = vmatpush1.bf16.msra.mxu0 %v10332
  %11037 = vmatprep.subr.bf16.mxu0 0
  %11038 = vmatpush1.bf16.msra.mxu0 %v10329
  %11039 = vmatprep.subr.bf16.mxu0 0
  %11040 = vmatpush1.bf16.msra.mxu0 %v10326
  %11041 = vmatprep.subr.bf16.mxu0 0
  %11042 = vmatpush1.bf16.msra.mxu0 %v10323
  %11043 = vmatprep.subr.bf16.mxu0 0
  %11044 = vmatpush2.bf16.msra.mxu0 %v10368
  %11045 = vmatprep.subr.bf16.mxu0 0
  %11046 = vmatpush2.bf16.msra.mxu0 %v10365
  %11047 = vmatprep.subr.bf16.mxu0 0
  %11048 = vmatpush2.bf16.msra.mxu0 %v10362
  %11049 = vmatprep.subr.bf16.mxu0 0
  %11050 = vmatpush2.bf16.msra.mxu0 %v10359
  %11051 = vmatprep.subr.bf16.mxu0 0
  %11052 = vmatpush2.bf16.msra.mxu0 %v10356
  %11053 = vmatprep.subr.bf16.mxu0 0
  %11054 = vmatpush2.bf16.msra.mxu0 %v10353
  %11055 = vmatprep.subr.bf16.mxu0 0
  %11056 = vmatpush2.bf16.msra.mxu0 %v10350
  %11057 = vmatprep.subr.bf16.mxu0 0
  %11058 = vmatpush2.bf16.msra.mxu0 %v10347
  %11059 = vmatprep.mubr.bf16.mxu0 %v9179
  %11060 = vmatmul.mubr.bf16.gmra.mxu0 %v9178
  %v11061 = vpop.f32.mrf.mxu0
  %v11062 = vadd.f32 %v11013, %v11061
  %v11063 = vpop.f32.mrf.mxu0
  %v11064 = vpop.f32.mrf.mxu0
  %v11065 = vadd.f32 %v11016, %v11064
  %v11066 = vpop.f32.mrf.mxu0
  %11067 = vmatprep.mubr.bf16.mxu0 %v9188
  %11068 = vmatmul.mubr.bf16.gmra.mxu0 %v9187
  %v11069 = vpop.f32.mrf.mxu0
  %v11070 = vadd.f32 %v11021, %v11069
  %v11071 = vpop.f32.mrf.mxu0
  %v11072 = vpop.f32.mrf.mxu0
  %v11073 = vadd.f32 %v11024, %v11072
  %v11074 = vpop.f32.mrf.mxu0
  %11075 = vdwg.mxu0
  %11076 = vmatprep.subr.bf16.mxu0 0
  %11077 = vmatpush1.bf16.msra.mxu0 0
  %11078 = vmatprep.subr.bf16.mxu0 0
  %11079 = vmatpush1.bf16.msra.mxu0 %v10613
  %11080 = vmatprep.subr.bf16.mxu0 0
  %11081 = vmatpush1.bf16.msra.mxu0 %v10386
  %11082 = vmatprep.subr.bf16.mxu0 0
  %11083 = vmatpush1.bf16.msra.mxu0 %v10383
  %11084 = vmatprep.subr.bf16.mxu0 0
  %11085 = vmatpush1.bf16.msra.mxu0 %v10380
  %11086 = vmatprep.subr.bf16.mxu0 0
  %11087 = vmatpush1.bf16.msra.mxu0 %v10377
  %11088 = vmatprep.subr.bf16.mxu0 0
  %11089 = vmatpush1.bf16.msra.mxu0 %v10374
  %11090 = vmatprep.subr.bf16.mxu0 0
  %11091 = vmatpush1.bf16.msra.mxu0 %v10371
  %11092 = vmatprep.subr.bf16.mxu0 0
  %11093 = vmatpush2.bf16.msra.mxu0 0
  %11094 = vmatprep.subr.bf16.mxu0 0
  %11095 = vmatpush2.bf16.msra.mxu0 0
  %11096 = vmatprep.subr.bf16.mxu0 0
  %11097 = vmatpush2.bf16.msra.mxu0 0
  %11098 = vmatprep.subr.bf16.mxu0 0
  %11099 = vmatpush2.bf16.msra.mxu0 0
  %11100 = vmatprep.subr.bf16.mxu0 0
  %11101 = vmatpush2.bf16.msra.mxu0 0
  %11102 = vmatprep.subr.bf16.mxu0 0
  %11103 = vmatpush2.bf16.msra.mxu0 0
  %11104 = vmatprep.subr.bf16.mxu0 0
  %11105 = vmatpush2.bf16.msra.mxu0 0
  %11106 = vmatprep.subr.bf16.mxu0 0
  %11107 = vmatpush2.bf16.msra.mxu0 0
  %11108 = vmatprep.mubr.bf16.mxu0 0
  %11109 = vmatmul.mubr.bf16.gmra.mxu0 %v10601
  %v11110 = vpop.f32.mrf.mxu0
  %v11111 = vadd.f32 %v11062, %v11110
  %v11112 = vpop.f32.mrf.mxu0
  %v11113 = vpop.f32.mrf.mxu0
  %v11114 = vadd.f32 %v11065, %v11113
  %v11115 = vpop.f32.mrf.mxu0
  %11116 = vmatprep.mubr.bf16.mxu0 0
  %11117 = vmatmul.mubr.bf16.gmra.mxu0 %v10604
  %v11118 = vpop.f32.mrf.mxu0
  %v11119 = vadd.f32 %v11070, %v11118
  %v11120 = vpop.f32.mrf.mxu0
  %v11121 = vpop.f32.mrf.mxu0
  %v11122 = vadd.f32 %v11073, %v11121
  %v11123 = vpop.f32.mrf.mxu0
  %11124 = vdwg.mxu0
  %v11125 = vmul.f32 %v4598, %v10862
  %v11126 = vmul.f32 %v4598, %v10864
  %v11127 = vmul.f32 %v4598, %v11111
  %v11128 = vmul.f32 %v4603, %v10866
  %v11129 = vmul.f32 %v4603, %v10868
  %v11130 = vmul.f32 %v4603, %v11114
  %v11131 = vmul.f32 %v4608, %v10872
  %v11132 = vmul.f32 %v4608, %v10874
  %v11133 = vmul.f32 %v4608, %v11119
  %v11134 = vmul.f32 %v4613, %v10876
  %v11135 = vmul.f32 %v4613, %v10878
  %v11136 = vmul.f32 %v4613, %v11122
  %v11137 = vmul.f32 %v4629, %v10862
  %v11138 = vmul.f32 %v4629, %v10864
  %v11139 = vmul.f32 %v4629, %v11111
  %v11140 = vmul.f32 %v4633, %v10866
  %v11141 = vmul.f32 %v4633, %v10868
  %v11142 = vmul.f32 %v4633, %v11114
  %v11143 = vmul.f32 %v4637, %v10872
  %v11144 = vmul.f32 %v4637, %v10874
  %v11145 = vmul.f32 %v4637, %v11119
  %v11146 = vmul.f32 %v4641, %v10876
  %v11147 = vmul.f32 %v4641, %v10878
  %v11148 = vmul.f32 %v4641, %v11122
  %11161 = vrot.lane.b32.xlu0 %v11137, 127
  %v11162 = vpop.permute.xlu0 %11161
  %11163 = vrot.lane.b32.xlu0 %v11138, 127
  %v11164 = vpop.permute.xlu0 %11163
  %11165 = vrot.lane.b32.xlu0 %v11139, 127
  %v11166 = vpop.permute.xlu0 %11165
  %11167 = vrot.lane.b32.xlu0 %v11140, 127
  %v11168 = vpop.permute.xlu0 %11167
  %11169 = vrot.lane.b32.xlu0 %v11141, 127
  %v11170 = vpop.permute.xlu0 %11169
  %11171 = vrot.lane.b32.xlu0 %v11142, 127
  %v11172 = vpop.permute.xlu0 %11171
  %11173 = vrot.lane.b32.xlu0 %v11143, 127
  %v11174 = vpop.permute.xlu0 %11173
  %11175 = vrot.lane.b32.xlu0 %v11144, 127
  %v11176 = vpop.permute.xlu0 %11175
  %11177 = vrot.lane.b32.xlu0 %v11145, 127
  %v11178 = vpop.permute.xlu0 %11177
  %11179 = vrot.lane.b32.xlu0 %v11146, 127
  %v11180 = vpop.permute.xlu0 %11179
  %11181 = vrot.lane.b32.xlu0 %v11147, 127
  %v11182 = vpop.permute.xlu0 %11181
  %11183 = vrot.lane.b32.xlu0 %v11148, 127
  %v11184 = vpop.permute.xlu0 %11183
  %v11185 = vsel %vm4691, %v11162, %v11164
  %v11186 = vsel %vm4691, %v11164, %v11166
  %v11187 = vsel %vm4691, %v11168, %v11170
  %v11188 = vsel %vm4691, %v11170, %v11172
  %v11189 = vsel %vm4691, %v11174, %v11176
  %v11190 = vsel %vm4691, %v11176, %v11178
  %v11191 = vsel %vm4691, %v11180, %v11182
  %v11192 = vsel %vm4691, %v11182, %v11184
  %v11205 = vadd.f32 %v11125, %v11185
  %v11206 = vadd.f32 %v11126, %v11186
  %v11207 = vadd.f32 %v11127, %v11166
  %v11208 = vadd.f32 %v11128, %v11187
  %v11209 = vadd.f32 %v11129, %v11188
  %v11210 = vadd.f32 %v11130, %v11172
  %v11211 = vadd.f32 %v11131, %v11189
  %v11212 = vadd.f32 %v11132, %v11190
  %v11213 = vadd.f32 %v11133, %v11178
  %v11214 = vadd.f32 %v11134, %v11191
  %v11215 = vadd.f32 %v11135, %v11192
  %v11216 = vadd.f32 %v11136, %v11184
  %v11217 = vmul.f32 %v4726, %v10862
  %v11218 = vmul.f32 %v4726, %v10864
  %v11219 = vmul.f32 %v4726, %v11111
  %v11220 = vmul.f32 %v4730, %v10866
  %v11221 = vmul.f32 %v4730, %v10868
  %v11222 = vmul.f32 %v4730, %v11114
  %v11223 = vmul.f32 %v4734, %v10872
  %v11224 = vmul.f32 %v4734, %v10874
  %v11225 = vmul.f32 %v4734, %v11119
  %v11226 = vmul.f32 %v4738, %v10876
  %v11227 = vmul.f32 %v4738, %v10878
  %v11228 = vmul.f32 %v4738, %v11122
  %11241 = vrot.lane.b32.xlu0 %v11217, 126
  %v11242 = vpop.permute.xlu0 %11241
  %11243 = vrot.lane.b32.xlu0 %v11218, 126
  %v11244 = vpop.permute.xlu0 %11243
  %11245 = vrot.lane.b32.xlu0 %v11219, 126
  %v11246 = vpop.permute.xlu0 %11245
  %11247 = vrot.lane.b32.xlu0 %v11220, 126
  %v11248 = vpop.permute.xlu0 %11247
  %11249 = vrot.lane.b32.xlu0 %v11221, 126
  %v11250 = vpop.permute.xlu0 %11249
  %11251 = vrot.lane.b32.xlu0 %v11222, 126
  %v11252 = vpop.permute.xlu0 %11251
  %11253 = vrot.lane.b32.xlu0 %v11223, 126
  %v11254 = vpop.permute.xlu0 %11253
  %11255 = vrot.lane.b32.xlu0 %v11224, 126
  %v11256 = vpop.permute.xlu0 %11255
  %11257 = vrot.lane.b32.xlu0 %v11225, 126
  %v11258 = vpop.permute.xlu0 %11257
  %11259 = vrot.lane.b32.xlu0 %v11226, 126
  %v11260 = vpop.permute.xlu0 %11259
  %11261 = vrot.lane.b32.xlu0 %v11227, 126
  %v11262 = vpop.permute.xlu0 %11261
  %11263 = vrot.lane.b32.xlu0 %v11228, 126
  %v11264 = vpop.permute.xlu0 %11263
  %v11265 = vsel %vm4788, %v11242, %v11244
  %v11266 = vsel %vm4788, %v11244, %v11246
  %v11267 = vsel %vm4788, %v11248, %v11250
  %v11268 = vsel %vm4788, %v11250, %v11252
  %v11269 = vsel %vm4788, %v11254, %v11256
  %v11270 = vsel %vm4788, %v11256, %v11258
  %v11271 = vsel %vm4788, %v11260, %v11262
  %v11272 = vsel %vm4788, %v11262, %v11264
  %v11285 = vadd.f32 %v11205, %v11265
  %v11286 = vadd.f32 %v11206, %v11266
  %v11287 = vadd.f32 %v11207, %v11246
  %v11288 = vadd.f32 %v11208, %v11267
  %v11289 = vadd.f32 %v11209, %v11268
  %v11290 = vadd.f32 %v11210, %v11252
  %v11291 = vadd.f32 %v11211, %v11269
  %v11292 = vadd.f32 %v11212, %v11270
  %v11293 = vadd.f32 %v11213, %v11258
  %v11294 = vadd.f32 %v11214, %v11271
  %v11295 = vadd.f32 %v11215, %v11272
  %v11296 = vadd.f32 %v11216, %v11264
  %v11297 = vmul.f32 %v4823, %v10862
  %v11298 = vmul.f32 %v4823, %v10864
  %v11299 = vmul.f32 %v4823, %v11111
  %v11300 = vmul.f32 %v4827, %v10866
  %v11301 = vmul.f32 %v4827, %v10868
  %v11302 = vmul.f32 %v4827, %v11114
  %v11303 = vmul.f32 %v4831, %v10872
  %v11304 = vmul.f32 %v4831, %v10874
  %v11305 = vmul.f32 %v4831, %v11119
  %v11306 = vmul.f32 %v4835, %v10876
  %v11307 = vmul.f32 %v4835, %v10878
  %v11308 = vmul.f32 %v4835, %v11122
  %11321 = vrot.lane.b32.xlu0 %v11297, 125
  %v11322 = vpop.permute.xlu0 %11321
  %11323 = vrot.lane.b32.xlu0 %v11298, 125
  %v11324 = vpop.permute.xlu0 %11323
  %11325 = vrot.lane.b32.xlu0 %v11299, 125
  %v11326 = vpop.permute.xlu0 %11325
  %11327 = vrot.lane.b32.xlu0 %v11300, 125
  %v11328 = vpop.permute.xlu0 %11327
  %11329 = vrot.lane.b32.xlu0 %v11301, 125
  %v11330 = vpop.permute.xlu0 %11329
  %11331 = vrot.lane.b32.xlu0 %v11302, 125
  %v11332 = vpop.permute.xlu0 %11331
  %11333 = vrot.lane.b32.xlu0 %v11303, 125
  %v11334 = vpop.permute.xlu0 %11333
  %11335 = vrot.lane.b32.xlu0 %v11304, 125
  %v11336 = vpop.permute.xlu0 %11335
  %11337 = vrot.lane.b32.xlu0 %v11305, 125
  %v11338 = vpop.permute.xlu0 %11337
  %11339 = vrot.lane.b32.xlu0 %v11306, 125
  %v11340 = vpop.permute.xlu0 %11339
  %11341 = vrot.lane.b32.xlu0 %v11307, 125
  %v11342 = vpop.permute.xlu0 %11341
  %11343 = vrot.lane.b32.xlu0 %v11308, 125
  %v11344 = vpop.permute.xlu0 %11343
  %v11345 = vsel %vm4885, %v11322, %v11324
  %v11346 = vsel %vm4885, %v11324, %v11326
  %v11347 = vsel %vm4885, %v11328, %v11330
  %v11348 = vsel %vm4885, %v11330, %v11332
  %v11349 = vsel %vm4885, %v11334, %v11336
  %v11350 = vsel %vm4885, %v11336, %v11338
  %v11351 = vsel %vm4885, %v11340, %v11342
  %v11352 = vsel %vm4885, %v11342, %v11344
  %v11365 = vadd.f32 %v11285, %v11345
  %v11366 = vadd.f32 %v11286, %v11346
  %v11367 = vadd.f32 %v11287, %v11326
  %v11368 = vadd.f32 %v11288, %v11347
  %v11369 = vadd.f32 %v11289, %v11348
  %v11370 = vadd.f32 %v11290, %v11332
  %v11371 = vadd.f32 %v11291, %v11349
  %v11372 = vadd.f32 %v11292, %v11350
  %v11373 = vadd.f32 %v11293, %v11338
  %v11374 = vadd.f32 %v11294, %v11351
  %v11375 = vadd.f32 %v11295, %v11352
  %v11376 = vadd.f32 %v11296, %v11344
  %v11377 = vmul.f32 %v4920, %v10862
  %v11378 = vmul.f32 %v4920, %v10864
  %v11379 = vmul.f32 %v4920, %v11111
  %v11380 = vmul.f32 %v4924, %v10866
  %v11381 = vmul.f32 %v4924, %v10868
  %v11382 = vmul.f32 %v4924, %v11114
  %v11383 = vmul.f32 %v4928, %v10872
  %v11384 = vmul.f32 %v4928, %v10874
  %v11385 = vmul.f32 %v4928, %v11119
  %v11386 = vmul.f32 %v4932, %v10876
  %v11387 = vmul.f32 %v4932, %v10878
  %v11388 = vmul.f32 %v4932, %v11122
  %11401 = vrot.lane.b32.xlu0 %v11377, 124
  %v11402 = vpop.permute.xlu0 %11401
  %11403 = vrot.lane.b32.xlu0 %v11378, 124
  %v11404 = vpop.permute.xlu0 %11403
  %11405 = vrot.lane.b32.xlu0 %v11379, 124
  %v11406 = vpop.permute.xlu0 %11405
  %11407 = vrot.lane.b32.xlu0 %v11380, 124
  %v11408 = vpop.permute.xlu0 %11407
  %11409 = vrot.lane.b32.xlu0 %v11381, 124
  %v11410 = vpop.permute.xlu0 %11409
  %11411 = vrot.lane.b32.xlu0 %v11382, 124
  %v11412 = vpop.permute.xlu0 %11411
  %11413 = vrot.lane.b32.xlu0 %v11383, 124
  %v11414 = vpop.permute.xlu0 %11413
  %11415 = vrot.lane.b32.xlu0 %v11384, 124
  %v11416 = vpop.permute.xlu0 %11415
  %11417 = vrot.lane.b32.xlu0 %v11385, 124
  %v11418 = vpop.permute.xlu0 %11417
  %11419 = vrot.lane.b32.xlu0 %v11386, 124
  %v11420 = vpop.permute.xlu0 %11419
  %11421 = vrot.lane.b32.xlu0 %v11387, 124
  %v11422 = vpop.permute.xlu0 %11421
  %11423 = vrot.lane.b32.xlu0 %v11388, 124
  %v11424 = vpop.permute.xlu0 %11423
  %v11425 = vsel %vm4982, %v11402, %v11404
  %v11426 = vsel %vm4982, %v11404, %v11406
  %v11427 = vsel %vm4982, %v11408, %v11410
  %v11428 = vsel %vm4982, %v11410, %v11412
  %v11429 = vsel %vm4982, %v11414, %v11416
  %v11430 = vsel %vm4982, %v11416, %v11418
  %v11431 = vsel %vm4982, %v11420, %v11422
  %v11432 = vsel %vm4982, %v11422, %v11424
  %v11445 = vadd.f32 %v11365, %v11425
  %v11446 = vadd.f32 %v11366, %v11426
  %v11447 = vadd.f32 %v11367, %v11406
  %v11448 = vadd.f32 %v11368, %v11427
  %v11449 = vadd.f32 %v11369, %v11428
  %v11450 = vadd.f32 %v11370, %v11412
  %v11451 = vadd.f32 %v11371, %v11429
  %v11452 = vadd.f32 %v11372, %v11430
  %v11453 = vadd.f32 %v11373, %v11418
  %v11454 = vadd.f32 %v11374, %v11431
  %v11455 = vadd.f32 %v11375, %v11432
  %v11456 = vadd.f32 %v11376, %v11424
  %v11457 = vmul.f32 %v5017, %v10862
  %v11458 = vmul.f32 %v5017, %v10864
  %v11459 = vmul.f32 %v5017, %v11111
  %v11460 = vmul.f32 %v5021, %v10866
  %v11461 = vmul.f32 %v5021, %v10868
  %v11462 = vmul.f32 %v5021, %v11114
  %v11463 = vmul.f32 %v5025, %v10872
  %v11464 = vmul.f32 %v5025, %v10874
  %v11465 = vmul.f32 %v5025, %v11119
  %v11466 = vmul.f32 %v5029, %v10876
  %v11467 = vmul.f32 %v5029, %v10878
  %v11468 = vmul.f32 %v5029, %v11122
  %11481 = vrot.lane.b32.xlu0 %v11457, 123
  %v11482 = vpop.permute.xlu0 %11481
  %11483 = vrot.lane.b32.xlu0 %v11458, 123
  %v11484 = vpop.permute.xlu0 %11483
  %11485 = vrot.lane.b32.xlu0 %v11459, 123
  %v11486 = vpop.permute.xlu0 %11485
  %11487 = vrot.lane.b32.xlu0 %v11460, 123
  %v11488 = vpop.permute.xlu0 %11487
  %11489 = vrot.lane.b32.xlu0 %v11461, 123
  %v11490 = vpop.permute.xlu0 %11489
  %11491 = vrot.lane.b32.xlu0 %v11462, 123
  %v11492 = vpop.permute.xlu0 %11491
  %11493 = vrot.lane.b32.xlu0 %v11463, 123
  %v11494 = vpop.permute.xlu0 %11493
  %11495 = vrot.lane.b32.xlu0 %v11464, 123
  %v11496 = vpop.permute.xlu0 %11495
  %11497 = vrot.lane.b32.xlu0 %v11465, 123
  %v11498 = vpop.permute.xlu0 %11497
  %11499 = vrot.lane.b32.xlu0 %v11466, 123
  %v11500 = vpop.permute.xlu0 %11499
  %11501 = vrot.lane.b32.xlu0 %v11467, 123
  %v11502 = vpop.permute.xlu0 %11501
  %11503 = vrot.lane.b32.xlu0 %v11468, 123
  %v11504 = vpop.permute.xlu0 %11503
  %v11505 = vsel %vm5079, %v11482, %v11484
  %v11506 = vsel %vm5079, %v11484, %v11486
  %v11507 = vsel %vm5079, %v11488, %v11490
  %v11508 = vsel %vm5079, %v11490, %v11492
  %v11509 = vsel %vm5079, %v11494, %v11496
  %v11510 = vsel %vm5079, %v11496, %v11498
  %v11511 = vsel %vm5079, %v11500, %v11502
  %v11512 = vsel %vm5079, %v11502, %v11504
  %v11525 = vadd.f32 %v11445, %v11505
  %v11526 = vadd.f32 %v11446, %v11506
  %v11527 = vadd.f32 %v11447, %v11486
  %v11528 = vadd.f32 %v11448, %v11507
  %v11529 = vadd.f32 %v11449, %v11508
  %v11530 = vadd.f32 %v11450, %v11492
  %v11531 = vadd.f32 %v11451, %v11509
  %v11532 = vadd.f32 %v11452, %v11510
  %v11533 = vadd.f32 %v11453, %v11498
  %v11534 = vadd.f32 %v11454, %v11511
  %v11535 = vadd.f32 %v11455, %v11512
  %v11536 = vadd.f32 %v11456, %v11504
  %v11537 = vmul.f32 %v5114, %v10862
  %v11538 = vmul.f32 %v5114, %v10864
  %v11539 = vmul.f32 %v5114, %v11111
  %v11540 = vmul.f32 %v5118, %v10866
  %v11541 = vmul.f32 %v5118, %v10868
  %v11542 = vmul.f32 %v5118, %v11114
  %v11543 = vmul.f32 %v5122, %v10872
  %v11544 = vmul.f32 %v5122, %v10874
  %v11545 = vmul.f32 %v5122, %v11119
  %v11546 = vmul.f32 %v5126, %v10876
  %v11547 = vmul.f32 %v5126, %v10878
  %v11548 = vmul.f32 %v5126, %v11122
  %11561 = vrot.lane.b32.xlu0 %v11537, 122
  %v11562 = vpop.permute.xlu0 %11561
  %11563 = vrot.lane.b32.xlu0 %v11538, 122
  %v11564 = vpop.permute.xlu0 %11563
  %11565 = vrot.lane.b32.xlu0 %v11539, 122
  %v11566 = vpop.permute.xlu0 %11565
  %11567 = vrot.lane.b32.xlu0 %v11540, 122
  %v11568 = vpop.permute.xlu0 %11567
  %11569 = vrot.lane.b32.xlu0 %v11541, 122
  %v11570 = vpop.permute.xlu0 %11569
  %11571 = vrot.lane.b32.xlu0 %v11542, 122
  %v11572 = vpop.permute.xlu0 %11571
  %11573 = vrot.lane.b32.xlu0 %v11543, 122
  %v11574 = vpop.permute.xlu0 %11573
  %11575 = vrot.lane.b32.xlu0 %v11544, 122
  %v11576 = vpop.permute.xlu0 %11575
  %11577 = vrot.lane.b32.xlu0 %v11545, 122
  %v11578 = vpop.permute.xlu0 %11577
  %11579 = vrot.lane.b32.xlu0 %v11546, 122
  %v11580 = vpop.permute.xlu0 %11579
  %11581 = vrot.lane.b32.xlu0 %v11547, 122
  %v11582 = vpop.permute.xlu0 %11581
  %11583 = vrot.lane.b32.xlu0 %v11548, 122
  %v11584 = vpop.permute.xlu0 %11583
  %v11585 = vsel %vm5176, %v11562, %v11564
  %v11586 = vsel %vm5176, %v11564, %v11566
  %v11587 = vsel %vm5176, %v11568, %v11570
  %v11588 = vsel %vm5176, %v11570, %v11572
  %v11589 = vsel %vm5176, %v11574, %v11576
  %v11590 = vsel %vm5176, %v11576, %v11578
  %v11591 = vsel %vm5176, %v11580, %v11582
  %v11592 = vsel %vm5176, %v11582, %v11584
  %v11605 = vadd.f32 %v11525, %v11585
  %v11606 = vadd.f32 %v11526, %v11586
  %v11607 = vadd.f32 %v11527, %v11566
  %v11608 = vadd.f32 %v11528, %v11587
  %v11609 = vadd.f32 %v11529, %v11588
  %v11610 = vadd.f32 %v11530, %v11572
  %v11611 = vadd.f32 %v11531, %v11589
  %v11612 = vadd.f32 %v11532, %v11590
  %v11613 = vadd.f32 %v11533, %v11578
  %v11614 = vadd.f32 %v11534, %v11591
  %v11615 = vadd.f32 %v11535, %v11592
  %v11616 = vadd.f32 %v11536, %v11584
  %v11617 = vmul.f32 %v5211, %v10862
  %v11618 = vmul.f32 %v5211, %v10864
  %v11619 = vmul.f32 %v5211, %v11111
  %v11620 = vmul.f32 %v5215, %v10866
  %v11621 = vmul.f32 %v5215, %v10868
  %v11622 = vmul.f32 %v5215, %v11114
  %v11623 = vmul.f32 %v5219, %v10872
  %v11624 = vmul.f32 %v5219, %v10874
  %v11625 = vmul.f32 %v5219, %v11119
  %v11626 = vmul.f32 %v5223, %v10876
  %v11627 = vmul.f32 %v5223, %v10878
  %v11628 = vmul.f32 %v5223, %v11122
  %11641 = vrot.lane.b32.xlu0 %v11617, 121
  %v11642 = vpop.permute.xlu0 %11641
  %11643 = vrot.lane.b32.xlu0 %v11618, 121
  %v11644 = vpop.permute.xlu0 %11643
  %11645 = vrot.lane.b32.xlu0 %v11619, 121
  %v11646 = vpop.permute.xlu0 %11645
  %11647 = vrot.lane.b32.xlu0 %v11620, 121
  %v11648 = vpop.permute.xlu0 %11647
  %11649 = vrot.lane.b32.xlu0 %v11621, 121
  %v11650 = vpop.permute.xlu0 %11649
  %11651 = vrot.lane.b32.xlu0 %v11622, 121
  %v11652 = vpop.permute.xlu0 %11651
  %11653 = vrot.lane.b32.xlu0 %v11623, 121
  %v11654 = vpop.permute.xlu0 %11653
  %11655 = vrot.lane.b32.xlu0 %v11624, 121
  %v11656 = vpop.permute.xlu0 %11655
  %11657 = vrot.lane.b32.xlu0 %v11625, 121
  %v11658 = vpop.permute.xlu0 %11657
  %11659 = vrot.lane.b32.xlu0 %v11626, 121
  %v11660 = vpop.permute.xlu0 %11659
  %11661 = vrot.lane.b32.xlu0 %v11627, 121
  %v11662 = vpop.permute.xlu0 %11661
  %11663 = vrot.lane.b32.xlu0 %v11628, 121
  %v11664 = vpop.permute.xlu0 %11663
  %v11665 = vsel %vm5273, %v11642, %v11644
  %v11666 = vsel %vm5273, %v11644, %v11646
  %v11667 = vsel %vm5273, %v11648, %v11650
  %v11668 = vsel %vm5273, %v11650, %v11652
  %v11669 = vsel %vm5273, %v11654, %v11656
  %v11670 = vsel %vm5273, %v11656, %v11658
  %v11671 = vsel %vm5273, %v11660, %v11662
  %v11672 = vsel %vm5273, %v11662, %v11664
  %v11685 = vadd.f32 %v11605, %v11665
  %v11686 = vadd.f32 %v11606, %v11666
  %v11687 = vadd.f32 %v11607, %v11646
  %v11688 = vadd.f32 %v11608, %v11667
  %v11689 = vadd.f32 %v11609, %v11668
  %v11690 = vadd.f32 %v11610, %v11652
  %v11691 = vadd.f32 %v11611, %v11669
  %v11692 = vadd.f32 %v11612, %v11670
  %v11693 = vadd.f32 %v11613, %v11658
  %v11694 = vadd.f32 %v11614, %v11671
  %v11695 = vadd.f32 %v11615, %v11672
  %v11696 = vadd.f32 %v11616, %v11664
  %v11697 = vmul.f32 %v5308, %v10862
  %v11698 = vmul.f32 %v5308, %v10864
  %v11699 = vmul.f32 %v5308, %v11111
  %v11700 = vmul.f32 %v5312, %v10866
  %v11701 = vmul.f32 %v5312, %v10868
  %v11702 = vmul.f32 %v5312, %v11114
  %v11703 = vmul.f32 %v5316, %v10872
  %v11704 = vmul.f32 %v5316, %v10874
  %v11705 = vmul.f32 %v5316, %v11119
  %v11706 = vmul.f32 %v5320, %v10876
  %v11707 = vmul.f32 %v5320, %v10878
  %v11708 = vmul.f32 %v5320, %v11122
  %11721 = vrot.lane.b32.xlu0 %v11697, 120
  %v11722 = vpop.permute.xlu0 %11721
  %11723 = vrot.lane.b32.xlu0 %v11698, 120
  %v11724 = vpop.permute.xlu0 %11723
  %11725 = vrot.lane.b32.xlu0 %v11699, 120
  %v11726 = vpop.permute.xlu0 %11725
  %11727 = vrot.lane.b32.xlu0 %v11700, 120
  %v11728 = vpop.permute.xlu0 %11727
  %11729 = vrot.lane.b32.xlu0 %v11701, 120
  %v11730 = vpop.permute.xlu0 %11729
  %11731 = vrot.lane.b32.xlu0 %v11702, 120
  %v11732 = vpop.permute.xlu0 %11731
  %11733 = vrot.lane.b32.xlu0 %v11703, 120
  %v11734 = vpop.permute.xlu0 %11733
  %11735 = vrot.lane.b32.xlu0 %v11704, 120
  %v11736 = vpop.permute.xlu0 %11735
  %11737 = vrot.lane.b32.xlu0 %v11705, 120
  %v11738 = vpop.permute.xlu0 %11737
  %11739 = vrot.lane.b32.xlu0 %v11706, 120
  %v11740 = vpop.permute.xlu0 %11739
  %11741 = vrot.lane.b32.xlu0 %v11707, 120
  %v11742 = vpop.permute.xlu0 %11741
  %11743 = vrot.lane.b32.xlu0 %v11708, 120
  %v11744 = vpop.permute.xlu0 %11743
  %v11745 = vsel %vm5370, %v11722, %v11724
  %v11746 = vsel %vm5370, %v11724, %v11726
  %v11747 = vsel %vm5370, %v11728, %v11730
  %v11748 = vsel %vm5370, %v11730, %v11732
  %v11749 = vsel %vm5370, %v11734, %v11736
  %v11750 = vsel %vm5370, %v11736, %v11738
  %v11751 = vsel %vm5370, %v11740, %v11742
  %v11752 = vsel %vm5370, %v11742, %v11744
  %v11765 = vadd.f32 %v11685, %v11745
  %v11766 = vadd.f32 %v11686, %v11746
  %v11767 = vadd.f32 %v11687, %v11726
  %v11768 = vadd.f32 %v11688, %v11747
  %v11769 = vadd.f32 %v11689, %v11748
  %v11770 = vadd.f32 %v11690, %v11732
  %v11771 = vadd.f32 %v11691, %v11749
  %v11772 = vadd.f32 %v11692, %v11750
  %v11773 = vadd.f32 %v11693, %v11738
  %v11774 = vadd.f32 %v11694, %v11751
  %v11775 = vadd.f32 %v11695, %v11752
  %v11776 = vadd.f32 %v11696, %v11744
  %v11777 = vmul.f32 %v5405, %v10862
  %v11778 = vmul.f32 %v5405, %v10864
  %v11779 = vmul.f32 %v5405, %v11111
  %v11780 = vmul.f32 %v5409, %v10866
  %v11781 = vmul.f32 %v5409, %v10868
  %v11782 = vmul.f32 %v5409, %v11114
  %v11783 = vmul.f32 %v5413, %v10872
  %v11784 = vmul.f32 %v5413, %v10874
  %v11785 = vmul.f32 %v5413, %v11119
  %v11786 = vmul.f32 %v5417, %v10876
  %v11787 = vmul.f32 %v5417, %v10878
  %v11788 = vmul.f32 %v5417, %v11122
  %11801 = vrot.lane.b32.xlu0 %v11777, 119
  %v11802 = vpop.permute.xlu0 %11801
  %11803 = vrot.lane.b32.xlu0 %v11778, 119
  %v11804 = vpop.permute.xlu0 %11803
  %11805 = vrot.lane.b32.xlu0 %v11779, 119
  %v11806 = vpop.permute.xlu0 %11805
  %11807 = vrot.lane.b32.xlu0 %v11780, 119
  %v11808 = vpop.permute.xlu0 %11807
  %11809 = vrot.lane.b32.xlu0 %v11781, 119
  %v11810 = vpop.permute.xlu0 %11809
  %11811 = vrot.lane.b32.xlu0 %v11782, 119
  %v11812 = vpop.permute.xlu0 %11811
  %11813 = vrot.lane.b32.xlu0 %v11783, 119
  %v11814 = vpop.permute.xlu0 %11813
  %11815 = vrot.lane.b32.xlu0 %v11784, 119
  %v11816 = vpop.permute.xlu0 %11815
  %11817 = vrot.lane.b32.xlu0 %v11785, 119
  %v11818 = vpop.permute.xlu0 %11817
  %11819 = vrot.lane.b32.xlu0 %v11786, 119
  %v11820 = vpop.permute.xlu0 %11819
  %11821 = vrot.lane.b32.xlu0 %v11787, 119
  %v11822 = vpop.permute.xlu0 %11821
  %11823 = vrot.lane.b32.xlu0 %v11788, 119
  %v11824 = vpop.permute.xlu0 %11823
  %v11825 = vsel %vm5467, %v11802, %v11804
  %v11826 = vsel %vm5467, %v11804, %v11806
  %v11827 = vsel %vm5467, %v11808, %v11810
  %v11828 = vsel %vm5467, %v11810, %v11812
  %v11829 = vsel %vm5467, %v11814, %v11816
  %v11830 = vsel %vm5467, %v11816, %v11818
  %v11831 = vsel %vm5467, %v11820, %v11822
  %v11832 = vsel %vm5467, %v11822, %v11824
  %v11845 = vadd.f32 %v11765, %v11825
  %v11846 = vadd.f32 %v11766, %v11826
  %v11847 = vadd.f32 %v11767, %v11806
  %v11848 = vadd.f32 %v11768, %v11827
  %v11849 = vadd.f32 %v11769, %v11828
  %v11850 = vadd.f32 %v11770, %v11812
  %v11851 = vadd.f32 %v11771, %v11829
  %v11852 = vadd.f32 %v11772, %v11830
  %v11853 = vadd.f32 %v11773, %v11818
  %v11854 = vadd.f32 %v11774, %v11831
  %v11855 = vadd.f32 %v11775, %v11832
  %v11856 = vadd.f32 %v11776, %v11824
  %v11857 = vmul.f32 %v5502, %v10862
  %v11858 = vmul.f32 %v5502, %v10864
  %v11859 = vmul.f32 %v5502, %v11111
  %v11860 = vmul.f32 %v5506, %v10866
  %v11861 = vmul.f32 %v5506, %v10868
  %v11862 = vmul.f32 %v5506, %v11114
  %v11863 = vmul.f32 %v5510, %v10872
  %v11864 = vmul.f32 %v5510, %v10874
  %v11865 = vmul.f32 %v5510, %v11119
  %v11866 = vmul.f32 %v5514, %v10876
  %v11867 = vmul.f32 %v5514, %v10878
  %v11868 = vmul.f32 %v5514, %v11122
  %11881 = vrot.lane.b32.xlu0 %v11857, 118
  %v11882 = vpop.permute.xlu0 %11881
  %11883 = vrot.lane.b32.xlu0 %v11858, 118
  %v11884 = vpop.permute.xlu0 %11883
  %11885 = vrot.lane.b32.xlu0 %v11859, 118
  %v11886 = vpop.permute.xlu0 %11885
  %11887 = vrot.lane.b32.xlu0 %v11860, 118
  %v11888 = vpop.permute.xlu0 %11887
  %11889 = vrot.lane.b32.xlu0 %v11861, 118
  %v11890 = vpop.permute.xlu0 %11889
  %11891 = vrot.lane.b32.xlu0 %v11862, 118
  %v11892 = vpop.permute.xlu0 %11891
  %11893 = vrot.lane.b32.xlu0 %v11863, 118
  %v11894 = vpop.permute.xlu0 %11893
  %11895 = vrot.lane.b32.xlu0 %v11864, 118
  %v11896 = vpop.permute.xlu0 %11895
  %11897 = vrot.lane.b32.xlu0 %v11865, 118
  %v11898 = vpop.permute.xlu0 %11897
  %11899 = vrot.lane.b32.xlu0 %v11866, 118
  %v11900 = vpop.permute.xlu0 %11899
  %11901 = vrot.lane.b32.xlu0 %v11867, 118
  %v11902 = vpop.permute.xlu0 %11901
  %11903 = vrot.lane.b32.xlu0 %v11868, 118
  %v11904 = vpop.permute.xlu0 %11903
  %v11905 = vsel %vm5564, %v11882, %v11884
  %v11906 = vsel %vm5564, %v11884, %v11886
  %v11907 = vsel %vm5564, %v11888, %v11890
  %v11908 = vsel %vm5564, %v11890, %v11892
  %v11909 = vsel %vm5564, %v11894, %v11896
  %v11910 = vsel %vm5564, %v11896, %v11898
  %v11911 = vsel %vm5564, %v11900, %v11902
  %v11912 = vsel %vm5564, %v11902, %v11904
  %v11925 = vadd.f32 %v11845, %v11905
  %v11926 = vadd.f32 %v11846, %v11906
  %v11927 = vadd.f32 %v11847, %v11886
  %v11928 = vadd.f32 %v11848, %v11907
  %v11929 = vadd.f32 %v11849, %v11908
  %v11930 = vadd.f32 %v11850, %v11892
  %v11931 = vadd.f32 %v11851, %v11909
  %v11932 = vadd.f32 %v11852, %v11910
  %v11933 = vadd.f32 %v11853, %v11898
  %v11934 = vadd.f32 %v11854, %v11911
  %v11935 = vadd.f32 %v11855, %v11912
  %v11936 = vadd.f32 %v11856, %v11904
  %v11937 = vmul.f32 %v5599, %v10862
  %v11938 = vmul.f32 %v5599, %v10864
  %v11939 = vmul.f32 %v5599, %v11111
  %v11940 = vmul.f32 %v5603, %v10866
  %v11941 = vmul.f32 %v5603, %v10868
  %v11942 = vmul.f32 %v5603, %v11114
  %v11943 = vmul.f32 %v5607, %v10872
  %v11944 = vmul.f32 %v5607, %v10874
  %v11945 = vmul.f32 %v5607, %v11119
  %v11946 = vmul.f32 %v5611, %v10876
  %v11947 = vmul.f32 %v5611, %v10878
  %v11948 = vmul.f32 %v5611, %v11122
  %11961 = vrot.lane.b32.xlu0 %v11937, 117
  %v11962 = vpop.permute.xlu0 %11961
  %11963 = vrot.lane.b32.xlu0 %v11938, 117
  %v11964 = vpop.permute.xlu0 %11963
  %11965 = vrot.lane.b32.xlu0 %v11939, 117
  %v11966 = vpop.permute.xlu0 %11965
  %11967 = vrot.lane.b32.xlu0 %v11940, 117
  %v11968 = vpop.permute.xlu0 %11967
  %11969 = vrot.lane.b32.xlu0 %v11941, 117
  %v11970 = vpop.permute.xlu0 %11969
  %11971 = vrot.lane.b32.xlu0 %v11942, 117
  %v11972 = vpop.permute.xlu0 %11971
  %11973 = vrot.lane.b32.xlu0 %v11943, 117
  %v11974 = vpop.permute.xlu0 %11973
  %11975 = vrot.lane.b32.xlu0 %v11944, 117
  %v11976 = vpop.permute.xlu0 %11975
  %11977 = vrot.lane.b32.xlu0 %v11945, 117
  %v11978 = vpop.permute.xlu0 %11977
  %11979 = vrot.lane.b32.xlu0 %v11946, 117
  %v11980 = vpop.permute.xlu0 %11979
  %11981 = vrot.lane.b32.xlu0 %v11947, 117
  %v11982 = vpop.permute.xlu0 %11981
  %11983 = vrot.lane.b32.xlu0 %v11948, 117
  %v11984 = vpop.permute.xlu0 %11983
  %v11985 = vsel %vm5661, %v11962, %v11964
  %v11986 = vsel %vm5661, %v11964, %v11966
  %v11987 = vsel %vm5661, %v11968, %v11970
  %v11988 = vsel %vm5661, %v11970, %v11972
  %v11989 = vsel %vm5661, %v11974, %v11976
  %v11990 = vsel %vm5661, %v11976, %v11978
  %v11991 = vsel %vm5661, %v11980, %v11982
  %v11992 = vsel %vm5661, %v11982, %v11984
  %v12005 = vadd.f32 %v11925, %v11985
  %v12006 = vadd.f32 %v11926, %v11986
  %v12007 = vadd.f32 %v11927, %v11966
  %v12008 = vadd.f32 %v11928, %v11987
  %v12009 = vadd.f32 %v11929, %v11988
  %v12010 = vadd.f32 %v11930, %v11972
  %v12011 = vadd.f32 %v11931, %v11989
  %v12012 = vadd.f32 %v11932, %v11990
  %v12013 = vadd.f32 %v11933, %v11978
  %v12014 = vadd.f32 %v11934, %v11991
  %v12015 = vadd.f32 %v11935, %v11992
  %v12016 = vadd.f32 %v11936, %v11984
  %v12017 = vmul.f32 %v5696, %v10862
  %v12018 = vmul.f32 %v5696, %v10864
  %v12019 = vmul.f32 %v5696, %v11111
  %v12020 = vmul.f32 %v5700, %v10866
  %v12021 = vmul.f32 %v5700, %v10868
  %v12022 = vmul.f32 %v5700, %v11114
  %v12023 = vmul.f32 %v5704, %v10872
  %v12024 = vmul.f32 %v5704, %v10874
  %v12025 = vmul.f32 %v5704, %v11119
  %v12026 = vmul.f32 %v5708, %v10876
  %v12027 = vmul.f32 %v5708, %v10878
  %v12028 = vmul.f32 %v5708, %v11122
  %12041 = vrot.lane.b32.xlu0 %v12017, 116
  %v12042 = vpop.permute.xlu0 %12041
  %12043 = vrot.lane.b32.xlu0 %v12018, 116
  %v12044 = vpop.permute.xlu0 %12043
  %12045 = vrot.lane.b32.xlu0 %v12019, 116
  %v12046 = vpop.permute.xlu0 %12045
  %12047 = vrot.lane.b32.xlu0 %v12020, 116
  %v12048 = vpop.permute.xlu0 %12047
  %12049 = vrot.lane.b32.xlu0 %v12021, 116
  %v12050 = vpop.permute.xlu0 %12049
  %12051 = vrot.lane.b32.xlu0 %v12022, 116
  %v12052 = vpop.permute.xlu0 %12051
  %12053 = vrot.lane.b32.xlu0 %v12023, 116
  %v12054 = vpop.permute.xlu0 %12053
  %12055 = vrot.lane.b32.xlu0 %v12024, 116
  %v12056 = vpop.permute.xlu0 %12055
  %12057 = vrot.lane.b32.xlu0 %v12025, 116
  %v12058 = vpop.permute.xlu0 %12057
  %12059 = vrot.lane.b32.xlu0 %v12026, 116
  %v12060 = vpop.permute.xlu0 %12059
  %12061 = vrot.lane.b32.xlu0 %v12027, 116
  %v12062 = vpop.permute.xlu0 %12061
  %12063 = vrot.lane.b32.xlu0 %v12028, 116
  %v12064 = vpop.permute.xlu0 %12063
  %v12065 = vsel %vm5758, %v12042, %v12044
  %v12066 = vsel %vm5758, %v12044, %v12046
  %v12067 = vsel %vm5758, %v12048, %v12050
  %v12068 = vsel %vm5758, %v12050, %v12052
  %v12069 = vsel %vm5758, %v12054, %v12056
  %v12070 = vsel %vm5758, %v12056, %v12058
  %v12071 = vsel %vm5758, %v12060, %v12062
  %v12072 = vsel %vm5758, %v12062, %v12064
  %v12085 = vadd.f32 %v12005, %v12065
  %v12086 = vadd.f32 %v12006, %v12066
  %v12087 = vadd.f32 %v12007, %v12046
  %v12088 = vadd.f32 %v12008, %v12067
  %v12089 = vadd.f32 %v12009, %v12068
  %v12090 = vadd.f32 %v12010, %v12052
  %v12091 = vadd.f32 %v12011, %v12069
  %v12092 = vadd.f32 %v12012, %v12070
  %v12093 = vadd.f32 %v12013, %v12058
  %v12094 = vadd.f32 %v12014, %v12071
  %v12095 = vadd.f32 %v12015, %v12072
  %v12096 = vadd.f32 %v12016, %v12064
  %v12097 = vmul.f32 %v5793, %v10862
  %v12098 = vmul.f32 %v5793, %v10864
  %v12099 = vmul.f32 %v5793, %v11111
  %v12100 = vmul.f32 %v5797, %v10866
  %v12101 = vmul.f32 %v5797, %v10868
  %v12102 = vmul.f32 %v5797, %v11114
  %v12103 = vmul.f32 %v5801, %v10872
  %v12104 = vmul.f32 %v5801, %v10874
  %v12105 = vmul.f32 %v5801, %v11119
  %v12106 = vmul.f32 %v5805, %v10876
  %v12107 = vmul.f32 %v5805, %v10878
  %v12108 = vmul.f32 %v5805, %v11122
  %12121 = vrot.lane.b32.xlu0 %v12097, 115
  %v12122 = vpop.permute.xlu0 %12121
  %12123 = vrot.lane.b32.xlu0 %v12098, 115
  %v12124 = vpop.permute.xlu0 %12123
  %12125 = vrot.lane.b32.xlu0 %v12099, 115
  %v12126 = vpop.permute.xlu0 %12125
  %12127 = vrot.lane.b32.xlu0 %v12100, 115
  %v12128 = vpop.permute.xlu0 %12127
  %12129 = vrot.lane.b32.xlu0 %v12101, 115
  %v12130 = vpop.permute.xlu0 %12129
  %12131 = vrot.lane.b32.xlu0 %v12102, 115
  %v12132 = vpop.permute.xlu0 %12131
  %12133 = vrot.lane.b32.xlu0 %v12103, 115
  %v12134 = vpop.permute.xlu0 %12133
  %12135 = vrot.lane.b32.xlu0 %v12104, 115
  %v12136 = vpop.permute.xlu0 %12135
  %12137 = vrot.lane.b32.xlu0 %v12105, 115
  %v12138 = vpop.permute.xlu0 %12137
  %12139 = vrot.lane.b32.xlu0 %v12106, 115
  %v12140 = vpop.permute.xlu0 %12139
  %12141 = vrot.lane.b32.xlu0 %v12107, 115
  %v12142 = vpop.permute.xlu0 %12141
  %12143 = vrot.lane.b32.xlu0 %v12108, 115
  %v12144 = vpop.permute.xlu0 %12143
  %v12145 = vsel %vm5855, %v12122, %v12124
  %v12146 = vsel %vm5855, %v12124, %v12126
  %v12147 = vsel %vm5855, %v12128, %v12130
  %v12148 = vsel %vm5855, %v12130, %v12132
  %v12149 = vsel %vm5855, %v12134, %v12136
  %v12150 = vsel %vm5855, %v12136, %v12138
  %v12151 = vsel %vm5855, %v12140, %v12142
  %v12152 = vsel %vm5855, %v12142, %v12144
  %v12165 = vadd.f32 %v12085, %v12145
  %v12166 = vadd.f32 %v12086, %v12146
  %v12167 = vadd.f32 %v12087, %v12126
  %v12168 = vadd.f32 %v12088, %v12147
  %v12169 = vadd.f32 %v12089, %v12148
  %v12170 = vadd.f32 %v12090, %v12132
  %v12171 = vadd.f32 %v12091, %v12149
  %v12172 = vadd.f32 %v12092, %v12150
  %v12173 = vadd.f32 %v12093, %v12138
  %v12174 = vadd.f32 %v12094, %v12151
  %v12175 = vadd.f32 %v12095, %v12152
  %v12176 = vadd.f32 %v12096, %v12144
  %v12177 = vmul.f32 %v5890, %v10862
  %v12178 = vmul.f32 %v5890, %v10864
  %v12179 = vmul.f32 %v5890, %v11111
  %v12180 = vmul.f32 %v5894, %v10866
  %v12181 = vmul.f32 %v5894, %v10868
  %v12182 = vmul.f32 %v5894, %v11114
  %v12183 = vmul.f32 %v5898, %v10872
  %v12184 = vmul.f32 %v5898, %v10874
  %v12185 = vmul.f32 %v5898, %v11119
  %v12186 = vmul.f32 %v5902, %v10876
  %v12187 = vmul.f32 %v5902, %v10878
  %v12188 = vmul.f32 %v5902, %v11122
  %12201 = vrot.lane.b32.xlu0 %v12177, 114
  %v12202 = vpop.permute.xlu0 %12201
  %12203 = vrot.lane.b32.xlu0 %v12178, 114
  %v12204 = vpop.permute.xlu0 %12203
  %12205 = vrot.lane.b32.xlu0 %v12179, 114
  %v12206 = vpop.permute.xlu0 %12205
  %12207 = vrot.lane.b32.xlu0 %v12180, 114
  %v12208 = vpop.permute.xlu0 %12207
  %12209 = vrot.lane.b32.xlu0 %v12181, 114
  %v12210 = vpop.permute.xlu0 %12209
  %12211 = vrot.lane.b32.xlu0 %v12182, 114
  %v12212 = vpop.permute.xlu0 %12211
  %12213 = vrot.lane.b32.xlu0 %v12183, 114
  %v12214 = vpop.permute.xlu0 %12213
  %12215 = vrot.lane.b32.xlu0 %v12184, 114
  %v12216 = vpop.permute.xlu0 %12215
  %12217 = vrot.lane.b32.xlu0 %v12185, 114
  %v12218 = vpop.permute.xlu0 %12217
  %12219 = vrot.lane.b32.xlu0 %v12186, 114
  %v12220 = vpop.permute.xlu0 %12219
  %12221 = vrot.lane.b32.xlu0 %v12187, 114
  %v12222 = vpop.permute.xlu0 %12221
  %12223 = vrot.lane.b32.xlu0 %v12188, 114
  %v12224 = vpop.permute.xlu0 %12223
  %v12225 = vsel %vm5952, %v12202, %v12204
  %v12226 = vsel %vm5952, %v12204, %v12206
  %v12227 = vsel %vm5952, %v12208, %v12210
  %v12228 = vsel %vm5952, %v12210, %v12212
  %v12229 = vsel %vm5952, %v12214, %v12216
  %v12230 = vsel %vm5952, %v12216, %v12218
  %v12231 = vsel %vm5952, %v12220, %v12222
  %v12232 = vsel %vm5952, %v12222, %v12224
  %v12245 = vadd.f32 %v12165, %v12225
  %v12246 = vadd.f32 %v12166, %v12226
  %v12247 = vadd.f32 %v12167, %v12206
  %v12248 = vadd.f32 %v12168, %v12227
  %v12249 = vadd.f32 %v12169, %v12228
  %v12250 = vadd.f32 %v12170, %v12212
  %v12251 = vadd.f32 %v12171, %v12229
  %v12252 = vadd.f32 %v12172, %v12230
  %v12253 = vadd.f32 %v12173, %v12218
  %v12254 = vadd.f32 %v12174, %v12231
  %v12255 = vadd.f32 %v12175, %v12232
  %v12256 = vadd.f32 %v12176, %v12224
  %v12257 = vmul.f32 %v5987, %v10862
  %v12258 = vmul.f32 %v5987, %v10864
  %v12259 = vmul.f32 %v5987, %v11111
  %v12260 = vmul.f32 %v5991, %v10866
  %v12261 = vmul.f32 %v5991, %v10868
  %v12262 = vmul.f32 %v5991, %v11114
  %v12263 = vmul.f32 %v5995, %v10872
  %v12264 = vmul.f32 %v5995, %v10874
  %v12265 = vmul.f32 %v5995, %v11119
  %v12266 = vmul.f32 %v5999, %v10876
  %v12267 = vmul.f32 %v5999, %v10878
  %v12268 = vmul.f32 %v5999, %v11122
  %12281 = vrot.lane.b32.xlu0 %v12257, 113
  %v12282 = vpop.permute.xlu0 %12281
  %12283 = vrot.lane.b32.xlu0 %v12258, 113
  %v12284 = vpop.permute.xlu0 %12283
  %12285 = vrot.lane.b32.xlu0 %v12259, 113
  %v12286 = vpop.permute.xlu0 %12285
  %12287 = vrot.lane.b32.xlu0 %v12260, 113
  %v12288 = vpop.permute.xlu0 %12287
  %12289 = vrot.lane.b32.xlu0 %v12261, 113
  %v12290 = vpop.permute.xlu0 %12289
  %12291 = vrot.lane.b32.xlu0 %v12262, 113
  %v12292 = vpop.permute.xlu0 %12291
  %12293 = vrot.lane.b32.xlu0 %v12263, 113
  %v12294 = vpop.permute.xlu0 %12293
  %12295 = vrot.lane.b32.xlu0 %v12264, 113
  %v12296 = vpop.permute.xlu0 %12295
  %12297 = vrot.lane.b32.xlu0 %v12265, 113
  %v12298 = vpop.permute.xlu0 %12297
  %12299 = vrot.lane.b32.xlu0 %v12266, 113
  %v12300 = vpop.permute.xlu0 %12299
  %12301 = vrot.lane.b32.xlu0 %v12267, 113
  %v12302 = vpop.permute.xlu0 %12301
  %12303 = vrot.lane.b32.xlu0 %v12268, 113
  %v12304 = vpop.permute.xlu0 %12303
  %v12305 = vsel %vm6049, %v12282, %v12284
  %v12306 = vsel %vm6049, %v12284, %v12286
  %v12307 = vsel %vm6049, %v12288, %v12290
  %v12308 = vsel %vm6049, %v12290, %v12292
  %v12309 = vsel %vm6049, %v12294, %v12296
  %v12310 = vsel %vm6049, %v12296, %v12298
  %v12311 = vsel %vm6049, %v12300, %v12302
  %v12312 = vsel %vm6049, %v12302, %v12304
  %v12325 = vadd.f32 %v12245, %v12305
  %v12326 = vadd.f32 %v12246, %v12306
  %v12327 = vadd.f32 %v12247, %v12286
  %v12328 = vadd.f32 %v12248, %v12307
  %v12329 = vadd.f32 %v12249, %v12308
  %v12330 = vadd.f32 %v12250, %v12292
  %v12331 = vadd.f32 %v12251, %v12309
  %v12332 = vadd.f32 %v12252, %v12310
  %v12333 = vadd.f32 %v12253, %v12298
  %v12334 = vadd.f32 %v12254, %v12311
  %v12335 = vadd.f32 %v12255, %v12312
  %v12336 = vadd.f32 %v12256, %v12304
  %v12337 = vld [vmem:[%s6] sm:$0xff]
  %v12338 = vld [vmem:[%s6 + $0x8] sm:$0xff]
  %v12339 = vld [vmem:[%s6 + $0x10] sm:$0xff]
  %v12340 = vld [vmem:[%s6 + $0x18] sm:$0xff]
  %12342 = vset.pattern.permute.xlu0 0
  %12343 = vperm.xlu0 %12342, %v12337
  %v12344 = vpop.permute.xlu0 %12343
  %12347 = vset.pattern.permute.xlu0 0
  %12348 = vperm.xlu0 %12347, %v12338
  %v12349 = vpop.permute.xlu0 %12348
  %12352 = vset.pattern.permute.xlu0 0
  %12353 = vperm.xlu0 %12352, %v12339
  %v12354 = vpop.permute.xlu0 %12353
  %12357 = vset.pattern.permute.xlu0 0
  %12358 = vperm.xlu0 %12357, %v12340
  %v12359 = vpop.permute.xlu0 %12358
  %12361 = vmatprep.subr.mxu0 0.0
  %12362 = vmatpush1.msra.mxu0 0.0
  %12363 = vmatprep.subr.mxu0 0.0
  %12364 = vmatpush1.msra.mxu0 0.0
  %12365 = vmatprep.subr.mxu0 0.0
  %12366 = vmatpush1.msra.mxu0 0.0
  %12367 = vmatprep.subr.mxu0 0.0
  %12368 = vmatpush1.msra.mxu0 0.0
  %12369 = vmatprep.subr.mxu0 0.0
  %12370 = vmatpush1.msra.mxu0 0.0
  %12371 = vmatprep.subr.mxu0 0.0
  %12372 = vmatpush1.msra.mxu0 0.0
  %12373 = vmatprep.subr.mxu0 0.0
  %12374 = vmatpush1.msra.mxu0 0.0
  %12375 = vmatprep.subr.mxu0 0.0
  %12376 = vmatpush1.msra.mxu0 0.0
  %12377 = vmatprep.subr.mxu0 0.0
  %12378 = vmatpush1.msra.mxu0 0.0
  %12379 = vmatprep.subr.mxu0 0.0
  %12380 = vmatpush1.msra.mxu0 0.0
  %12381 = vmatprep.subr.mxu0 0.0
  %12382 = vmatpush1.msra.mxu0 0.0
  %12383 = vmatprep.subr.mxu0 0.0
  %12384 = vmatpush1.msra.mxu0 0.0
  %12385 = vmatprep.subr.mxu0 %v12335
  %12386 = vmatpush1.msra.mxu0 %v12334
  %12387 = vmatprep.subr.mxu0 %v12332
  %12388 = vmatpush1.msra.mxu0 %v12331
  %12389 = vmatprep.subr.mxu0 %v12329
  %12390 = vmatpush1.msra.mxu0 %v12328
  %12391 = vmatprep.subr.mxu0 %v12326
  %12392 = vmatpush1.msra.mxu0 %v12325
  %12393 = vmatprep.subr.mxu0 0.0
  %12394 = vmatpush2.msra.mxu0 0.0
  %12395 = vmatprep.subr.mxu0 0.0
  %12396 = vmatpush2.msra.mxu0 0.0
  %12397 = vmatprep.subr.mxu0 0.0
  %12398 = vmatpush2.msra.mxu0 0.0
  %12399 = vmatprep.subr.mxu0 0.0
  %12400 = vmatpush2.msra.mxu0 0.0
  %12401 = vmatprep.subr.mxu0 0.0
  %12402 = vmatpush2.msra.mxu0 0.0
  %12403 = vmatprep.subr.mxu0 0.0
  %12404 = vmatpush2.msra.mxu0 0.0
  %12405 = vmatprep.subr.mxu0 0.0
  %12406 = vmatpush2.msra.mxu0 0.0
  %12407 = vmatprep.subr.mxu0 0.0
  %12408 = vmatpush2.msra.mxu0 0.0
  %12409 = vmatprep.subr.mxu0 0.0
  %12410 = vmatpush2.msra.mxu0 0.0
  %12411 = vmatprep.subr.mxu0 0.0
  %12412 = vmatpush2.msra.mxu0 0.0
  %12413 = vmatprep.subr.mxu0 0.0
  %12414 = vmatpush2.msra.mxu0 0.0
  %12415 = vmatprep.subr.mxu0 0.0
  %12416 = vmatpush2.msra.mxu0 0.0
  %12417 = vmatprep.subr.mxu0 0.0
  %12418 = vmatpush2.msra.mxu0 0.0
  %12419 = vmatprep.subr.mxu0 0.0
  %12420 = vmatpush2.msra.mxu0 0.0
  %12421 = vmatprep.subr.mxu0 0.0
  %12422 = vmatpush2.msra.mxu0 0.0
  %12423 = vmatprep.subr.mxu0 0.0
  %12424 = vmatpush2.msra.mxu0 0.0
  %12425 = vmatprep.mubr.f32.mxu0 0.0
  %12426 = vmatmul.mubr.f32.gmra.mxu0 %v6108
  %v12427 = vpop.f32.mrf.mxu0
  %v12428 = vadd.f32 %v12344, %v12427
  %v12429 = vpop.f32.mrf.mxu0
  %v12430 = vadd.f32 %v12344, %v12429
  %12431 = vmatprep.mubr.f32.mxu0 0.0
  %12432 = vmatmul.mubr.f32.gmra.mxu0 %v6111
  %v12433 = vpop.f32.mrf.mxu0
  %v12434 = vadd.f32 %v12349, %v12433
  %v12435 = vpop.f32.mrf.mxu0
  %v12436 = vadd.f32 %v12349, %v12435
  %12437 = vmatprep.mubr.f32.mxu0 0.0
  %12438 = vmatmul.mubr.f32.gmra.mxu0 %v6114
  %v12439 = vpop.f32.mrf.mxu0
  %v12440 = vadd.f32 %v12354, %v12439
  %v12441 = vpop.f32.mrf.mxu0
  %v12442 = vadd.f32 %v12354, %v12441
  %12443 = vmatprep.mubr.f32.mxu0 0.0
  %12444 = vmatmul.mubr.f32.gmra.mxu0 %v6117
  %v12445 = vpop.f32.mrf.mxu0
  %v12446 = vadd.f32 %v12359, %v12445
  %v12447 = vpop.f32.mrf.mxu0
  %v12448 = vadd.f32 %v12359, %v12447
  %12449 = vdwg.mxu0
  %12450 = vmatprep.subr.mxu0 0.0
  %12451 = vmatpush1.msra.mxu0 0.0
  %12452 = vmatprep.subr.mxu0 0.0
  %12453 = vmatpush1.msra.mxu0 0.0
  %12454 = vmatprep.subr.mxu0 0.0
  %12455 = vmatpush1.msra.mxu0 0.0
  %12456 = vmatprep.subr.mxu0 0.0
  %12457 = vmatpush1.msra.mxu0 0.0
  %12458 = vmatprep.subr.mxu0 0.0
  %12459 = vmatpush1.msra.mxu0 0.0
  %12460 = vmatprep.subr.mxu0 0.0
  %12461 = vmatpush1.msra.mxu0 0.0
  %12462 = vmatprep.subr.mxu0 0.0
  %12463 = vmatpush1.msra.mxu0 0.0
  %12464 = vmatprep.subr.mxu0 0.0
  %12465 = vmatpush1.msra.mxu0 0.0
  %12466 = vmatprep.subr.mxu0 0.0
  %12467 = vmatpush1.msra.mxu0 0.0
  %12468 = vmatprep.subr.mxu0 0.0
  %12469 = vmatpush1.msra.mxu0 0.0
  %12470 = vmatprep.subr.mxu0 0.0
  %12471 = vmatpush1.msra.mxu0 0.0
  %12472 = vmatprep.subr.mxu0 0.0
  %12473 = vmatpush1.msra.mxu0 0.0
  %12474 = vmatprep.subr.mxu0 0.0
  %12475 = vmatpush1.msra.mxu0 %v12336
  %12476 = vmatprep.subr.mxu0 0.0
  %12477 = vmatpush1.msra.mxu0 %v12333
  %12478 = vmatprep.subr.mxu0 0.0
  %12479 = vmatpush1.msra.mxu0 %v12330
  %12480 = vmatprep.subr.mxu0 0.0
  %12481 = vmatpush1.msra.mxu0 %v12327
  %12482 = vmatprep.subr.mxu0 0.0
  %12483 = vmatpush2.msra.mxu0 0.0
  %12484 = vmatprep.subr.mxu0 0.0
  %12485 = vmatpush2.msra.mxu0 0.0
  %12486 = vmatprep.subr.mxu0 0.0
  %12487 = vmatpush2.msra.mxu0 0.0
  %12488 = vmatprep.subr.mxu0 0.0
  %12489 = vmatpush2.msra.mxu0 0.0
  %12490 = vmatprep.subr.mxu0 0.0
  %12491 = vmatpush2.msra.mxu0 0.0
  %12492 = vmatprep.subr.mxu0 0.0
  %12493 = vmatpush2.msra.mxu0 0.0
  %12494 = vmatprep.subr.mxu0 0.0
  %12495 = vmatpush2.msra.mxu0 0.0
  %12496 = vmatprep.subr.mxu0 0.0
  %12497 = vmatpush2.msra.mxu0 0.0
  %12498 = vmatprep.subr.mxu0 0.0
  %12499 = vmatpush2.msra.mxu0 0.0
  %12500 = vmatprep.subr.mxu0 0.0
  %12501 = vmatpush2.msra.mxu0 0.0
  %12502 = vmatprep.subr.mxu0 0.0
  %12503 = vmatpush2.msra.mxu0 0.0
  %12504 = vmatprep.subr.mxu0 0.0
  %12505 = vmatpush2.msra.mxu0 0.0
  %12506 = vmatprep.subr.mxu0 0.0
  %12507 = vmatpush2.msra.mxu0 0.0
  %12508 = vmatprep.subr.mxu0 0.0
  %12509 = vmatpush2.msra.mxu0 0.0
  %12510 = vmatprep.subr.mxu0 0.0
  %12511 = vmatpush2.msra.mxu0 0.0
  %12512 = vmatprep.subr.mxu0 0.0
  %12513 = vmatpush2.msra.mxu0 0.0
  %12514 = vmatprep.mubr.f32.mxu0 0.0
  %12515 = vmatmul.mubr.f32.gmra.mxu0 %v6108
  %v12516 = vpop.f32.mrf.mxu0
  %v12517 = vadd.f32 %v12344, %v12516
  %v12518 = vpop.f32.mrf.mxu0
  %12519 = vmatprep.mubr.f32.mxu0 0.0
  %12520 = vmatmul.mubr.f32.gmra.mxu0 %v6111
  %v12521 = vpop.f32.mrf.mxu0
  %v12522 = vadd.f32 %v12349, %v12521
  %v12523 = vpop.f32.mrf.mxu0
  %12524 = vmatprep.mubr.f32.mxu0 0.0
  %12525 = vmatmul.mubr.f32.gmra.mxu0 %v6114
  %v12526 = vpop.f32.mrf.mxu0
  %v12527 = vadd.f32 %v12354, %v12526
  %v12528 = vpop.f32.mrf.mxu0
  %12529 = vmatprep.mubr.f32.mxu0 0.0
  %12530 = vmatmul.mubr.f32.gmra.mxu0 %v6117
  %v12531 = vpop.f32.mrf.mxu0
  %v12532 = vadd.f32 %v12359, %v12531
  %v12533 = vpop.f32.mrf.mxu0
  %12534 = vdwg.mxu0
  %vm12535 = vcmp.gt.f32.partialorder %v12428, 0.0
  %vm12536 = vcmp.gt.f32.partialorder %v12430, 0.0
  %vm12537 = vcmp.gt.f32.partialorder %v12517, 0.0
  %vm12538 = vcmp.gt.f32.partialorder %v12434, 0.0
  %vm12539 = vcmp.gt.f32.partialorder %v12436, 0.0
  %vm12540 = vcmp.gt.f32.partialorder %v12522, 0.0
  %vm12541 = vcmp.gt.f32.partialorder %v12440, 0.0
  %vm12542 = vcmp.gt.f32.partialorder %v12442, 0.0
  %vm12543 = vcmp.gt.f32.partialorder %v12527, 0.0
  %vm12544 = vcmp.gt.f32.partialorder %v12446, 0.0
  %vm12545 = vcmp.gt.f32.partialorder %v12448, 0.0
  %vm12546 = vcmp.gt.f32.partialorder %v12532, 0.0
  %v12547 = vmin.f32 %v12428, 0.0
  %v12548 = vmin.f32 %v12430, 0.0
  %v12549 = vmin.f32 %v12517, 0.0
  %v12550 = vmin.f32 %v12434, 0.0
  %v12551 = vmin.f32 %v12436, 0.0
  %v12552 = vmin.f32 %v12522, 0.0
  %v12553 = vmin.f32 %v12440, 0.0
  %v12554 = vmin.f32 %v12442, 0.0
  %v12555 = vmin.f32 %v12527, 0.0
  %v12556 = vmin.f32 %v12446, 0.0
  %v12557 = vmin.f32 %v12448, 0.0
  %v12558 = vmin.f32 %v12532, 0.0
  %v12559 = vmul.f32 %v12547, 1.442695
  %v12560 = vpow.pop %v12559
  %v12561 = vmul.f32 %v12548, 1.442695
  %v12562 = vpow.pop %v12561
  %v12563 = vmul.f32 %v12549, 1.442695
  %v12564 = vpow.pop %v12563
  %v12565 = vmul.f32 %v12550, 1.442695
  %v12566 = vpow.pop %v12565
  %v12567 = vmul.f32 %v12551, 1.442695
  %v12568 = vpow.pop %v12567
  %v12569 = vmul.f32 %v12552, 1.442695
  %v12570 = vpow.pop %v12569
  %v12571 = vmul.f32 %v12553, 1.442695
  %v12572 = vpow.pop %v12571
  %v12573 = vmul.f32 %v12554, 1.442695
  %v12574 = vpow.pop %v12573
  %v12575 = vmul.f32 %v12555, 1.442695
  %v12576 = vpow.pop %v12575
  %v12577 = vmul.f32 %v12556, 1.442695
  %v12578 = vpow.pop %v12577
  %v12579 = vmul.f32 %v12557, 1.442695
  %v12580 = vpow.pop %v12579
  %v12581 = vmul.f32 %v12558, 1.442695
  %v12582 = vpow.pop %v12581
  %v12583 = vsub.f32 %v12560, 1.0
  %v12584 = vsub.f32 %v12562, 1.0
  %v12585 = vsub.f32 %v12564, 1.0
  %v12586 = vsub.f32 %v12566, 1.0
  %v12587 = vsub.f32 %v12568, 1.0
  %v12588 = vsub.f32 %v12570, 1.0
  %v12589 = vsub.f32 %v12572, 1.0
  %v12590 = vsub.f32 %v12574, 1.0
  %v12591 = vsub.f32 %v12576, 1.0
  %v12592 = vsub.f32 %v12578, 1.0
  %v12593 = vsub.f32 %v12580, 1.0
  %v12594 = vsub.f32 %v12582, 1.0
  %v12595 = vsel %vm12535, %v12428, %v12583
  %v12596 = vsel %vm12536, %v12430, %v12584
  %v12597 = vsel %vm12537, %v12517, %v12585
  %v12598 = vsel %vm12538, %v12434, %v12586
  %v12599 = vsel %vm12539, %v12436, %v12587
  %v12600 = vsel %vm12540, %v12522, %v12588
  %v12601 = vsel %vm12541, %v12440, %v12589
  %v12602 = vsel %vm12542, %v12442, %v12590
  %v12603 = vsel %vm12543, %v12527, %v12591
  %v12604 = vsel %vm12544, %v12446, %v12592
  %v12605 = vsel %vm12545, %v12448, %v12593
  %v12606 = vsel %vm12546, %v12532, %v12594
  %v12607 = vpack.c.bf16 %v12598, %v12595
  %v12608 = vpack.c.bf16 %v12599, %v12596
  %v12609 = vpack.c.bf16 %v12600, %v12597
  %v12610 = vpack.c.bf16 %v12604, %v12601
  %v12611 = vpack.c.bf16 %v12605, %v12602
  %v12612 = vpack.c.bf16 %v12606, %v12603
  %v12613 = vld [vmem:[%s7] sm:$0xf]
  %v12614 = vld [vmem:[%s7 + $0x4] sm:$0xf]
  %v12615 = vld [vmem:[%s7 + $0x8] sm:$0xf]
  %v12616 = vld [vmem:[%s7 + $0xc] sm:$0xf]
  %v12617 = vld [vmem:[%s7 + $0x10] sm:$0xf]
  %v12618 = vld [vmem:[%s7 + $0x14] sm:$0xf]
  %v12619 = vld [vmem:[%s7 + $0x18] sm:$0xf]
  %v12620 = vld [vmem:[%s7 + $0x1c] sm:$0xf]
  %v12621 = vld [vmem:[%s7 + $0x20] sm:$0xf]
  %v12622 = vld [vmem:[%s7 + $0x24] sm:$0xf]
  %v12623 = vld [vmem:[%s7 + $0x28] sm:$0xf]
  %v12624 = vld [vmem:[%s7 + $0x2c] sm:$0xf]
  %v12625 = vld [vmem:[%s7 + $0x30] sm:$0xf]
  %v12626 = vld [vmem:[%s7 + $0x34] sm:$0xf]
  %v12627 = vld [vmem:[%s7 + $0x38] sm:$0xf]
  %v12628 = vld [vmem:[%s7 + $0x3c] sm:$0xf]
  %v12629 = vld [vmem:[%s7 + $0x40] sm:$0xf]
  %v12630 = vld [vmem:[%s7 + $0x44] sm:$0xf]
  %v12631 = vld [vmem:[%s7 + $0x48] sm:$0xf]
  %v12632 = vld [vmem:[%s7 + $0x4c] sm:$0xf]
  %v12633 = vld [vmem:[%s7 + $0x50] sm:$0xf]
  %v12634 = vld [vmem:[%s7 + $0x54] sm:$0xf]
  %v12635 = vld [vmem:[%s7 + $0x58] sm:$0xf]
  %v12636 = vld [vmem:[%s7 + $0x5c] sm:$0xf]
  %v12637 = vld [vmem:[%s7 + $0x60] sm:$0xf]
  %v12638 = vld [vmem:[%s7 + $0x64] sm:$0xf]
  %v12639 = vld [vmem:[%s7 + $0x68] sm:$0xf]
  %v12640 = vld [vmem:[%s7 + $0x6c] sm:$0xf]
  %v12641 = vld [vmem:[%s7 + $0x70] sm:$0xf]
  %v12642 = vld [vmem:[%s7 + $0x74] sm:$0xf]
  %v12643 = vld [vmem:[%s7 + $0x78] sm:$0xf]
  %v12644 = vld [vmem:[%s7 + $0x7c] sm:$0xf]
  %v12645 = vld [vmem:[%s7 + $0x80] sm:$0xf]
  %v12679 = vunpack.c.l.b16 %v12613
  %v12680 = vunpack.c.l.b16 %v12614
  %v12681 = vunpack.c.l.b16 %v12615
  %v12682 = vunpack.c.l.b16 %v12616
  %v12683 = vunpack.c.l.b16 %v12617
  %v12684 = vunpack.c.l.b16 %v12618
  %v12685 = vunpack.c.l.b16 %v12619
  %v12686 = vunpack.c.l.b16 %v12620
  %v12687 = vunpack.c.l.b16 %v12621
  %v12688 = vunpack.c.l.b16 %v12622
  %v12689 = vunpack.c.l.b16 %v12623
  %v12690 = vunpack.c.l.b16 %v12624
  %v12691 = vunpack.c.l.b16 %v12625
  %v12692 = vunpack.c.l.b16 %v12626
  %v12693 = vunpack.c.l.b16 %v12627
  %v12694 = vunpack.c.l.b16 %v12628
  %v12695 = vunpack.c.l.b16 %v12629
  %v12696 = vunpack.c.l.b16 %v12630
  %v12697 = vunpack.c.l.b16 %v12631
  %v12698 = vunpack.c.l.b16 %v12632
  %v12699 = vunpack.c.l.b16 %v12633
  %v12700 = vunpack.c.l.b16 %v12634
  %v12701 = vunpack.c.l.b16 %v12635
  %v12702 = vunpack.c.l.b16 %v12636
  %v12703 = vunpack.c.l.b16 %v12637
  %v12704 = vunpack.c.l.b16 %v12638
  %v12705 = vunpack.c.l.b16 %v12639
  %v12706 = vunpack.c.l.b16 %v12640
  %v12707 = vunpack.c.l.b16 %v12641
  %v12708 = vunpack.c.l.b16 %v12642
  %v12709 = vunpack.c.l.b16 %v12643
  %v12710 = vunpack.c.l.b16 %v12644
  %v12711 = vunpack.c.l.b16 %v12645
  %v12712 = vpack.c.b16 %v12680, %v12679
  %v12713 = vpack.c.b16 %v12682, %v12681
  %v12714 = vpack.c.b16 %v12684, %v12683
  %v12715 = vpack.c.b16 %v12686, %v12685
  %v12716 = vpack.c.b16 %v12688, %v12687
  %v12717 = vpack.c.b16 %v12690, %v12689
  %v12718 = vpack.c.b16 %v12692, %v12691
  %v12719 = vpack.c.b16 %v12694, %v12693
  %v12720 = vpack.c.b16 %v12696, %v12695
  %v12721 = vpack.c.b16 %v12698, %v12697
  %v12722 = vpack.c.b16 %v12700, %v12699
  %v12723 = vpack.c.b16 %v12702, %v12701
  %v12724 = vpack.c.b16 %v12704, %v12703
  %v12725 = vpack.c.b16 %v12706, %v12705
  %v12726 = vpack.c.b16 %v12708, %v12707
  %v12727 = vpack.c.b16 %v12710, %v12709
  %v12728 = vpack.c.b16 %v12711, %v12711
  %v12746 = vsel %vm6503, %v12609, 0
  %v12749 = vsel %vm6503, %v12612, 0
  %v12752 = vsel %vm6510, %v12728, 0
  %12754 = vmatprep.subr.bf16.mxu0 0
  %12755 = vmatpush1.bf16.msra.mxu0 %v12719
  %12756 = vmatprep.subr.bf16.mxu0 0
  %12757 = vmatpush1.bf16.msra.mxu0 %v12718
  %12758 = vmatprep.subr.bf16.mxu0 0
  %12759 = vmatpush1.bf16.msra.mxu0 %v12717
  %12760 = vmatprep.subr.bf16.mxu0 0
  %12761 = vmatpush1.bf16.msra.mxu0 %v12716
  %12762 = vmatprep.subr.bf16.mxu0 0
  %12763 = vmatpush1.bf16.msra.mxu0 %v12715
  %12764 = vmatprep.subr.bf16.mxu0 0
  %12765 = vmatpush1.bf16.msra.mxu0 %v12714
  %12766 = vmatprep.subr.bf16.mxu0 0
  %12767 = vmatpush1.bf16.msra.mxu0 %v12713
  %12768 = vmatprep.subr.bf16.mxu0 0
  %12769 = vmatpush1.bf16.msra.mxu0 %v12712
  %12770 = vmatprep.subr.bf16.mxu0 0
  %12771 = vmatpush2.bf16.msra.mxu0 %v12727
  %12772 = vmatprep.subr.bf16.mxu0 0
  %12773 = vmatpush2.bf16.msra.mxu0 %v12726
  %12774 = vmatprep.subr.bf16.mxu0 0
  %12775 = vmatpush2.bf16.msra.mxu0 %v12725
  %12776 = vmatprep.subr.bf16.mxu0 0
  %12777 = vmatpush2.bf16.msra.mxu0 %v12724
  %12778 = vmatprep.subr.bf16.mxu0 0
  %12779 = vmatpush2.bf16.msra.mxu0 %v12723
  %12780 = vmatprep.subr.bf16.mxu0 0
  %12781 = vmatpush2.bf16.msra.mxu0 %v12722
  %12782 = vmatprep.subr.bf16.mxu0 0
  %12783 = vmatpush2.bf16.msra.mxu0 %v12721
  %12784 = vmatprep.subr.bf16.mxu0 0
  %12785 = vmatpush2.bf16.msra.mxu0 %v12720
  %12786 = vmatprep.mubr.bf16.mxu0 %v12608
  %12787 = vmatmul.mubr.bf16.gmra.mxu0 %v12607
  %v12788 = vpop.f32.mrf.mxu0
  %v12789 = vadd.f32 0.0, %v12788
  %v12790 = vpop.f32.mrf.mxu0
  %v12791 = vpop.f32.mrf.mxu0
  %v12792 = vadd.f32 0.0, %v12791
  %v12793 = vpop.f32.mrf.mxu0
  %12794 = vmatprep.mubr.bf16.mxu0 %v12611
  %12795 = vmatmul.mubr.bf16.gmra.mxu0 %v12610
  %v12796 = vpop.f32.mrf.mxu0
  %v12797 = vadd.f32 0.0, %v12796
  %v12798 = vpop.f32.mrf.mxu0
  %v12799 = vpop.f32.mrf.mxu0
  %v12800 = vadd.f32 0.0, %v12799
  %v12801 = vpop.f32.mrf.mxu0
  %12802 = vdwg.mxu0
  %12803 = vmatprep.subr.bf16.mxu0 0
  %12804 = vmatpush1.bf16.msra.mxu0 0
  %12805 = vmatprep.subr.bf16.mxu0 0
  %12806 = vmatpush1.bf16.msra.mxu0 0
  %12807 = vmatprep.subr.bf16.mxu0 0
  %12808 = vmatpush1.bf16.msra.mxu0 0
  %12809 = vmatprep.subr.bf16.mxu0 0
  %12810 = vmatpush1.bf16.msra.mxu0 0
  %12811 = vmatprep.subr.bf16.mxu0 0
  %12812 = vmatpush1.bf16.msra.mxu0 0
  %12813 = vmatprep.subr.bf16.mxu0 0
  %12814 = vmatpush1.bf16.msra.mxu0 0
  %12815 = vmatprep.subr.bf16.mxu0 0
  %12816 = vmatpush1.bf16.msra.mxu0 0
  %12817 = vmatprep.subr.bf16.mxu0 0
  %12818 = vmatpush1.bf16.msra.mxu0 %v12752
  %12819 = vmatprep.subr.bf16.mxu0 0
  %12820 = vmatpush2.bf16.msra.mxu0 0
  %12821 = vmatprep.subr.bf16.mxu0 0
  %12822 = vmatpush2.bf16.msra.mxu0 0
  %12823 = vmatprep.subr.bf16.mxu0 0
  %12824 = vmatpush2.bf16.msra.mxu0 0
  %12825 = vmatprep.subr.bf16.mxu0 0
  %12826 = vmatpush2.bf16.msra.mxu0 0
  %12827 = vmatprep.subr.bf16.mxu0 0
  %12828 = vmatpush2.bf16.msra.mxu0 0
  %12829 = vmatprep.subr.bf16.mxu0 0
  %12830 = vmatpush2.bf16.msra.mxu0 0
  %12831 = vmatprep.subr.bf16.mxu0 0
  %12832 = vmatpush2.bf16.msra.mxu0 0
  %12833 = vmatprep.subr.bf16.mxu0 0
  %12834 = vmatpush2.bf16.msra.mxu0 0
  %12835 = vmatprep.mubr.bf16.mxu0 0
  %12836 = vmatmul.mubr.bf16.gmra.mxu0 %v12746
  %v12837 = vpop.f32.mrf.mxu0
  %v12838 = vadd.f32 %v12789, %v12837
  %v12839 = vpop.f32.mrf.mxu0
  %v12840 = vpop.f32.mrf.mxu0
  %v12841 = vadd.f32 %v12792, %v12840
  %v12842 = vpop.f32.mrf.mxu0
  %12843 = vmatprep.mubr.bf16.mxu0 0
  %12844 = vmatmul.mubr.bf16.gmra.mxu0 %v12749
  %v12845 = vpop.f32.mrf.mxu0
  %v12846 = vadd.f32 %v12797, %v12845
  %v12847 = vpop.f32.mrf.mxu0
  %v12848 = vpop.f32.mrf.mxu0
  %v12849 = vadd.f32 %v12800, %v12848
  %v12850 = vpop.f32.mrf.mxu0
  %12851 = vdwg.mxu0
  %s12852 = scalar_lea.vmem %s8, 32
  %12853 = vst.msk [vmem:[%s12852] sm:$0xff] %vm6612, %v12838
  %12854 = vst.msk [vmem:[%s12852 + $0x8] sm:$0xff] %vm6612, %v12841
  %12855 = vst.msk [vmem:[%s12852 + $0x10] sm:$0xff] %vm6612, %v12846
  %12856 = vst.msk [vmem:[%s12852 + $0x18] sm:$0xff] %vm6612, %v12849
  // Predicated region
  $region34: #{eegnet_with_dat_forward.2} parent=0 // pred_check
    _
  $region35: #{eegnet_with_dat_forward.2} parent=0 // pred_check_branch
    %12858 = sbr.rel (0) target = $region37
  $region36: #{eegnet_with_dat_forward.2} parent=0 // pred_region
    _
  $region37: #{eegnet_with_dat_forward.2} parent=0 // pred_fallthru
    _
  // Predicated region
  $region38: #{eegnet_with_dat_forward.2} parent=0 // pred_check
    _
  $region39: #{eegnet_with_dat_forward.2} parent=0 // pred_check_branch
    %12860 = sbr.rel (0) target = $region41
  $region40: #{eegnet_with_dat_forward.2} parent=0 // pred_region
    _
  $region41: #{eegnet_with_dat_forward.2} parent=0 // pred_fallthru
    _

</llo_original>
